<compile_context>
chip_gen: v5e
topology: v5e:2x2
jax: 0.10.0
libtpu: 0.0.40
codegen_flags: <defaults>
</compile_context>

<pallas_src>
import functools

import numpy as np

import jax
import jax.numpy as jnp
from jax.experimental import pallas as pl
from jax.experimental.pallas import tpu as pltpu

_BN_EPS = 1e-5


# -----------------------------------------------------------------------------
# Generation-aware VMEM budgeting.
# -----------------------------------------------------------------------------
def _vmem_limit_bytes():
    cap = 64 * 1024 * 1024                       # conservative (v7x per-TC) default
    try:
        info = pltpu.get_tpu_info()
        cap = int(getattr(info, "vmem_capacity_bytes", cap) or cap)
    except Exception:
        pass
    # ~96 MiB usable on 128-MiB parts (v5e/v6e), ~48 MiB on 64-MiB v7x.
    return int(min(cap * 3 // 4, 100 * 1024 * 1024))


def _pick_images_per_step(n, m_img, cin, planes, conv1_in_kernel, separate_xs,
                          has_proj, vmem_limit):
    """Largest divisor of n whose per-step working set fits the VMEM budget
    while keeping >= 2 grid steps (megacore / dual-TC friendliness)."""
    budget = int(vmem_limit * 0.6)
    w_bytes = 2 * (9 * cin * planes + 9 * planes * planes
                   + (cin * planes if has_proj else 0))

    def step_bytes(d):
        ms = d * m_img
        in_cols = cin if conv1_in_kernel else 9 * cin
        dma = 2 * ms * (2 * in_cols + 4 * planes + (2 * cin if separate_xs else 0))
        scratch = 2 * ms * (9 * planes + (9 * cin if conv1_in_kernel else 0))
        live = 3 * 4 * ms * planes
        return dma + scratch + live + 2 * w_bytes

    best = None
    for d in range(1, n + 1):
        if n % d:
            continue
        if n >= 2 and n // d < 2:        # keep at least 2 grid steps
            continue
        if (d * m_img) % 8:              # tiled block rows must be 8-aligned
            continue
        if step_bytes(d) <= budget:
            best = d                     # largest fitting divisor wins
    if best is None:
        best = 1 if (m_img % 8 == 0 or n == 1) else n
    return best


def _border_mask(ho, wo, imgs_per_step):
    """(9, imgs_per_step*ho*wo, 1) f32 multiplicative masks, tap-major
    (t = kh*3 + kw).  1.0 where the shifted source pixel lies inside the image,
    0.0 where it falls into the conv's zero padding (or a neighbouring image of
    a multi-image tile).  Computed host-side once per block shape."""
    pos = np.arange(ho * wo)
    hp, wp = pos // wo, pos % wo
    masks = np.empty((9, ho * wo), np.float32)
    for t in range(9):
        dh, dw = t // 3 - 1, t % 3 - 1
        ok = np.ones(ho * wo, bool)
        if dh:
            ok &= (hp + dh >= 0) & (hp + dh < ho)
        if dw:
            ok &= (wp + dw >= 0) & (wp + dw < wo)
        masks[t] = ok
    masks = np.tile(masks, (1, imgs_per_step))
    return jnp.asarray(masks[:, :, None], dtype=jnp.float32)


# -----------------------------------------------------------------------------
# In-kernel patch construction for a stride-1 "same" 3x3 conv.
# -----------------------------------------------------------------------------
def _fill_patches_3x3(patch_ref, y, tap_masks, wo):
    """Scatter the 9 shifted + masked taps into a (M, 9*C) bf16 VMEM scratch.

    y: (M, C) activation map, whole images flattened row-major
    (M = imgs_per_step * ho * wo).  Shifts are cyclic sublane rolls; tap_masks
    zero positions whose source pixel lies in the zero padding (or another
    image).  A single K = 9*C matmul then replaces 9 small per-tap dots."""
    m, c = y.shape
    # Rolls in f32 (packed bf16 sublane rotates are not reliably supported);
    # each tap is cast to bf16 exactly once, at the scratch store.
    y32 = y.astype(jnp.float32)
    for t in range(9):
        kh, kw = divmod(t, 3)
        shift = (kh - 1) * wo + (kw - 1)
        ys = pltpu.roll(y32, (-shift) % m, axis=0) if shift % m else y32
        if t != 4:                                   # centre tap: no border mask
            ys = ys * tap_masks[t]
        patch_ref[:, t * c:(t + 1) * c] = ys.astype(jnp.bfloat16)


# -----------------------------------------------------------------------------
# Fused BasicBlock kernel: conv1+bn1+relu -> conv2+bn2 -> (+shortcut) -> relu
# -----------------------------------------------------------------------------
def _basic_block_kernel(*refs, wo, conv1_in_kernel, separate_xs, has_proj):
    it = iter(refs)
    a_ref = next(it)        # (M, Cin) bf16 image, or (M, 9*Cin) bf16 patches
    mask_ref = next(it)     # (9, M, 1) f32 border masks
    w1_ref = next(it)       # (9*Cin, P) bf16, bn1 scale folded
    b1_ref = next(it)       # (1, P) f32
    w2_ref = next(it)       # (9*P, P) bf16, bn2 scale folded
    b2_ref = next(it)       # (1, P) f32
    xs_ref = next(it) if separate_xs else None        # (M, Cin) bf16 (stride-2)
    wsc_ref = next(it) if has_proj else None           # (Cin, P) bf16, scale folded
    bsc_ref = next(it) if has_proj else None           # (1, P) f32
    o_ref = next(it)        # (M, P) f32
    p1_ref = next(it) if conv1_in_kernel else None      # (M, 9*Cin) bf16 scratch
    p2_ref = next(it)                                   # (M, 9*P)  bf16 scratch

    # Hoisted once; shared by conv1 and conv2.
    tap_masks = [mask_ref[t] for t in range(9)]

    # ---- conv1 (bn1 scale folded into w1) + bias + relu --------------------
    if conv1_in_kernel:
        _fill_patches_3x3(p1_ref, a_ref[...], tap_masks, wo)
        p1 = p1_ref[...]
    else:
        p1 = a_ref[...]                    # stride-2: wrapper-built im2col patches
    h = jnp.dot(p1, w1_ref[...], preferred_element_type=jnp.float32)
    h = jnp.maximum(h + b1_ref[...], 0.0)

    # ---- conv2 (bn2 scale folded into w2) + bias ----------------------------
    _fill_patches_3x3(p2_ref, h, tap_masks, wo)
    h = jnp.dot(p2_ref[...], w2_ref[...], preferred_element_type=jnp.float32)
    h = h + b2_ref[...]

    # ---- shortcut (identity, or fused 1x1 conv with folded BN) --------------
    if has_proj:
        xs = xs_ref[...] if separate_xs else a_ref[...]
        sc = jnp.dot(xs, wsc_ref[...], preferred_element_type=jnp.float32)
        sc = sc + bsc_ref[...]
    else:
        sc = a_ref[...].astype(jnp.float32)

    o_ref[...] = jnp.maximum(h + sc, 0.0)


# -----------------------------------------------------------------------------
# Wrapper glue
# -----------------------------------------------------------------------------
def _im2col(x, ksize, stride, padding):
    """x: (N,H,W,C) -> patches (N*Ho*Wo, k*k*C), K ordered (kh, kw, c)."""
    n, h, w, c = x.shape
    xp = jnp.pad(x, ((0, 0), (padding, padding), (padding, padding), (0, 0)))
    ho = (h + 2 * padding - ksize) // stride + 1
    wo = (w + 2 * padding - ksize) // stride + 1
    cols = []
    for kh in range(ksize):
        for kw in range(ksize):
            cols.append(xp[:, kh:kh + stride * ho:stride,
                           kw:kw + stride * wo:stride, :])
    return jnp.concatenate(cols, axis=-1).reshape(n * ho * wo, ksize * ksize * c)


def basic_block_forward(params, x_nchw, *, cfg):
    """x_nchw: (N, in_planes, H, W) f32.  Returns (N, planes, Ho, Wo) f32."""
    stride, planes, has_proj = cfg["stride"], cfg["planes"], cfg["has_proj"]
    n, cin, h, w = x_nchw.shape
    ho = (h + 2 - 3) // stride + 1
    wo = (w + 2 - 3) // stride + 1
    m_img = ho * wo
    m = n * m_img

    conv1_in_kernel = (stride == 1)
    separate_xs = has_proj and not conv1_in_kernel

    vmem_limit = _vmem_limit_bytes()
    ips = _pick_images_per_step(n, m_img, cin, planes, conv1_in_kernel,
                                separate_xs, has_proj, vmem_limit)
    m_step = ips * m_img
    grid = (n // ips,)

    # Activations cross the kernel boundary in bf16 (MXU operand dtype anyway).
    x = jnp.transpose(x_nchw, (0, 2, 3, 1)).astype(jnp.bfloat16)    # NHWC bf16

    if conv1_in_kernel:
        a_in = x.reshape(m, cin)
        a_spec = pl.BlockSpec((m_step, cin), lambda b: (b, 0))
    else:
        a_in = _im2col(x, 3, stride, 1)                  # (m, 9*cin) bf16 patches
        a_spec = pl.BlockSpec((m_step, 9 * cin), lambda b: (b, 0))

    mask = _border_mask(ho, wo, ips)                     # (9, m_step, 1) f32
    bias_spec = pl.BlockSpec((1, planes), lambda b: (0, 0))

    args = [a_in, mask, params["k_w1"], params["k_b1"],
            params["k_w2"], params["k_b2"]]
    in_specs = [a_spec,
                pl.BlockSpec(mask.shape, lambda b: (0, 0, 0)),
                pl.BlockSpec(params["k_w1"].shape, lambda b: (0, 0)),
                bias_spec,
                pl.BlockSpec(params["k_w2"].shape, lambda b: (0, 0)),
                bias_spec]
    if separate_xs:
        xs = x[:, ::stride, ::stride, :].reshape(m, cin)
        args.append(xs)
        in_specs.append(pl.BlockSpec((m_step, cin), lambda b: (b, 0)))
    if has_proj:
        args += [params["k_wsc"], params["k_bsc"]]
        in_specs += [pl.BlockSpec(params["k_wsc"].shape, lambda b: (0, 0)),
                     bias_spec]

    scratch_shapes = []
    if conv1_in_kernel:
        scratch_shapes.append(pltpu.VMEM((m_step, 9 * cin), jnp.bfloat16))
    scratch_shapes.append(pltpu.VMEM((m_step, 9 * planes), jnp.bfloat16))

    kernel = functools.partial(_basic_block_kernel, wo=wo,
                               conv1_in_kernel=conv1_in_kernel,
                               separate_xs=separate_xs, has_proj=has_proj)

    out = pl.pallas_call(
        kernel,
        out_shape=jax.ShapeDtypeStruct((m, planes), jnp.float32),
        grid=grid,
        in_specs=in_specs,
        out_specs=pl.BlockSpec((m_step, planes), lambda b: (b, 0)),
        scratch_shapes=scratch_shapes,
        compiler_params=pltpu.CompilerParams(
            dimension_semantics=("parallel",),
            vmem_limit_bytes=vmem_limit,
        ),
    )(*args)

    out = out.reshape(n, ho, wo, planes)
    return jnp.transpose(out, (0, 3, 1, 2))              # back to NCHW


# -----------------------------------------------------------------------------
# Parameter construction (eval-mode BN folded; BN scale folded into bf16
# weights ONCE at init; im2col-layout (9*Cin, Cout) weights for single-dot).
# -----------------------------------------------------------------------------
def init_basic_block(key, in_planes, planes, stride):
    has_proj = (stride != 1) or (in_planes != planes)
    cfg = dict(in_planes=in_planes, planes=planes, stride=stride,
               has_proj=has_proj)
    keys = iter(jax.random.split(key, 32))

    def conv_w(cout, cin, k):
        fan_in = cin * k * k
        return jax.random.normal(next(keys), (cout, cin, k, k),
                                 jnp.float32) / jnp.sqrt(float(fan_in))

    def bn_fold(c):
        gamma = 1.0 + 0.1 * jax.random.normal(next(keys), (c,), jnp.float32)
        beta = 0.1 * jax.random.normal(next(keys), (c,), jnp.float32)
        r_mean = 0.1 * jax.random.normal(next(keys), (c,), jnp.float32)
        r_var = jax.random.uniform(next(keys), (c,), jnp.float32, 0.5, 1.5)
        scale = gamma / jnp.sqrt(r_var + _BN_EPS)
        bias = beta - r_mean * scale
        return scale, bias

    p = {}
    # Raw (PyTorch-layout) weights + folded BN kept for the pure-JAX reference.
    p["conv1_w"] = conv_w(planes, in_planes, 3)
    p["bn1_scale"], p["bn1_bias"] = bn_fold(planes)
    p["conv2_w"] = conv_w(planes, planes, 3)
    p["bn2_scale"], p["bn2_bias"] = bn_fold(planes)
    if has_proj:
        p["sc_w"] = conv_w(planes, in_planes, 1)
        p["sc_scale"], p["sc_bias"] = bn_fold(planes)

    def fold(w_pt, scale):   # (Cout,Cin,k,k) -> (k*k*Cin, Cout) bf16, scale folded
        cout, cin, k, _ = w_pt.shape
        wk = jnp.transpose(w_pt, (2, 3, 1, 0)).reshape(k * k * cin, cout)
        return (wk * scale[None, :]).astype(jnp.bfloat16)

    p["k_w1"] = fold(p["conv1_w"], p["bn1_scale"])
    p["k_b1"] = p["bn1_bias"].reshape(1, planes)
    p["k_w2"] = fold(p["conv2_w"], p["bn2_scale"])
    p["k_b2"] = p["bn2_bias"].reshape(1, planes)
    if has_proj:
        p["k_wsc"] = fold(p["sc_w"], p["sc_scale"])
        p["k_bsc"] = p["sc_bias"].reshape(1, planes)
    return cfg, p


# -----------------------------------------------------------------------------
# Pure-JAX (XLA conv) reference for sanity checking.
# -----------------------------------------------------------------------------
def _ref_conv(x_nhwc, w_pt, stride, padding):
    w_hwio = jnp.transpose(w_pt, (2, 3, 1, 0))
    return jax.lax.conv_general_dilated(
        x_nhwc, w_hwio, window_strides=(stride, stride),
        padding=[(padding, padding), (padding, padding)],
        dimension_numbers=("NHWC", "HWIO", "NHWC"))


def basic_block_reference(cfg, params, x_nchw):
    x = jnp.transpose(x_nchw, (0, 2, 3, 1)).astype(jnp.float32)
    s = cfg["stride"]
    out = _ref_conv(x, params["conv1_w"], s, 1)
    out = jax.nn.relu(out * params["bn1_scale"] + params["bn1_bias"])
    out = _ref_conv(out, params["conv2_w"], 1, 1)
    out = out * params["bn2_scale"] + params["bn2_bias"]
    if cfg["has_proj"]:
        sc = _ref_conv(x, params["sc_w"], s, 0)
        sc = sc * params["sc_scale"] + params["sc_bias"]
    else:
        sc = x
    out = jax.nn.relu(out + sc)
    return jnp.transpose(out, (0, 3, 1, 2))


# -----------------------------------------------------------------------------
if __name__ == "__main__":
    key = jax.random.PRNGKey(0)
    k_pa, k_pb, k_x = jax.random.split(key, 3)

    # Block A: stride=1, identity shortcut (fully fused, no im2col traffic).
    cfg_a, params_a = init_basic_block(k_pa, in_planes=64, planes=64, stride=1)
    # Block B: stride=2, channel expansion -> fused 1x1 projection shortcut.
    cfg_b, params_b = init_basic_block(k_pb, in_planes=64, planes=128, stride=2)

    x = jax.random.normal(k_x, (2, 64, 16, 16), jnp.float32)      # NCHW

    fwd_a = jax.jit(functools.partial(basic_block_forward, cfg=cfg_a))
    fwd_b = jax.jit(functools.partial(basic_block_forward, cfg=cfg_b))

    out_a = jax.block_until_ready(fwd_a(params_a, x))
    out_b = jax.block_until_ready(fwd_b(params_b, x))
    assert out_a.shape == (2, 64, 16, 16), out_a.shape
    assert out_b.shape == (2, 128, 8, 8), out_b.shape

    # Sanity check vs XLA reference (bf16 MXU operands -> loose tolerance).
    ref_a = basic_block_reference(cfg_a, params_a, x)
    ref_b = basic_block_reference(cfg_b, params_b, x)
    np.testing.assert_allclose(np.asarray(out_a), np.asarray(ref_a),
                               rtol=5e-2, atol=1e-1)
    np.testing.assert_allclose(np.asarray(out_b), np.asarray(ref_b),
                               rtol=5e-2, atol=1e-1)

    print("KERNEL_OK")
</pallas_src>

<mosaic_0001>
module attributes {stable_mosaic.version = 11 : i64} {
  func.func @_basic_block_kernel(%arg0: i32, %arg1: memref<256x64xbf16, #tpu.memory_space<vmem>>, %arg2: memref<9x256x1xf32, #tpu.memory_space<vmem>>, %arg3: memref<576x64xbf16, #tpu.memory_space<vmem>>, %arg4: memref<1x64xf32, #tpu.memory_space<vmem>>, %arg5: memref<576x64xbf16, #tpu.memory_space<vmem>>, %arg6: memref<1x64xf32, #tpu.memory_space<vmem>>, %arg7: memref<256x64xf32, #tpu.memory_space<vmem>>, %arg8: memref<256x576xbf16, #tpu.memory_space<vmem>>, %arg9: memref<256x576xbf16, #tpu.memory_space<vmem>>) attributes {dimension_semantics = [#tpu.dimension_semantics<parallel>], iteration_bounds = array<i64: 2>, scalar_prefetch = 0 : i64, scratch_operands = 2 : i64, tpu.core_type = #tpu.core_type<tc>, window_params = [{transform_indices = @transform_0, window_bounds = array<i64: 256, 64>}, {pipeline_mode = #tpu.pipeline_mode<synchronous>, transform_indices = @transform_1, window_bounds = array<i64: 9, 256, 1>}, {pipeline_mode = #tpu.pipeline_mode<synchronous>, transform_indices = @transform_2, window_bounds = array<i64: 576, 64>}, {pipeline_mode = #tpu.pipeline_mode<synchronous>, transform_indices = @transform_3, window_bounds = array<i64: 1, 64>}, {pipeline_mode = #tpu.pipeline_mode<synchronous>, transform_indices = @transform_4, window_bounds = array<i64: 576, 64>}, {pipeline_mode = #tpu.pipeline_mode<synchronous>, transform_indices = @transform_5, window_bounds = array<i64: 1, 64>}, {transform_indices = @transform_6, window_bounds = array<i64: 256, 64>}]} {
    %c0 = arith.constant 0 : index
    %c0_0 = arith.constant 0 : index
    %c0_1 = arith.constant 0 : index
    %0 = vector.load %arg2[%c0, %c0_0, %c0_1] : memref<9x256x1xf32, #tpu.memory_space<vmem>>, vector<1x256x1xf32>
    %1 = vector.shape_cast %0 : vector<1x256x1xf32> to vector<256x1xf32>
    %c1 = arith.constant 1 : index
    %c0_2 = arith.constant 0 : index
    %c0_3 = arith.constant 0 : index
    %2 = vector.load %arg2[%c1, %c0_2, %c0_3] : memref<9x256x1xf32, #tpu.memory_space<vmem>>, vector<1x256x1xf32>
    %3 = vector.shape_cast %2 : vector<1x256x1xf32> to vector<256x1xf32>
    %c2 = arith.constant 2 : index
    %c0_4 = arith.constant 0 : index
    %c0_5 = arith.constant 0 : index
    %4 = vector.load %arg2[%c2, %c0_4, %c0_5] : memref<9x256x1xf32, #tpu.memory_space<vmem>>, vector<1x256x1xf32>
    %5 = vector.shape_cast %4 : vector<1x256x1xf32> to vector<256x1xf32>
    %c3 = arith.constant 3 : index
    %c0_6 = arith.constant 0 : index
    %c0_7 = arith.constant 0 : index
    %6 = vector.load %arg2[%c3, %c0_6, %c0_7] : memref<9x256x1xf32, #tpu.memory_space<vmem>>, vector<1x256x1xf32>
    %7 = vector.shape_cast %6 : vector<1x256x1xf32> to vector<256x1xf32>
    %c5 = arith.constant 5 : index
    %c0_8 = arith.constant 0 : index
    %c0_9 = arith.constant 0 : index
    %8 = vector.load %arg2[%c5, %c0_8, %c0_9] : memref<9x256x1xf32, #tpu.memory_space<vmem>>, vector<1x256x1xf32>
    %9 = vector.shape_cast %8 : vector<1x256x1xf32> to vector<256x1xf32>
    %c6 = arith.constant 6 : index
    %c0_10 = arith.constant 0 : index
    %c0_11 = arith.constant 0 : index
    %10 = vector.load %arg2[%c6, %c0_10, %c0_11] : memref<9x256x1xf32, #tpu.memory_space<vmem>>, vector<1x256x1xf32>
    %11 = vector.shape_cast %10 : vector<1x256x1xf32> to vector<256x1xf32>
    %c7 = arith.constant 7 : index
    %c0_12 = arith.constant 0 : index
    %c0_13 = arith.constant 0 : index
    %12 = vector.load %arg2[%c7, %c0_12, %c0_13] : memref<9x256x1xf32, #tpu.memory_space<vmem>>, vector<1x256x1xf32>
    %13 = vector.shape_cast %12 : vector<1x256x1xf32> to vector<256x1xf32>
    %c8 = arith.constant 8 : index
    %c0_14 = arith.constant 0 : index
    %c0_15 = arith.constant 0 : index
    %14 = vector.load %arg2[%c8, %c0_14, %c0_15] : memref<9x256x1xf32, #tpu.memory_space<vmem>>, vector<1x256x1xf32>
    %15 = vector.shape_cast %14 : vector<1x256x1xf32> to vector<256x1xf32>
    %c0_16 = arith.constant 0 : index
    %c0_17 = arith.constant 0 : index
    %16 = vector.load %arg1[%c0_16, %c0_17] : memref<256x64xbf16, #tpu.memory_space<vmem>>, vector<256x64xbf16>
    %17 = arith.extf %16 : vector<256x64xbf16> to vector<256x64xf32>
    %c17_i32 = arith.constant 17 : i32
    %18 = tpu.dynamic_rotate %17 by %c17_i32 dim 0 : vector<256x64xf32>, i32 -> vector<256x64xf32>
    %19 = vector.broadcast %1 : vector<256x1xf32> to vector<256x64xf32>
    %20 = arith.mulf %18, %19 : vector<256x64xf32>
    %21 = arith.truncf %20 : vector<256x64xf32> to vector<256x64xbf16>
    %c0_18 = arith.constant 0 : index
    %c0_19 = arith.constant 0 : index
    %22 = vector.load %arg8[%c0_18, %c0_19] : memref<256x576xbf16, #tpu.memory_space<vmem>>, vector<256x64xbf16>
    tpu.vector_store %arg8[%c0_18, %c0_19], %21 {strides = array<i32>} : memref<256x576xbf16, #tpu.memory_space<vmem>>, vector<256x64xbf16>,
    %c16_i32 = arith.constant 16 : i32
    %23 = tpu.dynamic_rotate %17 by %c16_i32 dim 0 : vector<256x64xf32>, i32 -> vector<256x64xf32>
    %24 = vector.broadcast %3 : vector<256x1xf32> to vector<256x64xf32>
    %25 = arith.mulf %23, %24 : vector<256x64xf32>
    %26 = arith.truncf %25 : vector<256x64xf32> to vector<256x64xbf16>
    %c0_20 = arith.constant 0 : index
    %c64 = arith.constant 64 : index
    %27 = vector.load %arg8[%c0_20, %c64] : memref<256x576xbf16, #tpu.memory_space<vmem>>, vector<256x64xbf16>
    tpu.vector_store %arg8[%c0_20, %c64], %26 {strides = array<i32>} : memref<256x576xbf16, #tpu.memory_space<vmem>>, vector<256x64xbf16>,
    %c15_i32 = arith.constant 15 : i32
    %28 = tpu.dynamic_rotate %17 by %c15_i32 dim 0 : vector<256x64xf32>, i32 -> vector<256x64xf32>
    %29 = vector.broadcast %5 : vector<256x1xf32> to vector<256x64xf32>
    %30 = arith.mulf %28, %29 : vector<256x64xf32>
    %31 = arith.truncf %30 : vector<256x64xf32> to vector<256x64xbf16>
    %c0_21 = arith.constant 0 : index
    %c128 = arith.constant 128 : index
    %32 = vector.load %arg8[%c0_21, %c128] : memref<256x576xbf16, #tpu.memory_space<vmem>>, vector<256x64xbf16>
    tpu.vector_store %arg8[%c0_21, %c128], %31 {strides = array<i32>} : memref<256x576xbf16, #tpu.memory_space<vmem>>, vector<256x64xbf16>,
    %c1_i32 = arith.constant 1 : i32
    %33 = tpu.dynamic_rotate %17 by %c1_i32 dim 0 : vector<256x64xf32>, i32 -> vector<256x64xf32>
    %34 = vector.broadcast %7 : vector<256x1xf32> to vector<256x64xf32>
    %35 = arith.mulf %33, %34 : vector<256x64xf32>
    %36 = arith.truncf %35 : vector<256x64xf32> to vector<256x64xbf16>
    %c0_22 = arith.constant 0 : index
    %c192 = arith.constant 192 : index
    %37 = vector.load %arg8[%c0_22, %c192] : memref<256x576xbf16, #tpu.memory_space<vmem>>, vector<256x64xbf16>
    tpu.vector_store %arg8[%c0_22, %c192], %36 {strides = array<i32>} : memref<256x576xbf16, #tpu.memory_space<vmem>>, vector<256x64xbf16>,
    %38 = arith.truncf %17 : vector<256x64xf32> to vector<256x64xbf16>
    %c0_23 = arith.constant 0 : index
    %c256 = arith.constant 256 : index
    %39 = vector.load %arg8[%c0_23, %c256] : memref<256x576xbf16, #tpu.memory_space<vmem>>, vector<256x64xbf16>
    tpu.vector_store %arg8[%c0_23, %c256], %38 {strides = array<i32>} : memref<256x576xbf16, #tpu.memory_space<vmem>>, vector<256x64xbf16>,
    %c255_i32 = arith.constant 255 : i32
    %40 = tpu.dynamic_rotate %17 by %c255_i32 dim 0 : vector<256x64xf32>, i32 -> vector<256x64xf32>
    %41 = vector.broadcast %9 : vector<256x1xf32> to vector<256x64xf32>
    %42 = arith.mulf %40, %41 : vector<256x64xf32>
    %43 = arith.truncf %42 : vector<256x64xf32> to vector<256x64xbf16>
    %c0_24 = arith.constant 0 : index
    %c320 = arith.constant 320 : index
    %44 = vector.load %arg8[%c0_24, %c320] : memref<256x576xbf16, #tpu.memory_space<vmem>>, vector<256x64xbf16>
    tpu.vector_store %arg8[%c0_24, %c320], %43 {strides = array<i32>} : memref<256x576xbf16, #tpu.memory_space<vmem>>, vector<256x64xbf16>,
    %c241_i32 = arith.constant 241 : i32
    %45 = tpu.dynamic_rotate %17 by %c241_i32 dim 0 : vector<256x64xf32>, i32 -> vector<256x64xf32>
    %46 = vector.broadcast %11 : vector<256x1xf32> to vector<256x64xf32>
    %47 = arith.mulf %45, %46 : vector<256x64xf32>
    %48 = arith.truncf %47 : vector<256x64xf32> to vector<256x64xbf16>
    %c0_25 = arith.constant 0 : index
    %c384 = arith.constant 384 : index
    %49 = vector.load %arg8[%c0_25, %c384] : memref<256x576xbf16, #tpu.memory_space<vmem>>, vector<256x64xbf16>
    tpu.vector_store %arg8[%c0_25, %c384], %48 {strides = array<i32>} : memref<256x576xbf16, #tpu.memory_space<vmem>>, vector<256x64xbf16>,
    %c240_i32 = arith.constant 240 : i32
    %50 = tpu.dynamic_rotate %17 by %c240_i32 dim 0 : vector<256x64xf32>, i32 -> vector<256x64xf32>
    %51 = vector.broadcast %13 : vector<256x1xf32> to vector<256x64xf32>
    %52 = arith.mulf %50, %51 : vector<256x64xf32>
    %53 = arith.truncf %52 : vector<256x64xf32> to vector<256x64xbf16>
    %c0_26 = arith.constant 0 : index
    %c448 = arith.constant 448 : index
    %54 = vector.load %arg8[%c0_26, %c448] : memref<256x576xbf16, #tpu.memory_space<vmem>>, vector<256x64xbf16>
    tpu.vector_store %arg8[%c0_26, %c448], %53 {strides = array<i32>} : memref<256x576xbf16, #tpu.memory_space<vmem>>, vector<256x64xbf16>,
    %c239_i32 = arith.constant 239 : i32
    %55 = tpu.dynamic_rotate %17 by %c239_i32 dim 0 : vector<256x64xf32>, i32 -> vector<256x64xf32>
    %56 = vector.broadcast %15 : vector<256x1xf32> to vector<256x64xf32>
    %57 = arith.mulf %55, %56 : vector<256x64xf32>
    %58 = arith.truncf %57 : vector<256x64xf32> to vector<256x64xbf16>
    %c0_27 = arith.constant 0 : index
    %c512 = arith.constant 512 : index
    %59 = vector.load %arg8[%c0_27, %c512] : memref<256x576xbf16, #tpu.memory_space<vmem>>, vector<256x64xbf16>
    tpu.vector_store %arg8[%c0_27, %c512], %58 {strides = array<i32>} : memref<256x576xbf16, #tpu.memory_space<vmem>>, vector<256x64xbf16>,
    %c0_28 = arith.constant 0 : index
    %c0_29 = arith.constant 0 : index
    %60 = vector.load %arg8[%c0_28, %c0_29] : memref<256x576xbf16, #tpu.memory_space<vmem>>, vector<256x576xbf16>
    %c0_30 = arith.constant 0 : index
    %c0_31 = arith.constant 0 : index
    %61 = vector.load %arg3[%c0_30, %c0_31] : memref<576x64xbf16, #tpu.memory_space<vmem>>, vector<576x64xbf16>
    %cst = arith.constant dense<0.000000e+00> : vector<256x64xf32>
    %62 = tpu.matmul %60, %61, %cst {dimension_numbers = #tpu.dot_dimension_numbers<[1], [0], [0], [1], [0, 0, 1, 1], [], []>} : vector<256x576xbf16>, vector<576x64xbf16>, vector<256x64xf32> -> vector<256x64xf32>
    %c0_32 = arith.constant 0 : index
    %c0_33 = arith.constant 0 : index
    %63 = vector.load %arg4[%c0_32, %c0_33] : memref<1x64xf32, #tpu.memory_space<vmem>>, vector<1x64xf32>
    %64 = vector.broadcast %63 : vector<1x64xf32> to vector<256x64xf32>
    %65 = arith.addf %62, %64 : vector<256x64xf32>
    %cst_34 = arith.constant 0.000000e+00 : f32
    %66 = vector.broadcast %cst_34 : f32 to vector<256x64xf32>
    %67 = arith.maximumf %65, %66 : vector<256x64xf32>
    %c17_i32_35 = arith.constant 17 : i32
    %68 = tpu.dynamic_rotate %67 by %c17_i32_35 dim 0 : vector<256x64xf32>, i32 -> vector<256x64xf32>
    %69 = vector.broadcast %1 : vector<256x1xf32> to vector<256x64xf32>
    %70 = arith.mulf %68, %69 : vector<256x64xf32>
    %71 = arith.truncf %70 : vector<256x64xf32> to vector<256x64xbf16>
    %c0_36 = arith.constant 0 : index
    %c0_37 = arith.constant 0 : index
    %72 = vector.load %arg9[%c0_36, %c0_37] : memref<256x576xbf16, #tpu.memory_space<vmem>>, vector<256x64xbf16>
    tpu.vector_store %arg9[%c0_36, %c0_37], %71 {strides = array<i32>} : memref<256x576xbf16, #tpu.memory_space<vmem>>, vector<256x64xbf16>,
    %c16_i32_38 = arith.constant 16 : i32
    %73 = tpu.dynamic_rotate %67 by %c16_i32_38 dim 0 : vector<256x64xf32>, i32 -> vector<256x64xf32>
    %74 = vector.broadcast %3 : vector<256x1xf32> to vector<256x64xf32>
    %75 = arith.mulf %73, %74 : vector<256x64xf32>
    %76 = arith.truncf %75 : vector<256x64xf32> to vector<256x64xbf16>
    %c0_39 = arith.constant 0 : index
    %c64_40 = arith.constant 64 : index
    %77 = vector.load %arg9[%c0_39, %c64_40] : memref<256x576xbf16, #tpu.memory_space<vmem>>, vector<256x64xbf16>
    tpu.vector_store %arg9[%c0_39, %c64_40], %76 {strides = array<i32>} : memref<256x576xbf16, #tpu.memory_space<vmem>>, vector<256x64xbf16>,
    %c15_i32_41 = arith.constant 15 : i32
    %78 = tpu.dynamic_rotate %67 by %c15_i32_41 dim 0 : vector<256x64xf32>, i32 -> vector<256x64xf32>
    %79 = vector.broadcast %5 : vector<256x1xf32> to vector<256x64xf32>
    %80 = arith.mulf %78, %79 : vector<256x64xf32>
    %81 = arith.truncf %80 : vector<256x64xf32> to vector<256x64xbf16>
    %c0_42 = arith.constant 0 : index
    %c128_43 = arith.constant 128 : index
    %82 = vector.load %arg9[%c0_42, %c128_43] : memref<256x576xbf16, #tpu.memory_space<vmem>>, vector<256x64xbf16>
    tpu.vector_store %arg9[%c0_42, %c128_43], %81 {strides = array<i32>} : memref<256x576xbf16, #tpu.memory_space<vmem>>, vector<256x64xbf16>,
    %c1_i32_44 = arith.constant 1 : i32
    %83 = tpu.dynamic_rotate %67 by %c1_i32_44 dim 0 : vector<256x64xf32>, i32 -> vector<256x64xf32>
    %84 = vector.broadcast %7 : vector<256x1xf32> to vector<256x64xf32>
    %85 = arith.mulf %83, %84 : vector<256x64xf32>
    %86 = arith.truncf %85 : vector<256x64xf32> to vector<256x64xbf16>
    %c0_45 = arith.constant 0 : index
    %c192_46 = arith.constant 192 : index
    %87 = vector.load %arg9[%c0_45, %c192_46] : memref<256x576xbf16, #tpu.memory_space<vmem>>, vector<256x64xbf16>
    tpu.vector_store %arg9[%c0_45, %c192_46], %86 {strides = array<i32>} : memref<256x576xbf16, #tpu.memory_space<vmem>>, vector<256x64xbf16>,
    %88 = arith.truncf %67 : vector<256x64xf32> to vector<256x64xbf16>
    %c0_47 = arith.constant 0 : index
    %c256_48 = arith.constant 256 : index
    %89 = vector.load %arg9[%c0_47, %c256_48] : memref<256x576xbf16, #tpu.memory_space<vmem>>, vector<256x64xbf16>
    tpu.vector_store %arg9[%c0_47, %c256_48], %88 {strides = array<i32>} : memref<256x576xbf16, #tpu.memory_space<vmem>>, vector<256x64xbf16>,
    %c255_i32_49 = arith.constant 255 : i32
    %90 = tpu.dynamic_rotate %67 by %c255_i32_49 dim 0 : vector<256x64xf32>, i32 -> vector<256x64xf32>
    %91 = vector.broadcast %9 : vector<256x1xf32> to vector<256x64xf32>
    %92 = arith.mulf %90, %91 : vector<256x64xf32>
    %93 = arith.truncf %92 : vector<256x64xf32> to vector<256x64xbf16>
    %c0_50 = arith.constant 0 : index
    %c320_51 = arith.constant 320 : index
    %94 = vector.load %arg9[%c0_50, %c320_51] : memref<256x576xbf16, #tpu.memory_space<vmem>>, vector<256x64xbf16>
    tpu.vector_store %arg9[%c0_50, %c320_51], %93 {strides = array<i32>} : memref<256x576xbf16, #tpu.memory_space<vmem>>, vector<256x64xbf16>,
    %c241_i32_52 = arith.constant 241 : i32
    %95 = tpu.dynamic_rotate %67 by %c241_i32_52 dim 0 : vector<256x64xf32>, i32 -> vector<256x64xf32>
    %96 = vector.broadcast %11 : vector<256x1xf32> to vector<256x64xf32>
    %97 = arith.mulf %95, %96 : vector<256x64xf32>
    %98 = arith.truncf %97 : vector<256x64xf32> to vector<256x64xbf16>
    %c0_53 = arith.constant 0 : index
    %c384_54 = arith.constant 384 : index
    %99 = vector.load %arg9[%c0_53, %c384_54] : memref<256x576xbf16, #tpu.memory_space<vmem>>, vector<256x64xbf16>
    tpu.vector_store %arg9[%c0_53, %c384_54], %98 {strides = array<i32>} : memref<256x576xbf16, #tpu.memory_space<vmem>>, vector<256x64xbf16>,
    %c240_i32_55 = arith.constant 240 : i32
    %100 = tpu.dynamic_rotate %67 by %c240_i32_55 dim 0 : vector<256x64xf32>, i32 -> vector<256x64xf32>
    %101 = vector.broadcast %13 : vector<256x1xf32> to vector<256x64xf32>
    %102 = arith.mulf %100, %101 : vector<256x64xf32>
    %103 = arith.truncf %102 : vector<256x64xf32> to vector<256x64xbf16>
    %c0_56 = arith.constant 0 : index
    %c448_57 = arith.constant 448 : index
    %104 = vector.load %arg9[%c0_56, %c448_57] : memref<256x576xbf16, #tpu.memory_space<vmem>>, vector<256x64xbf16>
    tpu.vector_store %arg9[%c0_56, %c448_57], %103 {strides = array<i32>} : memref<256x576xbf16, #tpu.memory_space<vmem>>, vector<256x64xbf16>,
    %c239_i32_58 = arith.constant 239 : i32
    %105 = tpu.dynamic_rotate %67 by %c239_i32_58 dim 0 : vector<256x64xf32>, i32 -> vector<256x64xf32>
    %106 = vector.broadcast %15 : vector<256x1xf32> to vector<256x64xf32>
    %107 = arith.mulf %105, %106 : vector<256x64xf32>
    %108 = arith.truncf %107 : vector<256x64xf32> to vector<256x64xbf16>
    %c0_59 = arith.constant 0 : index
    %c512_60 = arith.constant 512 : index
    %109 = vector.load %arg9[%c0_59, %c512_60] : memref<256x576xbf16, #tpu.memory_space<vmem>>, vector<256x64xbf16>
    tpu.vector_store %arg9[%c0_59, %c512_60], %108 {strides = array<i32>} : memref<256x576xbf16, #tpu.memory_space<vmem>>, vector<256x64xbf16>,
    %c0_61 = arith.constant 0 : index
    %c0_62 = arith.constant 0 : index
    %110 = vector.load %arg9[%c0_61, %c0_62] : memref<256x576xbf16, #tpu.memory_space<vmem>>, vector<256x576xbf16>
    %c0_63 = arith.constant 0 : index
    %c0_64 = arith.constant 0 : index
    %111 = vector.load %arg5[%c0_63, %c0_64] : memref<576x64xbf16, #tpu.memory_space<vmem>>, vector<576x64xbf16>
    %cst_65 = arith.constant dense<0.000000e+00> : vector<256x64xf32>
    %112 = tpu.matmul %110, %111, %cst_65 {dimension_numbers = #tpu.dot_dimension_numbers<[1], [0], [0], [1], [0, 0, 1, 1], [], []>} : vector<256x576xbf16>, vector<576x64xbf16>, vector<256x64xf32> -> vector<256x64xf32>
    %c0_66 = arith.constant 0 : index
    %c0_67 = arith.constant 0 : index
    %113 = vector.load %arg6[%c0_66, %c0_67] : memref<1x64xf32, #tpu.memory_space<vmem>>, vector<1x64xf32>
    %114 = vector.broadcast %113 : vector<1x64xf32> to vector<256x64xf32>
    %115 = arith.addf %112, %114 : vector<256x64xf32>
    %c0_68 = arith.constant 0 : index
    %c0_69 = arith.constant 0 : index
    %116 = vector.load %arg1[%c0_68, %c0_69] : memref<256x64xbf16, #tpu.memory_space<vmem>>, vector<256x64xbf16>
    %117 = arith.extf %116 : vector<256x64xbf16> to vector<256x64xf32>
    %118 = arith.addf %115, %117 : vector<256x64xf32>
    %cst_70 = arith.constant 0.000000e+00 : f32
    %119 = vector.broadcast %cst_70 : f32 to vector<256x64xf32>
    %120 = arith.maximumf %118, %119 : vector<256x64xf32>
    %c0_71 = arith.constant 0 : index
    %c0_72 = arith.constant 0 : index
    %121 = vector.load %arg7[%c0_71, %c0_72] : memref<256x64xf32, #tpu.memory_space<vmem>>, vector<256x64xf32>
    tpu.vector_store %arg7[%c0_71, %c0_72], %120 {strides = array<i32>} : memref<256x64xf32, #tpu.memory_space<vmem>>, vector<256x64xf32>,
    return
  }
  func.func @transform_0(%arg0: i32) -> (i32, i32) {
    %c0_i32 = arith.constant 0 : i32
    %c0_i32_0 = arith.constant 0 : i32
    return %arg0, %c0_i32 : i32, i32
  }
  func.func @transform_1(%arg0: i32) -> (i32, i32, i32) {
    %c0_i32 = arith.constant 0 : i32
    %c0_i32_0 = arith.constant 0 : i32
    %c0_i32_1 = arith.constant 0 : i32
    %c0_i32_2 = arith.constant 0 : i32
    return %c0_i32, %c0_i32_0, %c0_i32_1 : i32, i32, i32
  }
  func.func @transform_2(%arg0: i32) -> (i32, i32) {
    %c0_i32 = arith.constant 0 : i32
    %c0_i32_0 = arith.constant 0 : i32
    %c0_i32_1 = arith.constant 0 : i32
    return %c0_i32, %c0_i32_0 : i32, i32
  }
  func.func @transform_3(%arg0: i32) -> (i32, i32) {
    %c0_i32 = arith.constant 0 : i32
    %c0_i32_0 = arith.constant 0 : i32
    %c0_i32_1 = arith.constant 0 : i32
    return %c0_i32, %c0_i32_0 : i32, i32
  }
  func.func @transform_4(%arg0: i32) -> (i32, i32) {
    %c0_i32 = arith.constant 0 : i32
    %c0_i32_0 = arith.constant 0 : i32
    %c0_i32_1 = arith.constant 0 : i32
    return %c0_i32, %c0_i32_0 : i32, i32
  }
  func.func @transform_5(%arg0: i32) -> (i32, i32) {
    %c0_i32 = arith.constant 0 : i32
    %c0_i32_0 = arith.constant 0 : i32
    %c0_i32_1 = arith.constant 0 : i32
    return %c0_i32, %c0_i32_0 : i32, i32
  }
  func.func @transform_6(%arg0: i32) -> (i32, i32) {
    %c0_i32 = arith.constant 0 : i32
    %c0_i32_0 = arith.constant 0 : i32
    return %arg0, %c0_i32 : i32, i32
  }
}

</mosaic_0001>

<llo_original>
// kernel: basic_block_forward.1
$region0: #{basic_block_forward.1}
  #allocation0 [shape = 'u32[]', space=smem, size = 0x4, offset = 0x4, fixed_abs, tag = 'smem constant byte address 0x4 - core index']
  #allocation1 [shape = 'u32[72,128]{1,0:T(1,128)}', space=vmem, size = 0x9000, scoped, tag = 'internal scratch']
  #allocation2 [shape = 'bf16[256,576]{1,0:T(8,128)(2,1)}', space=vmem, size = 0x50000, scoped, tag = 'scratch operand']
  #allocation3 [shape = 'bf16[256,576]{1,0:T(8,128)(2,1)}', space=vmem, size = 0x50000, scoped, tag = 'scratch operand']
  %s0 = inlined_call_operand.vmem [shape: bf16[512,64], index: 0, kind: input, shape index: {}]
  %s1 = inlined_call_operand.hbm [shape: f32[9,256,1], index: 1, kind: input, shape index: {}]
  %s2 = inlined_call_operand.vmem [shape: bf16[576,64], index: 2, kind: input, shape index: {}]
  %s3 = inlined_call_operand.hbm [shape: f32[1,64], index: 3, kind: input, shape index: {}]
  %s4 = inlined_call_operand.vmem [shape: bf16[576,64], index: 4, kind: input, shape index: {}]
  %s5 = inlined_call_operand.hbm [shape: f32[1,64], index: 5, kind: input, shape index: {}]
  %s6 = inlined_call_operand.hbm [shape: f32[512,64], index: 6, kind: output, shape index: {}]
  %s7 = sld [smem:[#allocation0]]
  $region69: #{basic_block_forward.1} parent=0
    _
  %s9 = ssub.s32 1, %s7
  %s10 = scalar_select 0, %s9, %s7
  $region1: #{basic_block_forward.1} parent=0
    #allocation4 [shape = 'u8[1179648]{0}', space=vmem, size = 0x120000, scoped, tag = 'input window, operand 1, single buffered']
    #allocation5 [shape = 's32[2]{0}', space=sflag, size = 0x8, scoped, tag = 'scoped memory for basic_block_forward.1']
    #allocation6 [shape = 's32[2]{0}', space=sflag, size = 0x8, scoped, tag = 'scoped memory for basic_block_forward.1']
    #allocation7 [shape = 'u8[512]{0}', space=vmem, size = 0x400, scoped, tag = 'input window, operand 3, single buffered']
    #allocation8 [shape = 's32[1]{0}', space=sflag, size = 0x4, scoped, tag = 'scoped memory for basic_block_forward.1']
    #allocation9 [shape = 'u8[512]{0}', space=vmem, size = 0x400, scoped, tag = 'input window, operand 5, single buffered']
    #allocation10 [shape = 'u8[262144]{0}', space=vmem, size = 0x40000, scoped, tag = 'output window, operand 0']
    %11 = vsyncpa [#allocation5], 0
    %12 = vsyncpa [#allocation8], 0
    %13 = vsyncpa [#allocation6], 0
    %s14 = scalar_lea.sflag [#allocation6], 1
    %15 = vsyncpa %s14, 0
    loop: start=0, step=1, limit=4
    $region2: #{basic_block_forward.1} parent=1 // loop_pre_header
      _
    $region3: #{basic_block_forward.1} parent=1 // loop_header
      %s17 = sphi 0, %s21
      %p18 = scmp.ge.s32.totalorder %s17, 4
      %s27 = sphi 0, %s29
      %s30 = sphi 0, %s27
      %s31 = sphi 0, %s30
      %s47 = sphi 0, %s31
      %s51 = sphi 0, %s51
      %s53 = sphi 0, %s51
      %s54 = sphi 0, %s53
      %s68 = sphi 0, %s54
      %s72 = sphi 0, %s72
      %s74 = sphi 0, %s72
      %s75 = sphi 0, %s74
      %s89 = sphi 0, %s75
      %s93 = sphi 0, %s93
      %s95 = sphi 0, %s93
      %s96 = sphi 0, %s95
      %s110 = sphi 0, %s96
      %s114 = sphi 0, %s114
      %s116 = sphi 0, %s114
      %s117 = sphi 0, %s116
      %s131 = sphi 0, %s117
      %s135 = sphi 0, %s135
      %s137 = sphi 0, %s135
      %s138 = sphi 0, %s137
      %s152 = sphi 0, %s138
      %s158 = sphi 0, %s160
      %s161 = sphi 0, %s158
      %s162 = sphi 0, %s161
      %s178 = sphi 0, %s162
    $region4: #{basic_block_forward.1} parent=1 // loop_header_branch
      %20 = sbr.rel (%p18) target = $region8
    $region5: #{basic_block_forward.1} parent=1 // loop_body
      %s22 = ssub.s32 %s17, 1
      %s23 = ssub.s32 %s17, 2
      %s24 = sadd.s32 %s17, 1
      %s25 = ssub.s32 %s17, %s24
      %p26 = scmp.eq.s32.totalorder %s25, 0
      %s28 = sadd.s32 %s27, 1
      %s29 = scalar_select %p26, %s27, %s28
      %p32 = pneg %p26
      %p33 = scmp.eq.s32.totalorder %s17, 1
      %p34 = por %p32, %p33
      %p35 = scmp.ne.s32.totalorder %s27, %s30
      %p36 = scmp.eq.s32.totalorder %s17, 0
      %p37 = por %p35, %p36
      %p38 = scmp.ne.s32.totalorder %s27, %s30
      %p39 = scmp.eq.s32.totalorder %s22, 1
      %p40 = por %p38, %p39
      %p41 = scmp.ne.s32.totalorder %s30, %s31
      %p42 = scmp.eq.s32.totalorder %s22, 0
      %p43 = por %p41, %p42
      %p44 = scmp.ne.s32.totalorder %s30, %s31
      %p45 = scmp.eq.s32.totalorder %s23, 1
      %p46 = por %p44, %p45
      %p48 = scmp.ne.s32.totalorder %s31, %s47
      %p49 = scmp.eq.s32.totalorder %s23, 0
      %p50 = por %p48, %p49
      %s52 = sadd.s32 %s51, 1
      %p55 = scmp.eq.s32.totalorder %s17, 1
      %p56 = scmp.ne.s32.totalorder %s51, %s53
      %p57 = scmp.eq.s32.totalorder %s17, 0
      %p58 = por %p56, %p57
      %p59 = scmp.ne.s32.totalorder %s51, %s53
      %p60 = scmp.eq.s32.totalorder %s22, 1
      %p61 = por %p59, %p60
      %p62 = scmp.ne.s32.totalorder %s53, %s54
      %p63 = scmp.eq.s32.totalorder %s22, 0
      %p64 = por %p62, %p63
      %p65 = scmp.ne.s32.totalorder %s53, %s54
      %p66 = scmp.eq.s32.totalorder %s23, 1
      %p67 = por %p65, %p66
      %p69 = scmp.ne.s32.totalorder %s54, %s68
      %p70 = scmp.eq.s32.totalorder %s23, 0
      %p71 = por %p69, %p70
      %s73 = sadd.s32 %s72, 1
      %p76 = scmp.eq.s32.totalorder %s17, 1
      %p77 = scmp.ne.s32.totalorder %s72, %s74
      %p78 = scmp.eq.s32.totalorder %s17, 0
      %p79 = por %p77, %p78
      %p80 = scmp.ne.s32.totalorder %s72, %s74
      %p81 = scmp.eq.s32.totalorder %s22, 1
      %p82 = por %p80, %p81
      %p83 = scmp.ne.s32.totalorder %s74, %s75
      %p84 = scmp.eq.s32.totalorder %s22, 0
      %p85 = por %p83, %p84
      %p86 = scmp.ne.s32.totalorder %s74, %s75
      %p87 = scmp.eq.s32.totalorder %s23, 1
      %p88 = por %p86, %p87
      %p90 = scmp.ne.s32.totalorder %s75, %s89
      %p91 = scmp.eq.s32.totalorder %s23, 0
      %p92 = por %p90, %p91
      %s94 = sadd.s32 %s93, 1
      %p97 = scmp.eq.s32.totalorder %s17, 1
      %p98 = scmp.ne.s32.totalorder %s93, %s95
      %p99 = scmp.eq.s32.totalorder %s17, 0
      %p100 = por %p98, %p99
      %p101 = scmp.ne.s32.totalorder %s93, %s95
      %p102 = scmp.eq.s32.totalorder %s22, 1
      %p103 = por %p101, %p102
      %p104 = scmp.ne.s32.totalorder %s95, %s96
      %p105 = scmp.eq.s32.totalorder %s22, 0
      %p106 = por %p104, %p105
      %p107 = scmp.ne.s32.totalorder %s95, %s96
      %p108 = scmp.eq.s32.totalorder %s23, 1
      %p109 = por %p107, %p108
      %p111 = scmp.ne.s32.totalorder %s96, %s110
      %p112 = scmp.eq.s32.totalorder %s23, 0
      %p113 = por %p111, %p112
      %s115 = sadd.s32 %s114, 1
      %p118 = scmp.eq.s32.totalorder %s17, 1
      %p119 = scmp.ne.s32.totalorder %s114, %s116
      %p120 = scmp.eq.s32.totalorder %s17, 0
      %p121 = por %p119, %p120
      %p122 = scmp.ne.s32.totalorder %s114, %s116
      %p123 = scmp.eq.s32.totalorder %s22, 1
      %p124 = por %p122, %p123
      %p125 = scmp.ne.s32.totalorder %s116, %s117
      %p126 = scmp.eq.s32.totalorder %s22, 0
      %p127 = por %p125, %p126
      %p128 = scmp.ne.s32.totalorder %s116, %s117
      %p129 = scmp.eq.s32.totalorder %s23, 1
      %p130 = por %p128, %p129
      %p132 = scmp.ne.s32.totalorder %s117, %s131
      %p133 = scmp.eq.s32.totalorder %s23, 0
      %p134 = por %p132, %p133
      %s136 = sadd.s32 %s135, 1
      %p139 = scmp.eq.s32.totalorder %s17, 1
      %p140 = scmp.ne.s32.totalorder %s135, %s137
      %p141 = scmp.eq.s32.totalorder %s17, 0
      %p142 = por %p140, %p141
      %p143 = scmp.ne.s32.totalorder %s135, %s137
      %p144 = scmp.eq.s32.totalorder %s22, 1
      %p145 = por %p143, %p144
      %p146 = scmp.ne.s32.totalorder %s137, %s138
      %p147 = scmp.eq.s32.totalorder %s22, 0
      %p148 = por %p146, %p147
      %p149 = scmp.ne.s32.totalorder %s137, %s138
      %p150 = scmp.eq.s32.totalorder %s23, 1
      %p151 = por %p149, %p150
      %p153 = scmp.ne.s32.totalorder %s138, %s152
      %p154 = scmp.eq.s32.totalorder %s23, 0
      %p155 = por %p153, %p154
      %s156 = ssub.s32 %s17, %s24
      %p157 = scmp.eq.s32.totalorder %s156, 0
      %s159 = sadd.s32 %s158, 1
      %s160 = scalar_select %p157, %s158, %s159
      %p163 = pneg %p157
      %p164 = scmp.eq.s32.totalorder %s17, 1
      %p165 = por %p163, %p164
      %p166 = scmp.ne.s32.totalorder %s158, %s161
      %p167 = scmp.eq.s32.totalorder %s17, 0
      %p168 = por %p166, %p167
      %p169 = scmp.ne.s32.totalorder %s158, %s161
      %p170 = scmp.eq.s32.totalorder %s22, 1
      %p171 = por %p169, %p170
      %p172 = scmp.ne.s32.totalorder %s161, %s162
      %p173 = scmp.eq.s32.totalorder %s22, 0
      %p174 = por %p172, %p173
      %p175 = scmp.ne.s32.totalorder %s161, %s162
      %p176 = scmp.eq.s32.totalorder %s23, 1
      %p177 = por %p175, %p176
      %p179 = scmp.ne.s32.totalorder %s162, %s178
      %p180 = scmp.eq.s32.totalorder %s23, 0
      %p181 = por %p179, %p180
      %p182 = scmp.le.s32.totalorder 1, %s17
      %p183 = scmp.lt.s32.totalorder %s17, 3
      %p184 = pnand %p182, %p183
      %p185 = pneg %p184
      // Predicated region
      $region9: #{basic_block_forward.1} parent=5 // pred_check
        _
      $region10: #{basic_block_forward.1} parent=5 // pred_check_branch
        %187 = sbr.rel (%p184) target = $region12
      $region11: #{basic_block_forward.1} parent=5 // pred_region
        %s188 = ssub.s32 %s17, 1
        // Predicated region
        $region13: #{basic_block_forward.1} parent=11 // pred_check
          %p189 = pneg %p64
        $region14: #{basic_block_forward.1} parent=11 // pred_check_branch
          %191 = sbr.rel (%p189) target = $region16
        $region15: #{basic_block_forward.1} parent=11 // pred_region
          %193 = vsyncadd [#allocation5], 0
          %s194 = sshll.u32 %s1, 4
          %s195 = int_to_ptr.hbm [resolvable:$true] %s194
          %s196 = sshll.u32 [#allocation4], 4
          %s197 = int_to_ptr.vmem [resolvable:$true] %s196
          %202 = dma.hbm_to_vmem [thread:$0]  %s195, 36864, %s197, [#allocation5], 128, 128, 8
        $region16: #{basic_block_forward.1} parent=11 // pred_fallthru
          _
        // Predicated region
        $region17: #{basic_block_forward.1} parent=11 // pred_check
          %p203 = pneg %p85
        $region18: #{basic_block_forward.1} parent=11 // pred_check_branch
          %205 = sbr.rel (%p203) target = $region20
        $region19: #{basic_block_forward.1} parent=11 // pred_region
          _
        $region20: #{basic_block_forward.1} parent=11 // pred_fallthru
          _
        // Predicated region
        $region21: #{basic_block_forward.1} parent=11 // pred_check
          %p206 = pneg %p106
        $region22: #{basic_block_forward.1} parent=11 // pred_check_branch
          %208 = sbr.rel (%p206) target = $region24
        $region23: #{basic_block_forward.1} parent=11 // pred_region
          %210 = vsyncadd [#allocation8], 0
          %s212 = sshll.u32 %s3, 4
          %s213 = int_to_ptr.hbm [resolvable:$true] %s212
          %s214 = sshll.u32 [#allocation7], 4
          %s215 = int_to_ptr.vmem [resolvable:$true] %s214
          %217 = dma.hbm_to_vmem [thread:$0]  %s213, 16, %s215, [#allocation8]
        $region24: #{basic_block_forward.1} parent=11 // pred_fallthru
          _
        // Predicated region
        $region25: #{basic_block_forward.1} parent=11 // pred_check
          %p218 = pneg %p127
        $region26: #{basic_block_forward.1} parent=11 // pred_check_branch
          %220 = sbr.rel (%p218) target = $region28
        $region27: #{basic_block_forward.1} parent=11 // pred_region
          _
        $region28: #{basic_block_forward.1} parent=11 // pred_fallthru
          _
        // Predicated region
        $region29: #{basic_block_forward.1} parent=11 // pred_check
          %p221 = pneg %p148
        $region30: #{basic_block_forward.1} parent=11 // pred_check_branch
          %223 = sbr.rel (%p221) target = $region32
        $region31: #{basic_block_forward.1} parent=11 // pred_region
          %225 = vsyncadd [#allocation8], 0
          %s227 = sshll.u32 %s5, 4
          %s228 = int_to_ptr.hbm [resolvable:$true] %s227
          %s229 = sshll.u32 [#allocation9], 4
          %s230 = int_to_ptr.vmem [resolvable:$true] %s229
          %232 = dma.hbm_to_vmem [thread:$0]  %s228, 16, %s230, [#allocation8]
        $region32: #{basic_block_forward.1} parent=11 // pred_fallthru
          _
      $region12: #{basic_block_forward.1} parent=5 // pred_fallthru
        _
      %p233 = scmp.lt.s32.totalorder %s17, 2
      // Predicated region
      $region33: #{basic_block_forward.1} parent=5 // pred_check
        %p234 = pneg %p233
      $region34: #{basic_block_forward.1} parent=5 // pred_check_branch
        %236 = sbr.rel (%p234) target = $region36
      $region35: #{basic_block_forward.1} parent=5 // pred_region
        // Predicated region
        $region37: #{basic_block_forward.1} parent=35 // pred_check
          %p237 = pneg %p37
        $region38: #{basic_block_forward.1} parent=35 // pred_check_branch
          %239 = sbr.rel (%p237) target = $region40
        $region39: #{basic_block_forward.1} parent=35 // pred_region
          %s240 = smul.u32 32, %s17
          %p241 = scmp.lt.s32.totalorder %s240, 63
          %s242 = scalar_select %p241, %s240, 63
          %s243 = smul.addr %s242, 4
          %s244 = scalar_lea.vmem %s0, %s243
          %s245 = smul.u32 32, %s17
        $region40: #{basic_block_forward.1} parent=35 // pred_fallthru
          _
      $region36: #{basic_block_forward.1} parent=5 // pred_fallthru
        _
      %p246 = scmp.le.s32.totalorder 1, %s17
      %p247 = scmp.lt.s32.totalorder %s17, 3
      %p248 = pnand %p246, %p247
      %p249 = pneg %p248
      // Predicated region
      $region41: #{basic_block_forward.1} parent=5 // pred_check
        _
      $region42: #{basic_block_forward.1} parent=5 // pred_check_branch
        %251 = sbr.rel (%p248) target = $region44
      $region43: #{basic_block_forward.1} parent=5 // pred_region
        %s252 = ssub.s32 %s17, 1
        // Predicated region
        $region45: #{basic_block_forward.1} parent=43 // pred_check
          %p253 = pneg %p64
        $region46: #{basic_block_forward.1} parent=43 // pred_check_branch
          %255 = sbr.rel (%p253) target = $region48
        $region47: #{basic_block_forward.1} parent=43 // pred_region
          %257 = dma.done [#allocation5], 36864
        $region48: #{basic_block_forward.1} parent=43 // pred_fallthru
          _
        // Predicated region
        $region49: #{basic_block_forward.1} parent=43 // pred_check
          %p258 = pneg %p106
        $region50: #{basic_block_forward.1} parent=43 // pred_check_branch
          %260 = sbr.rel (%p258) target = $region52
        $region51: #{basic_block_forward.1} parent=43 // pred_region
          %262 = dma.done [#allocation8], 16
        $region52: #{basic_block_forward.1} parent=43 // pred_fallthru
          _
        // Predicated region
        $region53: #{basic_block_forward.1} parent=43 // pred_check
          %p263 = pneg %p148
        $region54: #{basic_block_forward.1} parent=43 // pred_check_branch
          %265 = sbr.rel (%p263) target = $region56
        $region55: #{basic_block_forward.1} parent=43 // pred_region
          %267 = dma.done [#allocation8], 16
        $region56: #{basic_block_forward.1} parent=43 // pred_fallthru
          _
        %s268 = smul.u32 32, %s22
        %p269 = scmp.lt.s32.totalorder %s268, 63
        %s270 = scalar_select %p269, %s268, 63
        %s271 = smul.addr %s270, 4
        %s272 = scalar_lea.vmem %s0, %s271
        %p273 = pneg %p43
        %p274 = pneg %p40
        %p275 = pneg %p64
        %p276 = pneg %p61
        %p277 = pneg %p85
        %p278 = pneg %p82
        %p279 = pneg %p106
        %p280 = pneg %p103
        %p281 = pneg %p127
        %p282 = pneg %p124
        %p283 = pneg %p148
        %p284 = pneg %p145
        %p285 = pneg %p174
        %p286 = pneg %p171
        %s287 = sand.u32 %s161, 1
        %s288 = scalar_lea.sflag [#allocation6], %s287
        %s289 = sand.u32 %s161, 1
        %s290 = smul.addr %s289, 256
        %s291 = scalar_lea.vmem [#allocation10], %s290
        %s292 = smul.u32 32, %s22
        %p293 = scmp.lt.s32.totalorder %s292, 63
        %s294 = scalar_select %p293, %s292, 63
        %s295 = smul.addr %s294, 4
        %s296 = scalar_lea.vmem %s0, %s295
        %s297 = smul.u32 32, %s22
        %s298 = smul.u32 32, %s22
        %v300 = vld [vmem:[#allocation4] sm:$0xff]
        %v301 = vld [vmem:[#allocation4 + $0x8] sm:$0xff]
        %v302 = vld [vmem:[#allocation4 + $0x10] sm:$0xff]
        %v303 = vld [vmem:[#allocation4 + $0x18] sm:$0xff]
        %v304 = vld [vmem:[#allocation4 + $0x20] sm:$0xff]
        %v305 = vld [vmem:[#allocation4 + $0x28] sm:$0xff]
        %v306 = vld [vmem:[#allocation4 + $0x30] sm:$0xff]
        %v307 = vld [vmem:[#allocation4 + $0x38] sm:$0xff]
        %v308 = vld [vmem:[#allocation4 + $0x40] sm:$0xff]
        %v309 = vld [vmem:[#allocation4 + $0x48] sm:$0xff]
        %v310 = vld [vmem:[#allocation4 + $0x50] sm:$0xff]
        %v311 = vld [vmem:[#allocation4 + $0x58] sm:$0xff]
        %v312 = vld [vmem:[#allocation4 + $0x60] sm:$0xff]
        %v313 = vld [vmem:[#allocation4 + $0x68] sm:$0xff]
        %v314 = vld [vmem:[#allocation4 + $0x70] sm:$0xff]
        %v315 = vld [vmem:[#allocation4 + $0x78] sm:$0xff]
        %v316 = vld [vmem:[#allocation4 + $0x80] sm:$0xff]
        %v317 = vld [vmem:[#allocation4 + $0x88] sm:$0xff]
        %v318 = vld [vmem:[#allocation4 + $0x90] sm:$0xff]
        %v319 = vld [vmem:[#allocation4 + $0x98] sm:$0xff]
        %v320 = vld [vmem:[#allocation4 + $0xa0] sm:$0xff]
        %v321 = vld [vmem:[#allocation4 + $0xa8] sm:$0xff]
        %v322 = vld [vmem:[#allocation4 + $0xb0] sm:$0xff]
        %v323 = vld [vmem:[#allocation4 + $0xb8] sm:$0xff]
        %v324 = vld [vmem:[#allocation4 + $0xc0] sm:$0xff]
        %v325 = vld [vmem:[#allocation4 + $0xc8] sm:$0xff]
        %v326 = vld [vmem:[#allocation4 + $0xd0] sm:$0xff]
        %v327 = vld [vmem:[#allocation4 + $0xd8] sm:$0xff]
        %v328 = vld [vmem:[#allocation4 + $0xe0] sm:$0xff]
        %v329 = vld [vmem:[#allocation4 + $0xe8] sm:$0xff]
        %v330 = vld [vmem:[#allocation4 + $0xf0] sm:$0xff]
        %v331 = vld [vmem:[#allocation4 + $0xf8] sm:$0xff]
        %s332 = scalar_lea.vmem [#allocation4], 256
        %v333 = vld [vmem:[%s332] sm:$0xff]
        %v334 = vld [vmem:[%s332 + $0x8] sm:$0xff]
        %v335 = vld [vmem:[%s332 + $0x10] sm:$0xff]
        %v336 = vld [vmem:[%s332 + $0x18] sm:$0xff]
        %v337 = vld [vmem:[%s332 + $0x20] sm:$0xff]
        %v338 = vld [vmem:[%s332 + $0x28] sm:$0xff]
        %v339 = vld [vmem:[%s332 + $0x30] sm:$0xff]
        %v340 = vld [vmem:[%s332 + $0x38] sm:$0xff]
        %v341 = vld [vmem:[%s332 + $0x40] sm:$0xff]
        %v342 = vld [vmem:[%s332 + $0x48] sm:$0xff]
        %v343 = vld [vmem:[%s332 + $0x50] sm:$0xff]
        %v344 = vld [vmem:[%s332 + $0x58] sm:$0xff]
        %v345 = vld [vmem:[%s332 + $0x60] sm:$0xff]
        %v346 = vld [vmem:[%s332 + $0x68] sm:$0xff]
        %v347 = vld [vmem:[%s332 + $0x70] sm:$0xff]
        %v348 = vld [vmem:[%s332 + $0x78] sm:$0xff]
        %v349 = vld [vmem:[%s332 + $0x80] sm:$0xff]
        %v350 = vld [vmem:[%s332 + $0x88] sm:$0xff]
        %v351 = vld [vmem:[%s332 + $0x90] sm:$0xff]
        %v352 = vld [vmem:[%s332 + $0x98] sm:$0xff]
        %v353 = vld [vmem:[%s332 + $0xa0] sm:$0xff]
        %v354 = vld [vmem:[%s332 + $0xa8] sm:$0xff]
        %v355 = vld [vmem:[%s332 + $0xb0] sm:$0xff]
        %v356 = vld [vmem:[%s332 + $0xb8] sm:$0xff]
        %v357 = vld [vmem:[%s332 + $0xc0] sm:$0xff]
        %v358 = vld [vmem:[%s332 + $0xc8] sm:$0xff]
        %v359 = vld [vmem:[%s332 + $0xd0] sm:$0xff]
        %v360 = vld [vmem:[%s332 + $0xd8] sm:$0xff]
        %v361 = vld [vmem:[%s332 + $0xe0] sm:$0xff]
        %v362 = vld [vmem:[%s332 + $0xe8] sm:$0xff]
        %v363 = vld [vmem:[%s332 + $0xf0] sm:$0xff]
        %v364 = vld [vmem:[%s332 + $0xf8] sm:$0xff]
        %s365 = scalar_lea.vmem [#allocation4], 512
        %v366 = vld [vmem:[%s365] sm:$0xff]
        %v367 = vld [vmem:[%s365 + $0x8] sm:$0xff]
        %v368 = vld [vmem:[%s365 + $0x10] sm:$0xff]
        %v369 = vld [vmem:[%s365 + $0x18] sm:$0xff]
        %v370 = vld [vmem:[%s365 + $0x20] sm:$0xff]
        %v371 = vld [vmem:[%s365 + $0x28] sm:$0xff]
        %v372 = vld [vmem:[%s365 + $0x30] sm:$0xff]
        %v373 = vld [vmem:[%s365 + $0x38] sm:$0xff]
        %v374 = vld [vmem:[%s365 + $0x40] sm:$0xff]
        %v375 = vld [vmem:[%s365 + $0x48] sm:$0xff]
        %v376 = vld [vmem:[%s365 + $0x50] sm:$0xff]
        %v377 = vld [vmem:[%s365 + $0x58] sm:$0xff]
        %v378 = vld [vmem:[%s365 + $0x60] sm:$0xff]
        %v379 = vld [vmem:[%s365 + $0x68] sm:$0xff]
        %v380 = vld [vmem:[%s365 + $0x70] sm:$0xff]
        %v381 = vld [vmem:[%s365 + $0x78] sm:$0xff]
        %v382 = vld [vmem:[%s365 + $0x80] sm:$0xff]
        %v383 = vld [vmem:[%s365 + $0x88] sm:$0xff]
        %v384 = vld [vmem:[%s365 + $0x90] sm:$0xff]
        %v385 = vld [vmem:[%s365 + $0x98] sm:$0xff]
        %v386 = vld [vmem:[%s365 + $0xa0] sm:$0xff]
        %v387 = vld [vmem:[%s365 + $0xa8] sm:$0xff]
        %v388 = vld [vmem:[%s365 + $0xb0] sm:$0xff]
        %v389 = vld [vmem:[%s365 + $0xb8] sm:$0xff]
        %v390 = vld [vmem:[%s365 + $0xc0] sm:$0xff]
        %v391 = vld [vmem:[%s365 + $0xc8] sm:$0xff]
        %v392 = vld [vmem:[%s365 + $0xd0] sm:$0xff]
        %v393 = vld [vmem:[%s365 + $0xd8] sm:$0xff]
        %v394 = vld [vmem:[%s365 + $0xe0] sm:$0xff]
        %v395 = vld [vmem:[%s365 + $0xe8] sm:$0xff]
        %v396 = vld [vmem:[%s365 + $0xf0] sm:$0xff]
        %v397 = vld [vmem:[%s365 + $0xf8] sm:$0xff]
        %s398 = scalar_lea.vmem [#allocation4], 768
        %v399 = vld [vmem:[%s398] sm:$0xff]
        %v400 = vld [vmem:[%s398 + $0x8] sm:$0xff]
        %v401 = vld [vmem:[%s398 + $0x10] sm:$0xff]
        %v402 = vld [vmem:[%s398 + $0x18] sm:$0xff]
        %v403 = vld [vmem:[%s398 + $0x20] sm:$0xff]
        %v404 = vld [vmem:[%s398 + $0x28] sm:$0xff]
        %v405 = vld [vmem:[%s398 + $0x30] sm:$0xff]
        %v406 = vld [vmem:[%s398 + $0x38] sm:$0xff]
        %v407 = vld [vmem:[%s398 + $0x40] sm:$0xff]
        %v408 = vld [vmem:[%s398 + $0x48] sm:$0xff]
        %v409 = vld [vmem:[%s398 + $0x50] sm:$0xff]
        %v410 = vld [vmem:[%s398 + $0x58] sm:$0xff]
        %v411 = vld [vmem:[%s398 + $0x60] sm:$0xff]
        %v412 = vld [vmem:[%s398 + $0x68] sm:$0xff]
        %v413 = vld [vmem:[%s398 + $0x70] sm:$0xff]
        %v414 = vld [vmem:[%s398 + $0x78] sm:$0xff]
        %v415 = vld [vmem:[%s398 + $0x80] sm:$0xff]
        %v416 = vld [vmem:[%s398 + $0x88] sm:$0xff]
        %v417 = vld [vmem:[%s398 + $0x90] sm:$0xff]
        %v418 = vld [vmem:[%s398 + $0x98] sm:$0xff]
        %v419 = vld [vmem:[%s398 + $0xa0] sm:$0xff]
        %v420 = vld [vmem:[%s398 + $0xa8] sm:$0xff]
        %v421 = vld [vmem:[%s398 + $0xb0] sm:$0xff]
        %v422 = vld [vmem:[%s398 + $0xb8] sm:$0xff]
        %v423 = vld [vmem:[%s398 + $0xc0] sm:$0xff]
        %v424 = vld [vmem:[%s398 + $0xc8] sm:$0xff]
        %v425 = vld [vmem:[%s398 + $0xd0] sm:$0xff]
        %v426 = vld [vmem:[%s398 + $0xd8] sm:$0xff]
        %v427 = vld [vmem:[%s398 + $0xe0] sm:$0xff]
        %v428 = vld [vmem:[%s398 + $0xe8] sm:$0xff]
        %v429 = vld [vmem:[%s398 + $0xf0] sm:$0xff]
        %v430 = vld [vmem:[%s398 + $0xf8] sm:$0xff]
        %s431 = scalar_lea.vmem [#allocation4], 1280
        %v432 = vld [vmem:[%s431] sm:$0xff]
        %v433 = vld [vmem:[%s431 + $0x8] sm:$0xff]
        %v434 = vld [vmem:[%s431 + $0x10] sm:$0xff]
        %v435 = vld [vmem:[%s431 + $0x18] sm:$0xff]
        %v436 = vld [vmem:[%s431 + $0x20] sm:$0xff]
        %v437 = vld [vmem:[%s431 + $0x28] sm:$0xff]
        %v438 = vld [vmem:[%s431 + $0x30] sm:$0xff]
        %v439 = vld [vmem:[%s431 + $0x38] sm:$0xff]
        %v440 = vld [vmem:[%s431 + $0x40] sm:$0xff]
        %v441 = vld [vmem:[%s431 + $0x48] sm:$0xff]
        %v442 = vld [vmem:[%s431 + $0x50] sm:$0xff]
        %v443 = vld [vmem:[%s431 + $0x58] sm:$0xff]
        %v444 = vld [vmem:[%s431 + $0x60] sm:$0xff]
        %v445 = vld [vmem:[%s431 + $0x68] sm:$0xff]
        %v446 = vld [vmem:[%s431 + $0x70] sm:$0xff]
        %v447 = vld [vmem:[%s431 + $0x78] sm:$0xff]
        %v448 = vld [vmem:[%s431 + $0x80] sm:$0xff]
        %v449 = vld [vmem:[%s431 + $0x88] sm:$0xff]
        %v450 = vld [vmem:[%s431 + $0x90] sm:$0xff]
        %v451 = vld [vmem:[%s431 + $0x98] sm:$0xff]
        %v452 = vld [vmem:[%s431 + $0xa0] sm:$0xff]
        %v453 = vld [vmem:[%s431 + $0xa8] sm:$0xff]
        %v454 = vld [vmem:[%s431 + $0xb0] sm:$0xff]
        %v455 = vld [vmem:[%s431 + $0xb8] sm:$0xff]
        %v456 = vld [vmem:[%s431 + $0xc0] sm:$0xff]
        %v457 = vld [vmem:[%s431 + $0xc8] sm:$0xff]
        %v458 = vld [vmem:[%s431 + $0xd0] sm:$0xff]
        %v459 = vld [vmem:[%s431 + $0xd8] sm:$0xff]
        %v460 = vld [vmem:[%s431 + $0xe0] sm:$0xff]
        %v461 = vld [vmem:[%s431 + $0xe8] sm:$0xff]
        %v462 = vld [vmem:[%s431 + $0xf0] sm:$0xff]
        %v463 = vld [vmem:[%s431 + $0xf8] sm:$0xff]
        %s464 = scalar_lea.vmem [#allocation4], 1536
        %v465 = vld [vmem:[%s464] sm:$0xff]
        %v466 = vld [vmem:[%s464 + $0x8] sm:$0xff]
        %v467 = vld [vmem:[%s464 + $0x10] sm:$0xff]
        %v468 = vld [vmem:[%s464 + $0x18] sm:$0xff]
        %v469 = vld [vmem:[%s464 + $0x20] sm:$0xff]
        %v470 = vld [vmem:[%s464 + $0x28] sm:$0xff]
        %v471 = vld [vmem:[%s464 + $0x30] sm:$0xff]
        %v472 = vld [vmem:[%s464 + $0x38] sm:$0xff]
        %v473 = vld [vmem:[%s464 + $0x40] sm:$0xff]
        %v474 = vld [vmem:[%s464 + $0x48] sm:$0xff]
        %v475 = vld [vmem:[%s464 + $0x50] sm:$0xff]
        %v476 = vld [vmem:[%s464 + $0x58] sm:$0xff]
        %v477 = vld [vmem:[%s464 + $0x60] sm:$0xff]
        %v478 = vld [vmem:[%s464 + $0x68] sm:$0xff]
        %v479 = vld [vmem:[%s464 + $0x70] sm:$0xff]
        %v480 = vld [vmem:[%s464 + $0x78] sm:$0xff]
        %v481 = vld [vmem:[%s464 + $0x80] sm:$0xff]
        %v482 = vld [vmem:[%s464 + $0x88] sm:$0xff]
        %v483 = vld [vmem:[%s464 + $0x90] sm:$0xff]
        %v484 = vld [vmem:[%s464 + $0x98] sm:$0xff]
        %v485 = vld [vmem:[%s464 + $0xa0] sm:$0xff]
        %v486 = vld [vmem:[%s464 + $0xa8] sm:$0xff]
        %v487 = vld [vmem:[%s464 + $0xb0] sm:$0xff]
        %v488 = vld [vmem:[%s464 + $0xb8] sm:$0xff]
        %v489 = vld [vmem:[%s464 + $0xc0] sm:$0xff]
        %v490 = vld [vmem:[%s464 + $0xc8] sm:$0xff]
        %v491 = vld [vmem:[%s464 + $0xd0] sm:$0xff]
        %v492 = vld [vmem:[%s464 + $0xd8] sm:$0xff]
        %v493 = vld [vmem:[%s464 + $0xe0] sm:$0xff]
        %v494 = vld [vmem:[%s464 + $0xe8] sm:$0xff]
        %v495 = vld [vmem:[%s464 + $0xf0] sm:$0xff]
        %v496 = vld [vmem:[%s464 + $0xf8] sm:$0xff]
        %s497 = scalar_lea.vmem [#allocation4], 1792
        %v498 = vld [vmem:[%s497] sm:$0xff]
        %v499 = vld [vmem:[%s497 + $0x8] sm:$0xff]
        %v500 = vld [vmem:[%s497 + $0x10] sm:$0xff]
        %v501 = vld [vmem:[%s497 + $0x18] sm:$0xff]
        %v502 = vld [vmem:[%s497 + $0x20] sm:$0xff]
        %v503 = vld [vmem:[%s497 + $0x28] sm:$0xff]
        %v504 = vld [vmem:[%s497 + $0x30] sm:$0xff]
        %v505 = vld [vmem:[%s497 + $0x38] sm:$0xff]
        %v506 = vld [vmem:[%s497 + $0x40] sm:$0xff]
        %v507 = vld [vmem:[%s497 + $0x48] sm:$0xff]
        %v508 = vld [vmem:[%s497 + $0x50] sm:$0xff]
        %v509 = vld [vmem:[%s497 + $0x58] sm:$0xff]
        %v510 = vld [vmem:[%s497 + $0x60] sm:$0xff]
        %v511 = vld [vmem:[%s497 + $0x68] sm:$0xff]
        %v512 = vld [vmem:[%s497 + $0x70] sm:$0xff]
        %v513 = vld [vmem:[%s497 + $0x78] sm:$0xff]
        %v514 = vld [vmem:[%s497 + $0x80] sm:$0xff]
        %v515 = vld [vmem:[%s497 + $0x88] sm:$0xff]
        %v516 = vld [vmem:[%s497 + $0x90] sm:$0xff]
        %v517 = vld [vmem:[%s497 + $0x98] sm:$0xff]
        %v518 = vld [vmem:[%s497 + $0xa0] sm:$0xff]
        %v519 = vld [vmem:[%s497 + $0xa8] sm:$0xff]
        %v520 = vld [vmem:[%s497 + $0xb0] sm:$0xff]
        %v521 = vld [vmem:[%s497 + $0xb8] sm:$0xff]
        %v522 = vld [vmem:[%s497 + $0xc0] sm:$0xff]
        %v523 = vld [vmem:[%s497 + $0xc8] sm:$0xff]
        %v524 = vld [vmem:[%s497 + $0xd0] sm:$0xff]
        %v525 = vld [vmem:[%s497 + $0xd8] sm:$0xff]
        %v526 = vld [vmem:[%s497 + $0xe0] sm:$0xff]
        %v527 = vld [vmem:[%s497 + $0xe8] sm:$0xff]
        %v528 = vld [vmem:[%s497 + $0xf0] sm:$0xff]
        %v529 = vld [vmem:[%s497 + $0xf8] sm:$0xff]
        %s530 = scalar_lea.vmem [#allocation4], 2048
        %v531 = vld [vmem:[%s530] sm:$0xff]
        %v532 = vld [vmem:[%s530 + $0x8] sm:$0xff]
        %v533 = vld [vmem:[%s530 + $0x10] sm:$0xff]
        %v534 = vld [vmem:[%s530 + $0x18] sm:$0xff]
        %v535 = vld [vmem:[%s530 + $0x20] sm:$0xff]
        %v536 = vld [vmem:[%s530 + $0x28] sm:$0xff]
        %v537 = vld [vmem:[%s530 + $0x30] sm:$0xff]
        %v538 = vld [vmem:[%s530 + $0x38] sm:$0xff]
        %v539 = vld [vmem:[%s530 + $0x40] sm:$0xff]
        %v540 = vld [vmem:[%s530 + $0x48] sm:$0xff]
        %v541 = vld [vmem:[%s530 + $0x50] sm:$0xff]
        %v542 = vld [vmem:[%s530 + $0x58] sm:$0xff]
        %v543 = vld [vmem:[%s530 + $0x60] sm:$0xff]
        %v544 = vld [vmem:[%s530 + $0x68] sm:$0xff]
        %v545 = vld [vmem:[%s530 + $0x70] sm:$0xff]
        %v546 = vld [vmem:[%s530 + $0x78] sm:$0xff]
        %v547 = vld [vmem:[%s530 + $0x80] sm:$0xff]
        %v548 = vld [vmem:[%s530 + $0x88] sm:$0xff]
        %v549 = vld [vmem:[%s530 + $0x90] sm:$0xff]
        %v550 = vld [vmem:[%s530 + $0x98] sm:$0xff]
        %v551 = vld [vmem:[%s530 + $0xa0] sm:$0xff]
        %v552 = vld [vmem:[%s530 + $0xa8] sm:$0xff]
        %v553 = vld [vmem:[%s530 + $0xb0] sm:$0xff]
        %v554 = vld [vmem:[%s530 + $0xb8] sm:$0xff]
        %v555 = vld [vmem:[%s530 + $0xc0] sm:$0xff]
        %v556 = vld [vmem:[%s530 + $0xc8] sm:$0xff]
        %v557 = vld [vmem:[%s530 + $0xd0] sm:$0xff]
        %v558 = vld [vmem:[%s530 + $0xd8] sm:$0xff]
        %v559 = vld [vmem:[%s530 + $0xe0] sm:$0xff]
        %v560 = vld [vmem:[%s530 + $0xe8] sm:$0xff]
        %v561 = vld [vmem:[%s530 + $0xf0] sm:$0xff]
        %v562 = vld [vmem:[%s530 + $0xf8] sm:$0xff]
        %v563 = vld [vmem:[%s296] sm:$0xf]
        %v564 = vld [vmem:[%s296 + $0x4] sm:$0xf]
        %v565 = vld [vmem:[%s296 + $0x8] sm:$0xf]
        %v566 = vld [vmem:[%s296 + $0xc] sm:$0xf]
        %v567 = vld [vmem:[%s296 + $0x10] sm:$0xf]
        %v568 = vld [vmem:[%s296 + $0x14] sm:$0xf]
        %v569 = vld [vmem:[%s296 + $0x18] sm:$0xf]
        %v570 = vld [vmem:[%s296 + $0x1c] sm:$0xf]
        %v571 = vld [vmem:[%s296 + $0x20] sm:$0xf]
        %v572 = vld [vmem:[%s296 + $0x24] sm:$0xf]
        %v573 = vld [vmem:[%s296 + $0x28] sm:$0xf]
        %v574 = vld [vmem:[%s296 + $0x2c] sm:$0xf]
        %v575 = vld [vmem:[%s296 + $0x30] sm:$0xf]
        %v576 = vld [vmem:[%s296 + $0x34] sm:$0xf]
        %v577 = vld [vmem:[%s296 + $0x38] sm:$0xf]
        %v578 = vld [vmem:[%s296 + $0x3c] sm:$0xf]
        %v579 = vld [vmem:[%s296 + $0x40] sm:$0xf]
        %v580 = vld [vmem:[%s296 + $0x44] sm:$0xf]
        %v581 = vld [vmem:[%s296 + $0x48] sm:$0xf]
        %v582 = vld [vmem:[%s296 + $0x4c] sm:$0xf]
        %v583 = vld [vmem:[%s296 + $0x50] sm:$0xf]
        %v584 = vld [vmem:[%s296 + $0x54] sm:$0xf]
        %v585 = vld [vmem:[%s296 + $0x58] sm:$0xf]
        %v586 = vld [vmem:[%s296 + $0x5c] sm:$0xf]
        %v587 = vld [vmem:[%s296 + $0x60] sm:$0xf]
        %v588 = vld [vmem:[%s296 + $0x64] sm:$0xf]
        %v589 = vld [vmem:[%s296 + $0x68] sm:$0xf]
        %v590 = vld [vmem:[%s296 + $0x6c] sm:$0xf]
        %v591 = vld [vmem:[%s296 + $0x70] sm:$0xf]
        %v592 = vld [vmem:[%s296 + $0x74] sm:$0xf]
        %v593 = vld [vmem:[%s296 + $0x78] sm:$0xf]
        %v594 = vld [vmem:[%s296 + $0x7c] sm:$0xf]
        %v595 = vunpack.c.l.bf16 %v563
        %v596 = vunpack.c.l.bf16 %v564
        %v597 = vunpack.c.l.bf16 %v565
        %v598 = vunpack.c.l.bf16 %v566
        %v599 = vunpack.c.l.bf16 %v567
        %v600 = vunpack.c.l.bf16 %v568
        %v601 = vunpack.c.l.bf16 %v569
        %v602 = vunpack.c.l.bf16 %v570
        %v603 = vunpack.c.l.bf16 %v571
        %v604 = vunpack.c.l.bf16 %v572
        %v605 = vunpack.c.l.bf16 %v573
        %v606 = vunpack.c.l.bf16 %v574
        %v607 = vunpack.c.l.bf16 %v575
        %v608 = vunpack.c.l.bf16 %v576
        %v609 = vunpack.c.l.bf16 %v577
        %v610 = vunpack.c.l.bf16 %v578
        %v611 = vunpack.c.l.bf16 %v579
        %v612 = vunpack.c.l.bf16 %v580
        %v613 = vunpack.c.l.bf16 %v581
        %v614 = vunpack.c.l.bf16 %v582
        %v615 = vunpack.c.l.bf16 %v583
        %v616 = vunpack.c.l.bf16 %v584
        %v617 = vunpack.c.l.bf16 %v585
        %v618 = vunpack.c.l.bf16 %v586
        %v619 = vunpack.c.l.bf16 %v587
        %v620 = vunpack.c.l.bf16 %v588
        %v621 = vunpack.c.l.bf16 %v589
        %v622 = vunpack.c.l.bf16 %v590
        %v623 = vunpack.c.l.bf16 %v591
        %v624 = vunpack.c.l.bf16 %v592
        %v625 = vunpack.c.l.bf16 %v593
        %v626 = vunpack.c.l.bf16 %v594
        %v627 = vrot.slane %v595, 7
        %v628 = vrot.slane %v596, 7
        %v629 = vrot.slane %v597, 7
        %v630 = vrot.slane %v598, 7
        %v631 = vrot.slane %v599, 7
        %v632 = vrot.slane %v600, 7
        %v633 = vrot.slane %v601, 7
        %v634 = vrot.slane %v602, 7
        %v635 = vrot.slane %v603, 7
        %v636 = vrot.slane %v604, 7
        %v637 = vrot.slane %v605, 7
        %v638 = vrot.slane %v606, 7
        %v639 = vrot.slane %v607, 7
        %v640 = vrot.slane %v608, 7
        %v641 = vrot.slane %v609, 7
        %v642 = vrot.slane %v610, 7
        %v643 = vrot.slane %v611, 7
        %v644 = vrot.slane %v612, 7
        %v645 = vrot.slane %v613, 7
        %v646 = vrot.slane %v614, 7
        %v647 = vrot.slane %v615, 7
        %v648 = vrot.slane %v616, 7
        %v649 = vrot.slane %v617, 7
        %v650 = vrot.slane %v618, 7
        %v651 = vrot.slane %v619, 7
        %v652 = vrot.slane %v620, 7
        %v653 = vrot.slane %v621, 7
        %v654 = vrot.slane %v622, 7
        %v655 = vrot.slane %v623, 7
        %v656 = vrot.slane %v624, 7
        %v657 = vrot.slane %v625, 7
        %v658 = vrot.slane %v626, 7
        %v659 = vlaneseq
        %v660 = vshrl.u32 %v659, 7
        %vm661 = vcmp.lt.s32.totalorder %v660, 1
        %v662 = vsel %vm661, %v657, %v658
        %v663 = vsel %vm661, %v656, %v657
        %v664 = vsel %vm661, %v655, %v656
        %v665 = vsel %vm661, %v654, %v655
        %v666 = vsel %vm661, %v653, %v654
        %v667 = vsel %vm661, %v652, %v653
        %v668 = vsel %vm661, %v651, %v652
        %v669 = vsel %vm661, %v650, %v651
        %v670 = vsel %vm661, %v649, %v650
        %v671 = vsel %vm661, %v648, %v649
        %v672 = vsel %vm661, %v647, %v648
        %v673 = vsel %vm661, %v646, %v647
        %v674 = vsel %vm661, %v645, %v646
        %v675 = vsel %vm661, %v644, %v645
        %v676 = vsel %vm661, %v643, %v644
        %v677 = vsel %vm661, %v642, %v643
        %v678 = vsel %vm661, %v641, %v642
        %v679 = vsel %vm661, %v640, %v641
        %v680 = vsel %vm661, %v639, %v640
        %v681 = vsel %vm661, %v638, %v639
        %v682 = vsel %vm661, %v637, %v638
        %v683 = vsel %vm661, %v636, %v637
        %v684 = vsel %vm661, %v635, %v636
        %v685 = vsel %vm661, %v634, %v635
        %v686 = vsel %vm661, %v633, %v634
        %v687 = vsel %vm661, %v632, %v633
        %v688 = vsel %vm661, %v631, %v632
        %v689 = vsel %vm661, %v630, %v631
        %v690 = vsel %vm661, %v629, %v630
        %v691 = vsel %vm661, %v628, %v629
        %v692 = vsel %vm661, %v627, %v628
        %v693 = vsel %vm661, %v658, %v627
        %695 = vset.pattern.permute.xlu0 0
        %696 = vperm.xlu0 %695, %v300
        %v697 = vpop.permute.xlu0 %696
        %700 = vset.pattern.permute.xlu0 0
        %701 = vperm.xlu0 %700, %v301
        %v702 = vpop.permute.xlu0 %701
        %705 = vset.pattern.permute.xlu0 0
        %706 = vperm.xlu0 %705, %v302
        %v707 = vpop.permute.xlu0 %706
        %710 = vset.pattern.permute.xlu0 0
        %711 = vperm.xlu0 %710, %v303
        %v712 = vpop.permute.xlu0 %711
        %715 = vset.pattern.permute.xlu0 0
        %716 = vperm.xlu0 %715, %v304
        %v717 = vpop.permute.xlu0 %716
        %720 = vset.pattern.permute.xlu0 0
        %721 = vperm.xlu0 %720, %v305
        %v722 = vpop.permute.xlu0 %721
        %725 = vset.pattern.permute.xlu0 0
        %726 = vperm.xlu0 %725, %v306
        %v727 = vpop.permute.xlu0 %726
        %730 = vset.pattern.permute.xlu0 0
        %731 = vperm.xlu0 %730, %v307
        %v732 = vpop.permute.xlu0 %731
        %735 = vset.pattern.permute.xlu0 0
        %736 = vperm.xlu0 %735, %v308
        %v737 = vpop.permute.xlu0 %736
        %740 = vset.pattern.permute.xlu0 0
        %741 = vperm.xlu0 %740, %v309
        %v742 = vpop.permute.xlu0 %741
        %745 = vset.pattern.permute.xlu0 0
        %746 = vperm.xlu0 %745, %v310
        %v747 = vpop.permute.xlu0 %746
        %750 = vset.pattern.permute.xlu0 0
        %751 = vperm.xlu0 %750, %v311
        %v752 = vpop.permute.xlu0 %751
        %755 = vset.pattern.permute.xlu0 0
        %756 = vperm.xlu0 %755, %v312
        %v757 = vpop.permute.xlu0 %756
        %760 = vset.pattern.permute.xlu0 0
        %761 = vperm.xlu0 %760, %v313
        %v762 = vpop.permute.xlu0 %761
        %765 = vset.pattern.permute.xlu0 0
        %766 = vperm.xlu0 %765, %v314
        %v767 = vpop.permute.xlu0 %766
        %770 = vset.pattern.permute.xlu0 0
        %771 = vperm.xlu0 %770, %v315
        %v772 = vpop.permute.xlu0 %771
        %775 = vset.pattern.permute.xlu0 0
        %776 = vperm.xlu0 %775, %v316
        %v777 = vpop.permute.xlu0 %776
        %780 = vset.pattern.permute.xlu0 0
        %781 = vperm.xlu0 %780, %v317
        %v782 = vpop.permute.xlu0 %781
        %785 = vset.pattern.permute.xlu0 0
        %786 = vperm.xlu0 %785, %v318
        %v787 = vpop.permute.xlu0 %786
        %790 = vset.pattern.permute.xlu0 0
        %791 = vperm.xlu0 %790, %v319
        %v792 = vpop.permute.xlu0 %791
        %795 = vset.pattern.permute.xlu0 0
        %796 = vperm.xlu0 %795, %v320
        %v797 = vpop.permute.xlu0 %796
        %800 = vset.pattern.permute.xlu0 0
        %801 = vperm.xlu0 %800, %v321
        %v802 = vpop.permute.xlu0 %801
        %805 = vset.pattern.permute.xlu0 0
        %806 = vperm.xlu0 %805, %v322
        %v807 = vpop.permute.xlu0 %806
        %810 = vset.pattern.permute.xlu0 0
        %811 = vperm.xlu0 %810, %v323
        %v812 = vpop.permute.xlu0 %811
        %815 = vset.pattern.permute.xlu0 0
        %816 = vperm.xlu0 %815, %v324
        %v817 = vpop.permute.xlu0 %816
        %820 = vset.pattern.permute.xlu0 0
        %821 = vperm.xlu0 %820, %v325
        %v822 = vpop.permute.xlu0 %821
        %825 = vset.pattern.permute.xlu0 0
        %826 = vperm.xlu0 %825, %v326
        %v827 = vpop.permute.xlu0 %826
        %830 = vset.pattern.permute.xlu0 0
        %831 = vperm.xlu0 %830, %v327
        %v832 = vpop.permute.xlu0 %831
        %835 = vset.pattern.permute.xlu0 0
        %836 = vperm.xlu0 %835, %v328
        %v837 = vpop.permute.xlu0 %836
        %840 = vset.pattern.permute.xlu0 0
        %841 = vperm.xlu0 %840, %v329
        %v842 = vpop.permute.xlu0 %841
        %845 = vset.pattern.permute.xlu0 0
        %846 = vperm.xlu0 %845, %v330
        %v847 = vpop.permute.xlu0 %846
        %850 = vset.pattern.permute.xlu0 0
        %851 = vperm.xlu0 %850, %v331
        %v852 = vpop.permute.xlu0 %851
        %v854 = vmul.f32 %v663, %v697
        %v855 = vmul.f32 %v662, %v702
        %v856 = vmul.f32 %v693, %v707
        %v857 = vmul.f32 %v692, %v712
        %v858 = vmul.f32 %v691, %v717
        %v859 = vmul.f32 %v690, %v722
        %v860 = vmul.f32 %v689, %v727
        %v861 = vmul.f32 %v688, %v732
        %v862 = vmul.f32 %v687, %v737
        %v863 = vmul.f32 %v686, %v742
        %v864 = vmul.f32 %v685, %v747
        %v865 = vmul.f32 %v684, %v752
        %v866 = vmul.f32 %v683, %v757
        %v867 = vmul.f32 %v682, %v762
        %v868 = vmul.f32 %v681, %v767
        %v869 = vmul.f32 %v680, %v772
        %v870 = vmul.f32 %v679, %v777
        %v871 = vmul.f32 %v678, %v782
        %v872 = vmul.f32 %v677, %v787
        %v873 = vmul.f32 %v676, %v792
        %v874 = vmul.f32 %v675, %v797
        %v875 = vmul.f32 %v674, %v802
        %v876 = vmul.f32 %v673, %v807
        %v877 = vmul.f32 %v672, %v812
        %v878 = vmul.f32 %v671, %v817
        %v879 = vmul.f32 %v670, %v822
        %v880 = vmul.f32 %v669, %v827
        %v881 = vmul.f32 %v668, %v832
        %v882 = vmul.f32 %v667, %v837
        %v883 = vmul.f32 %v666, %v842
        %v884 = vmul.f32 %v665, %v847
        %v885 = vmul.f32 %v664, %v852
        %v886 = vpack.c.bf16 %v854, %v854
        %v887 = vpack.c.bf16 %v855, %v855
        %v888 = vpack.c.bf16 %v856, %v856
        %v889 = vpack.c.bf16 %v857, %v857
        %v890 = vpack.c.bf16 %v858, %v858
        %v891 = vpack.c.bf16 %v859, %v859
        %v892 = vpack.c.bf16 %v860, %v860
        %v893 = vpack.c.bf16 %v861, %v861
        %v894 = vpack.c.bf16 %v862, %v862
        %v895 = vpack.c.bf16 %v863, %v863
        %v896 = vpack.c.bf16 %v864, %v864
        %v897 = vpack.c.bf16 %v865, %v865
        %v898 = vpack.c.bf16 %v866, %v866
        %v899 = vpack.c.bf16 %v867, %v867
        %v900 = vpack.c.bf16 %v868, %v868
        %v901 = vpack.c.bf16 %v869, %v869
        %v902 = vpack.c.bf16 %v870, %v870
        %v903 = vpack.c.bf16 %v871, %v871
        %v904 = vpack.c.bf16 %v872, %v872
        %v905 = vpack.c.bf16 %v873, %v873
        %v906 = vpack.c.bf16 %v874, %v874
        %v907 = vpack.c.bf16 %v875, %v875
        %v908 = vpack.c.bf16 %v876, %v876
        %v909 = vpack.c.bf16 %v877, %v877
        %v910 = vpack.c.bf16 %v878, %v878
        %v911 = vpack.c.bf16 %v879, %v879
        %v912 = vpack.c.bf16 %v880, %v880
        %v913 = vpack.c.bf16 %v881, %v881
        %v914 = vpack.c.bf16 %v882, %v882
        %v915 = vpack.c.bf16 %v883, %v883
        %v916 = vpack.c.bf16 %v884, %v884
        %v917 = vpack.c.bf16 %v885, %v885
        %vm918 = vcmask 519168
        %919 = vst.msk [vmem:[#allocation2] sm:$0xf] %vm918, %v886
        %920 = vst.msk [vmem:[#allocation2 + $0x14] sm:$0xf] %vm918, %v887
        %921 = vst.msk [vmem:[#allocation2 + $0x28] sm:$0xf] %vm918, %v888
        %922 = vst.msk [vmem:[#allocation2 + $0x3c] sm:$0xf] %vm918, %v889
        %923 = vst.msk [vmem:[#allocation2 + $0x50] sm:$0xf] %vm918, %v890
        %924 = vst.msk [vmem:[#allocation2 + $0x64] sm:$0xf] %vm918, %v891
        %925 = vst.msk [vmem:[#allocation2 + $0x78] sm:$0xf] %vm918, %v892
        %926 = vst.msk [vmem:[#allocation2 + $0x8c] sm:$0xf] %vm918, %v893
        %927 = vst.msk [vmem:[#allocation2 + $0xa0] sm:$0xf] %vm918, %v894
        %928 = vst.msk [vmem:[#allocation2 + $0xb4] sm:$0xf] %vm918, %v895
        %929 = vst.msk [vmem:[#allocation2 + $0xc8] sm:$0xf] %vm918, %v896
        %930 = vst.msk [vmem:[#allocation2 + $0xdc] sm:$0xf] %vm918, %v897
        %931 = vst.msk [vmem:[#allocation2 + $0xf0] sm:$0xf] %vm918, %v898
        %932 = vst.msk [vmem:[#allocation2 + $0x104] sm:$0xf] %vm918, %v899
        %933 = vst.msk [vmem:[#allocation2 + $0x118] sm:$0xf] %vm918, %v900
        %934 = vst.msk [vmem:[#allocation2 + $0x12c] sm:$0xf] %vm918, %v901
        %935 = vst.msk [vmem:[#allocation2 + $0x140] sm:$0xf] %vm918, %v902
        %936 = vst.msk [vmem:[#allocation2 + $0x154] sm:$0xf] %vm918, %v903
        %937 = vst.msk [vmem:[#allocation2 + $0x168] sm:$0xf] %vm918, %v904
        %938 = vst.msk [vmem:[#allocation2 + $0x17c] sm:$0xf] %vm918, %v905
        %939 = vst.msk [vmem:[#allocation2 + $0x190] sm:$0xf] %vm918, %v906
        %940 = vst.msk [vmem:[#allocation2 + $0x1a4] sm:$0xf] %vm918, %v907
        %941 = vst.msk [vmem:[#allocation2 + $0x1b8] sm:$0xf] %vm918, %v908
        %942 = vst.msk [vmem:[#allocation2 + $0x1cc] sm:$0xf] %vm918, %v909
        %943 = vst.msk [vmem:[#allocation2 + $0x1e0] sm:$0xf] %vm918, %v910
        %944 = vst.msk [vmem:[#allocation2 + $0x1f4] sm:$0xf] %vm918, %v911
        %945 = vst.msk [vmem:[#allocation2 + $0x208] sm:$0xf] %vm918, %v912
        %946 = vst.msk [vmem:[#allocation2 + $0x21c] sm:$0xf] %vm918, %v913
        %947 = vst.msk [vmem:[#allocation2 + $0x230] sm:$0xf] %vm918, %v914
        %948 = vst.msk [vmem:[#allocation2 + $0x244] sm:$0xf] %vm918, %v915
        %949 = vst.msk [vmem:[#allocation2 + $0x258] sm:$0xf] %vm918, %v916
        %950 = vst.msk [vmem:[#allocation2 + $0x26c] sm:$0xf] %vm918, %v917
        %952 = vset.pattern.permute.xlu0 0
        %953 = vperm.xlu0 %952, %v333
        %v954 = vpop.permute.xlu0 %953
        %957 = vset.pattern.permute.xlu0 0
        %958 = vperm.xlu0 %957, %v334
        %v959 = vpop.permute.xlu0 %958
        %962 = vset.pattern.permute.xlu0 0
        %963 = vperm.xlu0 %962, %v335
        %v964 = vpop.permute.xlu0 %963
        %967 = vset.pattern.permute.xlu0 0
        %968 = vperm.xlu0 %967, %v336
        %v969 = vpop.permute.xlu0 %968
        %972 = vset.pattern.permute.xlu0 0
        %973 = vperm.xlu0 %972, %v337
        %v974 = vpop.permute.xlu0 %973
        %977 = vset.pattern.permute.xlu0 0
        %978 = vperm.xlu0 %977, %v338
        %v979 = vpop.permute.xlu0 %978
        %982 = vset.pattern.permute.xlu0 0
        %983 = vperm.xlu0 %982, %v339
        %v984 = vpop.permute.xlu0 %983
        %987 = vset.pattern.permute.xlu0 0
        %988 = vperm.xlu0 %987, %v340
        %v989 = vpop.permute.xlu0 %988
        %992 = vset.pattern.permute.xlu0 0
        %993 = vperm.xlu0 %992, %v341
        %v994 = vpop.permute.xlu0 %993
        %997 = vset.pattern.permute.xlu0 0
        %998 = vperm.xlu0 %997, %v342
        %v999 = vpop.permute.xlu0 %998
        %1002 = vset.pattern.permute.xlu0 0
        %1003 = vperm.xlu0 %1002, %v343
        %v1004 = vpop.permute.xlu0 %1003
        %1007 = vset.pattern.permute.xlu0 0
        %1008 = vperm.xlu0 %1007, %v344
        %v1009 = vpop.permute.xlu0 %1008
        %1012 = vset.pattern.permute.xlu0 0
        %1013 = vperm.xlu0 %1012, %v345
        %v1014 = vpop.permute.xlu0 %1013
        %1017 = vset.pattern.permute.xlu0 0
        %1018 = vperm.xlu0 %1017, %v346
        %v1019 = vpop.permute.xlu0 %1018
        %1022 = vset.pattern.permute.xlu0 0
        %1023 = vperm.xlu0 %1022, %v347
        %v1024 = vpop.permute.xlu0 %1023
        %1027 = vset.pattern.permute.xlu0 0
        %1028 = vperm.xlu0 %1027, %v348
        %v1029 = vpop.permute.xlu0 %1028
        %1032 = vset.pattern.permute.xlu0 0
        %1033 = vperm.xlu0 %1032, %v349
        %v1034 = vpop.permute.xlu0 %1033
        %1037 = vset.pattern.permute.xlu0 0
        %1038 = vperm.xlu0 %1037, %v350
        %v1039 = vpop.permute.xlu0 %1038
        %1042 = vset.pattern.permute.xlu0 0
        %1043 = vperm.xlu0 %1042, %v351
        %v1044 = vpop.permute.xlu0 %1043
        %1047 = vset.pattern.permute.xlu0 0
        %1048 = vperm.xlu0 %1047, %v352
        %v1049 = vpop.permute.xlu0 %1048
        %1052 = vset.pattern.permute.xlu0 0
        %1053 = vperm.xlu0 %1052, %v353
        %v1054 = vpop.permute.xlu0 %1053
        %1057 = vset.pattern.permute.xlu0 0
        %1058 = vperm.xlu0 %1057, %v354
        %v1059 = vpop.permute.xlu0 %1058
        %1062 = vset.pattern.permute.xlu0 0
        %1063 = vperm.xlu0 %1062, %v355
        %v1064 = vpop.permute.xlu0 %1063
        %1067 = vset.pattern.permute.xlu0 0
        %1068 = vperm.xlu0 %1067, %v356
        %v1069 = vpop.permute.xlu0 %1068
        %1072 = vset.pattern.permute.xlu0 0
        %1073 = vperm.xlu0 %1072, %v357
        %v1074 = vpop.permute.xlu0 %1073
        %1077 = vset.pattern.permute.xlu0 0
        %1078 = vperm.xlu0 %1077, %v358
        %v1079 = vpop.permute.xlu0 %1078
        %1082 = vset.pattern.permute.xlu0 0
        %1083 = vperm.xlu0 %1082, %v359
        %v1084 = vpop.permute.xlu0 %1083
        %1087 = vset.pattern.permute.xlu0 0
        %1088 = vperm.xlu0 %1087, %v360
        %v1089 = vpop.permute.xlu0 %1088
        %1092 = vset.pattern.permute.xlu0 0
        %1093 = vperm.xlu0 %1092, %v361
        %v1094 = vpop.permute.xlu0 %1093
        %1097 = vset.pattern.permute.xlu0 0
        %1098 = vperm.xlu0 %1097, %v362
        %v1099 = vpop.permute.xlu0 %1098
        %1102 = vset.pattern.permute.xlu0 0
        %1103 = vperm.xlu0 %1102, %v363
        %v1104 = vpop.permute.xlu0 %1103
        %1107 = vset.pattern.permute.xlu0 0
        %1108 = vperm.xlu0 %1107, %v364
        %v1109 = vpop.permute.xlu0 %1108
        %v1111 = vmul.f32 %v625, %v954
        %v1112 = vmul.f32 %v626, %v959
        %v1113 = vmul.f32 %v595, %v964
        %v1114 = vmul.f32 %v596, %v969
        %v1115 = vmul.f32 %v597, %v974
        %v1116 = vmul.f32 %v598, %v979
        %v1117 = vmul.f32 %v599, %v984
        %v1118 = vmul.f32 %v600, %v989
        %v1119 = vmul.f32 %v601, %v994
        %v1120 = vmul.f32 %v602, %v999
        %v1121 = vmul.f32 %v603, %v1004
        %v1122 = vmul.f32 %v604, %v1009
        %v1123 = vmul.f32 %v605, %v1014
        %v1124 = vmul.f32 %v606, %v1019
        %v1125 = vmul.f32 %v607, %v1024
        %v1126 = vmul.f32 %v608, %v1029
        %v1127 = vmul.f32 %v609, %v1034
        %v1128 = vmul.f32 %v610, %v1039
        %v1129 = vmul.f32 %v611, %v1044
        %v1130 = vmul.f32 %v612, %v1049
        %v1131 = vmul.f32 %v613, %v1054
        %v1132 = vmul.f32 %v614, %v1059
        %v1133 = vmul.f32 %v615, %v1064
        %v1134 = vmul.f32 %v616, %v1069
        %v1135 = vmul.f32 %v617, %v1074
        %v1136 = vmul.f32 %v618, %v1079
        %v1137 = vmul.f32 %v619, %v1084
        %v1138 = vmul.f32 %v620, %v1089
        %v1139 = vmul.f32 %v621, %v1094
        %v1140 = vmul.f32 %v622, %v1099
        %v1141 = vmul.f32 %v623, %v1104
        %v1142 = vmul.f32 %v624, %v1109
        %v1143 = vpack.c.bf16 %v1111, %v1111
        %v1144 = vpack.c.bf16 %v1112, %v1112
        %v1145 = vpack.c.bf16 %v1113, %v1113
        %v1146 = vpack.c.bf16 %v1114, %v1114
        %v1147 = vpack.c.bf16 %v1115, %v1115
        %v1148 = vpack.c.bf16 %v1116, %v1116
        %v1149 = vpack.c.bf16 %v1117, %v1117
        %v1150 = vpack.c.bf16 %v1118, %v1118
        %v1151 = vpack.c.bf16 %v1119, %v1119
        %v1152 = vpack.c.bf16 %v1120, %v1120
        %v1153 = vpack.c.bf16 %v1121, %v1121
        %v1154 = vpack.c.bf16 %v1122, %v1122
        %v1155 = vpack.c.bf16 %v1123, %v1123
        %v1156 = vpack.c.bf16 %v1124, %v1124
        %v1157 = vpack.c.bf16 %v1125, %v1125
        %v1158 = vpack.c.bf16 %v1126, %v1126
        %v1159 = vpack.c.bf16 %v1127, %v1127
        %v1160 = vpack.c.bf16 %v1128, %v1128
        %v1161 = vpack.c.bf16 %v1129, %v1129
        %v1162 = vpack.c.bf16 %v1130, %v1130
        %v1163 = vpack.c.bf16 %v1131, %v1131
        %v1164 = vpack.c.bf16 %v1132, %v1132
        %v1165 = vpack.c.bf16 %v1133, %v1133
        %v1166 = vpack.c.bf16 %v1134, %v1134
        %v1167 = vpack.c.bf16 %v1135, %v1135
        %v1168 = vpack.c.bf16 %v1136, %v1136
        %v1169 = vpack.c.bf16 %v1137, %v1137
        %v1170 = vpack.c.bf16 %v1138, %v1138
        %v1171 = vpack.c.bf16 %v1139, %v1139
        %v1172 = vpack.c.bf16 %v1140, %v1140
        %v1173 = vpack.c.bf16 %v1141, %v1141
        %v1174 = vpack.c.bf16 %v1142, %v1142
        %1207 = vrot.lane.b32.xlu0 %v1143, 64
        %v1208 = vpop.permute.xlu0 %1207
        %1209 = vrot.lane.b32.xlu0 %v1144, 64
        %v1210 = vpop.permute.xlu0 %1209
        %1211 = vrot.lane.b32.xlu0 %v1145, 64
        %v1212 = vpop.permute.xlu0 %1211
        %1213 = vrot.lane.b32.xlu0 %v1146, 64
        %v1214 = vpop.permute.xlu0 %1213
        %1215 = vrot.lane.b32.xlu0 %v1147, 64
        %v1216 = vpop.permute.xlu0 %1215
        %1217 = vrot.lane.b32.xlu0 %v1148, 64
        %v1218 = vpop.permute.xlu0 %1217
        %1219 = vrot.lane.b32.xlu0 %v1149, 64
        %v1220 = vpop.permute.xlu0 %1219
        %1221 = vrot.lane.b32.xlu0 %v1150, 64
        %v1222 = vpop.permute.xlu0 %1221
        %1223 = vrot.lane.b32.xlu0 %v1151, 64
        %v1224 = vpop.permute.xlu0 %1223
        %1225 = vrot.lane.b32.xlu0 %v1152, 64
        %v1226 = vpop.permute.xlu0 %1225
        %1227 = vrot.lane.b32.xlu0 %v1153, 64
        %v1228 = vpop.permute.xlu0 %1227
        %1229 = vrot.lane.b32.xlu0 %v1154, 64
        %v1230 = vpop.permute.xlu0 %1229
        %1231 = vrot.lane.b32.xlu0 %v1155, 64
        %v1232 = vpop.permute.xlu0 %1231
        %1233 = vrot.lane.b32.xlu0 %v1156, 64
        %v1234 = vpop.permute.xlu0 %1233
        %1235 = vrot.lane.b32.xlu0 %v1157, 64
        %v1236 = vpop.permute.xlu0 %1235
        %1237 = vrot.lane.b32.xlu0 %v1158, 64
        %v1238 = vpop.permute.xlu0 %1237
        %1239 = vrot.lane.b32.xlu0 %v1159, 64
        %v1240 = vpop.permute.xlu0 %1239
        %1241 = vrot.lane.b32.xlu0 %v1160, 64
        %v1242 = vpop.permute.xlu0 %1241
        %1243 = vrot.lane.b32.xlu0 %v1161, 64
        %v1244 = vpop.permute.xlu0 %1243
        %1245 = vrot.lane.b32.xlu0 %v1162, 64
        %v1246 = vpop.permute.xlu0 %1245
        %1247 = vrot.lane.b32.xlu0 %v1163, 64
        %v1248 = vpop.permute.xlu0 %1247
        %1249 = vrot.lane.b32.xlu0 %v1164, 64
        %v1250 = vpop.permute.xlu0 %1249
        %1251 = vrot.lane.b32.xlu0 %v1165, 64
        %v1252 = vpop.permute.xlu0 %1251
        %1253 = vrot.lane.b32.xlu0 %v1166, 64
        %v1254 = vpop.permute.xlu0 %1253
        %1255 = vrot.lane.b32.xlu0 %v1167, 64
        %v1256 = vpop.permute.xlu0 %1255
        %1257 = vrot.lane.b32.xlu0 %v1168, 64
        %v1258 = vpop.permute.xlu0 %1257
        %1259 = vrot.lane.b32.xlu0 %v1169, 64
        %v1260 = vpop.permute.xlu0 %1259
        %1261 = vrot.lane.b32.xlu0 %v1170, 64
        %v1262 = vpop.permute.xlu0 %1261
        %1263 = vrot.lane.b32.xlu0 %v1171, 64
        %v1264 = vpop.permute.xlu0 %1263
        %1265 = vrot.lane.b32.xlu0 %v1172, 64
        %v1266 = vpop.permute.xlu0 %1265
        %1267 = vrot.lane.b32.xlu0 %v1173, 64
        %v1268 = vpop.permute.xlu0 %1267
        %1269 = vrot.lane.b32.xlu0 %v1174, 64
        %v1270 = vpop.permute.xlu0 %1269
        %vm1303 = vcmask 1043968
        %1304 = vst.msk [vmem:[#allocation2] sm:$0xf] %vm1303, %v1208
        %1305 = vst.msk [vmem:[#allocation2 + $0x14] sm:$0xf] %vm1303, %v1210
        %1306 = vst.msk [vmem:[#allocation2 + $0x28] sm:$0xf] %vm1303, %v1212
        %1307 = vst.msk [vmem:[#allocation2 + $0x3c] sm:$0xf] %vm1303, %v1214
        %1308 = vst.msk [vmem:[#allocation2 + $0x50] sm:$0xf] %vm1303, %v1216
        %1309 = vst.msk [vmem:[#allocation2 + $0x64] sm:$0xf] %vm1303, %v1218
        %1310 = vst.msk [vmem:[#allocation2 + $0x78] sm:$0xf] %vm1303, %v1220
        %1311 = vst.msk [vmem:[#allocation2 + $0x8c] sm:$0xf] %vm1303, %v1222
        %1312 = vst.msk [vmem:[#allocation2 + $0xa0] sm:$0xf] %vm1303, %v1224
        %1313 = vst.msk [vmem:[#allocation2 + $0xb4] sm:$0xf] %vm1303, %v1226
        %1314 = vst.msk [vmem:[#allocation2 + $0xc8] sm:$0xf] %vm1303, %v1228
        %1315 = vst.msk [vmem:[#allocation2 + $0xdc] sm:$0xf] %vm1303, %v1230
        %1316 = vst.msk [vmem:[#allocation2 + $0xf0] sm:$0xf] %vm1303, %v1232
        %1317 = vst.msk [vmem:[#allocation2 + $0x104] sm:$0xf] %vm1303, %v1234
        %1318 = vst.msk [vmem:[#allocation2 + $0x118] sm:$0xf] %vm1303, %v1236
        %1319 = vst.msk [vmem:[#allocation2 + $0x12c] sm:$0xf] %vm1303, %v1238
        %1320 = vst.msk [vmem:[#allocation2 + $0x140] sm:$0xf] %vm1303, %v1240
        %1321 = vst.msk [vmem:[#allocation2 + $0x154] sm:$0xf] %vm1303, %v1242
        %1322 = vst.msk [vmem:[#allocation2 + $0x168] sm:$0xf] %vm1303, %v1244
        %1323 = vst.msk [vmem:[#allocation2 + $0x17c] sm:$0xf] %vm1303, %v1246
        %1324 = vst.msk [vmem:[#allocation2 + $0x190] sm:$0xf] %vm1303, %v1248
        %1325 = vst.msk [vmem:[#allocation2 + $0x1a4] sm:$0xf] %vm1303, %v1250
        %1326 = vst.msk [vmem:[#allocation2 + $0x1b8] sm:$0xf] %vm1303, %v1252
        %1327 = vst.msk [vmem:[#allocation2 + $0x1cc] sm:$0xf] %vm1303, %v1254
        %1328 = vst.msk [vmem:[#allocation2 + $0x1e0] sm:$0xf] %vm1303, %v1256
        %1329 = vst.msk [vmem:[#allocation2 + $0x1f4] sm:$0xf] %vm1303, %v1258
        %1330 = vst.msk [vmem:[#allocation2 + $0x208] sm:$0xf] %vm1303, %v1260
        %1331 = vst.msk [vmem:[#allocation2 + $0x21c] sm:$0xf] %vm1303, %v1262
        %1332 = vst.msk [vmem:[#allocation2 + $0x230] sm:$0xf] %vm1303, %v1264
        %1333 = vst.msk [vmem:[#allocation2 + $0x244] sm:$0xf] %vm1303, %v1266
        %1334 = vst.msk [vmem:[#allocation2 + $0x258] sm:$0xf] %vm1303, %v1268
        %1335 = vst.msk [vmem:[#allocation2 + $0x26c] sm:$0xf] %vm1303, %v1270
        %v1336 = vrot.slane %v595, 1
        %v1337 = vrot.slane %v596, 1
        %v1338 = vrot.slane %v597, 1
        %v1339 = vrot.slane %v598, 1
        %v1340 = vrot.slane %v599, 1
        %v1341 = vrot.slane %v600, 1
        %v1342 = vrot.slane %v601, 1
        %v1343 = vrot.slane %v602, 1
        %v1344 = vrot.slane %v603, 1
        %v1345 = vrot.slane %v604, 1
        %v1346 = vrot.slane %v605, 1
        %v1347 = vrot.slane %v606, 1
        %v1348 = vrot.slane %v607, 1
        %v1349 = vrot.slane %v608, 1
        %v1350 = vrot.slane %v609, 1
        %v1351 = vrot.slane %v610, 1
        %v1352 = vrot.slane %v611, 1
        %v1353 = vrot.slane %v612, 1
        %v1354 = vrot.slane %v613, 1
        %v1355 = vrot.slane %v614, 1
        %v1356 = vrot.slane %v615, 1
        %v1357 = vrot.slane %v616, 1
        %v1358 = vrot.slane %v617, 1
        %v1359 = vrot.slane %v618, 1
        %v1360 = vrot.slane %v619, 1
        %v1361 = vrot.slane %v620, 1
        %v1362 = vrot.slane %v621, 1
        %v1363 = vrot.slane %v622, 1
        %v1364 = vrot.slane %v623, 1
        %v1365 = vrot.slane %v624, 1
        %v1366 = vrot.slane %v625, 1
        %v1367 = vrot.slane %v626, 1
        %vm1368 = vcmp.lt.s32.totalorder %v660, 7
        %v1369 = vsel %vm1368, %v1366, %v1367
        %v1370 = vsel %vm1368, %v1365, %v1366
        %v1371 = vsel %vm1368, %v1364, %v1365
        %v1372 = vsel %vm1368, %v1363, %v1364
        %v1373 = vsel %vm1368, %v1362, %v1363
        %v1374 = vsel %vm1368, %v1361, %v1362
        %v1375 = vsel %vm1368, %v1360, %v1361
        %v1376 = vsel %vm1368, %v1359, %v1360
        %v1377 = vsel %vm1368, %v1358, %v1359
        %v1378 = vsel %vm1368, %v1357, %v1358
        %v1379 = vsel %vm1368, %v1356, %v1357
        %v1380 = vsel %vm1368, %v1355, %v1356
        %v1381 = vsel %vm1368, %v1354, %v1355
        %v1382 = vsel %vm1368, %v1353, %v1354
        %v1383 = vsel %vm1368, %v1352, %v1353
        %v1384 = vsel %vm1368, %v1351, %v1352
        %v1385 = vsel %vm1368, %v1350, %v1351
        %v1386 = vsel %vm1368, %v1349, %v1350
        %v1387 = vsel %vm1368, %v1348, %v1349
        %v1388 = vsel %vm1368, %v1347, %v1348
        %v1389 = vsel %vm1368, %v1346, %v1347
        %v1390 = vsel %vm1368, %v1345, %v1346
        %v1391 = vsel %vm1368, %v1344, %v1345
        %v1392 = vsel %vm1368, %v1343, %v1344
        %v1393 = vsel %vm1368, %v1342, %v1343
        %v1394 = vsel %vm1368, %v1341, %v1342
        %v1395 = vsel %vm1368, %v1340, %v1341
        %v1396 = vsel %vm1368, %v1339, %v1340
        %v1397 = vsel %vm1368, %v1338, %v1339
        %v1398 = vsel %vm1368, %v1337, %v1338
        %v1399 = vsel %vm1368, %v1336, %v1337
        %v1400 = vsel %vm1368, %v1367, %v1336
        %1402 = vset.pattern.permute.xlu0 0
        %1403 = vperm.xlu0 %1402, %v366
        %v1404 = vpop.permute.xlu0 %1403
        %1407 = vset.pattern.permute.xlu0 0
        %1408 = vperm.xlu0 %1407, %v367
        %v1409 = vpop.permute.xlu0 %1408
        %1412 = vset.pattern.permute.xlu0 0
        %1413 = vperm.xlu0 %1412, %v368
        %v1414 = vpop.permute.xlu0 %1413
        %1417 = vset.pattern.permute.xlu0 0
        %1418 = vperm.xlu0 %1417, %v369
        %v1419 = vpop.permute.xlu0 %1418
        %1422 = vset.pattern.permute.xlu0 0
        %1423 = vperm.xlu0 %1422, %v370
        %v1424 = vpop.permute.xlu0 %1423
        %1427 = vset.pattern.permute.xlu0 0
        %1428 = vperm.xlu0 %1427, %v371
        %v1429 = vpop.permute.xlu0 %1428
        %1432 = vset.pattern.permute.xlu0 0
        %1433 = vperm.xlu0 %1432, %v372
        %v1434 = vpop.permute.xlu0 %1433
        %1437 = vset.pattern.permute.xlu0 0
        %1438 = vperm.xlu0 %1437, %v373
        %v1439 = vpop.permute.xlu0 %1438
        %1442 = vset.pattern.permute.xlu0 0
        %1443 = vperm.xlu0 %1442, %v374
        %v1444 = vpop.permute.xlu0 %1443
        %1447 = vset.pattern.permute.xlu0 0
        %1448 = vperm.xlu0 %1447, %v375
        %v1449 = vpop.permute.xlu0 %1448
        %1452 = vset.pattern.permute.xlu0 0
        %1453 = vperm.xlu0 %1452, %v376
        %v1454 = vpop.permute.xlu0 %1453
        %1457 = vset.pattern.permute.xlu0 0
        %1458 = vperm.xlu0 %1457, %v377
        %v1459 = vpop.permute.xlu0 %1458
        %1462 = vset.pattern.permute.xlu0 0
        %1463 = vperm.xlu0 %1462, %v378
        %v1464 = vpop.permute.xlu0 %1463
        %1467 = vset.pattern.permute.xlu0 0
        %1468 = vperm.xlu0 %1467, %v379
        %v1469 = vpop.permute.xlu0 %1468
        %1472 = vset.pattern.permute.xlu0 0
        %1473 = vperm.xlu0 %1472, %v380
        %v1474 = vpop.permute.xlu0 %1473
        %1477 = vset.pattern.permute.xlu0 0
        %1478 = vperm.xlu0 %1477, %v381
        %v1479 = vpop.permute.xlu0 %1478
        %1482 = vset.pattern.permute.xlu0 0
        %1483 = vperm.xlu0 %1482, %v382
        %v1484 = vpop.permute.xlu0 %1483
        %1487 = vset.pattern.permute.xlu0 0
        %1488 = vperm.xlu0 %1487, %v383
        %v1489 = vpop.permute.xlu0 %1488
        %1492 = vset.pattern.permute.xlu0 0
        %1493 = vperm.xlu0 %1492, %v384
        %v1494 = vpop.permute.xlu0 %1493
        %1497 = vset.pattern.permute.xlu0 0
        %1498 = vperm.xlu0 %1497, %v385
        %v1499 = vpop.permute.xlu0 %1498
        %1502 = vset.pattern.permute.xlu0 0
        %1503 = vperm.xlu0 %1502, %v386
        %v1504 = vpop.permute.xlu0 %1503
        %1507 = vset.pattern.permute.xlu0 0
        %1508 = vperm.xlu0 %1507, %v387
        %v1509 = vpop.permute.xlu0 %1508
        %1512 = vset.pattern.permute.xlu0 0
        %1513 = vperm.xlu0 %1512, %v388
        %v1514 = vpop.permute.xlu0 %1513
        %1517 = vset.pattern.permute.xlu0 0
        %1518 = vperm.xlu0 %1517, %v389
        %v1519 = vpop.permute.xlu0 %1518
        %1522 = vset.pattern.permute.xlu0 0
        %1523 = vperm.xlu0 %1522, %v390
        %v1524 = vpop.permute.xlu0 %1523
        %1527 = vset.pattern.permute.xlu0 0
        %1528 = vperm.xlu0 %1527, %v391
        %v1529 = vpop.permute.xlu0 %1528
        %1532 = vset.pattern.permute.xlu0 0
        %1533 = vperm.xlu0 %1532, %v392
        %v1534 = vpop.permute.xlu0 %1533
        %1537 = vset.pattern.permute.xlu0 0
        %1538 = vperm.xlu0 %1537, %v393
        %v1539 = vpop.permute.xlu0 %1538
        %1542 = vset.pattern.permute.xlu0 0
        %1543 = vperm.xlu0 %1542, %v394
        %v1544 = vpop.permute.xlu0 %1543
        %1547 = vset.pattern.permute.xlu0 0
        %1548 = vperm.xlu0 %1547, %v395
        %v1549 = vpop.permute.xlu0 %1548
        %1552 = vset.pattern.permute.xlu0 0
        %1553 = vperm.xlu0 %1552, %v396
        %v1554 = vpop.permute.xlu0 %1553
        %1557 = vset.pattern.permute.xlu0 0
        %1558 = vperm.xlu0 %1557, %v397
        %v1559 = vpop.permute.xlu0 %1558
        %v1561 = vmul.f32 %v1369, %v1404
        %v1562 = vmul.f32 %v1400, %v1409
        %v1563 = vmul.f32 %v1399, %v1414
        %v1564 = vmul.f32 %v1398, %v1419
        %v1565 = vmul.f32 %v1397, %v1424
        %v1566 = vmul.f32 %v1396, %v1429
        %v1567 = vmul.f32 %v1395, %v1434
        %v1568 = vmul.f32 %v1394, %v1439
        %v1569 = vmul.f32 %v1393, %v1444
        %v1570 = vmul.f32 %v1392, %v1449
        %v1571 = vmul.f32 %v1391, %v1454
        %v1572 = vmul.f32 %v1390, %v1459
        %v1573 = vmul.f32 %v1389, %v1464
        %v1574 = vmul.f32 %v1388, %v1469
        %v1575 = vmul.f32 %v1387, %v1474
        %v1576 = vmul.f32 %v1386, %v1479
        %v1577 = vmul.f32 %v1385, %v1484
        %v1578 = vmul.f32 %v1384, %v1489
        %v1579 = vmul.f32 %v1383, %v1494
        %v1580 = vmul.f32 %v1382, %v1499
        %v1581 = vmul.f32 %v1381, %v1504
        %v1582 = vmul.f32 %v1380, %v1509
        %v1583 = vmul.f32 %v1379, %v1514
        %v1584 = vmul.f32 %v1378, %v1519
        %v1585 = vmul.f32 %v1377, %v1524
        %v1586 = vmul.f32 %v1376, %v1529
        %v1587 = vmul.f32 %v1375, %v1534
        %v1588 = vmul.f32 %v1374, %v1539
        %v1589 = vmul.f32 %v1373, %v1544
        %v1590 = vmul.f32 %v1372, %v1549
        %v1591 = vmul.f32 %v1371, %v1554
        %v1592 = vmul.f32 %v1370, %v1559
        %v1593 = vpack.c.bf16 %v1561, %v1561
        %v1594 = vpack.c.bf16 %v1562, %v1562
        %v1595 = vpack.c.bf16 %v1563, %v1563
        %v1596 = vpack.c.bf16 %v1564, %v1564
        %v1597 = vpack.c.bf16 %v1565, %v1565
        %v1598 = vpack.c.bf16 %v1566, %v1566
        %v1599 = vpack.c.bf16 %v1567, %v1567
        %v1600 = vpack.c.bf16 %v1568, %v1568
        %v1601 = vpack.c.bf16 %v1569, %v1569
        %v1602 = vpack.c.bf16 %v1570, %v1570
        %v1603 = vpack.c.bf16 %v1571, %v1571
        %v1604 = vpack.c.bf16 %v1572, %v1572
        %v1605 = vpack.c.bf16 %v1573, %v1573
        %v1606 = vpack.c.bf16 %v1574, %v1574
        %v1607 = vpack.c.bf16 %v1575, %v1575
        %v1608 = vpack.c.bf16 %v1576, %v1576
        %v1609 = vpack.c.bf16 %v1577, %v1577
        %v1610 = vpack.c.bf16 %v1578, %v1578
        %v1611 = vpack.c.bf16 %v1579, %v1579
        %v1612 = vpack.c.bf16 %v1580, %v1580
        %v1613 = vpack.c.bf16 %v1581, %v1581
        %v1614 = vpack.c.bf16 %v1582, %v1582
        %v1615 = vpack.c.bf16 %v1583, %v1583
        %v1616 = vpack.c.bf16 %v1584, %v1584
        %v1617 = vpack.c.bf16 %v1585, %v1585
        %v1618 = vpack.c.bf16 %v1586, %v1586
        %v1619 = vpack.c.bf16 %v1587, %v1587
        %v1620 = vpack.c.bf16 %v1588, %v1588
        %v1621 = vpack.c.bf16 %v1589, %v1589
        %v1622 = vpack.c.bf16 %v1590, %v1590
        %v1623 = vpack.c.bf16 %v1591, %v1591
        %v1624 = vpack.c.bf16 %v1592, %v1592
        %1625 = vst.msk [vmem:[#allocation2 + $0x4] sm:$0xf] %vm918, %v1593
        %1626 = vst.msk [vmem:[#allocation2 + $0x18] sm:$0xf] %vm918, %v1594
        %1627 = vst.msk [vmem:[#allocation2 + $0x2c] sm:$0xf] %vm918, %v1595
        %1628 = vst.msk [vmem:[#allocation2 + $0x40] sm:$0xf] %vm918, %v1596
        %1629 = vst.msk [vmem:[#allocation2 + $0x54] sm:$0xf] %vm918, %v1597
        %1630 = vst.msk [vmem:[#allocation2 + $0x68] sm:$0xf] %vm918, %v1598
        %1631 = vst.msk [vmem:[#allocation2 + $0x7c] sm:$0xf] %vm918, %v1599
        %1632 = vst.msk [vmem:[#allocation2 + $0x90] sm:$0xf] %vm918, %v1600
        %1633 = vst.msk [vmem:[#allocation2 + $0xa4] sm:$0xf] %vm918, %v1601
        %1634 = vst.msk [vmem:[#allocation2 + $0xb8] sm:$0xf] %vm918, %v1602
        %1635 = vst.msk [vmem:[#allocation2 + $0xcc] sm:$0xf] %vm918, %v1603
        %1636 = vst.msk [vmem:[#allocation2 + $0xe0] sm:$0xf] %vm918, %v1604
        %1637 = vst.msk [vmem:[#allocation2 + $0xf4] sm:$0xf] %vm918, %v1605
        %1638 = vst.msk [vmem:[#allocation2 + $0x108] sm:$0xf] %vm918, %v1606
        %1639 = vst.msk [vmem:[#allocation2 + $0x11c] sm:$0xf] %vm918, %v1607
        %1640 = vst.msk [vmem:[#allocation2 + $0x130] sm:$0xf] %vm918, %v1608
        %1641 = vst.msk [vmem:[#allocation2 + $0x144] sm:$0xf] %vm918, %v1609
        %1642 = vst.msk [vmem:[#allocation2 + $0x158] sm:$0xf] %vm918, %v1610
        %1643 = vst.msk [vmem:[#allocation2 + $0x16c] sm:$0xf] %vm918, %v1611
        %1644 = vst.msk [vmem:[#allocation2 + $0x180] sm:$0xf] %vm918, %v1612
        %1645 = vst.msk [vmem:[#allocation2 + $0x194] sm:$0xf] %vm918, %v1613
        %1646 = vst.msk [vmem:[#allocation2 + $0x1a8] sm:$0xf] %vm918, %v1614
        %1647 = vst.msk [vmem:[#allocation2 + $0x1bc] sm:$0xf] %vm918, %v1615
        %1648 = vst.msk [vmem:[#allocation2 + $0x1d0] sm:$0xf] %vm918, %v1616
        %1649 = vst.msk [vmem:[#allocation2 + $0x1e4] sm:$0xf] %vm918, %v1617
        %1650 = vst.msk [vmem:[#allocation2 + $0x1f8] sm:$0xf] %vm918, %v1618
        %1651 = vst.msk [vmem:[#allocation2 + $0x20c] sm:$0xf] %vm918, %v1619
        %1652 = vst.msk [vmem:[#allocation2 + $0x220] sm:$0xf] %vm918, %v1620
        %1653 = vst.msk [vmem:[#allocation2 + $0x234] sm:$0xf] %vm918, %v1621
        %1654 = vst.msk [vmem:[#allocation2 + $0x248] sm:$0xf] %vm918, %v1622
        %1655 = vst.msk [vmem:[#allocation2 + $0x25c] sm:$0xf] %vm918, %v1623
        %1656 = vst.msk [vmem:[#allocation2 + $0x270] sm:$0xf] %vm918, %v1624
        %1658 = vset.pattern.permute.xlu0 0
        %1659 = vperm.xlu0 %1658, %v399
        %v1660 = vpop.permute.xlu0 %1659
        %1663 = vset.pattern.permute.xlu0 0
        %1664 = vperm.xlu0 %1663, %v400
        %v1665 = vpop.permute.xlu0 %1664
        %1668 = vset.pattern.permute.xlu0 0
        %1669 = vperm.xlu0 %1668, %v401
        %v1670 = vpop.permute.xlu0 %1669
        %1673 = vset.pattern.permute.xlu0 0
        %1674 = vperm.xlu0 %1673, %v402
        %v1675 = vpop.permute.xlu0 %1674
        %1678 = vset.pattern.permute.xlu0 0
        %1679 = vperm.xlu0 %1678, %v403
        %v1680 = vpop.permute.xlu0 %1679
        %1683 = vset.pattern.permute.xlu0 0
        %1684 = vperm.xlu0 %1683, %v404
        %v1685 = vpop.permute.xlu0 %1684
        %1688 = vset.pattern.permute.xlu0 0
        %1689 = vperm.xlu0 %1688, %v405
        %v1690 = vpop.permute.xlu0 %1689
        %1693 = vset.pattern.permute.xlu0 0
        %1694 = vperm.xlu0 %1693, %v406
        %v1695 = vpop.permute.xlu0 %1694
        %1698 = vset.pattern.permute.xlu0 0
        %1699 = vperm.xlu0 %1698, %v407
        %v1700 = vpop.permute.xlu0 %1699
        %1703 = vset.pattern.permute.xlu0 0
        %1704 = vperm.xlu0 %1703, %v408
        %v1705 = vpop.permute.xlu0 %1704
        %1708 = vset.pattern.permute.xlu0 0
        %1709 = vperm.xlu0 %1708, %v409
        %v1710 = vpop.permute.xlu0 %1709
        %1713 = vset.pattern.permute.xlu0 0
        %1714 = vperm.xlu0 %1713, %v410
        %v1715 = vpop.permute.xlu0 %1714
        %1718 = vset.pattern.permute.xlu0 0
        %1719 = vperm.xlu0 %1718, %v411
        %v1720 = vpop.permute.xlu0 %1719
        %1723 = vset.pattern.permute.xlu0 0
        %1724 = vperm.xlu0 %1723, %v412
        %v1725 = vpop.permute.xlu0 %1724
        %1728 = vset.pattern.permute.xlu0 0
        %1729 = vperm.xlu0 %1728, %v413
        %v1730 = vpop.permute.xlu0 %1729
        %1733 = vset.pattern.permute.xlu0 0
        %1734 = vperm.xlu0 %1733, %v414
        %v1735 = vpop.permute.xlu0 %1734
        %1738 = vset.pattern.permute.xlu0 0
        %1739 = vperm.xlu0 %1738, %v415
        %v1740 = vpop.permute.xlu0 %1739
        %1743 = vset.pattern.permute.xlu0 0
        %1744 = vperm.xlu0 %1743, %v416
        %v1745 = vpop.permute.xlu0 %1744
        %1748 = vset.pattern.permute.xlu0 0
        %1749 = vperm.xlu0 %1748, %v417
        %v1750 = vpop.permute.xlu0 %1749
        %1753 = vset.pattern.permute.xlu0 0
        %1754 = vperm.xlu0 %1753, %v418
        %v1755 = vpop.permute.xlu0 %1754
        %1758 = vset.pattern.permute.xlu0 0
        %1759 = vperm.xlu0 %1758, %v419
        %v1760 = vpop.permute.xlu0 %1759
        %1763 = vset.pattern.permute.xlu0 0
        %1764 = vperm.xlu0 %1763, %v420
        %v1765 = vpop.permute.xlu0 %1764
        %1768 = vset.pattern.permute.xlu0 0
        %1769 = vperm.xlu0 %1768, %v421
        %v1770 = vpop.permute.xlu0 %1769
        %1773 = vset.pattern.permute.xlu0 0
        %1774 = vperm.xlu0 %1773, %v422
        %v1775 = vpop.permute.xlu0 %1774
        %1778 = vset.pattern.permute.xlu0 0
        %1779 = vperm.xlu0 %1778, %v423
        %v1780 = vpop.permute.xlu0 %1779
        %1783 = vset.pattern.permute.xlu0 0
        %1784 = vperm.xlu0 %1783, %v424
        %v1785 = vpop.permute.xlu0 %1784
        %1788 = vset.pattern.permute.xlu0 0
        %1789 = vperm.xlu0 %1788, %v425
        %v1790 = vpop.permute.xlu0 %1789
        %1793 = vset.pattern.permute.xlu0 0
        %1794 = vperm.xlu0 %1793, %v426
        %v1795 = vpop.permute.xlu0 %1794
        %1798 = vset.pattern.permute.xlu0 0
        %1799 = vperm.xlu0 %1798, %v427
        %v1800 = vpop.permute.xlu0 %1799
        %1803 = vset.pattern.permute.xlu0 0
        %1804 = vperm.xlu0 %1803, %v428
        %v1805 = vpop.permute.xlu0 %1804
        %1808 = vset.pattern.permute.xlu0 0
        %1809 = vperm.xlu0 %1808, %v429
        %v1810 = vpop.permute.xlu0 %1809
        %1813 = vset.pattern.permute.xlu0 0
        %1814 = vperm.xlu0 %1813, %v430
        %v1815 = vpop.permute.xlu0 %1814
        %v1817 = vmul.f32 %v693, %v1660
        %v1818 = vmul.f32 %v692, %v1665
        %v1819 = vmul.f32 %v691, %v1670
        %v1820 = vmul.f32 %v690, %v1675
        %v1821 = vmul.f32 %v689, %v1680
        %v1822 = vmul.f32 %v688, %v1685
        %v1823 = vmul.f32 %v687, %v1690
        %v1824 = vmul.f32 %v686, %v1695
        %v1825 = vmul.f32 %v685, %v1700
        %v1826 = vmul.f32 %v684, %v1705
        %v1827 = vmul.f32 %v683, %v1710
        %v1828 = vmul.f32 %v682, %v1715
        %v1829 = vmul.f32 %v681, %v1720
        %v1830 = vmul.f32 %v680, %v1725
        %v1831 = vmul.f32 %v679, %v1730
        %v1832 = vmul.f32 %v678, %v1735
        %v1833 = vmul.f32 %v677, %v1740
        %v1834 = vmul.f32 %v676, %v1745
        %v1835 = vmul.f32 %v675, %v1750
        %v1836 = vmul.f32 %v674, %v1755
        %v1837 = vmul.f32 %v673, %v1760
        %v1838 = vmul.f32 %v672, %v1765
        %v1839 = vmul.f32 %v671, %v1770
        %v1840 = vmul.f32 %v670, %v1775
        %v1841 = vmul.f32 %v669, %v1780
        %v1842 = vmul.f32 %v668, %v1785
        %v1843 = vmul.f32 %v667, %v1790
        %v1844 = vmul.f32 %v666, %v1795
        %v1845 = vmul.f32 %v665, %v1800
        %v1846 = vmul.f32 %v664, %v1805
        %v1847 = vmul.f32 %v663, %v1810
        %v1848 = vmul.f32 %v662, %v1815
        %v1849 = vpack.c.bf16 %v1817, %v1817
        %v1850 = vpack.c.bf16 %v1818, %v1818
        %v1851 = vpack.c.bf16 %v1819, %v1819
        %v1852 = vpack.c.bf16 %v1820, %v1820
        %v1853 = vpack.c.bf16 %v1821, %v1821
        %v1854 = vpack.c.bf16 %v1822, %v1822
        %v1855 = vpack.c.bf16 %v1823, %v1823
        %v1856 = vpack.c.bf16 %v1824, %v1824
        %v1857 = vpack.c.bf16 %v1825, %v1825
        %v1858 = vpack.c.bf16 %v1826, %v1826
        %v1859 = vpack.c.bf16 %v1827, %v1827
        %v1860 = vpack.c.bf16 %v1828, %v1828
        %v1861 = vpack.c.bf16 %v1829, %v1829
        %v1862 = vpack.c.bf16 %v1830, %v1830
        %v1863 = vpack.c.bf16 %v1831, %v1831
        %v1864 = vpack.c.bf16 %v1832, %v1832
        %v1865 = vpack.c.bf16 %v1833, %v1833
        %v1866 = vpack.c.bf16 %v1834, %v1834
        %v1867 = vpack.c.bf16 %v1835, %v1835
        %v1868 = vpack.c.bf16 %v1836, %v1836
        %v1869 = vpack.c.bf16 %v1837, %v1837
        %v1870 = vpack.c.bf16 %v1838, %v1838
        %v1871 = vpack.c.bf16 %v1839, %v1839
        %v1872 = vpack.c.bf16 %v1840, %v1840
        %v1873 = vpack.c.bf16 %v1841, %v1841
        %v1874 = vpack.c.bf16 %v1842, %v1842
        %v1875 = vpack.c.bf16 %v1843, %v1843
        %v1876 = vpack.c.bf16 %v1844, %v1844
        %v1877 = vpack.c.bf16 %v1845, %v1845
        %v1878 = vpack.c.bf16 %v1846, %v1846
        %v1879 = vpack.c.bf16 %v1847, %v1847
        %v1880 = vpack.c.bf16 %v1848, %v1848
        %1913 = vrot.lane.b32.xlu0 %v1849, 64
        %v1914 = vpop.permute.xlu0 %1913
        %1915 = vrot.lane.b32.xlu0 %v1850, 64
        %v1916 = vpop.permute.xlu0 %1915
        %1917 = vrot.lane.b32.xlu0 %v1851, 64
        %v1918 = vpop.permute.xlu0 %1917
        %1919 = vrot.lane.b32.xlu0 %v1852, 64
        %v1920 = vpop.permute.xlu0 %1919
        %1921 = vrot.lane.b32.xlu0 %v1853, 64
        %v1922 = vpop.permute.xlu0 %1921
        %1923 = vrot.lane.b32.xlu0 %v1854, 64
        %v1924 = vpop.permute.xlu0 %1923
        %1925 = vrot.lane.b32.xlu0 %v1855, 64
        %v1926 = vpop.permute.xlu0 %1925
        %1927 = vrot.lane.b32.xlu0 %v1856, 64
        %v1928 = vpop.permute.xlu0 %1927
        %1929 = vrot.lane.b32.xlu0 %v1857, 64
        %v1930 = vpop.permute.xlu0 %1929
        %1931 = vrot.lane.b32.xlu0 %v1858, 64
        %v1932 = vpop.permute.xlu0 %1931
        %1933 = vrot.lane.b32.xlu0 %v1859, 64
        %v1934 = vpop.permute.xlu0 %1933
        %1935 = vrot.lane.b32.xlu0 %v1860, 64
        %v1936 = vpop.permute.xlu0 %1935
        %1937 = vrot.lane.b32.xlu0 %v1861, 64
        %v1938 = vpop.permute.xlu0 %1937
        %1939 = vrot.lane.b32.xlu0 %v1862, 64
        %v1940 = vpop.permute.xlu0 %1939
        %1941 = vrot.lane.b32.xlu0 %v1863, 64
        %v1942 = vpop.permute.xlu0 %1941
        %1943 = vrot.lane.b32.xlu0 %v1864, 64
        %v1944 = vpop.permute.xlu0 %1943
        %1945 = vrot.lane.b32.xlu0 %v1865, 64
        %v1946 = vpop.permute.xlu0 %1945
        %1947 = vrot.lane.b32.xlu0 %v1866, 64
        %v1948 = vpop.permute.xlu0 %1947
        %1949 = vrot.lane.b32.xlu0 %v1867, 64
        %v1950 = vpop.permute.xlu0 %1949
        %1951 = vrot.lane.b32.xlu0 %v1868, 64
        %v1952 = vpop.permute.xlu0 %1951
        %1953 = vrot.lane.b32.xlu0 %v1869, 64
        %v1954 = vpop.permute.xlu0 %1953
        %1955 = vrot.lane.b32.xlu0 %v1870, 64
        %v1956 = vpop.permute.xlu0 %1955
        %1957 = vrot.lane.b32.xlu0 %v1871, 64
        %v1958 = vpop.permute.xlu0 %1957
        %1959 = vrot.lane.b32.xlu0 %v1872, 64
        %v1960 = vpop.permute.xlu0 %1959
        %1961 = vrot.lane.b32.xlu0 %v1873, 64
        %v1962 = vpop.permute.xlu0 %1961
        %1963 = vrot.lane.b32.xlu0 %v1874, 64
        %v1964 = vpop.permute.xlu0 %1963
        %1965 = vrot.lane.b32.xlu0 %v1875, 64
        %v1966 = vpop.permute.xlu0 %1965
        %1967 = vrot.lane.b32.xlu0 %v1876, 64
        %v1968 = vpop.permute.xlu0 %1967
        %1969 = vrot.lane.b32.xlu0 %v1877, 64
        %v1970 = vpop.permute.xlu0 %1969
        %1971 = vrot.lane.b32.xlu0 %v1878, 64
        %v1972 = vpop.permute.xlu0 %1971
        %1973 = vrot.lane.b32.xlu0 %v1879, 64
        %v1974 = vpop.permute.xlu0 %1973
        %1975 = vrot.lane.b32.xlu0 %v1880, 64
        %v1976 = vpop.permute.xlu0 %1975
        %2009 = vst.msk [vmem:[#allocation2 + $0x4] sm:$0xf] %vm1303, %v1914
        %2010 = vst.msk [vmem:[#allocation2 + $0x18] sm:$0xf] %vm1303, %v1916
        %2011 = vst.msk [vmem:[#allocation2 + $0x2c] sm:$0xf] %vm1303, %v1918
        %2012 = vst.msk [vmem:[#allocation2 + $0x40] sm:$0xf] %vm1303, %v1920
        %2013 = vst.msk [vmem:[#allocation2 + $0x54] sm:$0xf] %vm1303, %v1922
        %2014 = vst.msk [vmem:[#allocation2 + $0x68] sm:$0xf] %vm1303, %v1924
        %2015 = vst.msk [vmem:[#allocation2 + $0x7c] sm:$0xf] %vm1303, %v1926
        %2016 = vst.msk [vmem:[#allocation2 + $0x90] sm:$0xf] %vm1303, %v1928
        %2017 = vst.msk [vmem:[#allocation2 + $0xa4] sm:$0xf] %vm1303, %v1930
        %2018 = vst.msk [vmem:[#allocation2 + $0xb8] sm:$0xf] %vm1303, %v1932
        %2019 = vst.msk [vmem:[#allocation2 + $0xcc] sm:$0xf] %vm1303, %v1934
        %2020 = vst.msk [vmem:[#allocation2 + $0xe0] sm:$0xf] %vm1303, %v1936
        %2021 = vst.msk [vmem:[#allocation2 + $0xf4] sm:$0xf] %vm1303, %v1938
        %2022 = vst.msk [vmem:[#allocation2 + $0x108] sm:$0xf] %vm1303, %v1940
        %2023 = vst.msk [vmem:[#allocation2 + $0x11c] sm:$0xf] %vm1303, %v1942
        %2024 = vst.msk [vmem:[#allocation2 + $0x130] sm:$0xf] %vm1303, %v1944
        %2025 = vst.msk [vmem:[#allocation2 + $0x144] sm:$0xf] %vm1303, %v1946
        %2026 = vst.msk [vmem:[#allocation2 + $0x158] sm:$0xf] %vm1303, %v1948
        %2027 = vst.msk [vmem:[#allocation2 + $0x16c] sm:$0xf] %vm1303, %v1950
        %2028 = vst.msk [vmem:[#allocation2 + $0x180] sm:$0xf] %vm1303, %v1952
        %2029 = vst.msk [vmem:[#allocation2 + $0x194] sm:$0xf] %vm1303, %v1954
        %2030 = vst.msk [vmem:[#allocation2 + $0x1a8] sm:$0xf] %vm1303, %v1956
        %2031 = vst.msk [vmem:[#allocation2 + $0x1bc] sm:$0xf] %vm1303, %v1958
        %2032 = vst.msk [vmem:[#allocation2 + $0x1d0] sm:$0xf] %vm1303, %v1960
        %2033 = vst.msk [vmem:[#allocation2 + $0x1e4] sm:$0xf] %vm1303, %v1962
        %2034 = vst.msk [vmem:[#allocation2 + $0x1f8] sm:$0xf] %vm1303, %v1964
        %2035 = vst.msk [vmem:[#allocation2 + $0x20c] sm:$0xf] %vm1303, %v1966
        %2036 = vst.msk [vmem:[#allocation2 + $0x220] sm:$0xf] %vm1303, %v1968
        %2037 = vst.msk [vmem:[#allocation2 + $0x234] sm:$0xf] %vm1303, %v1970
        %2038 = vst.msk [vmem:[#allocation2 + $0x248] sm:$0xf] %vm1303, %v1972
        %2039 = vst.msk [vmem:[#allocation2 + $0x25c] sm:$0xf] %vm1303, %v1974
        %2040 = vst.msk [vmem:[#allocation2 + $0x270] sm:$0xf] %vm1303, %v1976
        %2041 = vst.msk [vmem:[#allocation2 + $0x8] sm:$0xf] %vm918, %v563
        %2042 = vst.msk [vmem:[#allocation2 + $0x1c] sm:$0xf] %vm918, %v564
        %2043 = vst.msk [vmem:[#allocation2 + $0x30] sm:$0xf] %vm918, %v565
        %2044 = vst.msk [vmem:[#allocation2 + $0x44] sm:$0xf] %vm918, %v566
        %2045 = vst.msk [vmem:[#allocation2 + $0x58] sm:$0xf] %vm918, %v567
        %2046 = vst.msk [vmem:[#allocation2 + $0x6c] sm:$0xf] %vm918, %v568
        %2047 = vst.msk [vmem:[#allocation2 + $0x80] sm:$0xf] %vm918, %v569
        %2048 = vst.msk [vmem:[#allocation2 + $0x94] sm:$0xf] %vm918, %v570
        %2049 = vst.msk [vmem:[#allocation2 + $0xa8] sm:$0xf] %vm918, %v571
        %2050 = vst.msk [vmem:[#allocation2 + $0xbc] sm:$0xf] %vm918, %v572
        %2051 = vst.msk [vmem:[#allocation2 + $0xd0] sm:$0xf] %vm918, %v573
        %2052 = vst.msk [vmem:[#allocation2 + $0xe4] sm:$0xf] %vm918, %v574
        %2053 = vst.msk [vmem:[#allocation2 + $0xf8] sm:$0xf] %vm918, %v575
        %2054 = vst.msk [vmem:[#allocation2 + $0x10c] sm:$0xf] %vm918, %v576
        %2055 = vst.msk [vmem:[#allocation2 + $0x120] sm:$0xf] %vm918, %v577
        %2056 = vst.msk [vmem:[#allocation2 + $0x134] sm:$0xf] %vm918, %v578
        %2057 = vst.msk [vmem:[#allocation2 + $0x148] sm:$0xf] %vm918, %v579
        %2058 = vst.msk [vmem:[#allocation2 + $0x15c] sm:$0xf] %vm918, %v580
        %2059 = vst.msk [vmem:[#allocation2 + $0x170] sm:$0xf] %vm918, %v581
        %2060 = vst.msk [vmem:[#allocation2 + $0x184] sm:$0xf] %vm918, %v582
        %2061 = vst.msk [vmem:[#allocation2 + $0x198] sm:$0xf] %vm918, %v583
        %2062 = vst.msk [vmem:[#allocation2 + $0x1ac] sm:$0xf] %vm918, %v584
        %2063 = vst.msk [vmem:[#allocation2 + $0x1c0] sm:$0xf] %vm918, %v585
        %2064 = vst.msk [vmem:[#allocation2 + $0x1d4] sm:$0xf] %vm918, %v586
        %2065 = vst.msk [vmem:[#allocation2 + $0x1e8] sm:$0xf] %vm918, %v587
        %2066 = vst.msk [vmem:[#allocation2 + $0x1fc] sm:$0xf] %vm918, %v588
        %2067 = vst.msk [vmem:[#allocation2 + $0x210] sm:$0xf] %vm918, %v589
        %2068 = vst.msk [vmem:[#allocation2 + $0x224] sm:$0xf] %vm918, %v590
        %2069 = vst.msk [vmem:[#allocation2 + $0x238] sm:$0xf] %vm918, %v591
        %2070 = vst.msk [vmem:[#allocation2 + $0x24c] sm:$0xf] %vm918, %v592
        %2071 = vst.msk [vmem:[#allocation2 + $0x260] sm:$0xf] %vm918, %v593
        %2072 = vst.msk [vmem:[#allocation2 + $0x274] sm:$0xf] %vm918, %v594
        %2074 = vset.pattern.permute.xlu0 0
        %2075 = vperm.xlu0 %2074, %v432
        %v2076 = vpop.permute.xlu0 %2075
        %2079 = vset.pattern.permute.xlu0 0
        %2080 = vperm.xlu0 %2079, %v433
        %v2081 = vpop.permute.xlu0 %2080
        %2084 = vset.pattern.permute.xlu0 0
        %2085 = vperm.xlu0 %2084, %v434
        %v2086 = vpop.permute.xlu0 %2085
        %2089 = vset.pattern.permute.xlu0 0
        %2090 = vperm.xlu0 %2089, %v435
        %v2091 = vpop.permute.xlu0 %2090
        %2094 = vset.pattern.permute.xlu0 0
        %2095 = vperm.xlu0 %2094, %v436
        %v2096 = vpop.permute.xlu0 %2095
        %2099 = vset.pattern.permute.xlu0 0
        %2100 = vperm.xlu0 %2099, %v437
        %v2101 = vpop.permute.xlu0 %2100
        %2104 = vset.pattern.permute.xlu0 0
        %2105 = vperm.xlu0 %2104, %v438
        %v2106 = vpop.permute.xlu0 %2105
        %2109 = vset.pattern.permute.xlu0 0
        %2110 = vperm.xlu0 %2109, %v439
        %v2111 = vpop.permute.xlu0 %2110
        %2114 = vset.pattern.permute.xlu0 0
        %2115 = vperm.xlu0 %2114, %v440
        %v2116 = vpop.permute.xlu0 %2115
        %2119 = vset.pattern.permute.xlu0 0
        %2120 = vperm.xlu0 %2119, %v441
        %v2121 = vpop.permute.xlu0 %2120
        %2124 = vset.pattern.permute.xlu0 0
        %2125 = vperm.xlu0 %2124, %v442
        %v2126 = vpop.permute.xlu0 %2125
        %2129 = vset.pattern.permute.xlu0 0
        %2130 = vperm.xlu0 %2129, %v443
        %v2131 = vpop.permute.xlu0 %2130
        %2134 = vset.pattern.permute.xlu0 0
        %2135 = vperm.xlu0 %2134, %v444
        %v2136 = vpop.permute.xlu0 %2135
        %2139 = vset.pattern.permute.xlu0 0
        %2140 = vperm.xlu0 %2139, %v445
        %v2141 = vpop.permute.xlu0 %2140
        %2144 = vset.pattern.permute.xlu0 0
        %2145 = vperm.xlu0 %2144, %v446
        %v2146 = vpop.permute.xlu0 %2145
        %2149 = vset.pattern.permute.xlu0 0
        %2150 = vperm.xlu0 %2149, %v447
        %v2151 = vpop.permute.xlu0 %2150
        %2154 = vset.pattern.permute.xlu0 0
        %2155 = vperm.xlu0 %2154, %v448
        %v2156 = vpop.permute.xlu0 %2155
        %2159 = vset.pattern.permute.xlu0 0
        %2160 = vperm.xlu0 %2159, %v449
        %v2161 = vpop.permute.xlu0 %2160
        %2164 = vset.pattern.permute.xlu0 0
        %2165 = vperm.xlu0 %2164, %v450
        %v2166 = vpop.permute.xlu0 %2165
        %2169 = vset.pattern.permute.xlu0 0
        %2170 = vperm.xlu0 %2169, %v451
        %v2171 = vpop.permute.xlu0 %2170
        %2174 = vset.pattern.permute.xlu0 0
        %2175 = vperm.xlu0 %2174, %v452
        %v2176 = vpop.permute.xlu0 %2175
        %2179 = vset.pattern.permute.xlu0 0
        %2180 = vperm.xlu0 %2179, %v453
        %v2181 = vpop.permute.xlu0 %2180
        %2184 = vset.pattern.permute.xlu0 0
        %2185 = vperm.xlu0 %2184, %v454
        %v2186 = vpop.permute.xlu0 %2185
        %2189 = vset.pattern.permute.xlu0 0
        %2190 = vperm.xlu0 %2189, %v455
        %v2191 = vpop.permute.xlu0 %2190
        %2194 = vset.pattern.permute.xlu0 0
        %2195 = vperm.xlu0 %2194, %v456
        %v2196 = vpop.permute.xlu0 %2195
        %2199 = vset.pattern.permute.xlu0 0
        %2200 = vperm.xlu0 %2199, %v457
        %v2201 = vpop.permute.xlu0 %2200
        %2204 = vset.pattern.permute.xlu0 0
        %2205 = vperm.xlu0 %2204, %v458
        %v2206 = vpop.permute.xlu0 %2205
        %2209 = vset.pattern.permute.xlu0 0
        %2210 = vperm.xlu0 %2209, %v459
        %v2211 = vpop.permute.xlu0 %2210
        %2214 = vset.pattern.permute.xlu0 0
        %2215 = vperm.xlu0 %2214, %v460
        %v2216 = vpop.permute.xlu0 %2215
        %2219 = vset.pattern.permute.xlu0 0
        %2220 = vperm.xlu0 %2219, %v461
        %v2221 = vpop.permute.xlu0 %2220
        %2224 = vset.pattern.permute.xlu0 0
        %2225 = vperm.xlu0 %2224, %v462
        %v2226 = vpop.permute.xlu0 %2225
        %2229 = vset.pattern.permute.xlu0 0
        %2230 = vperm.xlu0 %2229, %v463
        %v2231 = vpop.permute.xlu0 %2230
        %v2233 = vmul.f32 %v1399, %v2076
        %v2234 = vmul.f32 %v1398, %v2081
        %v2235 = vmul.f32 %v1397, %v2086
        %v2236 = vmul.f32 %v1396, %v2091
        %v2237 = vmul.f32 %v1395, %v2096
        %v2238 = vmul.f32 %v1394, %v2101
        %v2239 = vmul.f32 %v1393, %v2106
        %v2240 = vmul.f32 %v1392, %v2111
        %v2241 = vmul.f32 %v1391, %v2116
        %v2242 = vmul.f32 %v1390, %v2121
        %v2243 = vmul.f32 %v1389, %v2126
        %v2244 = vmul.f32 %v1388, %v2131
        %v2245 = vmul.f32 %v1387, %v2136
        %v2246 = vmul.f32 %v1386, %v2141
        %v2247 = vmul.f32 %v1385, %v2146
        %v2248 = vmul.f32 %v1384, %v2151
        %v2249 = vmul.f32 %v1383, %v2156
        %v2250 = vmul.f32 %v1382, %v2161
        %v2251 = vmul.f32 %v1381, %v2166
        %v2252 = vmul.f32 %v1380, %v2171
        %v2253 = vmul.f32 %v1379, %v2176
        %v2254 = vmul.f32 %v1378, %v2181
        %v2255 = vmul.f32 %v1377, %v2186
        %v2256 = vmul.f32 %v1376, %v2191
        %v2257 = vmul.f32 %v1375, %v2196
        %v2258 = vmul.f32 %v1374, %v2201
        %v2259 = vmul.f32 %v1373, %v2206
        %v2260 = vmul.f32 %v1372, %v2211
        %v2261 = vmul.f32 %v1371, %v2216
        %v2262 = vmul.f32 %v1370, %v2221
        %v2263 = vmul.f32 %v1369, %v2226
        %v2264 = vmul.f32 %v1400, %v2231
        %v2265 = vpack.c.bf16 %v2233, %v2233
        %v2266 = vpack.c.bf16 %v2234, %v2234
        %v2267 = vpack.c.bf16 %v2235, %v2235
        %v2268 = vpack.c.bf16 %v2236, %v2236
        %v2269 = vpack.c.bf16 %v2237, %v2237
        %v2270 = vpack.c.bf16 %v2238, %v2238
        %v2271 = vpack.c.bf16 %v2239, %v2239
        %v2272 = vpack.c.bf16 %v2240, %v2240
        %v2273 = vpack.c.bf16 %v2241, %v2241
        %v2274 = vpack.c.bf16 %v2242, %v2242
        %v2275 = vpack.c.bf16 %v2243, %v2243
        %v2276 = vpack.c.bf16 %v2244, %v2244
        %v2277 = vpack.c.bf16 %v2245, %v2245
        %v2278 = vpack.c.bf16 %v2246, %v2246
        %v2279 = vpack.c.bf16 %v2247, %v2247
        %v2280 = vpack.c.bf16 %v2248, %v2248
        %v2281 = vpack.c.bf16 %v2249, %v2249
        %v2282 = vpack.c.bf16 %v2250, %v2250
        %v2283 = vpack.c.bf16 %v2251, %v2251
        %v2284 = vpack.c.bf16 %v2252, %v2252
        %v2285 = vpack.c.bf16 %v2253, %v2253
        %v2286 = vpack.c.bf16 %v2254, %v2254
        %v2287 = vpack.c.bf16 %v2255, %v2255
        %v2288 = vpack.c.bf16 %v2256, %v2256
        %v2289 = vpack.c.bf16 %v2257, %v2257
        %v2290 = vpack.c.bf16 %v2258, %v2258
        %v2291 = vpack.c.bf16 %v2259, %v2259
        %v2292 = vpack.c.bf16 %v2260, %v2260
        %v2293 = vpack.c.bf16 %v2261, %v2261
        %v2294 = vpack.c.bf16 %v2262, %v2262
        %v2295 = vpack.c.bf16 %v2263, %v2263
        %v2296 = vpack.c.bf16 %v2264, %v2264
        %2329 = vrot.lane.b32.xlu0 %v2265, 64
        %v2330 = vpop.permute.xlu0 %2329
        %2331 = vrot.lane.b32.xlu0 %v2266, 64
        %v2332 = vpop.permute.xlu0 %2331
        %2333 = vrot.lane.b32.xlu0 %v2267, 64
        %v2334 = vpop.permute.xlu0 %2333
        %2335 = vrot.lane.b32.xlu0 %v2268, 64
        %v2336 = vpop.permute.xlu0 %2335
        %2337 = vrot.lane.b32.xlu0 %v2269, 64
        %v2338 = vpop.permute.xlu0 %2337
        %2339 = vrot.lane.b32.xlu0 %v2270, 64
        %v2340 = vpop.permute.xlu0 %2339
        %2341 = vrot.lane.b32.xlu0 %v2271, 64
        %v2342 = vpop.permute.xlu0 %2341
        %2343 = vrot.lane.b32.xlu0 %v2272, 64
        %v2344 = vpop.permute.xlu0 %2343
        %2345 = vrot.lane.b32.xlu0 %v2273, 64
        %v2346 = vpop.permute.xlu0 %2345
        %2347 = vrot.lane.b32.xlu0 %v2274, 64
        %v2348 = vpop.permute.xlu0 %2347
        %2349 = vrot.lane.b32.xlu0 %v2275, 64
        %v2350 = vpop.permute.xlu0 %2349
        %2351 = vrot.lane.b32.xlu0 %v2276, 64
        %v2352 = vpop.permute.xlu0 %2351
        %2353 = vrot.lane.b32.xlu0 %v2277, 64
        %v2354 = vpop.permute.xlu0 %2353
        %2355 = vrot.lane.b32.xlu0 %v2278, 64
        %v2356 = vpop.permute.xlu0 %2355
        %2357 = vrot.lane.b32.xlu0 %v2279, 64
        %v2358 = vpop.permute.xlu0 %2357
        %2359 = vrot.lane.b32.xlu0 %v2280, 64
        %v2360 = vpop.permute.xlu0 %2359
        %2361 = vrot.lane.b32.xlu0 %v2281, 64
        %v2362 = vpop.permute.xlu0 %2361
        %2363 = vrot.lane.b32.xlu0 %v2282, 64
        %v2364 = vpop.permute.xlu0 %2363
        %2365 = vrot.lane.b32.xlu0 %v2283, 64
        %v2366 = vpop.permute.xlu0 %2365
        %2367 = vrot.lane.b32.xlu0 %v2284, 64
        %v2368 = vpop.permute.xlu0 %2367
        %2369 = vrot.lane.b32.xlu0 %v2285, 64
        %v2370 = vpop.permute.xlu0 %2369
        %2371 = vrot.lane.b32.xlu0 %v2286, 64
        %v2372 = vpop.permute.xlu0 %2371
        %2373 = vrot.lane.b32.xlu0 %v2287, 64
        %v2374 = vpop.permute.xlu0 %2373
        %2375 = vrot.lane.b32.xlu0 %v2288, 64
        %v2376 = vpop.permute.xlu0 %2375
        %2377 = vrot.lane.b32.xlu0 %v2289, 64
        %v2378 = vpop.permute.xlu0 %2377
        %2379 = vrot.lane.b32.xlu0 %v2290, 64
        %v2380 = vpop.permute.xlu0 %2379
        %2381 = vrot.lane.b32.xlu0 %v2291, 64
        %v2382 = vpop.permute.xlu0 %2381
        %2383 = vrot.lane.b32.xlu0 %v2292, 64
        %v2384 = vpop.permute.xlu0 %2383
        %2385 = vrot.lane.b32.xlu0 %v2293, 64
        %v2386 = vpop.permute.xlu0 %2385
        %2387 = vrot.lane.b32.xlu0 %v2294, 64
        %v2388 = vpop.permute.xlu0 %2387
        %2389 = vrot.lane.b32.xlu0 %v2295, 64
        %v2390 = vpop.permute.xlu0 %2389
        %2391 = vrot.lane.b32.xlu0 %v2296, 64
        %v2392 = vpop.permute.xlu0 %2391
        %2425 = vst.msk [vmem:[#allocation2 + $0x8] sm:$0xf] %vm1303, %v2330
        %2426 = vst.msk [vmem:[#allocation2 + $0x1c] sm:$0xf] %vm1303, %v2332
        %2427 = vst.msk [vmem:[#allocation2 + $0x30] sm:$0xf] %vm1303, %v2334
        %2428 = vst.msk [vmem:[#allocation2 + $0x44] sm:$0xf] %vm1303, %v2336
        %2429 = vst.msk [vmem:[#allocation2 + $0x58] sm:$0xf] %vm1303, %v2338
        %2430 = vst.msk [vmem:[#allocation2 + $0x6c] sm:$0xf] %vm1303, %v2340
        %2431 = vst.msk [vmem:[#allocation2 + $0x80] sm:$0xf] %vm1303, %v2342
        %2432 = vst.msk [vmem:[#allocation2 + $0x94] sm:$0xf] %vm1303, %v2344
        %2433 = vst.msk [vmem:[#allocation2 + $0xa8] sm:$0xf] %vm1303, %v2346
        %2434 = vst.msk [vmem:[#allocation2 + $0xbc] sm:$0xf] %vm1303, %v2348
        %2435 = vst.msk [vmem:[#allocation2 + $0xd0] sm:$0xf] %vm1303, %v2350
        %2436 = vst.msk [vmem:[#allocation2 + $0xe4] sm:$0xf] %vm1303, %v2352
        %2437 = vst.msk [vmem:[#allocation2 + $0xf8] sm:$0xf] %vm1303, %v2354
        %2438 = vst.msk [vmem:[#allocation2 + $0x10c] sm:$0xf] %vm1303, %v2356
        %2439 = vst.msk [vmem:[#allocation2 + $0x120] sm:$0xf] %vm1303, %v2358
        %2440 = vst.msk [vmem:[#allocation2 + $0x134] sm:$0xf] %vm1303, %v2360
        %2441 = vst.msk [vmem:[#allocation2 + $0x148] sm:$0xf] %vm1303, %v2362
        %2442 = vst.msk [vmem:[#allocation2 + $0x15c] sm:$0xf] %vm1303, %v2364
        %2443 = vst.msk [vmem:[#allocation2 + $0x170] sm:$0xf] %vm1303, %v2366
        %2444 = vst.msk [vmem:[#allocation2 + $0x184] sm:$0xf] %vm1303, %v2368
        %2445 = vst.msk [vmem:[#allocation2 + $0x198] sm:$0xf] %vm1303, %v2370
        %2446 = vst.msk [vmem:[#allocation2 + $0x1ac] sm:$0xf] %vm1303, %v2372
        %2447 = vst.msk [vmem:[#allocation2 + $0x1c0] sm:$0xf] %vm1303, %v2374
        %2448 = vst.msk [vmem:[#allocation2 + $0x1d4] sm:$0xf] %vm1303, %v2376
        %2449 = vst.msk [vmem:[#allocation2 + $0x1e8] sm:$0xf] %vm1303, %v2378
        %2450 = vst.msk [vmem:[#allocation2 + $0x1fc] sm:$0xf] %vm1303, %v2380
        %2451 = vst.msk [vmem:[#allocation2 + $0x210] sm:$0xf] %vm1303, %v2382
        %2452 = vst.msk [vmem:[#allocation2 + $0x224] sm:$0xf] %vm1303, %v2384
        %2453 = vst.msk [vmem:[#allocation2 + $0x238] sm:$0xf] %vm1303, %v2386
        %2454 = vst.msk [vmem:[#allocation2 + $0x24c] sm:$0xf] %vm1303, %v2388
        %2455 = vst.msk [vmem:[#allocation2 + $0x260] sm:$0xf] %vm1303, %v2390
        %2456 = vst.msk [vmem:[#allocation2 + $0x274] sm:$0xf] %vm1303, %v2392
        %2458 = vset.pattern.permute.xlu0 0
        %2459 = vperm.xlu0 %2458, %v465
        %v2460 = vpop.permute.xlu0 %2459
        %2463 = vset.pattern.permute.xlu0 0
        %2464 = vperm.xlu0 %2463, %v466
        %v2465 = vpop.permute.xlu0 %2464
        %2468 = vset.pattern.permute.xlu0 0
        %2469 = vperm.xlu0 %2468, %v467
        %v2470 = vpop.permute.xlu0 %2469
        %2473 = vset.pattern.permute.xlu0 0
        %2474 = vperm.xlu0 %2473, %v468
        %v2475 = vpop.permute.xlu0 %2474
        %2478 = vset.pattern.permute.xlu0 0
        %2479 = vperm.xlu0 %2478, %v469
        %v2480 = vpop.permute.xlu0 %2479
        %2483 = vset.pattern.permute.xlu0 0
        %2484 = vperm.xlu0 %2483, %v470
        %v2485 = vpop.permute.xlu0 %2484
        %2488 = vset.pattern.permute.xlu0 0
        %2489 = vperm.xlu0 %2488, %v471
        %v2490 = vpop.permute.xlu0 %2489
        %2493 = vset.pattern.permute.xlu0 0
        %2494 = vperm.xlu0 %2493, %v472
        %v2495 = vpop.permute.xlu0 %2494
        %2498 = vset.pattern.permute.xlu0 0
        %2499 = vperm.xlu0 %2498, %v473
        %v2500 = vpop.permute.xlu0 %2499
        %2503 = vset.pattern.permute.xlu0 0
        %2504 = vperm.xlu0 %2503, %v474
        %v2505 = vpop.permute.xlu0 %2504
        %2508 = vset.pattern.permute.xlu0 0
        %2509 = vperm.xlu0 %2508, %v475
        %v2510 = vpop.permute.xlu0 %2509
        %2513 = vset.pattern.permute.xlu0 0
        %2514 = vperm.xlu0 %2513, %v476
        %v2515 = vpop.permute.xlu0 %2514
        %2518 = vset.pattern.permute.xlu0 0
        %2519 = vperm.xlu0 %2518, %v477
        %v2520 = vpop.permute.xlu0 %2519
        %2523 = vset.pattern.permute.xlu0 0
        %2524 = vperm.xlu0 %2523, %v478
        %v2525 = vpop.permute.xlu0 %2524
        %2528 = vset.pattern.permute.xlu0 0
        %2529 = vperm.xlu0 %2528, %v479
        %v2530 = vpop.permute.xlu0 %2529
        %2533 = vset.pattern.permute.xlu0 0
        %2534 = vperm.xlu0 %2533, %v480
        %v2535 = vpop.permute.xlu0 %2534
        %2538 = vset.pattern.permute.xlu0 0
        %2539 = vperm.xlu0 %2538, %v481
        %v2540 = vpop.permute.xlu0 %2539
        %2543 = vset.pattern.permute.xlu0 0
        %2544 = vperm.xlu0 %2543, %v482
        %v2545 = vpop.permute.xlu0 %2544
        %2548 = vset.pattern.permute.xlu0 0
        %2549 = vperm.xlu0 %2548, %v483
        %v2550 = vpop.permute.xlu0 %2549
        %2553 = vset.pattern.permute.xlu0 0
        %2554 = vperm.xlu0 %2553, %v484
        %v2555 = vpop.permute.xlu0 %2554
        %2558 = vset.pattern.permute.xlu0 0
        %2559 = vperm.xlu0 %2558, %v485
        %v2560 = vpop.permute.xlu0 %2559
        %2563 = vset.pattern.permute.xlu0 0
        %2564 = vperm.xlu0 %2563, %v486
        %v2565 = vpop.permute.xlu0 %2564
        %2568 = vset.pattern.permute.xlu0 0
        %2569 = vperm.xlu0 %2568, %v487
        %v2570 = vpop.permute.xlu0 %2569
        %2573 = vset.pattern.permute.xlu0 0
        %2574 = vperm.xlu0 %2573, %v488
        %v2575 = vpop.permute.xlu0 %2574
        %2578 = vset.pattern.permute.xlu0 0
        %2579 = vperm.xlu0 %2578, %v489
        %v2580 = vpop.permute.xlu0 %2579
        %2583 = vset.pattern.permute.xlu0 0
        %2584 = vperm.xlu0 %2583, %v490
        %v2585 = vpop.permute.xlu0 %2584
        %2588 = vset.pattern.permute.xlu0 0
        %2589 = vperm.xlu0 %2588, %v491
        %v2590 = vpop.permute.xlu0 %2589
        %2593 = vset.pattern.permute.xlu0 0
        %2594 = vperm.xlu0 %2593, %v492
        %v2595 = vpop.permute.xlu0 %2594
        %2598 = vset.pattern.permute.xlu0 0
        %2599 = vperm.xlu0 %2598, %v493
        %v2600 = vpop.permute.xlu0 %2599
        %2603 = vset.pattern.permute.xlu0 0
        %2604 = vperm.xlu0 %2603, %v494
        %v2605 = vpop.permute.xlu0 %2604
        %2608 = vset.pattern.permute.xlu0 0
        %2609 = vperm.xlu0 %2608, %v495
        %v2610 = vpop.permute.xlu0 %2609
        %2613 = vset.pattern.permute.xlu0 0
        %2614 = vperm.xlu0 %2613, %v496
        %v2615 = vpop.permute.xlu0 %2614
        %v2617 = vmul.f32 %v691, %v2460
        %v2618 = vmul.f32 %v690, %v2465
        %v2619 = vmul.f32 %v689, %v2470
        %v2620 = vmul.f32 %v688, %v2475
        %v2621 = vmul.f32 %v687, %v2480
        %v2622 = vmul.f32 %v686, %v2485
        %v2623 = vmul.f32 %v685, %v2490
        %v2624 = vmul.f32 %v684, %v2495
        %v2625 = vmul.f32 %v683, %v2500
        %v2626 = vmul.f32 %v682, %v2505
        %v2627 = vmul.f32 %v681, %v2510
        %v2628 = vmul.f32 %v680, %v2515
        %v2629 = vmul.f32 %v679, %v2520
        %v2630 = vmul.f32 %v678, %v2525
        %v2631 = vmul.f32 %v677, %v2530
        %v2632 = vmul.f32 %v676, %v2535
        %v2633 = vmul.f32 %v675, %v2540
        %v2634 = vmul.f32 %v674, %v2545
        %v2635 = vmul.f32 %v673, %v2550
        %v2636 = vmul.f32 %v672, %v2555
        %v2637 = vmul.f32 %v671, %v2560
        %v2638 = vmul.f32 %v670, %v2565
        %v2639 = vmul.f32 %v669, %v2570
        %v2640 = vmul.f32 %v668, %v2575
        %v2641 = vmul.f32 %v667, %v2580
        %v2642 = vmul.f32 %v666, %v2585
        %v2643 = vmul.f32 %v665, %v2590
        %v2644 = vmul.f32 %v664, %v2595
        %v2645 = vmul.f32 %v663, %v2600
        %v2646 = vmul.f32 %v662, %v2605
        %v2647 = vmul.f32 %v693, %v2610
        %v2648 = vmul.f32 %v692, %v2615
        %v2649 = vpack.c.bf16 %v2617, %v2617
        %v2650 = vpack.c.bf16 %v2618, %v2618
        %v2651 = vpack.c.bf16 %v2619, %v2619
        %v2652 = vpack.c.bf16 %v2620, %v2620
        %v2653 = vpack.c.bf16 %v2621, %v2621
        %v2654 = vpack.c.bf16 %v2622, %v2622
        %v2655 = vpack.c.bf16 %v2623, %v2623
        %v2656 = vpack.c.bf16 %v2624, %v2624
        %v2657 = vpack.c.bf16 %v2625, %v2625
        %v2658 = vpack.c.bf16 %v2626, %v2626
        %v2659 = vpack.c.bf16 %v2627, %v2627
        %v2660 = vpack.c.bf16 %v2628, %v2628
        %v2661 = vpack.c.bf16 %v2629, %v2629
        %v2662 = vpack.c.bf16 %v2630, %v2630
        %v2663 = vpack.c.bf16 %v2631, %v2631
        %v2664 = vpack.c.bf16 %v2632, %v2632
        %v2665 = vpack.c.bf16 %v2633, %v2633
        %v2666 = vpack.c.bf16 %v2634, %v2634
        %v2667 = vpack.c.bf16 %v2635, %v2635
        %v2668 = vpack.c.bf16 %v2636, %v2636
        %v2669 = vpack.c.bf16 %v2637, %v2637
        %v2670 = vpack.c.bf16 %v2638, %v2638
        %v2671 = vpack.c.bf16 %v2639, %v2639
        %v2672 = vpack.c.bf16 %v2640, %v2640
        %v2673 = vpack.c.bf16 %v2641, %v2641
        %v2674 = vpack.c.bf16 %v2642, %v2642
        %v2675 = vpack.c.bf16 %v2643, %v2643
        %v2676 = vpack.c.bf16 %v2644, %v2644
        %v2677 = vpack.c.bf16 %v2645, %v2645
        %v2678 = vpack.c.bf16 %v2646, %v2646
        %v2679 = vpack.c.bf16 %v2647, %v2647
        %v2680 = vpack.c.bf16 %v2648, %v2648
        %2681 = vst.msk [vmem:[#allocation2 + $0xc] sm:$0xf] %vm918, %v2649
        %2682 = vst.msk [vmem:[#allocation2 + $0x20] sm:$0xf] %vm918, %v2650
        %2683 = vst.msk [vmem:[#allocation2 + $0x34] sm:$0xf] %vm918, %v2651
        %2684 = vst.msk [vmem:[#allocation2 + $0x48] sm:$0xf] %vm918, %v2652
        %2685 = vst.msk [vmem:[#allocation2 + $0x5c] sm:$0xf] %vm918, %v2653
        %2686 = vst.msk [vmem:[#allocation2 + $0x70] sm:$0xf] %vm918, %v2654
        %2687 = vst.msk [vmem:[#allocation2 + $0x84] sm:$0xf] %vm918, %v2655
        %2688 = vst.msk [vmem:[#allocation2 + $0x98] sm:$0xf] %vm918, %v2656
        %2689 = vst.msk [vmem:[#allocation2 + $0xac] sm:$0xf] %vm918, %v2657
        %2690 = vst.msk [vmem:[#allocation2 + $0xc0] sm:$0xf] %vm918, %v2658
        %2691 = vst.msk [vmem:[#allocation2 + $0xd4] sm:$0xf] %vm918, %v2659
        %2692 = vst.msk [vmem:[#allocation2 + $0xe8] sm:$0xf] %vm918, %v2660
        %2693 = vst.msk [vmem:[#allocation2 + $0xfc] sm:$0xf] %vm918, %v2661
        %2694 = vst.msk [vmem:[#allocation2 + $0x110] sm:$0xf] %vm918, %v2662
        %2695 = vst.msk [vmem:[#allocation2 + $0x124] sm:$0xf] %vm918, %v2663
        %2696 = vst.msk [vmem:[#allocation2 + $0x138] sm:$0xf] %vm918, %v2664
        %2697 = vst.msk [vmem:[#allocation2 + $0x14c] sm:$0xf] %vm918, %v2665
        %2698 = vst.msk [vmem:[#allocation2 + $0x160] sm:$0xf] %vm918, %v2666
        %2699 = vst.msk [vmem:[#allocation2 + $0x174] sm:$0xf] %vm918, %v2667
        %2700 = vst.msk [vmem:[#allocation2 + $0x188] sm:$0xf] %vm918, %v2668
        %2701 = vst.msk [vmem:[#allocation2 + $0x19c] sm:$0xf] %vm918, %v2669
        %2702 = vst.msk [vmem:[#allocation2 + $0x1b0] sm:$0xf] %vm918, %v2670
        %2703 = vst.msk [vmem:[#allocation2 + $0x1c4] sm:$0xf] %vm918, %v2671
        %2704 = vst.msk [vmem:[#allocation2 + $0x1d8] sm:$0xf] %vm918, %v2672
        %2705 = vst.msk [vmem:[#allocation2 + $0x1ec] sm:$0xf] %vm918, %v2673
        %2706 = vst.msk [vmem:[#allocation2 + $0x200] sm:$0xf] %vm918, %v2674
        %2707 = vst.msk [vmem:[#allocation2 + $0x214] sm:$0xf] %vm918, %v2675
        %2708 = vst.msk [vmem:[#allocation2 + $0x228] sm:$0xf] %vm918, %v2676
        %2709 = vst.msk [vmem:[#allocation2 + $0x23c] sm:$0xf] %vm918, %v2677
        %2710 = vst.msk [vmem:[#allocation2 + $0x250] sm:$0xf] %vm918, %v2678
        %2711 = vst.msk [vmem:[#allocation2 + $0x264] sm:$0xf] %vm918, %v2679
        %2712 = vst.msk [vmem:[#allocation2 + $0x278] sm:$0xf] %vm918, %v2680
        %2714 = vset.pattern.permute.xlu0 0
        %2715 = vperm.xlu0 %2714, %v498
        %v2716 = vpop.permute.xlu0 %2715
        %2719 = vset.pattern.permute.xlu0 0
        %2720 = vperm.xlu0 %2719, %v499
        %v2721 = vpop.permute.xlu0 %2720
        %2724 = vset.pattern.permute.xlu0 0
        %2725 = vperm.xlu0 %2724, %v500
        %v2726 = vpop.permute.xlu0 %2725
        %2729 = vset.pattern.permute.xlu0 0
        %2730 = vperm.xlu0 %2729, %v501
        %v2731 = vpop.permute.xlu0 %2730
        %2734 = vset.pattern.permute.xlu0 0
        %2735 = vperm.xlu0 %2734, %v502
        %v2736 = vpop.permute.xlu0 %2735
        %2739 = vset.pattern.permute.xlu0 0
        %2740 = vperm.xlu0 %2739, %v503
        %v2741 = vpop.permute.xlu0 %2740
        %2744 = vset.pattern.permute.xlu0 0
        %2745 = vperm.xlu0 %2744, %v504
        %v2746 = vpop.permute.xlu0 %2745
        %2749 = vset.pattern.permute.xlu0 0
        %2750 = vperm.xlu0 %2749, %v505
        %v2751 = vpop.permute.xlu0 %2750
        %2754 = vset.pattern.permute.xlu0 0
        %2755 = vperm.xlu0 %2754, %v506
        %v2756 = vpop.permute.xlu0 %2755
        %2759 = vset.pattern.permute.xlu0 0
        %2760 = vperm.xlu0 %2759, %v507
        %v2761 = vpop.permute.xlu0 %2760
        %2764 = vset.pattern.permute.xlu0 0
        %2765 = vperm.xlu0 %2764, %v508
        %v2766 = vpop.permute.xlu0 %2765
        %2769 = vset.pattern.permute.xlu0 0
        %2770 = vperm.xlu0 %2769, %v509
        %v2771 = vpop.permute.xlu0 %2770
        %2774 = vset.pattern.permute.xlu0 0
        %2775 = vperm.xlu0 %2774, %v510
        %v2776 = vpop.permute.xlu0 %2775
        %2779 = vset.pattern.permute.xlu0 0
        %2780 = vperm.xlu0 %2779, %v511
        %v2781 = vpop.permute.xlu0 %2780
        %2784 = vset.pattern.permute.xlu0 0
        %2785 = vperm.xlu0 %2784, %v512
        %v2786 = vpop.permute.xlu0 %2785
        %2789 = vset.pattern.permute.xlu0 0
        %2790 = vperm.xlu0 %2789, %v513
        %v2791 = vpop.permute.xlu0 %2790
        %2794 = vset.pattern.permute.xlu0 0
        %2795 = vperm.xlu0 %2794, %v514
        %v2796 = vpop.permute.xlu0 %2795
        %2799 = vset.pattern.permute.xlu0 0
        %2800 = vperm.xlu0 %2799, %v515
        %v2801 = vpop.permute.xlu0 %2800
        %2804 = vset.pattern.permute.xlu0 0
        %2805 = vperm.xlu0 %2804, %v516
        %v2806 = vpop.permute.xlu0 %2805
        %2809 = vset.pattern.permute.xlu0 0
        %2810 = vperm.xlu0 %2809, %v517
        %v2811 = vpop.permute.xlu0 %2810
        %2814 = vset.pattern.permute.xlu0 0
        %2815 = vperm.xlu0 %2814, %v518
        %v2816 = vpop.permute.xlu0 %2815
        %2819 = vset.pattern.permute.xlu0 0
        %2820 = vperm.xlu0 %2819, %v519
        %v2821 = vpop.permute.xlu0 %2820
        %2824 = vset.pattern.permute.xlu0 0
        %2825 = vperm.xlu0 %2824, %v520
        %v2826 = vpop.permute.xlu0 %2825
        %2829 = vset.pattern.permute.xlu0 0
        %2830 = vperm.xlu0 %2829, %v521
        %v2831 = vpop.permute.xlu0 %2830
        %2834 = vset.pattern.permute.xlu0 0
        %2835 = vperm.xlu0 %2834, %v522
        %v2836 = vpop.permute.xlu0 %2835
        %2839 = vset.pattern.permute.xlu0 0
        %2840 = vperm.xlu0 %2839, %v523
        %v2841 = vpop.permute.xlu0 %2840
        %2844 = vset.pattern.permute.xlu0 0
        %2845 = vperm.xlu0 %2844, %v524
        %v2846 = vpop.permute.xlu0 %2845
        %2849 = vset.pattern.permute.xlu0 0
        %2850 = vperm.xlu0 %2849, %v525
        %v2851 = vpop.permute.xlu0 %2850
        %2854 = vset.pattern.permute.xlu0 0
        %2855 = vperm.xlu0 %2854, %v526
        %v2856 = vpop.permute.xlu0 %2855
        %2859 = vset.pattern.permute.xlu0 0
        %2860 = vperm.xlu0 %2859, %v527
        %v2861 = vpop.permute.xlu0 %2860
        %2864 = vset.pattern.permute.xlu0 0
        %2865 = vperm.xlu0 %2864, %v528
        %v2866 = vpop.permute.xlu0 %2865
        %2869 = vset.pattern.permute.xlu0 0
        %2870 = vperm.xlu0 %2869, %v529
        %v2871 = vpop.permute.xlu0 %2870
        %v2873 = vmul.f32 %v597, %v2716
        %v2874 = vmul.f32 %v598, %v2721
        %v2875 = vmul.f32 %v599, %v2726
        %v2876 = vmul.f32 %v600, %v2731
        %v2877 = vmul.f32 %v601, %v2736
        %v2878 = vmul.f32 %v602, %v2741
        %v2879 = vmul.f32 %v603, %v2746
        %v2880 = vmul.f32 %v604, %v2751
        %v2881 = vmul.f32 %v605, %v2756
        %v2882 = vmul.f32 %v606, %v2761
        %v2883 = vmul.f32 %v607, %v2766
        %v2884 = vmul.f32 %v608, %v2771
        %v2885 = vmul.f32 %v609, %v2776
        %v2886 = vmul.f32 %v610, %v2781
        %v2887 = vmul.f32 %v611, %v2786
        %v2888 = vmul.f32 %v612, %v2791
        %v2889 = vmul.f32 %v613, %v2796
        %v2890 = vmul.f32 %v614, %v2801
        %v2891 = vmul.f32 %v615, %v2806
        %v2892 = vmul.f32 %v616, %v2811
        %v2893 = vmul.f32 %v617, %v2816
        %v2894 = vmul.f32 %v618, %v2821
        %v2895 = vmul.f32 %v619, %v2826
        %v2896 = vmul.f32 %v620, %v2831
        %v2897 = vmul.f32 %v621, %v2836
        %v2898 = vmul.f32 %v622, %v2841
        %v2899 = vmul.f32 %v623, %v2846
        %v2900 = vmul.f32 %v624, %v2851
        %v2901 = vmul.f32 %v625, %v2856
        %v2902 = vmul.f32 %v626, %v2861
        %v2903 = vmul.f32 %v595, %v2866
        %v2904 = vmul.f32 %v596, %v2871
        %v2905 = vpack.c.bf16 %v2873, %v2873
        %v2906 = vpack.c.bf16 %v2874, %v2874
        %v2907 = vpack.c.bf16 %v2875, %v2875
        %v2908 = vpack.c.bf16 %v2876, %v2876
        %v2909 = vpack.c.bf16 %v2877, %v2877
        %v2910 = vpack.c.bf16 %v2878, %v2878
        %v2911 = vpack.c.bf16 %v2879, %v2879
        %v2912 = vpack.c.bf16 %v2880, %v2880
        %v2913 = vpack.c.bf16 %v2881, %v2881
        %v2914 = vpack.c.bf16 %v2882, %v2882
        %v2915 = vpack.c.bf16 %v2883, %v2883
        %v2916 = vpack.c.bf16 %v2884, %v2884
        %v2917 = vpack.c.bf16 %v2885, %v2885
        %v2918 = vpack.c.bf16 %v2886, %v2886
        %v2919 = vpack.c.bf16 %v2887, %v2887
        %v2920 = vpack.c.bf16 %v2888, %v2888
        %v2921 = vpack.c.bf16 %v2889, %v2889
        %v2922 = vpack.c.bf16 %v2890, %v2890
        %v2923 = vpack.c.bf16 %v2891, %v2891
        %v2924 = vpack.c.bf16 %v2892, %v2892
        %v2925 = vpack.c.bf16 %v2893, %v2893
        %v2926 = vpack.c.bf16 %v2894, %v2894
        %v2927 = vpack.c.bf16 %v2895, %v2895
        %v2928 = vpack.c.bf16 %v2896, %v2896
        %v2929 = vpack.c.bf16 %v2897, %v2897
        %v2930 = vpack.c.bf16 %v2898, %v2898
        %v2931 = vpack.c.bf16 %v2899, %v2899
        %v2932 = vpack.c.bf16 %v2900, %v2900
        %v2933 = vpack.c.bf16 %v2901, %v2901
        %v2934 = vpack.c.bf16 %v2902, %v2902
        %v2935 = vpack.c.bf16 %v2903, %v2903
        %v2936 = vpack.c.bf16 %v2904, %v2904
        %2969 = vrot.lane.b32.xlu0 %v2905, 64
        %v2970 = vpop.permute.xlu0 %2969
        %2971 = vrot.lane.b32.xlu0 %v2906, 64
        %v2972 = vpop.permute.xlu0 %2971
        %2973 = vrot.lane.b32.xlu0 %v2907, 64
        %v2974 = vpop.permute.xlu0 %2973
        %2975 = vrot.lane.b32.xlu0 %v2908, 64
        %v2976 = vpop.permute.xlu0 %2975
        %2977 = vrot.lane.b32.xlu0 %v2909, 64
        %v2978 = vpop.permute.xlu0 %2977
        %2979 = vrot.lane.b32.xlu0 %v2910, 64
        %v2980 = vpop.permute.xlu0 %2979
        %2981 = vrot.lane.b32.xlu0 %v2911, 64
        %v2982 = vpop.permute.xlu0 %2981
        %2983 = vrot.lane.b32.xlu0 %v2912, 64
        %v2984 = vpop.permute.xlu0 %2983
        %2985 = vrot.lane.b32.xlu0 %v2913, 64
        %v2986 = vpop.permute.xlu0 %2985
        %2987 = vrot.lane.b32.xlu0 %v2914, 64
        %v2988 = vpop.permute.xlu0 %2987
        %2989 = vrot.lane.b32.xlu0 %v2915, 64
        %v2990 = vpop.permute.xlu0 %2989
        %2991 = vrot.lane.b32.xlu0 %v2916, 64
        %v2992 = vpop.permute.xlu0 %2991
        %2993 = vrot.lane.b32.xlu0 %v2917, 64
        %v2994 = vpop.permute.xlu0 %2993
        %2995 = vrot.lane.b32.xlu0 %v2918, 64
        %v2996 = vpop.permute.xlu0 %2995
        %2997 = vrot.lane.b32.xlu0 %v2919, 64
        %v2998 = vpop.permute.xlu0 %2997
        %2999 = vrot.lane.b32.xlu0 %v2920, 64
        %v3000 = vpop.permute.xlu0 %2999
        %3001 = vrot.lane.b32.xlu0 %v2921, 64
        %v3002 = vpop.permute.xlu0 %3001
        %3003 = vrot.lane.b32.xlu0 %v2922, 64
        %v3004 = vpop.permute.xlu0 %3003
        %3005 = vrot.lane.b32.xlu0 %v2923, 64
        %v3006 = vpop.permute.xlu0 %3005
        %3007 = vrot.lane.b32.xlu0 %v2924, 64
        %v3008 = vpop.permute.xlu0 %3007
        %3009 = vrot.lane.b32.xlu0 %v2925, 64
        %v3010 = vpop.permute.xlu0 %3009
        %3011 = vrot.lane.b32.xlu0 %v2926, 64
        %v3012 = vpop.permute.xlu0 %3011
        %3013 = vrot.lane.b32.xlu0 %v2927, 64
        %v3014 = vpop.permute.xlu0 %3013
        %3015 = vrot.lane.b32.xlu0 %v2928, 64
        %v3016 = vpop.permute.xlu0 %3015
        %3017 = vrot.lane.b32.xlu0 %v2929, 64
        %v3018 = vpop.permute.xlu0 %3017
        %3019 = vrot.lane.b32.xlu0 %v2930, 64
        %v3020 = vpop.permute.xlu0 %3019
        %3021 = vrot.lane.b32.xlu0 %v2931, 64
        %v3022 = vpop.permute.xlu0 %3021
        %3023 = vrot.lane.b32.xlu0 %v2932, 64
        %v3024 = vpop.permute.xlu0 %3023
        %3025 = vrot.lane.b32.xlu0 %v2933, 64
        %v3026 = vpop.permute.xlu0 %3025
        %3027 = vrot.lane.b32.xlu0 %v2934, 64
        %v3028 = vpop.permute.xlu0 %3027
        %3029 = vrot.lane.b32.xlu0 %v2935, 64
        %v3030 = vpop.permute.xlu0 %3029
        %3031 = vrot.lane.b32.xlu0 %v2936, 64
        %v3032 = vpop.permute.xlu0 %3031
        %3065 = vst.msk [vmem:[#allocation2 + $0xc] sm:$0xf] %vm1303, %v2970
        %3066 = vst.msk [vmem:[#allocation2 + $0x20] sm:$0xf] %vm1303, %v2972
        %3067 = vst.msk [vmem:[#allocation2 + $0x34] sm:$0xf] %vm1303, %v2974
        %3068 = vst.msk [vmem:[#allocation2 + $0x48] sm:$0xf] %vm1303, %v2976
        %3069 = vst.msk [vmem:[#allocation2 + $0x5c] sm:$0xf] %vm1303, %v2978
        %3070 = vst.msk [vmem:[#allocation2 + $0x70] sm:$0xf] %vm1303, %v2980
        %3071 = vst.msk [vmem:[#allocation2 + $0x84] sm:$0xf] %vm1303, %v2982
        %3072 = vst.msk [vmem:[#allocation2 + $0x98] sm:$0xf] %vm1303, %v2984
        %3073 = vst.msk [vmem:[#allocation2 + $0xac] sm:$0xf] %vm1303, %v2986
        %3074 = vst.msk [vmem:[#allocation2 + $0xc0] sm:$0xf] %vm1303, %v2988
        %3075 = vst.msk [vmem:[#allocation2 + $0xd4] sm:$0xf] %vm1303, %v2990
        %3076 = vst.msk [vmem:[#allocation2 + $0xe8] sm:$0xf] %vm1303, %v2992
        %3077 = vst.msk [vmem:[#allocation2 + $0xfc] sm:$0xf] %vm1303, %v2994
        %3078 = vst.msk [vmem:[#allocation2 + $0x110] sm:$0xf] %vm1303, %v2996
        %3079 = vst.msk [vmem:[#allocation2 + $0x124] sm:$0xf] %vm1303, %v2998
        %3080 = vst.msk [vmem:[#allocation2 + $0x138] sm:$0xf] %vm1303, %v3000
        %3081 = vst.msk [vmem:[#allocation2 + $0x14c] sm:$0xf] %vm1303, %v3002
        %3082 = vst.msk [vmem:[#allocation2 + $0x160] sm:$0xf] %vm1303, %v3004
        %3083 = vst.msk [vmem:[#allocation2 + $0x174] sm:$0xf] %vm1303, %v3006
        %3084 = vst.msk [vmem:[#allocation2 + $0x188] sm:$0xf] %vm1303, %v3008
        %3085 = vst.msk [vmem:[#allocation2 + $0x19c] sm:$0xf] %vm1303, %v3010
        %3086 = vst.msk [vmem:[#allocation2 + $0x1b0] sm:$0xf] %vm1303, %v3012
        %3087 = vst.msk [vmem:[#allocation2 + $0x1c4] sm:$0xf] %vm1303, %v3014
        %3088 = vst.msk [vmem:[#allocation2 + $0x1d8] sm:$0xf] %vm1303, %v3016
        %3089 = vst.msk [vmem:[#allocation2 + $0x1ec] sm:$0xf] %vm1303, %v3018
        %3090 = vst.msk [vmem:[#allocation2 + $0x200] sm:$0xf] %vm1303, %v3020
        %3091 = vst.msk [vmem:[#allocation2 + $0x214] sm:$0xf] %vm1303, %v3022
        %3092 = vst.msk [vmem:[#allocation2 + $0x228] sm:$0xf] %vm1303, %v3024
        %3093 = vst.msk [vmem:[#allocation2 + $0x23c] sm:$0xf] %vm1303, %v3026
        %3094 = vst.msk [vmem:[#allocation2 + $0x250] sm:$0xf] %vm1303, %v3028
        %3095 = vst.msk [vmem:[#allocation2 + $0x264] sm:$0xf] %vm1303, %v3030
        %3096 = vst.msk [vmem:[#allocation2 + $0x278] sm:$0xf] %vm1303, %v3032
        %3098 = vset.pattern.permute.xlu0 0
        %3099 = vperm.xlu0 %3098, %v531
        %v3100 = vpop.permute.xlu0 %3099
        %3103 = vset.pattern.permute.xlu0 0
        %3104 = vperm.xlu0 %3103, %v532
        %v3105 = vpop.permute.xlu0 %3104
        %3108 = vset.pattern.permute.xlu0 0
        %3109 = vperm.xlu0 %3108, %v533
        %v3110 = vpop.permute.xlu0 %3109
        %3113 = vset.pattern.permute.xlu0 0
        %3114 = vperm.xlu0 %3113, %v534
        %v3115 = vpop.permute.xlu0 %3114
        %3118 = vset.pattern.permute.xlu0 0
        %3119 = vperm.xlu0 %3118, %v535
        %v3120 = vpop.permute.xlu0 %3119
        %3123 = vset.pattern.permute.xlu0 0
        %3124 = vperm.xlu0 %3123, %v536
        %v3125 = vpop.permute.xlu0 %3124
        %3128 = vset.pattern.permute.xlu0 0
        %3129 = vperm.xlu0 %3128, %v537
        %v3130 = vpop.permute.xlu0 %3129
        %3133 = vset.pattern.permute.xlu0 0
        %3134 = vperm.xlu0 %3133, %v538
        %v3135 = vpop.permute.xlu0 %3134
        %3138 = vset.pattern.permute.xlu0 0
        %3139 = vperm.xlu0 %3138, %v539
        %v3140 = vpop.permute.xlu0 %3139
        %3143 = vset.pattern.permute.xlu0 0
        %3144 = vperm.xlu0 %3143, %v540
        %v3145 = vpop.permute.xlu0 %3144
        %3148 = vset.pattern.permute.xlu0 0
        %3149 = vperm.xlu0 %3148, %v541
        %v3150 = vpop.permute.xlu0 %3149
        %3153 = vset.pattern.permute.xlu0 0
        %3154 = vperm.xlu0 %3153, %v542
        %v3155 = vpop.permute.xlu0 %3154
        %3158 = vset.pattern.permute.xlu0 0
        %3159 = vperm.xlu0 %3158, %v543
        %v3160 = vpop.permute.xlu0 %3159
        %3163 = vset.pattern.permute.xlu0 0
        %3164 = vperm.xlu0 %3163, %v544
        %v3165 = vpop.permute.xlu0 %3164
        %3168 = vset.pattern.permute.xlu0 0
        %3169 = vperm.xlu0 %3168, %v545
        %v3170 = vpop.permute.xlu0 %3169
        %3173 = vset.pattern.permute.xlu0 0
        %3174 = vperm.xlu0 %3173, %v546
        %v3175 = vpop.permute.xlu0 %3174
        %3178 = vset.pattern.permute.xlu0 0
        %3179 = vperm.xlu0 %3178, %v547
        %v3180 = vpop.permute.xlu0 %3179
        %3183 = vset.pattern.permute.xlu0 0
        %3184 = vperm.xlu0 %3183, %v548
        %v3185 = vpop.permute.xlu0 %3184
        %3188 = vset.pattern.permute.xlu0 0
        %3189 = vperm.xlu0 %3188, %v549
        %v3190 = vpop.permute.xlu0 %3189
        %3193 = vset.pattern.permute.xlu0 0
        %3194 = vperm.xlu0 %3193, %v550
        %v3195 = vpop.permute.xlu0 %3194
        %3198 = vset.pattern.permute.xlu0 0
        %3199 = vperm.xlu0 %3198, %v551
        %v3200 = vpop.permute.xlu0 %3199
        %3203 = vset.pattern.permute.xlu0 0
        %3204 = vperm.xlu0 %3203, %v552
        %v3205 = vpop.permute.xlu0 %3204
        %3208 = vset.pattern.permute.xlu0 0
        %3209 = vperm.xlu0 %3208, %v553
        %v3210 = vpop.permute.xlu0 %3209
        %3213 = vset.pattern.permute.xlu0 0
        %3214 = vperm.xlu0 %3213, %v554
        %v3215 = vpop.permute.xlu0 %3214
        %3218 = vset.pattern.permute.xlu0 0
        %3219 = vperm.xlu0 %3218, %v555
        %v3220 = vpop.permute.xlu0 %3219
        %3223 = vset.pattern.permute.xlu0 0
        %3224 = vperm.xlu0 %3223, %v556
        %v3225 = vpop.permute.xlu0 %3224
        %3228 = vset.pattern.permute.xlu0 0
        %3229 = vperm.xlu0 %3228, %v557
        %v3230 = vpop.permute.xlu0 %3229
        %3233 = vset.pattern.permute.xlu0 0
        %3234 = vperm.xlu0 %3233, %v558
        %v3235 = vpop.permute.xlu0 %3234
        %3238 = vset.pattern.permute.xlu0 0
        %3239 = vperm.xlu0 %3238, %v559
        %v3240 = vpop.permute.xlu0 %3239
        %3243 = vset.pattern.permute.xlu0 0
        %3244 = vperm.xlu0 %3243, %v560
        %v3245 = vpop.permute.xlu0 %3244
        %3248 = vset.pattern.permute.xlu0 0
        %3249 = vperm.xlu0 %3248, %v561
        %v3250 = vpop.permute.xlu0 %3249
        %3253 = vset.pattern.permute.xlu0 0
        %3254 = vperm.xlu0 %3253, %v562
        %v3255 = vpop.permute.xlu0 %3254
        %v3257 = vmul.f32 %v1397, %v3100
        %v3258 = vmul.f32 %v1396, %v3105
        %v3259 = vmul.f32 %v1395, %v3110
        %v3260 = vmul.f32 %v1394, %v3115
        %v3261 = vmul.f32 %v1393, %v3120
        %v3262 = vmul.f32 %v1392, %v3125
        %v3263 = vmul.f32 %v1391, %v3130
        %v3264 = vmul.f32 %v1390, %v3135
        %v3265 = vmul.f32 %v1389, %v3140
        %v3266 = vmul.f32 %v1388, %v3145
        %v3267 = vmul.f32 %v1387, %v3150
        %v3268 = vmul.f32 %v1386, %v3155
        %v3269 = vmul.f32 %v1385, %v3160
        %v3270 = vmul.f32 %v1384, %v3165
        %v3271 = vmul.f32 %v1383, %v3170
        %v3272 = vmul.f32 %v1382, %v3175
        %v3273 = vmul.f32 %v1381, %v3180
        %v3274 = vmul.f32 %v1380, %v3185
        %v3275 = vmul.f32 %v1379, %v3190
        %v3276 = vmul.f32 %v1378, %v3195
        %v3277 = vmul.f32 %v1377, %v3200
        %v3278 = vmul.f32 %v1376, %v3205
        %v3279 = vmul.f32 %v1375, %v3210
        %v3280 = vmul.f32 %v1374, %v3215
        %v3281 = vmul.f32 %v1373, %v3220
        %v3282 = vmul.f32 %v1372, %v3225
        %v3283 = vmul.f32 %v1371, %v3230
        %v3284 = vmul.f32 %v1370, %v3235
        %v3285 = vmul.f32 %v1369, %v3240
        %v3286 = vmul.f32 %v1400, %v3245
        %v3287 = vmul.f32 %v1399, %v3250
        %v3288 = vmul.f32 %v1398, %v3255
        %v3289 = vpack.c.bf16 %v3257, %v3257
        %v3290 = vpack.c.bf16 %v3258, %v3258
        %v3291 = vpack.c.bf16 %v3259, %v3259
        %v3292 = vpack.c.bf16 %v3260, %v3260
        %v3293 = vpack.c.bf16 %v3261, %v3261
        %v3294 = vpack.c.bf16 %v3262, %v3262
        %v3295 = vpack.c.bf16 %v3263, %v3263
        %v3296 = vpack.c.bf16 %v3264, %v3264
        %v3297 = vpack.c.bf16 %v3265, %v3265
        %v3298 = vpack.c.bf16 %v3266, %v3266
        %v3299 = vpack.c.bf16 %v3267, %v3267
        %v3300 = vpack.c.bf16 %v3268, %v3268
        %v3301 = vpack.c.bf16 %v3269, %v3269
        %v3302 = vpack.c.bf16 %v3270, %v3270
        %v3303 = vpack.c.bf16 %v3271, %v3271
        %v3304 = vpack.c.bf16 %v3272, %v3272
        %v3305 = vpack.c.bf16 %v3273, %v3273
        %v3306 = vpack.c.bf16 %v3274, %v3274
        %v3307 = vpack.c.bf16 %v3275, %v3275
        %v3308 = vpack.c.bf16 %v3276, %v3276
        %v3309 = vpack.c.bf16 %v3277, %v3277
        %v3310 = vpack.c.bf16 %v3278, %v3278
        %v3311 = vpack.c.bf16 %v3279, %v3279
        %v3312 = vpack.c.bf16 %v3280, %v3280
        %v3313 = vpack.c.bf16 %v3281, %v3281
        %v3314 = vpack.c.bf16 %v3282, %v3282
        %v3315 = vpack.c.bf16 %v3283, %v3283
        %v3316 = vpack.c.bf16 %v3284, %v3284
        %v3317 = vpack.c.bf16 %v3285, %v3285
        %v3318 = vpack.c.bf16 %v3286, %v3286
        %v3319 = vpack.c.bf16 %v3287, %v3287
        %v3320 = vpack.c.bf16 %v3288, %v3288
        %3321 = vst.msk [vmem:[#allocation2 + $0x10] sm:$0xf] %vm918, %v3289
        %3322 = vst.msk [vmem:[#allocation2 + $0x24] sm:$0xf] %vm918, %v3290
        %3323 = vst.msk [vmem:[#allocation2 + $0x38] sm:$0xf] %vm918, %v3291
        %3324 = vst.msk [vmem:[#allocation2 + $0x4c] sm:$0xf] %vm918, %v3292
        %3325 = vst.msk [vmem:[#allocation2 + $0x60] sm:$0xf] %vm918, %v3293
        %3326 = vst.msk [vmem:[#allocation2 + $0x74] sm:$0xf] %vm918, %v3294
        %3327 = vst.msk [vmem:[#allocation2 + $0x88] sm:$0xf] %vm918, %v3295
        %3328 = vst.msk [vmem:[#allocation2 + $0x9c] sm:$0xf] %vm918, %v3296
        %3329 = vst.msk [vmem:[#allocation2 + $0xb0] sm:$0xf] %vm918, %v3297
        %3330 = vst.msk [vmem:[#allocation2 + $0xc4] sm:$0xf] %vm918, %v3298
        %3331 = vst.msk [vmem:[#allocation2 + $0xd8] sm:$0xf] %vm918, %v3299
        %3332 = vst.msk [vmem:[#allocation2 + $0xec] sm:$0xf] %vm918, %v3300
        %3333 = vst.msk [vmem:[#allocation2 + $0x100] sm:$0xf] %vm918, %v3301
        %3334 = vst.msk [vmem:[#allocation2 + $0x114] sm:$0xf] %vm918, %v3302
        %3335 = vst.msk [vmem:[#allocation2 + $0x128] sm:$0xf] %vm918, %v3303
        %3336 = vst.msk [vmem:[#allocation2 + $0x13c] sm:$0xf] %vm918, %v3304
        %3337 = vst.msk [vmem:[#allocation2 + $0x150] sm:$0xf] %vm918, %v3305
        %3338 = vst.msk [vmem:[#allocation2 + $0x164] sm:$0xf] %vm918, %v3306
        %3339 = vst.msk [vmem:[#allocation2 + $0x178] sm:$0xf] %vm918, %v3307
        %3340 = vst.msk [vmem:[#allocation2 + $0x18c] sm:$0xf] %vm918, %v3308
        %3341 = vst.msk [vmem:[#allocation2 + $0x1a0] sm:$0xf] %vm918, %v3309
        %3342 = vst.msk [vmem:[#allocation2 + $0x1b4] sm:$0xf] %vm918, %v3310
        %3343 = vst.msk [vmem:[#allocation2 + $0x1c8] sm:$0xf] %vm918, %v3311
        %3344 = vst.msk [vmem:[#allocation2 + $0x1dc] sm:$0xf] %vm918, %v3312
        %3345 = vst.msk [vmem:[#allocation2 + $0x1f0] sm:$0xf] %vm918, %v3313
        %3346 = vst.msk [vmem:[#allocation2 + $0x204] sm:$0xf] %vm918, %v3314
        %3347 = vst.msk [vmem:[#allocation2 + $0x218] sm:$0xf] %vm918, %v3315
        %3348 = vst.msk [vmem:[#allocation2 + $0x22c] sm:$0xf] %vm918, %v3316
        %3349 = vst.msk [vmem:[#allocation2 + $0x240] sm:$0xf] %vm918, %v3317
        %3350 = vst.msk [vmem:[#allocation2 + $0x254] sm:$0xf] %vm918, %v3318
        %3351 = vst.msk [vmem:[#allocation2 + $0x268] sm:$0xf] %vm918, %v3319
        %3352 = vst.msk [vmem:[#allocation2 + $0x27c] sm:$0xf] %vm918, %v3320
        %v3353 = vld [vmem:[#allocation2] sm:$0xff]
        %v3354 = vld [vmem:[#allocation2 + $0x8] sm:$0xff]
        %v3355 = vld [vmem:[#allocation2 + $0x10] sm:$0xf]
        %v3356 = vld [vmem:[#allocation2 + $0x14] sm:$0xff]
        %v3357 = vld [vmem:[#allocation2 + $0x1c] sm:$0xff]
        %v3358 = vld [vmem:[#allocation2 + $0x24] sm:$0xf]
        %v3359 = vld [vmem:[#allocation2 + $0x28] sm:$0xff]
        %v3360 = vld [vmem:[#allocation2 + $0x30] sm:$0xff]
        %v3361 = vld [vmem:[#allocation2 + $0x38] sm:$0xf]
        %v3362 = vld [vmem:[#allocation2 + $0x3c] sm:$0xff]
        %v3363 = vld [vmem:[#allocation2 + $0x44] sm:$0xff]
        %v3364 = vld [vmem:[#allocation2 + $0x4c] sm:$0xf]
        %v3365 = vld [vmem:[#allocation2 + $0x50] sm:$0xff]
        %v3366 = vld [vmem:[#allocation2 + $0x58] sm:$0xff]
        %v3367 = vld [vmem:[#allocation2 + $0x60] sm:$0xf]
        %v3368 = vld [vmem:[#allocation2 + $0x64] sm:$0xff]
        %v3369 = vld [vmem:[#allocation2 + $0x6c] sm:$0xff]
        %v3370 = vld [vmem:[#allocation2 + $0x74] sm:$0xf]
        %v3371 = vld [vmem:[#allocation2 + $0x78] sm:$0xff]
        %v3372 = vld [vmem:[#allocation2 + $0x80] sm:$0xff]
        %v3373 = vld [vmem:[#allocation2 + $0x88] sm:$0xf]
        %v3374 = vld [vmem:[#allocation2 + $0x8c] sm:$0xff]
        %v3375 = vld [vmem:[#allocation2 + $0x94] sm:$0xff]
        %v3376 = vld [vmem:[#allocation2 + $0x9c] sm:$0xf]
        %v3377 = vld [vmem:[#allocation2 + $0xa0] sm:$0xff]
        %v3378 = vld [vmem:[#allocation2 + $0xa8] sm:$0xff]
        %v3379 = vld [vmem:[#allocation2 + $0xb0] sm:$0xf]
        %v3380 = vld [vmem:[#allocation2 + $0xb4] sm:$0xff]
        %v3381 = vld [vmem:[#allocation2 + $0xbc] sm:$0xff]
        %v3382 = vld [vmem:[#allocation2 + $0xc4] sm:$0xf]
        %v3383 = vld [vmem:[#allocation2 + $0xc8] sm:$0xff]
        %v3384 = vld [vmem:[#allocation2 + $0xd0] sm:$0xff]
        %v3385 = vld [vmem:[#allocation2 + $0xd8] sm:$0xf]
        %v3386 = vld [vmem:[#allocation2 + $0xdc] sm:$0xff]
        %v3387 = vld [vmem:[#allocation2 + $0xe4] sm:$0xff]
        %v3388 = vld [vmem:[#allocation2 + $0xec] sm:$0xf]
        %v3389 = vld [vmem:[#allocation2 + $0xf0] sm:$0xff]
        %v3390 = vld [vmem:[#allocation2 + $0xf8] sm:$0xff]
        %v3391 = vld [vmem:[#allocation2 + $0x100] sm:$0xf]
        %v3392 = vld [vmem:[#allocation2 + $0x104] sm:$0xff]
        %v3393 = vld [vmem:[#allocation2 + $0x10c] sm:$0xff]
        %v3394 = vld [vmem:[#allocation2 + $0x114] sm:$0xf]
        %v3395 = vld [vmem:[#allocation2 + $0x118] sm:$0xff]
        %v3396 = vld [vmem:[#allocation2 + $0x120] sm:$0xff]
        %v3397 = vld [vmem:[#allocation2 + $0x128] sm:$0xf]
        %v3398 = vld [vmem:[#allocation2 + $0x12c] sm:$0xff]
        %v3399 = vld [vmem:[#allocation2 + $0x134] sm:$0xff]
        %v3400 = vld [vmem:[#allocation2 + $0x13c] sm:$0xf]
        %v3401 = vld [vmem:[#allocation2 + $0x140] sm:$0xff]
        %v3402 = vld [vmem:[#allocation2 + $0x148] sm:$0xff]
        %v3403 = vld [vmem:[#allocation2 + $0x150] sm:$0xf]
        %v3404 = vld [vmem:[#allocation2 + $0x154] sm:$0xff]
        %v3405 = vld [vmem:[#allocation2 + $0x15c] sm:$0xff]
        %v3406 = vld [vmem:[#allocation2 + $0x164] sm:$0xf]
        %v3407 = vld [vmem:[#allocation2 + $0x168] sm:$0xff]
        %v3408 = vld [vmem:[#allocation2 + $0x170] sm:$0xff]
        %v3409 = vld [vmem:[#allocation2 + $0x178] sm:$0xf]
        %v3410 = vld [vmem:[#allocation2 + $0x17c] sm:$0xff]
        %v3411 = vld [vmem:[#allocation2 + $0x184] sm:$0xff]
        %v3412 = vld [vmem:[#allocation2 + $0x18c] sm:$0xf]
        %v3413 = vld [vmem:[#allocation2 + $0x190] sm:$0xff]
        %v3414 = vld [vmem:[#allocation2 + $0x198] sm:$0xff]
        %v3415 = vld [vmem:[#allocation2 + $0x1a0] sm:$0xf]
        %v3416 = vld [vmem:[#allocation2 + $0x1a4] sm:$0xff]
        %v3417 = vld [vmem:[#allocation2 + $0x1ac] sm:$0xff]
        %v3418 = vld [vmem:[#allocation2 + $0x1b4] sm:$0xf]
        %v3419 = vld [vmem:[#allocation2 + $0x1b8] sm:$0xff]
        %v3420 = vld [vmem:[#allocation2 + $0x1c0] sm:$0xff]
        %v3421 = vld [vmem:[#allocation2 + $0x1c8] sm:$0xf]
        %v3422 = vld [vmem:[#allocation2 + $0x1cc] sm:$0xff]
        %v3423 = vld [vmem:[#allocation2 + $0x1d4] sm:$0xff]
        %v3424 = vld [vmem:[#allocation2 + $0x1dc] sm:$0xf]
        %v3425 = vld [vmem:[#allocation2 + $0x1e0] sm:$0xff]
        %v3426 = vld [vmem:[#allocation2 + $0x1e8] sm:$0xff]
        %v3427 = vld [vmem:[#allocation2 + $0x1f0] sm:$0xf]
        %v3428 = vld [vmem:[#allocation2 + $0x1f4] sm:$0xff]
        %v3429 = vld [vmem:[#allocation2 + $0x1fc] sm:$0xff]
        %v3430 = vld [vmem:[#allocation2 + $0x204] sm:$0xf]
        %v3431 = vld [vmem:[#allocation2 + $0x208] sm:$0xff]
        %v3432 = vld [vmem:[#allocation2 + $0x210] sm:$0xff]
        %v3433 = vld [vmem:[#allocation2 + $0x218] sm:$0xf]
        %v3434 = vld [vmem:[#allocation2 + $0x21c] sm:$0xff]
        %v3435 = vld [vmem:[#allocation2 + $0x224] sm:$0xff]
        %v3436 = vld [vmem:[#allocation2 + $0x22c] sm:$0xf]
        %v3437 = vld [vmem:[#allocation2 + $0x230] sm:$0xff]
        %v3438 = vld [vmem:[#allocation2 + $0x238] sm:$0xff]
        %v3439 = vld [vmem:[#allocation2 + $0x240] sm:$0xf]
        %v3440 = vld [vmem:[#allocation2 + $0x244] sm:$0xff]
        %v3441 = vld [vmem:[#allocation2 + $0x24c] sm:$0xff]
        %v3442 = vld [vmem:[#allocation2 + $0x254] sm:$0xf]
        %v3443 = vld [vmem:[#allocation2 + $0x258] sm:$0xff]
        %v3444 = vld [vmem:[#allocation2 + $0x260] sm:$0xff]
        %v3445 = vld [vmem:[#allocation2 + $0x268] sm:$0xf]
        %v3446 = vld [vmem:[#allocation2 + $0x26c] sm:$0xff]
        %v3447 = vld [vmem:[#allocation2 + $0x274] sm:$0xff]
        %v3448 = vld [vmem:[#allocation2 + $0x27c] sm:$0xf]
        %v3449 = vld [vmem:[%s2] sm:$0xf]
        %v3450 = vld [vmem:[%s2 + $0x4] sm:$0xf]
        %v3451 = vld [vmem:[%s2 + $0x8] sm:$0xf]
        %v3452 = vld [vmem:[%s2 + $0xc] sm:$0xf]
        %v3453 = vld [vmem:[%s2 + $0x10] sm:$0xf]
        %v3454 = vld [vmem:[%s2 + $0x14] sm:$0xf]
        %v3455 = vld [vmem:[%s2 + $0x18] sm:$0xf]
        %v3456 = vld [vmem:[%s2 + $0x1c] sm:$0xf]
        %v3457 = vld [vmem:[%s2 + $0x20] sm:$0xf]
        %v3458 = vld [vmem:[%s2 + $0x24] sm:$0xf]
        %v3459 = vld [vmem:[%s2 + $0x28] sm:$0xf]
        %v3460 = vld [vmem:[%s2 + $0x2c] sm:$0xf]
        %v3461 = vld [vmem:[%s2 + $0x30] sm:$0xf]
        %v3462 = vld [vmem:[%s2 + $0x34] sm:$0xf]
        %v3463 = vld [vmem:[%s2 + $0x38] sm:$0xf]
        %v3464 = vld [vmem:[%s2 + $0x3c] sm:$0xf]
        %v3465 = vld [vmem:[%s2 + $0x40] sm:$0xf]
        %v3466 = vld [vmem:[%s2 + $0x44] sm:$0xf]
        %v3467 = vld [vmem:[%s2 + $0x48] sm:$0xf]
        %v3468 = vld [vmem:[%s2 + $0x4c] sm:$0xf]
        %v3469 = vld [vmem:[%s2 + $0x50] sm:$0xf]
        %v3470 = vld [vmem:[%s2 + $0x54] sm:$0xf]
        %v3471 = vld [vmem:[%s2 + $0x58] sm:$0xf]
        %v3472 = vld [vmem:[%s2 + $0x5c] sm:$0xf]
        %v3473 = vld [vmem:[%s2 + $0x60] sm:$0xf]
        %v3474 = vld [vmem:[%s2 + $0x64] sm:$0xf]
        %v3475 = vld [vmem:[%s2 + $0x68] sm:$0xf]
        %v3476 = vld [vmem:[%s2 + $0x6c] sm:$0xf]
        %v3477 = vld [vmem:[%s2 + $0x70] sm:$0xf]
        %v3478 = vld [vmem:[%s2 + $0x74] sm:$0xf]
        %v3479 = vld [vmem:[%s2 + $0x78] sm:$0xf]
        %v3480 = vld [vmem:[%s2 + $0x7c] sm:$0xf]
        %v3481 = vld [vmem:[%s2 + $0x80] sm:$0xf]
        %v3482 = vld [vmem:[%s2 + $0x84] sm:$0xf]
        %v3483 = vld [vmem:[%s2 + $0x88] sm:$0xf]
        %v3484 = vld [vmem:[%s2 + $0x8c] sm:$0xf]
        %v3485 = vld [vmem:[%s2 + $0x90] sm:$0xf]
        %v3486 = vld [vmem:[%s2 + $0x94] sm:$0xf]
        %v3487 = vld [vmem:[%s2 + $0x98] sm:$0xf]
        %v3488 = vld [vmem:[%s2 + $0x9c] sm:$0xf]
        %v3489 = vld [vmem:[%s2 + $0xa0] sm:$0xf]
        %v3490 = vld [vmem:[%s2 + $0xa4] sm:$0xf]
        %v3491 = vld [vmem:[%s2 + $0xa8] sm:$0xf]
        %v3492 = vld [vmem:[%s2 + $0xac] sm:$0xf]
        %v3493 = vld [vmem:[%s2 + $0xb0] sm:$0xf]
        %v3494 = vld [vmem:[%s2 + $0xb4] sm:$0xf]
        %v3495 = vld [vmem:[%s2 + $0xb8] sm:$0xf]
        %v3496 = vld [vmem:[%s2 + $0xbc] sm:$0xf]
        %v3497 = vld [vmem:[%s2 + $0xc0] sm:$0xf]
        %v3498 = vld [vmem:[%s2 + $0xc4] sm:$0xf]
        %v3499 = vld [vmem:[%s2 + $0xc8] sm:$0xf]
        %v3500 = vld [vmem:[%s2 + $0xcc] sm:$0xf]
        %v3501 = vld [vmem:[%s2 + $0xd0] sm:$0xf]
        %v3502 = vld [vmem:[%s2 + $0xd4] sm:$0xf]
        %v3503 = vld [vmem:[%s2 + $0xd8] sm:$0xf]
        %v3504 = vld [vmem:[%s2 + $0xdc] sm:$0xf]
        %v3505 = vld [vmem:[%s2 + $0xe0] sm:$0xf]
        %v3506 = vld [vmem:[%s2 + $0xe4] sm:$0xf]
        %v3507 = vld [vmem:[%s2 + $0xe8] sm:$0xf]
        %v3508 = vld [vmem:[%s2 + $0xec] sm:$0xf]
        %v3509 = vld [vmem:[%s2 + $0xf0] sm:$0xf]
        %v3510 = vld [vmem:[%s2 + $0xf4] sm:$0xf]
        %v3511 = vld [vmem:[%s2 + $0xf8] sm:$0xf]
        %v3512 = vld [vmem:[%s2 + $0xfc] sm:$0xf]
        %v3513 = vld [vmem:[%s2 + $0x100] sm:$0xf]
        %v3514 = vld [vmem:[%s2 + $0x104] sm:$0xf]
        %v3515 = vld [vmem:[%s2 + $0x108] sm:$0xf]
        %v3516 = vld [vmem:[%s2 + $0x10c] sm:$0xf]
        %v3517 = vld [vmem:[%s2 + $0x110] sm:$0xf]
        %v3518 = vld [vmem:[%s2 + $0x114] sm:$0xf]
        %v3519 = vld [vmem:[%s2 + $0x118] sm:$0xf]
        %v3520 = vld [vmem:[%s2 + $0x11c] sm:$0xf]
        %v3521 = vld [vmem:[#allocation7] sm:$0x1]
        %v3523 = vperm.slane %v3521, 0
        %v3621 = vunpack.c.l.b16 %v3353
        %v3622 = vunpack.c.h.b16 %v3353
        %v3623 = vunpack.c.l.b16 %v3354
        %v3624 = vunpack.c.h.b16 %v3354
        %v3625 = vunpack.c.l.b16 %v3355
        %v3626 = vunpack.c.l.b16 %v3356
        %v3627 = vunpack.c.h.b16 %v3356
        %v3628 = vunpack.c.l.b16 %v3357
        %v3629 = vunpack.c.h.b16 %v3357
        %v3630 = vunpack.c.l.b16 %v3358
        %v3631 = vunpack.c.l.b16 %v3359
        %v3632 = vunpack.c.h.b16 %v3359
        %v3633 = vunpack.c.l.b16 %v3360
        %v3634 = vunpack.c.h.b16 %v3360
        %v3635 = vunpack.c.l.b16 %v3361
        %v3636 = vunpack.c.l.b16 %v3362
        %v3637 = vunpack.c.h.b16 %v3362
        %v3638 = vunpack.c.l.b16 %v3363
        %v3639 = vunpack.c.h.b16 %v3363
        %v3640 = vunpack.c.l.b16 %v3364
        %v3641 = vunpack.c.l.b16 %v3365
        %v3642 = vunpack.c.h.b16 %v3365
        %v3643 = vunpack.c.l.b16 %v3366
        %v3644 = vunpack.c.h.b16 %v3366
        %v3645 = vunpack.c.l.b16 %v3367
        %v3646 = vunpack.c.l.b16 %v3368
        %v3647 = vunpack.c.h.b16 %v3368
        %v3648 = vunpack.c.l.b16 %v3369
        %v3649 = vunpack.c.h.b16 %v3369
        %v3650 = vunpack.c.l.b16 %v3370
        %v3651 = vunpack.c.l.b16 %v3371
        %v3652 = vunpack.c.h.b16 %v3371
        %v3653 = vunpack.c.l.b16 %v3372
        %v3654 = vunpack.c.h.b16 %v3372
        %v3655 = vunpack.c.l.b16 %v3373
        %v3656 = vunpack.c.l.b16 %v3374
        %v3657 = vunpack.c.h.b16 %v3374
        %v3658 = vunpack.c.l.b16 %v3375
        %v3659 = vunpack.c.h.b16 %v3375
        %v3660 = vunpack.c.l.b16 %v3376
        %v3661 = vunpack.c.l.b16 %v3377
        %v3662 = vunpack.c.h.b16 %v3377
        %v3663 = vunpack.c.l.b16 %v3378
        %v3664 = vunpack.c.h.b16 %v3378
        %v3665 = vunpack.c.l.b16 %v3379
        %v3666 = vunpack.c.l.b16 %v3380
        %v3667 = vunpack.c.h.b16 %v3380
        %v3668 = vunpack.c.l.b16 %v3381
        %v3669 = vunpack.c.h.b16 %v3381
        %v3670 = vunpack.c.l.b16 %v3382
        %v3671 = vunpack.c.l.b16 %v3383
        %v3672 = vunpack.c.h.b16 %v3383
        %v3673 = vunpack.c.l.b16 %v3384
        %v3674 = vunpack.c.h.b16 %v3384
        %v3675 = vunpack.c.l.b16 %v3385
        %v3676 = vunpack.c.l.b16 %v3386
        %v3677 = vunpack.c.h.b16 %v3386
        %v3678 = vunpack.c.l.b16 %v3387
        %v3679 = vunpack.c.h.b16 %v3387
        %v3680 = vunpack.c.l.b16 %v3388
        %v3681 = vunpack.c.l.b16 %v3389
        %v3682 = vunpack.c.h.b16 %v3389
        %v3683 = vunpack.c.l.b16 %v3390
        %v3684 = vunpack.c.h.b16 %v3390
        %v3685 = vunpack.c.l.b16 %v3391
        %v3686 = vunpack.c.l.b16 %v3392
        %v3687 = vunpack.c.h.b16 %v3392
        %v3688 = vunpack.c.l.b16 %v3393
        %v3689 = vunpack.c.h.b16 %v3393
        %v3690 = vunpack.c.l.b16 %v3394
        %v3691 = vunpack.c.l.b16 %v3395
        %v3692 = vunpack.c.h.b16 %v3395
        %v3693 = vunpack.c.l.b16 %v3396
        %v3694 = vunpack.c.h.b16 %v3396
        %v3695 = vunpack.c.l.b16 %v3397
        %v3696 = vunpack.c.l.b16 %v3398
        %v3697 = vunpack.c.h.b16 %v3398
        %v3698 = vunpack.c.l.b16 %v3399
        %v3699 = vunpack.c.h.b16 %v3399
        %v3700 = vunpack.c.l.b16 %v3400
        %v3701 = vunpack.c.l.b16 %v3401
        %v3702 = vunpack.c.h.b16 %v3401
        %v3703 = vunpack.c.l.b16 %v3402
        %v3704 = vunpack.c.h.b16 %v3402
        %v3705 = vunpack.c.l.b16 %v3403
        %v3706 = vunpack.c.l.b16 %v3404
        %v3707 = vunpack.c.h.b16 %v3404
        %v3708 = vunpack.c.l.b16 %v3405
        %v3709 = vunpack.c.h.b16 %v3405
        %v3710 = vunpack.c.l.b16 %v3406
        %v3711 = vunpack.c.l.b16 %v3407
        %v3712 = vunpack.c.h.b16 %v3407
        %v3713 = vunpack.c.l.b16 %v3408
        %v3714 = vunpack.c.h.b16 %v3408
        %v3715 = vunpack.c.l.b16 %v3409
        %v3716 = vunpack.c.l.b16 %v3410
        %v3717 = vunpack.c.h.b16 %v3410
        %v3718 = vunpack.c.l.b16 %v3411
        %v3719 = vunpack.c.h.b16 %v3411
        %v3720 = vunpack.c.l.b16 %v3412
        %v3721 = vunpack.c.l.b16 %v3413
        %v3722 = vunpack.c.h.b16 %v3413
        %v3723 = vunpack.c.l.b16 %v3414
        %v3724 = vunpack.c.h.b16 %v3414
        %v3725 = vunpack.c.l.b16 %v3415
        %v3726 = vunpack.c.l.b16 %v3416
        %v3727 = vunpack.c.h.b16 %v3416
        %v3728 = vunpack.c.l.b16 %v3417
        %v3729 = vunpack.c.h.b16 %v3417
        %v3730 = vunpack.c.l.b16 %v3418
        %v3731 = vunpack.c.l.b16 %v3419
        %v3732 = vunpack.c.h.b16 %v3419
        %v3733 = vunpack.c.l.b16 %v3420
        %v3734 = vunpack.c.h.b16 %v3420
        %v3735 = vunpack.c.l.b16 %v3421
        %v3736 = vunpack.c.l.b16 %v3422
        %v3737 = vunpack.c.h.b16 %v3422
        %v3738 = vunpack.c.l.b16 %v3423
        %v3739 = vunpack.c.h.b16 %v3423
        %v3740 = vunpack.c.l.b16 %v3424
        %v3741 = vunpack.c.l.b16 %v3425
        %v3742 = vunpack.c.h.b16 %v3425
        %v3743 = vunpack.c.l.b16 %v3426
        %v3744 = vunpack.c.h.b16 %v3426
        %v3745 = vunpack.c.l.b16 %v3427
        %v3746 = vunpack.c.l.b16 %v3428
        %v3747 = vunpack.c.h.b16 %v3428
        %v3748 = vunpack.c.l.b16 %v3429
        %v3749 = vunpack.c.h.b16 %v3429
        %v3750 = vunpack.c.l.b16 %v3430
        %v3751 = vunpack.c.l.b16 %v3431
        %v3752 = vunpack.c.h.b16 %v3431
        %v3753 = vunpack.c.l.b16 %v3432
        %v3754 = vunpack.c.h.b16 %v3432
        %v3755 = vunpack.c.l.b16 %v3433
        %v3756 = vunpack.c.l.b16 %v3434
        %v3757 = vunpack.c.h.b16 %v3434
        %v3758 = vunpack.c.l.b16 %v3435
        %v3759 = vunpack.c.h.b16 %v3435
        %v3760 = vunpack.c.l.b16 %v3436
        %v3761 = vunpack.c.l.b16 %v3437
        %v3762 = vunpack.c.h.b16 %v3437
        %v3763 = vunpack.c.l.b16 %v3438
        %v3764 = vunpack.c.h.b16 %v3438
        %v3765 = vunpack.c.l.b16 %v3439
        %v3766 = vunpack.c.l.b16 %v3440
        %v3767 = vunpack.c.h.b16 %v3440
        %v3768 = vunpack.c.l.b16 %v3441
        %v3769 = vunpack.c.h.b16 %v3441
        %v3770 = vunpack.c.l.b16 %v3442
        %v3771 = vunpack.c.l.b16 %v3443
        %v3772 = vunpack.c.h.b16 %v3443
        %v3773 = vunpack.c.l.b16 %v3444
        %v3774 = vunpack.c.h.b16 %v3444
        %v3775 = vunpack.c.l.b16 %v3445
        %v3776 = vunpack.c.l.b16 %v3446
        %v3777 = vunpack.c.h.b16 %v3446
        %v3778 = vunpack.c.l.b16 %v3447
        %v3779 = vunpack.c.h.b16 %v3447
        %v3780 = vunpack.c.l.b16 %v3448
        %v3781 = vpack.c.b16 %v3626, %v3621
        %v3782 = vpack.c.b16 %v3627, %v3622
        %v3783 = vpack.c.b16 %v3628, %v3623
        %v3784 = vpack.c.b16 %v3629, %v3624
        %v3785 = vpack.c.b16 %v3630, %v3625
        %v3786 = vpack.c.b16 %v3636, %v3631
        %v3787 = vpack.c.b16 %v3637, %v3632
        %v3788 = vpack.c.b16 %v3638, %v3633
        %v3789 = vpack.c.b16 %v3639, %v3634
        %v3790 = vpack.c.b16 %v3640, %v3635
        %v3791 = vpack.c.b16 %v3646, %v3641
        %v3792 = vpack.c.b16 %v3647, %v3642
        %v3793 = vpack.c.b16 %v3648, %v3643
        %v3794 = vpack.c.b16 %v3649, %v3644
        %v3795 = vpack.c.b16 %v3650, %v3645
        %v3796 = vpack.c.b16 %v3656, %v3651
        %v3797 = vpack.c.b16 %v3657, %v3652
        %v3798 = vpack.c.b16 %v3658, %v3653
        %v3799 = vpack.c.b16 %v3659, %v3654
        %v3800 = vpack.c.b16 %v3660, %v3655
        %v3801 = vpack.c.b16 %v3666, %v3661
        %v3802 = vpack.c.b16 %v3667, %v3662
        %v3803 = vpack.c.b16 %v3668, %v3663
        %v3804 = vpack.c.b16 %v3669, %v3664
        %v3805 = vpack.c.b16 %v3670, %v3665
        %v3806 = vpack.c.b16 %v3676, %v3671
        %v3807 = vpack.c.b16 %v3677, %v3672
        %v3808 = vpack.c.b16 %v3678, %v3673
        %v3809 = vpack.c.b16 %v3679, %v3674
        %v3810 = vpack.c.b16 %v3680, %v3675
        %v3811 = vpack.c.b16 %v3686, %v3681
        %v3812 = vpack.c.b16 %v3687, %v3682
        %v3813 = vpack.c.b16 %v3688, %v3683
        %v3814 = vpack.c.b16 %v3689, %v3684
        %v3815 = vpack.c.b16 %v3690, %v3685
        %v3816 = vpack.c.b16 %v3696, %v3691
        %v3817 = vpack.c.b16 %v3697, %v3692
        %v3818 = vpack.c.b16 %v3698, %v3693
        %v3819 = vpack.c.b16 %v3699, %v3694
        %v3820 = vpack.c.b16 %v3700, %v3695
        %v3821 = vpack.c.b16 %v3706, %v3701
        %v3822 = vpack.c.b16 %v3707, %v3702
        %v3823 = vpack.c.b16 %v3708, %v3703
        %v3824 = vpack.c.b16 %v3709, %v3704
        %v3825 = vpack.c.b16 %v3710, %v3705
        %v3826 = vpack.c.b16 %v3716, %v3711
        %v3827 = vpack.c.b16 %v3717, %v3712
        %v3828 = vpack.c.b16 %v3718, %v3713
        %v3829 = vpack.c.b16 %v3719, %v3714
        %v3830 = vpack.c.b16 %v3720, %v3715
        %v3831 = vpack.c.b16 %v3726, %v3721
        %v3832 = vpack.c.b16 %v3727, %v3722
        %v3833 = vpack.c.b16 %v3728, %v3723
        %v3834 = vpack.c.b16 %v3729, %v3724
        %v3835 = vpack.c.b16 %v3730, %v3725
        %v3836 = vpack.c.b16 %v3736, %v3731
        %v3837 = vpack.c.b16 %v3737, %v3732
        %v3838 = vpack.c.b16 %v3738, %v3733
        %v3839 = vpack.c.b16 %v3739, %v3734
        %v3840 = vpack.c.b16 %v3740, %v3735
        %v3841 = vpack.c.b16 %v3746, %v3741
        %v3842 = vpack.c.b16 %v3747, %v3742
        %v3843 = vpack.c.b16 %v3748, %v3743
        %v3844 = vpack.c.b16 %v3749, %v3744
        %v3845 = vpack.c.b16 %v3750, %v3745
        %v3846 = vpack.c.b16 %v3756, %v3751
        %v3847 = vpack.c.b16 %v3757, %v3752
        %v3848 = vpack.c.b16 %v3758, %v3753
        %v3849 = vpack.c.b16 %v3759, %v3754
        %v3850 = vpack.c.b16 %v3760, %v3755
        %v3851 = vpack.c.b16 %v3766, %v3761
        %v3852 = vpack.c.b16 %v3767, %v3762
        %v3853 = vpack.c.b16 %v3768, %v3763
        %v3854 = vpack.c.b16 %v3769, %v3764
        %v3855 = vpack.c.b16 %v3770, %v3765
        %v3856 = vpack.c.b16 %v3776, %v3771
        %v3857 = vpack.c.b16 %v3777, %v3772
        %v3858 = vpack.c.b16 %v3778, %v3773
        %v3859 = vpack.c.b16 %v3779, %v3774
        %v3860 = vpack.c.b16 %v3780, %v3775
        %v3997 = vunpack.c.l.b16 %v3449
        %v3998 = vunpack.c.l.b16 %v3450
        %v3999 = vunpack.c.l.b16 %v3451
        %v4000 = vunpack.c.l.b16 %v3452
        %v4001 = vunpack.c.l.b16 %v3453
        %v4002 = vunpack.c.l.b16 %v3454
        %v4003 = vunpack.c.l.b16 %v3455
        %v4004 = vunpack.c.l.b16 %v3456
        %v4005 = vunpack.c.l.b16 %v3457
        %v4006 = vunpack.c.l.b16 %v3458
        %v4007 = vunpack.c.l.b16 %v3459
        %v4008 = vunpack.c.l.b16 %v3460
        %v4009 = vunpack.c.l.b16 %v3461
        %v4010 = vunpack.c.l.b16 %v3462
        %v4011 = vunpack.c.l.b16 %v3463
        %v4012 = vunpack.c.l.b16 %v3464
        %v4013 = vunpack.c.l.b16 %v3465
        %v4014 = vunpack.c.l.b16 %v3466
        %v4015 = vunpack.c.l.b16 %v3467
        %v4016 = vunpack.c.l.b16 %v3468
        %v4017 = vunpack.c.l.b16 %v3469
        %v4018 = vunpack.c.l.b16 %v3470
        %v4019 = vunpack.c.l.b16 %v3471
        %v4020 = vunpack.c.l.b16 %v3472
        %v4021 = vunpack.c.l.b16 %v3473
        %v4022 = vunpack.c.l.b16 %v3474
        %v4023 = vunpack.c.l.b16 %v3475
        %v4024 = vunpack.c.l.b16 %v3476
        %v4025 = vunpack.c.l.b16 %v3477
        %v4026 = vunpack.c.l.b16 %v3478
        %v4027 = vunpack.c.l.b16 %v3479
        %v4028 = vunpack.c.l.b16 %v3480
        %v4029 = vunpack.c.l.b16 %v3481
        %v4030 = vunpack.c.l.b16 %v3482
        %v4031 = vunpack.c.l.b16 %v3483
        %v4032 = vunpack.c.l.b16 %v3484
        %v4033 = vunpack.c.l.b16 %v3485
        %v4034 = vunpack.c.l.b16 %v3486
        %v4035 = vunpack.c.l.b16 %v3487
        %v4036 = vunpack.c.l.b16 %v3488
        %v4037 = vunpack.c.l.b16 %v3489
        %v4038 = vunpack.c.l.b16 %v3490
        %v4039 = vunpack.c.l.b16 %v3491
        %v4040 = vunpack.c.l.b16 %v3492
        %v4041 = vunpack.c.l.b16 %v3493
        %v4042 = vunpack.c.l.b16 %v3494
        %v4043 = vunpack.c.l.b16 %v3495
        %v4044 = vunpack.c.l.b16 %v3496
        %v4045 = vunpack.c.l.b16 %v3497
        %v4046 = vunpack.c.l.b16 %v3498
        %v4047 = vunpack.c.l.b16 %v3499
        %v4048 = vunpack.c.l.b16 %v3500
        %v4049 = vunpack.c.l.b16 %v3501
        %v4050 = vunpack.c.l.b16 %v3502
        %v4051 = vunpack.c.l.b16 %v3503
        %v4052 = vunpack.c.l.b16 %v3504
        %v4053 = vunpack.c.l.b16 %v3505
        %v4054 = vunpack.c.l.b16 %v3506
        %v4055 = vunpack.c.l.b16 %v3507
        %v4056 = vunpack.c.l.b16 %v3508
        %v4057 = vunpack.c.l.b16 %v3509
        %v4058 = vunpack.c.l.b16 %v3510
        %v4059 = vunpack.c.l.b16 %v3511
        %v4060 = vunpack.c.l.b16 %v3512
        %v4061 = vunpack.c.l.b16 %v3513
        %v4062 = vunpack.c.l.b16 %v3514
        %v4063 = vunpack.c.l.b16 %v3515
        %v4064 = vunpack.c.l.b16 %v3516
        %v4065 = vunpack.c.l.b16 %v3517
        %v4066 = vunpack.c.l.b16 %v3518
        %v4067 = vunpack.c.l.b16 %v3519
        %v4068 = vunpack.c.l.b16 %v3520
        %v4069 = vpack.c.b16 %v3998, %v3997
        %v4070 = vpack.c.b16 %v4000, %v3999
        %v4071 = vpack.c.b16 %v4002, %v4001
        %v4072 = vpack.c.b16 %v4004, %v4003
        %v4073 = vpack.c.b16 %v4006, %v4005
        %v4074 = vpack.c.b16 %v4008, %v4007
        %v4075 = vpack.c.b16 %v4010, %v4009
        %v4076 = vpack.c.b16 %v4012, %v4011
        %v4077 = vpack.c.b16 %v4014, %v4013
        %v4078 = vpack.c.b16 %v4016, %v4015
        %v4079 = vpack.c.b16 %v4018, %v4017
        %v4080 = vpack.c.b16 %v4020, %v4019
        %v4081 = vpack.c.b16 %v4022, %v4021
        %v4082 = vpack.c.b16 %v4024, %v4023
        %v4083 = vpack.c.b16 %v4026, %v4025
        %v4084 = vpack.c.b16 %v4028, %v4027
        %v4085 = vpack.c.b16 %v4030, %v4029
        %v4086 = vpack.c.b16 %v4032, %v4031
        %v4087 = vpack.c.b16 %v4034, %v4033
        %v4088 = vpack.c.b16 %v4036, %v4035
        %v4089 = vpack.c.b16 %v4038, %v4037
        %v4090 = vpack.c.b16 %v4040, %v4039
        %v4091 = vpack.c.b16 %v4042, %v4041
        %v4092 = vpack.c.b16 %v4044, %v4043
        %v4093 = vpack.c.b16 %v4046, %v4045
        %v4094 = vpack.c.b16 %v4048, %v4047
        %v4095 = vpack.c.b16 %v4050, %v4049
        %v4096 = vpack.c.b16 %v4052, %v4051
        %v4097 = vpack.c.b16 %v4054, %v4053
        %v4098 = vpack.c.b16 %v4056, %v4055
        %v4099 = vpack.c.b16 %v4058, %v4057
        %v4100 = vpack.c.b16 %v4060, %v4059
        %v4101 = vpack.c.b16 %v4062, %v4061
        %v4102 = vpack.c.b16 %v4064, %v4063
        %v4103 = vpack.c.b16 %v4066, %v4065
        %v4104 = vpack.c.b16 %v4068, %v4067
        %vm4141 = vcmask 523264
        %v4143 = vsel %vm4141, %v3785, 0
        %v4146 = vsel %vm4141, %v3790, 0
        %v4149 = vsel %vm4141, %v3795, 0
        %v4152 = vsel %vm4141, %v3800, 0
        %v4155 = vsel %vm4141, %v3805, 0
        %v4158 = vsel %vm4141, %v3810, 0
        %v4161 = vsel %vm4141, %v3815, 0
        %v4164 = vsel %vm4141, %v3820, 0
        %v4167 = vsel %vm4141, %v3825, 0
        %v4170 = vsel %vm4141, %v3830, 0
        %v4173 = vsel %vm4141, %v3835, 0
        %v4176 = vsel %vm4141, %v3840, 0
        %v4179 = vsel %vm4141, %v3845, 0
        %v4182 = vsel %vm4141, %v3850, 0
        %v4185 = vsel %vm4141, %v3855, 0
        %v4188 = vsel %vm4141, %v3860, 0
        %4190 = vmatpush.bf16.msra.mxu0 %v4076
        %4191 = vmatpush.bf16.msra.mxu0 %v4075
        %4192 = vmatpush.bf16.msra.mxu0 %v4074
        %4193 = vmatpush.bf16.msra.mxu0 %v4073
        %4194 = vmatpush.bf16.msra.mxu0 %v4072
        %4195 = vmatpush.bf16.msra.mxu0 %v4071
        %4196 = vmatpush.bf16.msra.mxu0 %v4070
        %4197 = vmatpush.bf16.msra.mxu0 %v4069
        %4198 = vmatmul.bf16.gmra.mxu0 %v3781
        %v4199 = vpop.f32.mrf.mxu0
        %v4200 = vadd.f32 %v3523, %v4199
        %v4201 = vpop.f32.mrf.mxu0
        %v4202 = vadd.f32 %v3523, %v4201
        %4203 = vmatmul.bf16.gmra.mxu0 %v3786
        %v4204 = vpop.f32.mrf.mxu0
        %v4205 = vadd.f32 %v3523, %v4204
        %v4206 = vpop.f32.mrf.mxu0
        %v4207 = vadd.f32 %v3523, %v4206
        %4208 = vmatmul.bf16.gmra.mxu0 %v3791
        %v4209 = vpop.f32.mrf.mxu0
        %v4210 = vadd.f32 %v3523, %v4209
        %v4211 = vpop.f32.mrf.mxu0
        %v4212 = vadd.f32 %v3523, %v4211
        %4213 = vmatmul.bf16.gmra.mxu0 %v3796
        %v4214 = vpop.f32.mrf.mxu0
        %v4215 = vadd.f32 %v3523, %v4214
        %v4216 = vpop.f32.mrf.mxu0
        %v4217 = vadd.f32 %v3523, %v4216
        %4218 = vmatmul.bf16.gmra.mxu0 %v3801
        %v4219 = vpop.f32.mrf.mxu0
        %v4220 = vadd.f32 %v3523, %v4219
        %v4221 = vpop.f32.mrf.mxu0
        %v4222 = vadd.f32 %v3523, %v4221
        %4223 = vmatmul.bf16.gmra.mxu0 %v3806
        %v4224 = vpop.f32.mrf.mxu0
        %v4225 = vadd.f32 %v3523, %v4224
        %v4226 = vpop.f32.mrf.mxu0
        %v4227 = vadd.f32 %v3523, %v4226
        %4228 = vmatmul.bf16.gmra.mxu0 %v3811
        %v4229 = vpop.f32.mrf.mxu0
        %v4230 = vadd.f32 %v3523, %v4229
        %v4231 = vpop.f32.mrf.mxu0
        %v4232 = vadd.f32 %v3523, %v4231
        %4233 = vmatmul.bf16.gmra.mxu0 %v3816
        %v4234 = vpop.f32.mrf.mxu0
        %v4235 = vadd.f32 %v3523, %v4234
        %v4236 = vpop.f32.mrf.mxu0
        %v4237 = vadd.f32 %v3523, %v4236
        %4238 = vmatmul.bf16.gmra.mxu0 %v3821
        %v4239 = vpop.f32.mrf.mxu0
        %v4240 = vadd.f32 %v3523, %v4239
        %v4241 = vpop.f32.mrf.mxu0
        %v4242 = vadd.f32 %v3523, %v4241
        %4243 = vmatmul.bf16.gmra.mxu0 %v3826
        %v4244 = vpop.f32.mrf.mxu0
        %v4245 = vadd.f32 %v3523, %v4244
        %v4246 = vpop.f32.mrf.mxu0
        %v4247 = vadd.f32 %v3523, %v4246
        %4248 = vmatmul.bf16.gmra.mxu0 %v3831
        %v4249 = vpop.f32.mrf.mxu0
        %v4250 = vadd.f32 %v3523, %v4249
        %v4251 = vpop.f32.mrf.mxu0
        %v4252 = vadd.f32 %v3523, %v4251
        %4253 = vmatmul.bf16.gmra.mxu0 %v3836
        %v4254 = vpop.f32.mrf.mxu0
        %v4255 = vadd.f32 %v3523, %v4254
        %v4256 = vpop.f32.mrf.mxu0
        %v4257 = vadd.f32 %v3523, %v4256
        %4258 = vmatmul.bf16.gmra.mxu0 %v3841
        %v4259 = vpop.f32.mrf.mxu0
        %v4260 = vadd.f32 %v3523, %v4259
        %v4261 = vpop.f32.mrf.mxu0
        %v4262 = vadd.f32 %v3523, %v4261
        %4263 = vmatmul.bf16.gmra.mxu0 %v3846
        %v4264 = vpop.f32.mrf.mxu0
        %v4265 = vadd.f32 %v3523, %v4264
        %v4266 = vpop.f32.mrf.mxu0
        %v4267 = vadd.f32 %v3523, %v4266
        %4268 = vmatmul.bf16.gmra.mxu0 %v3851
        %v4269 = vpop.f32.mrf.mxu0
        %v4270 = vadd.f32 %v3523, %v4269
        %v4271 = vpop.f32.mrf.mxu0
        %v4272 = vadd.f32 %v3523, %v4271
        %4273 = vmatmul.bf16.gmra.mxu0 %v3856
        %v4274 = vpop.f32.mrf.mxu0
        %v4275 = vadd.f32 %v3523, %v4274
        %v4276 = vpop.f32.mrf.mxu0
        %v4277 = vadd.f32 %v3523, %v4276
        %4278 = vdwg.mxu0
        %4279 = vmatpush.bf16.msra.mxu0 %v4084
        %4280 = vmatpush.bf16.msra.mxu0 %v4083
        %4281 = vmatpush.bf16.msra.mxu0 %v4082
        %4282 = vmatpush.bf16.msra.mxu0 %v4081
        %4283 = vmatpush.bf16.msra.mxu0 %v4080
        %4284 = vmatpush.bf16.msra.mxu0 %v4079
        %4285 = vmatpush.bf16.msra.mxu0 %v4078
        %4286 = vmatpush.bf16.msra.mxu0 %v4077
        %4287 = vmatmul.bf16.gmra.mxu0 %v3782
        %v4288 = vpop.f32.mrf.mxu0
        %v4289 = vadd.f32 %v4200, %v4288
        %v4290 = vpop.f32.mrf.mxu0
        %v4291 = vadd.f32 %v4202, %v4290
        %4292 = vmatmul.bf16.gmra.mxu0 %v3787
        %v4293 = vpop.f32.mrf.mxu0
        %v4294 = vadd.f32 %v4205, %v4293
        %v4295 = vpop.f32.mrf.mxu0
        %v4296 = vadd.f32 %v4207, %v4295
        %4297 = vmatmul.bf16.gmra.mxu0 %v3792
        %v4298 = vpop.f32.mrf.mxu0
        %v4299 = vadd.f32 %v4210, %v4298
        %v4300 = vpop.f32.mrf.mxu0
        %v4301 = vadd.f32 %v4212, %v4300
        %4302 = vmatmul.bf16.gmra.mxu0 %v3797
        %v4303 = vpop.f32.mrf.mxu0
        %v4304 = vadd.f32 %v4215, %v4303
        %v4305 = vpop.f32.mrf.mxu0
        %v4306 = vadd.f32 %v4217, %v4305
        %4307 = vmatmul.bf16.gmra.mxu0 %v3802
        %v4308 = vpop.f32.mrf.mxu0
        %v4309 = vadd.f32 %v4220, %v4308
        %v4310 = vpop.f32.mrf.mxu0
        %v4311 = vadd.f32 %v4222, %v4310
        %4312 = vmatmul.bf16.gmra.mxu0 %v3807
        %v4313 = vpop.f32.mrf.mxu0
        %v4314 = vadd.f32 %v4225, %v4313
        %v4315 = vpop.f32.mrf.mxu0
        %v4316 = vadd.f32 %v4227, %v4315
        %4317 = vmatmul.bf16.gmra.mxu0 %v3812
        %v4318 = vpop.f32.mrf.mxu0
        %v4319 = vadd.f32 %v4230, %v4318
        %v4320 = vpop.f32.mrf.mxu0
        %v4321 = vadd.f32 %v4232, %v4320
        %4322 = vmatmul.bf16.gmra.mxu0 %v3817
        %v4323 = vpop.f32.mrf.mxu0
        %v4324 = vadd.f32 %v4235, %v4323
        %v4325 = vpop.f32.mrf.mxu0
        %v4326 = vadd.f32 %v4237, %v4325
        %4327 = vmatmul.bf16.gmra.mxu0 %v3822
        %v4328 = vpop.f32.mrf.mxu0
        %v4329 = vadd.f32 %v4240, %v4328
        %v4330 = vpop.f32.mrf.mxu0
        %v4331 = vadd.f32 %v4242, %v4330
        %4332 = vmatmul.bf16.gmra.mxu0 %v3827
        %v4333 = vpop.f32.mrf.mxu0
        %v4334 = vadd.f32 %v4245, %v4333
        %v4335 = vpop.f32.mrf.mxu0
        %v4336 = vadd.f32 %v4247, %v4335
        %4337 = vmatmul.bf16.gmra.mxu0 %v3832
        %v4338 = vpop.f32.mrf.mxu0
        %v4339 = vadd.f32 %v4250, %v4338
        %v4340 = vpop.f32.mrf.mxu0
        %v4341 = vadd.f32 %v4252, %v4340
        %4342 = vmatmul.bf16.gmra.mxu0 %v3837
        %v4343 = vpop.f32.mrf.mxu0
        %v4344 = vadd.f32 %v4255, %v4343
        %v4345 = vpop.f32.mrf.mxu0
        %v4346 = vadd.f32 %v4257, %v4345
        %4347 = vmatmul.bf16.gmra.mxu0 %v3842
        %v4348 = vpop.f32.mrf.mxu0
        %v4349 = vadd.f32 %v4260, %v4348
        %v4350 = vpop.f32.mrf.mxu0
        %v4351 = vadd.f32 %v4262, %v4350
        %4352 = vmatmul.bf16.gmra.mxu0 %v3847
        %v4353 = vpop.f32.mrf.mxu0
        %v4354 = vadd.f32 %v4265, %v4353
        %v4355 = vpop.f32.mrf.mxu0
        %v4356 = vadd.f32 %v4267, %v4355
        %4357 = vmatmul.bf16.gmra.mxu0 %v3852
        %v4358 = vpop.f32.mrf.mxu0
        %v4359 = vadd.f32 %v4270, %v4358
        %v4360 = vpop.f32.mrf.mxu0
        %v4361 = vadd.f32 %v4272, %v4360
        %4362 = vmatmul.bf16.gmra.mxu0 %v3857
        %v4363 = vpop.f32.mrf.mxu0
        %v4364 = vadd.f32 %v4275, %v4363
        %v4365 = vpop.f32.mrf.mxu0
        %v4366 = vadd.f32 %v4277, %v4365
        %4367 = vdwg.mxu0
        %4368 = vmatpush.bf16.msra.mxu0 %v4092
        %4369 = vmatpush.bf16.msra.mxu0 %v4091
        %4370 = vmatpush.bf16.msra.mxu0 %v4090
        %4371 = vmatpush.bf16.msra.mxu0 %v4089
        %4372 = vmatpush.bf16.msra.mxu0 %v4088
        %4373 = vmatpush.bf16.msra.mxu0 %v4087
        %4374 = vmatpush.bf16.msra.mxu0 %v4086
        %4375 = vmatpush.bf16.msra.mxu0 %v4085
        %4376 = vmatmul.bf16.gmra.mxu0 %v3783
        %v4377 = vpop.f32.mrf.mxu0
        %v4378 = vadd.f32 %v4289, %v4377
        %v4379 = vpop.f32.mrf.mxu0
        %v4380 = vadd.f32 %v4291, %v4379
        %4381 = vmatmul.bf16.gmra.mxu0 %v3788
        %v4382 = vpop.f32.mrf.mxu0
        %v4383 = vadd.f32 %v4294, %v4382
        %v4384 = vpop.f32.mrf.mxu0
        %v4385 = vadd.f32 %v4296, %v4384
        %4386 = vmatmul.bf16.gmra.mxu0 %v3793
        %v4387 = vpop.f32.mrf.mxu0
        %v4388 = vadd.f32 %v4299, %v4387
        %v4389 = vpop.f32.mrf.mxu0
        %v4390 = vadd.f32 %v4301, %v4389
        %4391 = vmatmul.bf16.gmra.mxu0 %v3798
        %v4392 = vpop.f32.mrf.mxu0
        %v4393 = vadd.f32 %v4304, %v4392
        %v4394 = vpop.f32.mrf.mxu0
        %v4395 = vadd.f32 %v4306, %v4394
        %4396 = vmatmul.bf16.gmra.mxu0 %v3803
        %v4397 = vpop.f32.mrf.mxu0
        %v4398 = vadd.f32 %v4309, %v4397
        %v4399 = vpop.f32.mrf.mxu0
        %v4400 = vadd.f32 %v4311, %v4399
        %4401 = vmatmul.bf16.gmra.mxu0 %v3808
        %v4402 = vpop.f32.mrf.mxu0
        %v4403 = vadd.f32 %v4314, %v4402
        %v4404 = vpop.f32.mrf.mxu0
        %v4405 = vadd.f32 %v4316, %v4404
        %4406 = vmatmul.bf16.gmra.mxu0 %v3813
        %v4407 = vpop.f32.mrf.mxu0
        %v4408 = vadd.f32 %v4319, %v4407
        %v4409 = vpop.f32.mrf.mxu0
        %v4410 = vadd.f32 %v4321, %v4409
        %4411 = vmatmul.bf16.gmra.mxu0 %v3818
        %v4412 = vpop.f32.mrf.mxu0
        %v4413 = vadd.f32 %v4324, %v4412
        %v4414 = vpop.f32.mrf.mxu0
        %v4415 = vadd.f32 %v4326, %v4414
        %4416 = vmatmul.bf16.gmra.mxu0 %v3823
        %v4417 = vpop.f32.mrf.mxu0
        %v4418 = vadd.f32 %v4329, %v4417
        %v4419 = vpop.f32.mrf.mxu0
        %v4420 = vadd.f32 %v4331, %v4419
        %4421 = vmatmul.bf16.gmra.mxu0 %v3828
        %v4422 = vpop.f32.mrf.mxu0
        %v4423 = vadd.f32 %v4334, %v4422
        %v4424 = vpop.f32.mrf.mxu0
        %v4425 = vadd.f32 %v4336, %v4424
        %4426 = vmatmul.bf16.gmra.mxu0 %v3833
        %v4427 = vpop.f32.mrf.mxu0
        %v4428 = vadd.f32 %v4339, %v4427
        %v4429 = vpop.f32.mrf.mxu0
        %v4430 = vadd.f32 %v4341, %v4429
        %4431 = vmatmul.bf16.gmra.mxu0 %v3838
        %v4432 = vpop.f32.mrf.mxu0
        %v4433 = vadd.f32 %v4344, %v4432
        %v4434 = vpop.f32.mrf.mxu0
        %v4435 = vadd.f32 %v4346, %v4434
        %4436 = vmatmul.bf16.gmra.mxu0 %v3843
        %v4437 = vpop.f32.mrf.mxu0
        %v4438 = vadd.f32 %v4349, %v4437
        %v4439 = vpop.f32.mrf.mxu0
        %v4440 = vadd.f32 %v4351, %v4439
        %4441 = vmatmul.bf16.gmra.mxu0 %v3848
        %v4442 = vpop.f32.mrf.mxu0
        %v4443 = vadd.f32 %v4354, %v4442
        %v4444 = vpop.f32.mrf.mxu0
        %v4445 = vadd.f32 %v4356, %v4444
        %4446 = vmatmul.bf16.gmra.mxu0 %v3853
        %v4447 = vpop.f32.mrf.mxu0
        %v4448 = vadd.f32 %v4359, %v4447
        %v4449 = vpop.f32.mrf.mxu0
        %v4450 = vadd.f32 %v4361, %v4449
        %4451 = vmatmul.bf16.gmra.mxu0 %v3858
        %v4452 = vpop.f32.mrf.mxu0
        %v4453 = vadd.f32 %v4364, %v4452
        %v4454 = vpop.f32.mrf.mxu0
        %v4455 = vadd.f32 %v4366, %v4454
        %4456 = vdwg.mxu0
        %4457 = vmatpush.bf16.msra.mxu0 %v4100
        %4458 = vmatpush.bf16.msra.mxu0 %v4099
        %4459 = vmatpush.bf16.msra.mxu0 %v4098
        %4460 = vmatpush.bf16.msra.mxu0 %v4097
        %4461 = vmatpush.bf16.msra.mxu0 %v4096
        %4462 = vmatpush.bf16.msra.mxu0 %v4095
        %4463 = vmatpush.bf16.msra.mxu0 %v4094
        %4464 = vmatpush.bf16.msra.mxu0 %v4093
        %4465 = vmatmul.bf16.gmra.mxu0 %v3784
        %v4466 = vpop.f32.mrf.mxu0
        %v4467 = vadd.f32 %v4378, %v4466
        %v4468 = vpop.f32.mrf.mxu0
        %v4469 = vadd.f32 %v4380, %v4468
        %4470 = vmatmul.bf16.gmra.mxu0 %v3789
        %v4471 = vpop.f32.mrf.mxu0
        %v4472 = vadd.f32 %v4383, %v4471
        %v4473 = vpop.f32.mrf.mxu0
        %v4474 = vadd.f32 %v4385, %v4473
        %4475 = vmatmul.bf16.gmra.mxu0 %v3794
        %v4476 = vpop.f32.mrf.mxu0
        %v4477 = vadd.f32 %v4388, %v4476
        %v4478 = vpop.f32.mrf.mxu0
        %v4479 = vadd.f32 %v4390, %v4478
        %4480 = vmatmul.bf16.gmra.mxu0 %v3799
        %v4481 = vpop.f32.mrf.mxu0
        %v4482 = vadd.f32 %v4393, %v4481
        %v4483 = vpop.f32.mrf.mxu0
        %v4484 = vadd.f32 %v4395, %v4483
        %4485 = vmatmul.bf16.gmra.mxu0 %v3804
        %v4486 = vpop.f32.mrf.mxu0
        %v4487 = vadd.f32 %v4398, %v4486
        %v4488 = vpop.f32.mrf.mxu0
        %v4489 = vadd.f32 %v4400, %v4488
        %4490 = vmatmul.bf16.gmra.mxu0 %v3809
        %v4491 = vpop.f32.mrf.mxu0
        %v4492 = vadd.f32 %v4403, %v4491
        %v4493 = vpop.f32.mrf.mxu0
        %v4494 = vadd.f32 %v4405, %v4493
        %4495 = vmatmul.bf16.gmra.mxu0 %v3814
        %v4496 = vpop.f32.mrf.mxu0
        %v4497 = vadd.f32 %v4408, %v4496
        %v4498 = vpop.f32.mrf.mxu0
        %v4499 = vadd.f32 %v4410, %v4498
        %4500 = vmatmul.bf16.gmra.mxu0 %v3819
        %v4501 = vpop.f32.mrf.mxu0
        %v4502 = vadd.f32 %v4413, %v4501
        %v4503 = vpop.f32.mrf.mxu0
        %v4504 = vadd.f32 %v4415, %v4503
        %4505 = vmatmul.bf16.gmra.mxu0 %v3824
        %v4506 = vpop.f32.mrf.mxu0
        %v4507 = vadd.f32 %v4418, %v4506
        %v4508 = vpop.f32.mrf.mxu0
        %v4509 = vadd.f32 %v4420, %v4508
        %4510 = vmatmul.bf16.gmra.mxu0 %v3829
        %v4511 = vpop.f32.mrf.mxu0
        %v4512 = vadd.f32 %v4423, %v4511
        %v4513 = vpop.f32.mrf.mxu0
        %v4514 = vadd.f32 %v4425, %v4513
        %4515 = vmatmul.bf16.gmra.mxu0 %v3834
        %v4516 = vpop.f32.mrf.mxu0
        %v4517 = vadd.f32 %v4428, %v4516
        %v4518 = vpop.f32.mrf.mxu0
        %v4519 = vadd.f32 %v4430, %v4518
        %4520 = vmatmul.bf16.gmra.mxu0 %v3839
        %v4521 = vpop.f32.mrf.mxu0
        %v4522 = vadd.f32 %v4433, %v4521
        %v4523 = vpop.f32.mrf.mxu0
        %v4524 = vadd.f32 %v4435, %v4523
        %4525 = vmatmul.bf16.gmra.mxu0 %v3844
        %v4526 = vpop.f32.mrf.mxu0
        %v4527 = vadd.f32 %v4438, %v4526
        %v4528 = vpop.f32.mrf.mxu0
        %v4529 = vadd.f32 %v4440, %v4528
        %4530 = vmatmul.bf16.gmra.mxu0 %v3849
        %v4531 = vpop.f32.mrf.mxu0
        %v4532 = vadd.f32 %v4443, %v4531
        %v4533 = vpop.f32.mrf.mxu0
        %v4534 = vadd.f32 %v4445, %v4533
        %4535 = vmatmul.bf16.gmra.mxu0 %v3854
        %v4536 = vpop.f32.mrf.mxu0
        %v4537 = vadd.f32 %v4448, %v4536
        %v4538 = vpop.f32.mrf.mxu0
        %v4539 = vadd.f32 %v4450, %v4538
        %4540 = vmatmul.bf16.gmra.mxu0 %v3859
        %v4541 = vpop.f32.mrf.mxu0
        %v4542 = vadd.f32 %v4453, %v4541
        %v4543 = vpop.f32.mrf.mxu0
        %v4544 = vadd.f32 %v4455, %v4543
        %4545 = vdwg.mxu0
        %4546 = vmatpush.bf16.msra.mxu0 0
        %4547 = vmatpush.bf16.msra.mxu0 0
        %4548 = vmatpush.bf16.msra.mxu0 0
        %4549 = vmatpush.bf16.msra.mxu0 0
        %4550 = vmatpush.bf16.msra.mxu0 %v4104
        %4551 = vmatpush.bf16.msra.mxu0 %v4103
        %4552 = vmatpush.bf16.msra.mxu0 %v4102
        %4553 = vmatpush.bf16.msra.mxu0 %v4101
        %4554 = vmatmul.bf16.gmra.mxu0 %v4143
        %v4555 = vpop.f32.mrf.mxu0
        %v4556 = vadd.f32 %v4467, %v4555
        %v4557 = vpop.f32.mrf.mxu0
        %v4558 = vadd.f32 %v4469, %v4557
        %4559 = vmatmul.bf16.gmra.mxu0 %v4146
        %v4560 = vpop.f32.mrf.mxu0
        %v4561 = vadd.f32 %v4472, %v4560
        %v4562 = vpop.f32.mrf.mxu0
        %v4563 = vadd.f32 %v4474, %v4562
        %4564 = vmatmul.bf16.gmra.mxu0 %v4149
        %v4565 = vpop.f32.mrf.mxu0
        %v4566 = vadd.f32 %v4477, %v4565
        %v4567 = vpop.f32.mrf.mxu0
        %v4568 = vadd.f32 %v4479, %v4567
        %4569 = vmatmul.bf16.gmra.mxu0 %v4152
        %v4570 = vpop.f32.mrf.mxu0
        %v4571 = vadd.f32 %v4482, %v4570
        %v4572 = vpop.f32.mrf.mxu0
        %v4573 = vadd.f32 %v4484, %v4572
        %4574 = vmatmul.bf16.gmra.mxu0 %v4155
        %v4575 = vpop.f32.mrf.mxu0
        %v4576 = vadd.f32 %v4487, %v4575
        %v4577 = vpop.f32.mrf.mxu0
        %v4578 = vadd.f32 %v4489, %v4577
        %4579 = vmatmul.bf16.gmra.mxu0 %v4158
        %v4580 = vpop.f32.mrf.mxu0
        %v4581 = vadd.f32 %v4492, %v4580
        %v4582 = vpop.f32.mrf.mxu0
        %v4583 = vadd.f32 %v4494, %v4582
        %4584 = vmatmul.bf16.gmra.mxu0 %v4161
        %v4585 = vpop.f32.mrf.mxu0
        %v4586 = vadd.f32 %v4497, %v4585
        %v4587 = vpop.f32.mrf.mxu0
        %v4588 = vadd.f32 %v4499, %v4587
        %4589 = vmatmul.bf16.gmra.mxu0 %v4164
        %v4590 = vpop.f32.mrf.mxu0
        %v4591 = vadd.f32 %v4502, %v4590
        %v4592 = vpop.f32.mrf.mxu0
        %v4593 = vadd.f32 %v4504, %v4592
        %4594 = vmatmul.bf16.gmra.mxu0 %v4167
        %v4595 = vpop.f32.mrf.mxu0
        %v4596 = vadd.f32 %v4507, %v4595
        %v4597 = vpop.f32.mrf.mxu0
        %v4598 = vadd.f32 %v4509, %v4597
        %4599 = vmatmul.bf16.gmra.mxu0 %v4170
        %v4600 = vpop.f32.mrf.mxu0
        %v4601 = vadd.f32 %v4512, %v4600
        %v4602 = vpop.f32.mrf.mxu0
        %v4603 = vadd.f32 %v4514, %v4602
        %4604 = vmatmul.bf16.gmra.mxu0 %v4173
        %v4605 = vpop.f32.mrf.mxu0
        %v4606 = vadd.f32 %v4517, %v4605
        %v4607 = vpop.f32.mrf.mxu0
        %v4608 = vadd.f32 %v4519, %v4607
        %4609 = vmatmul.bf16.gmra.mxu0 %v4176
        %v4610 = vpop.f32.mrf.mxu0
        %v4611 = vadd.f32 %v4522, %v4610
        %v4612 = vpop.f32.mrf.mxu0
        %v4613 = vadd.f32 %v4524, %v4612
        %4614 = vmatmul.bf16.gmra.mxu0 %v4179
        %v4615 = vpop.f32.mrf.mxu0
        %v4616 = vadd.f32 %v4527, %v4615
        %v4617 = vpop.f32.mrf.mxu0
        %v4618 = vadd.f32 %v4529, %v4617
        %4619 = vmatmul.bf16.gmra.mxu0 %v4182
        %v4620 = vpop.f32.mrf.mxu0
        %v4621 = vadd.f32 %v4532, %v4620
        %v4622 = vpop.f32.mrf.mxu0
        %v4623 = vadd.f32 %v4534, %v4622
        %4624 = vmatmul.bf16.gmra.mxu0 %v4185
        %v4625 = vpop.f32.mrf.mxu0
        %v4626 = vadd.f32 %v4537, %v4625
        %v4627 = vpop.f32.mrf.mxu0
        %v4628 = vadd.f32 %v4539, %v4627
        %4629 = vmatmul.bf16.gmra.mxu0 %v4188
        %v4630 = vpop.f32.mrf.mxu0
        %v4631 = vadd.f32 %v4542, %v4630
        %v4632 = vpop.f32.mrf.mxu0
        %v4633 = vadd.f32 %v4544, %v4632
        %4634 = vdwg.mxu0
        %v4635 = vmax.f32 %v4556, 0.0
        %v4636 = vmax.f32 %v4558, 0.0
        %v4637 = vmax.f32 %v4561, 0.0
        %v4638 = vmax.f32 %v4563, 0.0
        %v4639 = vmax.f32 %v4566, 0.0
        %v4640 = vmax.f32 %v4568, 0.0
        %v4641 = vmax.f32 %v4571, 0.0
        %v4642 = vmax.f32 %v4573, 0.0
        %v4643 = vmax.f32 %v4576, 0.0
        %v4644 = vmax.f32 %v4578, 0.0
        %v4645 = vmax.f32 %v4581, 0.0
        %v4646 = vmax.f32 %v4583, 0.0
        %v4647 = vmax.f32 %v4586, 0.0
        %v4648 = vmax.f32 %v4588, 0.0
        %v4649 = vmax.f32 %v4591, 0.0
        %v4650 = vmax.f32 %v4593, 0.0
        %v4651 = vmax.f32 %v4596, 0.0
        %v4652 = vmax.f32 %v4598, 0.0
        %v4653 = vmax.f32 %v4601, 0.0
        %v4654 = vmax.f32 %v4603, 0.0
        %v4655 = vmax.f32 %v4606, 0.0
        %v4656 = vmax.f32 %v4608, 0.0
        %v4657 = vmax.f32 %v4611, 0.0
        %v4658 = vmax.f32 %v4613, 0.0
        %v4659 = vmax.f32 %v4616, 0.0
        %v4660 = vmax.f32 %v4618, 0.0
        %v4661 = vmax.f32 %v4621, 0.0
        %v4662 = vmax.f32 %v4623, 0.0
        %v4663 = vmax.f32 %v4626, 0.0
        %v4664 = vmax.f32 %v4628, 0.0
        %v4665 = vmax.f32 %v4631, 0.0
        %v4666 = vmax.f32 %v4633, 0.0
        %v4667 = vrot.slane %v4635, 7
        %v4668 = vrot.slane %v4636, 7
        %v4669 = vrot.slane %v4637, 7
        %v4670 = vrot.slane %v4638, 7
        %v4671 = vrot.slane %v4639, 7
        %v4672 = vrot.slane %v4640, 7
        %v4673 = vrot.slane %v4641, 7
        %v4674 = vrot.slane %v4642, 7
        %v4675 = vrot.slane %v4643, 7
        %v4676 = vrot.slane %v4644, 7
        %v4677 = vrot.slane %v4645, 7
        %v4678 = vrot.slane %v4646, 7
        %v4679 = vrot.slane %v4647, 7
        %v4680 = vrot.slane %v4648, 7
        %v4681 = vrot.slane %v4649, 7
        %v4682 = vrot.slane %v4650, 7
        %v4683 = vrot.slane %v4651, 7
        %v4684 = vrot.slane %v4652, 7
        %v4685 = vrot.slane %v4653, 7
        %v4686 = vrot.slane %v4654, 7
        %v4687 = vrot.slane %v4655, 7
        %v4688 = vrot.slane %v4656, 7
        %v4689 = vrot.slane %v4657, 7
        %v4690 = vrot.slane %v4658, 7
        %v4691 = vrot.slane %v4659, 7
        %v4692 = vrot.slane %v4660, 7
        %v4693 = vrot.slane %v4661, 7
        %v4694 = vrot.slane %v4662, 7
        %v4695 = vrot.slane %v4663, 7
        %v4696 = vrot.slane %v4664, 7
        %v4697 = vrot.slane %v4665, 7
        %v4698 = vrot.slane %v4666, 7
        %v4699 = vsel %vm661, %v4697, %v4698
        %v4700 = vsel %vm661, %v4696, %v4697
        %v4701 = vsel %vm661, %v4695, %v4696
        %v4702 = vsel %vm661, %v4694, %v4695
        %v4703 = vsel %vm661, %v4693, %v4694
        %v4704 = vsel %vm661, %v4692, %v4693
        %v4705 = vsel %vm661, %v4691, %v4692
        %v4706 = vsel %vm661, %v4690, %v4691
        %v4707 = vsel %vm661, %v4689, %v4690
        %v4708 = vsel %vm661, %v4688, %v4689
        %v4709 = vsel %vm661, %v4687, %v4688
        %v4710 = vsel %vm661, %v4686, %v4687
        %v4711 = vsel %vm661, %v4685, %v4686
        %v4712 = vsel %vm661, %v4684, %v4685
        %v4713 = vsel %vm661, %v4683, %v4684
        %v4714 = vsel %vm661, %v4682, %v4683
        %v4715 = vsel %vm661, %v4681, %v4682
        %v4716 = vsel %vm661, %v4680, %v4681
        %v4717 = vsel %vm661, %v4679, %v4680
        %v4718 = vsel %vm661, %v4678, %v4679
        %v4719 = vsel %vm661, %v4677, %v4678
        %v4720 = vsel %vm661, %v4676, %v4677
        %v4721 = vsel %vm661, %v4675, %v4676
        %v4722 = vsel %vm661, %v4674, %v4675
        %v4723 = vsel %vm661, %v4673, %v4674
        %v4724 = vsel %vm661, %v4672, %v4673
        %v4725 = vsel %vm661, %v4671, %v4672
        %v4726 = vsel %vm661, %v4670, %v4671
        %v4727 = vsel %vm661, %v4669, %v4670
        %v4728 = vsel %vm661, %v4668, %v4669
        %v4729 = vsel %vm661, %v4667, %v4668
        %v4730 = vsel %vm661, %v4698, %v4667
        %v4731 = vmul.f32 %v4700, %v697
        %v4732 = vmul.f32 %v4699, %v702
        %v4733 = vmul.f32 %v4730, %v707
        %v4734 = vmul.f32 %v4729, %v712
        %v4735 = vmul.f32 %v4728, %v717
        %v4736 = vmul.f32 %v4727, %v722
        %v4737 = vmul.f32 %v4726, %v727
        %v4738 = vmul.f32 %v4725, %v732
        %v4739 = vmul.f32 %v4724, %v737
        %v4740 = vmul.f32 %v4723, %v742
        %v4741 = vmul.f32 %v4722, %v747
        %v4742 = vmul.f32 %v4721, %v752
        %v4743 = vmul.f32 %v4720, %v757
        %v4744 = vmul.f32 %v4719, %v762
        %v4745 = vmul.f32 %v4718, %v767
        %v4746 = vmul.f32 %v4717, %v772
        %v4747 = vmul.f32 %v4716, %v777
        %v4748 = vmul.f32 %v4715, %v782
        %v4749 = vmul.f32 %v4714, %v787
        %v4750 = vmul.f32 %v4713, %v792
        %v4751 = vmul.f32 %v4712, %v797
        %v4752 = vmul.f32 %v4711, %v802
        %v4753 = vmul.f32 %v4710, %v807
        %v4754 = vmul.f32 %v4709, %v812
        %v4755 = vmul.f32 %v4708, %v817
        %v4756 = vmul.f32 %v4707, %v822
        %v4757 = vmul.f32 %v4706, %v827
        %v4758 = vmul.f32 %v4705, %v832
        %v4759 = vmul.f32 %v4704, %v837
        %v4760 = vmul.f32 %v4703, %v842
        %v4761 = vmul.f32 %v4702, %v847
        %v4762 = vmul.f32 %v4701, %v852
        %v4763 = vpack.c.bf16 %v4731, %v4731
        %v4764 = vpack.c.bf16 %v4732, %v4732
        %v4765 = vpack.c.bf16 %v4733, %v4733
        %v4766 = vpack.c.bf16 %v4734, %v4734
        %v4767 = vpack.c.bf16 %v4735, %v4735
        %v4768 = vpack.c.bf16 %v4736, %v4736
        %v4769 = vpack.c.bf16 %v4737, %v4737
        %v4770 = vpack.c.bf16 %v4738, %v4738
        %v4771 = vpack.c.bf16 %v4739, %v4739
        %v4772 = vpack.c.bf16 %v4740, %v4740
        %v4773 = vpack.c.bf16 %v4741, %v4741
        %v4774 = vpack.c.bf16 %v4742, %v4742
        %v4775 = vpack.c.bf16 %v4743, %v4743
        %v4776 = vpack.c.bf16 %v4744, %v4744
        %v4777 = vpack.c.bf16 %v4745, %v4745
        %v4778 = vpack.c.bf16 %v4746, %v4746
        %v4779 = vpack.c.bf16 %v4747, %v4747
        %v4780 = vpack.c.bf16 %v4748, %v4748
        %v4781 = vpack.c.bf16 %v4749, %v4749
        %v4782 = vpack.c.bf16 %v4750, %v4750
        %v4783 = vpack.c.bf16 %v4751, %v4751
        %v4784 = vpack.c.bf16 %v4752, %v4752
        %v4785 = vpack.c.bf16 %v4753, %v4753
        %v4786 = vpack.c.bf16 %v4754, %v4754
        %v4787 = vpack.c.bf16 %v4755, %v4755
        %v4788 = vpack.c.bf16 %v4756, %v4756
        %v4789 = vpack.c.bf16 %v4757, %v4757
        %v4790 = vpack.c.bf16 %v4758, %v4758
        %v4791 = vpack.c.bf16 %v4759, %v4759
        %v4792 = vpack.c.bf16 %v4760, %v4760
        %v4793 = vpack.c.bf16 %v4761, %v4761
        %v4794 = vpack.c.bf16 %v4762, %v4762
        %4795 = vst.msk [vmem:[#allocation3] sm:$0xf] %vm918, %v4763
        %4796 = vst.msk [vmem:[#allocation3 + $0x14] sm:$0xf] %vm918, %v4764
        %4797 = vst.msk [vmem:[#allocation3 + $0x28] sm:$0xf] %vm918, %v4765
        %4798 = vst.msk [vmem:[#allocation3 + $0x3c] sm:$0xf] %vm918, %v4766
        %4799 = vst.msk [vmem:[#allocation3 + $0x50] sm:$0xf] %vm918, %v4767
        %4800 = vst.msk [vmem:[#allocation3 + $0x64] sm:$0xf] %vm918, %v4768
        %4801 = vst.msk [vmem:[#allocation3 + $0x78] sm:$0xf] %vm918, %v4769
        %4802 = vst.msk [vmem:[#allocation3 + $0x8c] sm:$0xf] %vm918, %v4770
        %4803 = vst.msk [vmem:[#allocation3 + $0xa0] sm:$0xf] %vm918, %v4771
        %4804 = vst.msk [vmem:[#allocation3 + $0xb4] sm:$0xf] %vm918, %v4772
        %4805 = vst.msk [vmem:[#allocation3 + $0xc8] sm:$0xf] %vm918, %v4773
        %4806 = vst.msk [vmem:[#allocation3 + $0xdc] sm:$0xf] %vm918, %v4774
        %4807 = vst.msk [vmem:[#allocation3 + $0xf0] sm:$0xf] %vm918, %v4775
        %4808 = vst.msk [vmem:[#allocation3 + $0x104] sm:$0xf] %vm918, %v4776
        %4809 = vst.msk [vmem:[#allocation3 + $0x118] sm:$0xf] %vm918, %v4777
        %4810 = vst.msk [vmem:[#allocation3 + $0x12c] sm:$0xf] %vm918, %v4778
        %4811 = vst.msk [vmem:[#allocation3 + $0x140] sm:$0xf] %vm918, %v4779
        %4812 = vst.msk [vmem:[#allocation3 + $0x154] sm:$0xf] %vm918, %v4780
        %4813 = vst.msk [vmem:[#allocation3 + $0x168] sm:$0xf] %vm918, %v4781
        %4814 = vst.msk [vmem:[#allocation3 + $0x17c] sm:$0xf] %vm918, %v4782
        %4815 = vst.msk [vmem:[#allocation3 + $0x190] sm:$0xf] %vm918, %v4783
        %4816 = vst.msk [vmem:[#allocation3 + $0x1a4] sm:$0xf] %vm918, %v4784
        %4817 = vst.msk [vmem:[#allocation3 + $0x1b8] sm:$0xf] %vm918, %v4785
        %4818 = vst.msk [vmem:[#allocation3 + $0x1cc] sm:$0xf] %vm918, %v4786
        %4819 = vst.msk [vmem:[#allocation3 + $0x1e0] sm:$0xf] %vm918, %v4787
        %4820 = vst.msk [vmem:[#allocation3 + $0x1f4] sm:$0xf] %vm918, %v4788
        %4821 = vst.msk [vmem:[#allocation3 + $0x208] sm:$0xf] %vm918, %v4789
        %4822 = vst.msk [vmem:[#allocation3 + $0x21c] sm:$0xf] %vm918, %v4790
        %4823 = vst.msk [vmem:[#allocation3 + $0x230] sm:$0xf] %vm918, %v4791
        %4824 = vst.msk [vmem:[#allocation3 + $0x244] sm:$0xf] %vm918, %v4792
        %4825 = vst.msk [vmem:[#allocation3 + $0x258] sm:$0xf] %vm918, %v4793
        %4826 = vst.msk [vmem:[#allocation3 + $0x26c] sm:$0xf] %vm918, %v4794
        %v4827 = vmul.f32 %v4665, %v954
        %v4828 = vmul.f32 %v4666, %v959
        %v4829 = vmul.f32 %v4635, %v964
        %v4830 = vmul.f32 %v4636, %v969
        %v4831 = vmul.f32 %v4637, %v974
        %v4832 = vmul.f32 %v4638, %v979
        %v4833 = vmul.f32 %v4639, %v984
        %v4834 = vmul.f32 %v4640, %v989
        %v4835 = vmul.f32 %v4641, %v994
        %v4836 = vmul.f32 %v4642, %v999
        %v4837 = vmul.f32 %v4643, %v1004
        %v4838 = vmul.f32 %v4644, %v1009
        %v4839 = vmul.f32 %v4645, %v1014
        %v4840 = vmul.f32 %v4646, %v1019
        %v4841 = vmul.f32 %v4647, %v1024
        %v4842 = vmul.f32 %v4648, %v1029
        %v4843 = vmul.f32 %v4649, %v1034
        %v4844 = vmul.f32 %v4650, %v1039
        %v4845 = vmul.f32 %v4651, %v1044
        %v4846 = vmul.f32 %v4652, %v1049
        %v4847 = vmul.f32 %v4653, %v1054
        %v4848 = vmul.f32 %v4654, %v1059
        %v4849 = vmul.f32 %v4655, %v1064
        %v4850 = vmul.f32 %v4656, %v1069
        %v4851 = vmul.f32 %v4657, %v1074
        %v4852 = vmul.f32 %v4658, %v1079
        %v4853 = vmul.f32 %v4659, %v1084
        %v4854 = vmul.f32 %v4660, %v1089
        %v4855 = vmul.f32 %v4661, %v1094
        %v4856 = vmul.f32 %v4662, %v1099
        %v4857 = vmul.f32 %v4663, %v1104
        %v4858 = vmul.f32 %v4664, %v1109
        %v4859 = vpack.c.bf16 %v4827, %v4827
        %v4860 = vpack.c.bf16 %v4828, %v4828
        %v4861 = vpack.c.bf16 %v4829, %v4829
        %v4862 = vpack.c.bf16 %v4830, %v4830
        %v4863 = vpack.c.bf16 %v4831, %v4831
        %v4864 = vpack.c.bf16 %v4832, %v4832
        %v4865 = vpack.c.bf16 %v4833, %v4833
        %v4866 = vpack.c.bf16 %v4834, %v4834
        %v4867 = vpack.c.bf16 %v4835, %v4835
        %v4868 = vpack.c.bf16 %v4836, %v4836
        %v4869 = vpack.c.bf16 %v4837, %v4837
        %v4870 = vpack.c.bf16 %v4838, %v4838
        %v4871 = vpack.c.bf16 %v4839, %v4839
        %v4872 = vpack.c.bf16 %v4840, %v4840
        %v4873 = vpack.c.bf16 %v4841, %v4841
        %v4874 = vpack.c.bf16 %v4842, %v4842
        %v4875 = vpack.c.bf16 %v4843, %v4843
        %v4876 = vpack.c.bf16 %v4844, %v4844
        %v4877 = vpack.c.bf16 %v4845, %v4845
        %v4878 = vpack.c.bf16 %v4846, %v4846
        %v4879 = vpack.c.bf16 %v4847, %v4847
        %v4880 = vpack.c.bf16 %v4848, %v4848
        %v4881 = vpack.c.bf16 %v4849, %v4849
        %v4882 = vpack.c.bf16 %v4850, %v4850
        %v4883 = vpack.c.bf16 %v4851, %v4851
        %v4884 = vpack.c.bf16 %v4852, %v4852
        %v4885 = vpack.c.bf16 %v4853, %v4853
        %v4886 = vpack.c.bf16 %v4854, %v4854
        %v4887 = vpack.c.bf16 %v4855, %v4855
        %v4888 = vpack.c.bf16 %v4856, %v4856
        %v4889 = vpack.c.bf16 %v4857, %v4857
        %v4890 = vpack.c.bf16 %v4858, %v4858
        %4923 = vrot.lane.b32.xlu0 %v4859, 64
        %v4924 = vpop.permute.xlu0 %4923
        %4925 = vrot.lane.b32.xlu0 %v4860, 64
        %v4926 = vpop.permute.xlu0 %4925
        %4927 = vrot.lane.b32.xlu0 %v4861, 64
        %v4928 = vpop.permute.xlu0 %4927
        %4929 = vrot.lane.b32.xlu0 %v4862, 64
        %v4930 = vpop.permute.xlu0 %4929
        %4931 = vrot.lane.b32.xlu0 %v4863, 64
        %v4932 = vpop.permute.xlu0 %4931
        %4933 = vrot.lane.b32.xlu0 %v4864, 64
        %v4934 = vpop.permute.xlu0 %4933
        %4935 = vrot.lane.b32.xlu0 %v4865, 64
        %v4936 = vpop.permute.xlu0 %4935
        %4937 = vrot.lane.b32.xlu0 %v4866, 64
        %v4938 = vpop.permute.xlu0 %4937
        %4939 = vrot.lane.b32.xlu0 %v4867, 64
        %v4940 = vpop.permute.xlu0 %4939
        %4941 = vrot.lane.b32.xlu0 %v4868, 64
        %v4942 = vpop.permute.xlu0 %4941
        %4943 = vrot.lane.b32.xlu0 %v4869, 64
        %v4944 = vpop.permute.xlu0 %4943
        %4945 = vrot.lane.b32.xlu0 %v4870, 64
        %v4946 = vpop.permute.xlu0 %4945
        %4947 = vrot.lane.b32.xlu0 %v4871, 64
        %v4948 = vpop.permute.xlu0 %4947
        %4949 = vrot.lane.b32.xlu0 %v4872, 64
        %v4950 = vpop.permute.xlu0 %4949
        %4951 = vrot.lane.b32.xlu0 %v4873, 64
        %v4952 = vpop.permute.xlu0 %4951
        %4953 = vrot.lane.b32.xlu0 %v4874, 64
        %v4954 = vpop.permute.xlu0 %4953
        %4955 = vrot.lane.b32.xlu0 %v4875, 64
        %v4956 = vpop.permute.xlu0 %4955
        %4957 = vrot.lane.b32.xlu0 %v4876, 64
        %v4958 = vpop.permute.xlu0 %4957
        %4959 = vrot.lane.b32.xlu0 %v4877, 64
        %v4960 = vpop.permute.xlu0 %4959
        %4961 = vrot.lane.b32.xlu0 %v4878, 64
        %v4962 = vpop.permute.xlu0 %4961
        %4963 = vrot.lane.b32.xlu0 %v4879, 64
        %v4964 = vpop.permute.xlu0 %4963
        %4965 = vrot.lane.b32.xlu0 %v4880, 64
        %v4966 = vpop.permute.xlu0 %4965
        %4967 = vrot.lane.b32.xlu0 %v4881, 64
        %v4968 = vpop.permute.xlu0 %4967
        %4969 = vrot.lane.b32.xlu0 %v4882, 64
        %v4970 = vpop.permute.xlu0 %4969
        %4971 = vrot.lane.b32.xlu0 %v4883, 64
        %v4972 = vpop.permute.xlu0 %4971
        %4973 = vrot.lane.b32.xlu0 %v4884, 64
        %v4974 = vpop.permute.xlu0 %4973
        %4975 = vrot.lane.b32.xlu0 %v4885, 64
        %v4976 = vpop.permute.xlu0 %4975
        %4977 = vrot.lane.b32.xlu0 %v4886, 64
        %v4978 = vpop.permute.xlu0 %4977
        %4979 = vrot.lane.b32.xlu0 %v4887, 64
        %v4980 = vpop.permute.xlu0 %4979
        %4981 = vrot.lane.b32.xlu0 %v4888, 64
        %v4982 = vpop.permute.xlu0 %4981
        %4983 = vrot.lane.b32.xlu0 %v4889, 64
        %v4984 = vpop.permute.xlu0 %4983
        %4985 = vrot.lane.b32.xlu0 %v4890, 64
        %v4986 = vpop.permute.xlu0 %4985
        %5019 = vst.msk [vmem:[#allocation3] sm:$0xf] %vm1303, %v4924
        %5020 = vst.msk [vmem:[#allocation3 + $0x14] sm:$0xf] %vm1303, %v4926
        %5021 = vst.msk [vmem:[#allocation3 + $0x28] sm:$0xf] %vm1303, %v4928
        %5022 = vst.msk [vmem:[#allocation3 + $0x3c] sm:$0xf] %vm1303, %v4930
        %5023 = vst.msk [vmem:[#allocation3 + $0x50] sm:$0xf] %vm1303, %v4932
        %5024 = vst.msk [vmem:[#allocation3 + $0x64] sm:$0xf] %vm1303, %v4934
        %5025 = vst.msk [vmem:[#allocation3 + $0x78] sm:$0xf] %vm1303, %v4936
        %5026 = vst.msk [vmem:[#allocation3 + $0x8c] sm:$0xf] %vm1303, %v4938
        %5027 = vst.msk [vmem:[#allocation3 + $0xa0] sm:$0xf] %vm1303, %v4940
        %5028 = vst.msk [vmem:[#allocation3 + $0xb4] sm:$0xf] %vm1303, %v4942
        %5029 = vst.msk [vmem:[#allocation3 + $0xc8] sm:$0xf] %vm1303, %v4944
        %5030 = vst.msk [vmem:[#allocation3 + $0xdc] sm:$0xf] %vm1303, %v4946
        %5031 = vst.msk [vmem:[#allocation3 + $0xf0] sm:$0xf] %vm1303, %v4948
        %5032 = vst.msk [vmem:[#allocation3 + $0x104] sm:$0xf] %vm1303, %v4950
        %5033 = vst.msk [vmem:[#allocation3 + $0x118] sm:$0xf] %vm1303, %v4952
        %5034 = vst.msk [vmem:[#allocation3 + $0x12c] sm:$0xf] %vm1303, %v4954
        %5035 = vst.msk [vmem:[#allocation3 + $0x140] sm:$0xf] %vm1303, %v4956
        %5036 = vst.msk [vmem:[#allocation3 + $0x154] sm:$0xf] %vm1303, %v4958
        %5037 = vst.msk [vmem:[#allocation3 + $0x168] sm:$0xf] %vm1303, %v4960
        %5038 = vst.msk [vmem:[#allocation3 + $0x17c] sm:$0xf] %vm1303, %v4962
        %5039 = vst.msk [vmem:[#allocation3 + $0x190] sm:$0xf] %vm1303, %v4964
        %5040 = vst.msk [vmem:[#allocation3 + $0x1a4] sm:$0xf] %vm1303, %v4966
        %5041 = vst.msk [vmem:[#allocation3 + $0x1b8] sm:$0xf] %vm1303, %v4968
        %5042 = vst.msk [vmem:[#allocation3 + $0x1cc] sm:$0xf] %vm1303, %v4970
        %5043 = vst.msk [vmem:[#allocation3 + $0x1e0] sm:$0xf] %vm1303, %v4972
        %5044 = vst.msk [vmem:[#allocation3 + $0x1f4] sm:$0xf] %vm1303, %v4974
        %5045 = vst.msk [vmem:[#allocation3 + $0x208] sm:$0xf] %vm1303, %v4976
        %5046 = vst.msk [vmem:[#allocation3 + $0x21c] sm:$0xf] %vm1303, %v4978
        %5047 = vst.msk [vmem:[#allocation3 + $0x230] sm:$0xf] %vm1303, %v4980
        %5048 = vst.msk [vmem:[#allocation3 + $0x244] sm:$0xf] %vm1303, %v4982
        %5049 = vst.msk [vmem:[#allocation3 + $0x258] sm:$0xf] %vm1303, %v4984
        %5050 = vst.msk [vmem:[#allocation3 + $0x26c] sm:$0xf] %vm1303, %v4986
        %v5051 = vrot.slane %v4635, 1
        %v5052 = vrot.slane %v4636, 1
        %v5053 = vrot.slane %v4637, 1
        %v5054 = vrot.slane %v4638, 1
        %v5055 = vrot.slane %v4639, 1
        %v5056 = vrot.slane %v4640, 1
        %v5057 = vrot.slane %v4641, 1
        %v5058 = vrot.slane %v4642, 1
        %v5059 = vrot.slane %v4643, 1
        %v5060 = vrot.slane %v4644, 1
        %v5061 = vrot.slane %v4645, 1
        %v5062 = vrot.slane %v4646, 1
        %v5063 = vrot.slane %v4647, 1
        %v5064 = vrot.slane %v4648, 1
        %v5065 = vrot.slane %v4649, 1
        %v5066 = vrot.slane %v4650, 1
        %v5067 = vrot.slane %v4651, 1
        %v5068 = vrot.slane %v4652, 1
        %v5069 = vrot.slane %v4653, 1
        %v5070 = vrot.slane %v4654, 1
        %v5071 = vrot.slane %v4655, 1
        %v5072 = vrot.slane %v4656, 1
        %v5073 = vrot.slane %v4657, 1
        %v5074 = vrot.slane %v4658, 1
        %v5075 = vrot.slane %v4659, 1
        %v5076 = vrot.slane %v4660, 1
        %v5077 = vrot.slane %v4661, 1
        %v5078 = vrot.slane %v4662, 1
        %v5079 = vrot.slane %v4663, 1
        %v5080 = vrot.slane %v4664, 1
        %v5081 = vrot.slane %v4665, 1
        %v5082 = vrot.slane %v4666, 1
        %v5083 = vsel %vm1368, %v5081, %v5082
        %v5084 = vsel %vm1368, %v5080, %v5081
        %v5085 = vsel %vm1368, %v5079, %v5080
        %v5086 = vsel %vm1368, %v5078, %v5079
        %v5087 = vsel %vm1368, %v5077, %v5078
        %v5088 = vsel %vm1368, %v5076, %v5077
        %v5089 = vsel %vm1368, %v5075, %v5076
        %v5090 = vsel %vm1368, %v5074, %v5075
        %v5091 = vsel %vm1368, %v5073, %v5074
        %v5092 = vsel %vm1368, %v5072, %v5073
        %v5093 = vsel %vm1368, %v5071, %v5072
        %v5094 = vsel %vm1368, %v5070, %v5071
        %v5095 = vsel %vm1368, %v5069, %v5070
        %v5096 = vsel %vm1368, %v5068, %v5069
        %v5097 = vsel %vm1368, %v5067, %v5068
        %v5098 = vsel %vm1368, %v5066, %v5067
        %v5099 = vsel %vm1368, %v5065, %v5066
        %v5100 = vsel %vm1368, %v5064, %v5065
        %v5101 = vsel %vm1368, %v5063, %v5064
        %v5102 = vsel %vm1368, %v5062, %v5063
        %v5103 = vsel %vm1368, %v5061, %v5062
        %v5104 = vsel %vm1368, %v5060, %v5061
        %v5105 = vsel %vm1368, %v5059, %v5060
        %v5106 = vsel %vm1368, %v5058, %v5059
        %v5107 = vsel %vm1368, %v5057, %v5058
        %v5108 = vsel %vm1368, %v5056, %v5057
        %v5109 = vsel %vm1368, %v5055, %v5056
        %v5110 = vsel %vm1368, %v5054, %v5055
        %v5111 = vsel %vm1368, %v5053, %v5054
        %v5112 = vsel %vm1368, %v5052, %v5053
        %v5113 = vsel %vm1368, %v5051, %v5052
        %v5114 = vsel %vm1368, %v5082, %v5051
        %v5115 = vmul.f32 %v5083, %v1404
        %v5116 = vmul.f32 %v5114, %v1409
        %v5117 = vmul.f32 %v5113, %v1414
        %v5118 = vmul.f32 %v5112, %v1419
        %v5119 = vmul.f32 %v5111, %v1424
        %v5120 = vmul.f32 %v5110, %v1429
        %v5121 = vmul.f32 %v5109, %v1434
        %v5122 = vmul.f32 %v5108, %v1439
        %v5123 = vmul.f32 %v5107, %v1444
        %v5124 = vmul.f32 %v5106, %v1449
        %v5125 = vmul.f32 %v5105, %v1454
        %v5126 = vmul.f32 %v5104, %v1459
        %v5127 = vmul.f32 %v5103, %v1464
        %v5128 = vmul.f32 %v5102, %v1469
        %v5129 = vmul.f32 %v5101, %v1474
        %v5130 = vmul.f32 %v5100, %v1479
        %v5131 = vmul.f32 %v5099, %v1484
        %v5132 = vmul.f32 %v5098, %v1489
        %v5133 = vmul.f32 %v5097, %v1494
        %v5134 = vmul.f32 %v5096, %v1499
        %v5135 = vmul.f32 %v5095, %v1504
        %v5136 = vmul.f32 %v5094, %v1509
        %v5137 = vmul.f32 %v5093, %v1514
        %v5138 = vmul.f32 %v5092, %v1519
        %v5139 = vmul.f32 %v5091, %v1524
        %v5140 = vmul.f32 %v5090, %v1529
        %v5141 = vmul.f32 %v5089, %v1534
        %v5142 = vmul.f32 %v5088, %v1539
        %v5143 = vmul.f32 %v5087, %v1544
        %v5144 = vmul.f32 %v5086, %v1549
        %v5145 = vmul.f32 %v5085, %v1554
        %v5146 = vmul.f32 %v5084, %v1559
        %v5147 = vpack.c.bf16 %v5115, %v5115
        %v5148 = vpack.c.bf16 %v5116, %v5116
        %v5149 = vpack.c.bf16 %v5117, %v5117
        %v5150 = vpack.c.bf16 %v5118, %v5118
        %v5151 = vpack.c.bf16 %v5119, %v5119
        %v5152 = vpack.c.bf16 %v5120, %v5120
        %v5153 = vpack.c.bf16 %v5121, %v5121
        %v5154 = vpack.c.bf16 %v5122, %v5122
        %v5155 = vpack.c.bf16 %v5123, %v5123
        %v5156 = vpack.c.bf16 %v5124, %v5124
        %v5157 = vpack.c.bf16 %v5125, %v5125
        %v5158 = vpack.c.bf16 %v5126, %v5126
        %v5159 = vpack.c.bf16 %v5127, %v5127
        %v5160 = vpack.c.bf16 %v5128, %v5128
        %v5161 = vpack.c.bf16 %v5129, %v5129
        %v5162 = vpack.c.bf16 %v5130, %v5130
        %v5163 = vpack.c.bf16 %v5131, %v5131
        %v5164 = vpack.c.bf16 %v5132, %v5132
        %v5165 = vpack.c.bf16 %v5133, %v5133
        %v5166 = vpack.c.bf16 %v5134, %v5134
        %v5167 = vpack.c.bf16 %v5135, %v5135
        %v5168 = vpack.c.bf16 %v5136, %v5136
        %v5169 = vpack.c.bf16 %v5137, %v5137
        %v5170 = vpack.c.bf16 %v5138, %v5138
        %v5171 = vpack.c.bf16 %v5139, %v5139
        %v5172 = vpack.c.bf16 %v5140, %v5140
        %v5173 = vpack.c.bf16 %v5141, %v5141
        %v5174 = vpack.c.bf16 %v5142, %v5142
        %v5175 = vpack.c.bf16 %v5143, %v5143
        %v5176 = vpack.c.bf16 %v5144, %v5144
        %v5177 = vpack.c.bf16 %v5145, %v5145
        %v5178 = vpack.c.bf16 %v5146, %v5146
        %5179 = vst.msk [vmem:[#allocation3 + $0x4] sm:$0xf] %vm918, %v5147
        %5180 = vst.msk [vmem:[#allocation3 + $0x18] sm:$0xf] %vm918, %v5148
        %5181 = vst.msk [vmem:[#allocation3 + $0x2c] sm:$0xf] %vm918, %v5149
        %5182 = vst.msk [vmem:[#allocation3 + $0x40] sm:$0xf] %vm918, %v5150
        %5183 = vst.msk [vmem:[#allocation3 + $0x54] sm:$0xf] %vm918, %v5151
        %5184 = vst.msk [vmem:[#allocation3 + $0x68] sm:$0xf] %vm918, %v5152
        %5185 = vst.msk [vmem:[#allocation3 + $0x7c] sm:$0xf] %vm918, %v5153
        %5186 = vst.msk [vmem:[#allocation3 + $0x90] sm:$0xf] %vm918, %v5154
        %5187 = vst.msk [vmem:[#allocation3 + $0xa4] sm:$0xf] %vm918, %v5155
        %5188 = vst.msk [vmem:[#allocation3 + $0xb8] sm:$0xf] %vm918, %v5156
        %5189 = vst.msk [vmem:[#allocation3 + $0xcc] sm:$0xf] %vm918, %v5157
        %5190 = vst.msk [vmem:[#allocation3 + $0xe0] sm:$0xf] %vm918, %v5158
        %5191 = vst.msk [vmem:[#allocation3 + $0xf4] sm:$0xf] %vm918, %v5159
        %5192 = vst.msk [vmem:[#allocation3 + $0x108] sm:$0xf] %vm918, %v5160
        %5193 = vst.msk [vmem:[#allocation3 + $0x11c] sm:$0xf] %vm918, %v5161
        %5194 = vst.msk [vmem:[#allocation3 + $0x130] sm:$0xf] %vm918, %v5162
        %5195 = vst.msk [vmem:[#allocation3 + $0x144] sm:$0xf] %vm918, %v5163
        %5196 = vst.msk [vmem:[#allocation3 + $0x158] sm:$0xf] %vm918, %v5164
        %5197 = vst.msk [vmem:[#allocation3 + $0x16c] sm:$0xf] %vm918, %v5165
        %5198 = vst.msk [vmem:[#allocation3 + $0x180] sm:$0xf] %vm918, %v5166
        %5199 = vst.msk [vmem:[#allocation3 + $0x194] sm:$0xf] %vm918, %v5167
        %5200 = vst.msk [vmem:[#allocation3 + $0x1a8] sm:$0xf] %vm918, %v5168
        %5201 = vst.msk [vmem:[#allocation3 + $0x1bc] sm:$0xf] %vm918, %v5169
        %5202 = vst.msk [vmem:[#allocation3 + $0x1d0] sm:$0xf] %vm918, %v5170
        %5203 = vst.msk [vmem:[#allocation3 + $0x1e4] sm:$0xf] %vm918, %v5171
        %5204 = vst.msk [vmem:[#allocation3 + $0x1f8] sm:$0xf] %vm918, %v5172
        %5205 = vst.msk [vmem:[#allocation3 + $0x20c] sm:$0xf] %vm918, %v5173
        %5206 = vst.msk [vmem:[#allocation3 + $0x220] sm:$0xf] %vm918, %v5174
        %5207 = vst.msk [vmem:[#allocation3 + $0x234] sm:$0xf] %vm918, %v5175
        %5208 = vst.msk [vmem:[#allocation3 + $0x248] sm:$0xf] %vm918, %v5176
        %5209 = vst.msk [vmem:[#allocation3 + $0x25c] sm:$0xf] %vm918, %v5177
        %5210 = vst.msk [vmem:[#allocation3 + $0x270] sm:$0xf] %vm918, %v5178
        %v5211 = vmul.f32 %v4730, %v1660
        %v5212 = vmul.f32 %v4729, %v1665
        %v5213 = vmul.f32 %v4728, %v1670
        %v5214 = vmul.f32 %v4727, %v1675
        %v5215 = vmul.f32 %v4726, %v1680
        %v5216 = vmul.f32 %v4725, %v1685
        %v5217 = vmul.f32 %v4724, %v1690
        %v5218 = vmul.f32 %v4723, %v1695
        %v5219 = vmul.f32 %v4722, %v1700
        %v5220 = vmul.f32 %v4721, %v1705
        %v5221 = vmul.f32 %v4720, %v1710
        %v5222 = vmul.f32 %v4719, %v1715
        %v5223 = vmul.f32 %v4718, %v1720
        %v5224 = vmul.f32 %v4717, %v1725
        %v5225 = vmul.f32 %v4716, %v1730
        %v5226 = vmul.f32 %v4715, %v1735
        %v5227 = vmul.f32 %v4714, %v1740
        %v5228 = vmul.f32 %v4713, %v1745
        %v5229 = vmul.f32 %v4712, %v1750
        %v5230 = vmul.f32 %v4711, %v1755
        %v5231 = vmul.f32 %v4710, %v1760
        %v5232 = vmul.f32 %v4709, %v1765
        %v5233 = vmul.f32 %v4708, %v1770
        %v5234 = vmul.f32 %v4707, %v1775
        %v5235 = vmul.f32 %v4706, %v1780
        %v5236 = vmul.f32 %v4705, %v1785
        %v5237 = vmul.f32 %v4704, %v1790
        %v5238 = vmul.f32 %v4703, %v1795
        %v5239 = vmul.f32 %v4702, %v1800
        %v5240 = vmul.f32 %v4701, %v1805
        %v5241 = vmul.f32 %v4700, %v1810
        %v5242 = vmul.f32 %v4699, %v1815
        %v5243 = vpack.c.bf16 %v5211, %v5211
        %v5244 = vpack.c.bf16 %v5212, %v5212
        %v5245 = vpack.c.bf16 %v5213, %v5213
        %v5246 = vpack.c.bf16 %v5214, %v5214
        %v5247 = vpack.c.bf16 %v5215, %v5215
        %v5248 = vpack.c.bf16 %v5216, %v5216
        %v5249 = vpack.c.bf16 %v5217, %v5217
        %v5250 = vpack.c.bf16 %v5218, %v5218
        %v5251 = vpack.c.bf16 %v5219, %v5219
        %v5252 = vpack.c.bf16 %v5220, %v5220
        %v5253 = vpack.c.bf16 %v5221, %v5221
        %v5254 = vpack.c.bf16 %v5222, %v5222
        %v5255 = vpack.c.bf16 %v5223, %v5223
        %v5256 = vpack.c.bf16 %v5224, %v5224
        %v5257 = vpack.c.bf16 %v5225, %v5225
        %v5258 = vpack.c.bf16 %v5226, %v5226
        %v5259 = vpack.c.bf16 %v5227, %v5227
        %v5260 = vpack.c.bf16 %v5228, %v5228
        %v5261 = vpack.c.bf16 %v5229, %v5229
        %v5262 = vpack.c.bf16 %v5230, %v5230
        %v5263 = vpack.c.bf16 %v5231, %v5231
        %v5264 = vpack.c.bf16 %v5232, %v5232
        %v5265 = vpack.c.bf16 %v5233, %v5233
        %v5266 = vpack.c.bf16 %v5234, %v5234
        %v5267 = vpack.c.bf16 %v5235, %v5235
        %v5268 = vpack.c.bf16 %v5236, %v5236
        %v5269 = vpack.c.bf16 %v5237, %v5237
        %v5270 = vpack.c.bf16 %v5238, %v5238
        %v5271 = vpack.c.bf16 %v5239, %v5239
        %v5272 = vpack.c.bf16 %v5240, %v5240
        %v5273 = vpack.c.bf16 %v5241, %v5241
        %v5274 = vpack.c.bf16 %v5242, %v5242
        %5307 = vrot.lane.b32.xlu0 %v5243, 64
        %v5308 = vpop.permute.xlu0 %5307
        %5309 = vrot.lane.b32.xlu0 %v5244, 64
        %v5310 = vpop.permute.xlu0 %5309
        %5311 = vrot.lane.b32.xlu0 %v5245, 64
        %v5312 = vpop.permute.xlu0 %5311
        %5313 = vrot.lane.b32.xlu0 %v5246, 64
        %v5314 = vpop.permute.xlu0 %5313
        %5315 = vrot.lane.b32.xlu0 %v5247, 64
        %v5316 = vpop.permute.xlu0 %5315
        %5317 = vrot.lane.b32.xlu0 %v5248, 64
        %v5318 = vpop.permute.xlu0 %5317
        %5319 = vrot.lane.b32.xlu0 %v5249, 64
        %v5320 = vpop.permute.xlu0 %5319
        %5321 = vrot.lane.b32.xlu0 %v5250, 64
        %v5322 = vpop.permute.xlu0 %5321
        %5323 = vrot.lane.b32.xlu0 %v5251, 64
        %v5324 = vpop.permute.xlu0 %5323
        %5325 = vrot.lane.b32.xlu0 %v5252, 64
        %v5326 = vpop.permute.xlu0 %5325
        %5327 = vrot.lane.b32.xlu0 %v5253, 64
        %v5328 = vpop.permute.xlu0 %5327
        %5329 = vrot.lane.b32.xlu0 %v5254, 64
        %v5330 = vpop.permute.xlu0 %5329
        %5331 = vrot.lane.b32.xlu0 %v5255, 64
        %v5332 = vpop.permute.xlu0 %5331
        %5333 = vrot.lane.b32.xlu0 %v5256, 64
        %v5334 = vpop.permute.xlu0 %5333
        %5335 = vrot.lane.b32.xlu0 %v5257, 64
        %v5336 = vpop.permute.xlu0 %5335
        %5337 = vrot.lane.b32.xlu0 %v5258, 64
        %v5338 = vpop.permute.xlu0 %5337
        %5339 = vrot.lane.b32.xlu0 %v5259, 64
        %v5340 = vpop.permute.xlu0 %5339
        %5341 = vrot.lane.b32.xlu0 %v5260, 64
        %v5342 = vpop.permute.xlu0 %5341
        %5343 = vrot.lane.b32.xlu0 %v5261, 64
        %v5344 = vpop.permute.xlu0 %5343
        %5345 = vrot.lane.b32.xlu0 %v5262, 64
        %v5346 = vpop.permute.xlu0 %5345
        %5347 = vrot.lane.b32.xlu0 %v5263, 64
        %v5348 = vpop.permute.xlu0 %5347
        %5349 = vrot.lane.b32.xlu0 %v5264, 64
        %v5350 = vpop.permute.xlu0 %5349
        %5351 = vrot.lane.b32.xlu0 %v5265, 64
        %v5352 = vpop.permute.xlu0 %5351
        %5353 = vrot.lane.b32.xlu0 %v5266, 64
        %v5354 = vpop.permute.xlu0 %5353
        %5355 = vrot.lane.b32.xlu0 %v5267, 64
        %v5356 = vpop.permute.xlu0 %5355
        %5357 = vrot.lane.b32.xlu0 %v5268, 64
        %v5358 = vpop.permute.xlu0 %5357
        %5359 = vrot.lane.b32.xlu0 %v5269, 64
        %v5360 = vpop.permute.xlu0 %5359
        %5361 = vrot.lane.b32.xlu0 %v5270, 64
        %v5362 = vpop.permute.xlu0 %5361
        %5363 = vrot.lane.b32.xlu0 %v5271, 64
        %v5364 = vpop.permute.xlu0 %5363
        %5365 = vrot.lane.b32.xlu0 %v5272, 64
        %v5366 = vpop.permute.xlu0 %5365
        %5367 = vrot.lane.b32.xlu0 %v5273, 64
        %v5368 = vpop.permute.xlu0 %5367
        %5369 = vrot.lane.b32.xlu0 %v5274, 64
        %v5370 = vpop.permute.xlu0 %5369
        %5403 = vst.msk [vmem:[#allocation3 + $0x4] sm:$0xf] %vm1303, %v5308
        %5404 = vst.msk [vmem:[#allocation3 + $0x18] sm:$0xf] %vm1303, %v5310
        %5405 = vst.msk [vmem:[#allocation3 + $0x2c] sm:$0xf] %vm1303, %v5312
        %5406 = vst.msk [vmem:[#allocation3 + $0x40] sm:$0xf] %vm1303, %v5314
        %5407 = vst.msk [vmem:[#allocation3 + $0x54] sm:$0xf] %vm1303, %v5316
        %5408 = vst.msk [vmem:[#allocation3 + $0x68] sm:$0xf] %vm1303, %v5318
        %5409 = vst.msk [vmem:[#allocation3 + $0x7c] sm:$0xf] %vm1303, %v5320
        %5410 = vst.msk [vmem:[#allocation3 + $0x90] sm:$0xf] %vm1303, %v5322
        %5411 = vst.msk [vmem:[#allocation3 + $0xa4] sm:$0xf] %vm1303, %v5324
        %5412 = vst.msk [vmem:[#allocation3 + $0xb8] sm:$0xf] %vm1303, %v5326
        %5413 = vst.msk [vmem:[#allocation3 + $0xcc] sm:$0xf] %vm1303, %v5328
        %5414 = vst.msk [vmem:[#allocation3 + $0xe0] sm:$0xf] %vm1303, %v5330
        %5415 = vst.msk [vmem:[#allocation3 + $0xf4] sm:$0xf] %vm1303, %v5332
        %5416 = vst.msk [vmem:[#allocation3 + $0x108] sm:$0xf] %vm1303, %v5334
        %5417 = vst.msk [vmem:[#allocation3 + $0x11c] sm:$0xf] %vm1303, %v5336
        %5418 = vst.msk [vmem:[#allocation3 + $0x130] sm:$0xf] %vm1303, %v5338
        %5419 = vst.msk [vmem:[#allocation3 + $0x144] sm:$0xf] %vm1303, %v5340
        %5420 = vst.msk [vmem:[#allocation3 + $0x158] sm:$0xf] %vm1303, %v5342
        %5421 = vst.msk [vmem:[#allocation3 + $0x16c] sm:$0xf] %vm1303, %v5344
        %5422 = vst.msk [vmem:[#allocation3 + $0x180] sm:$0xf] %vm1303, %v5346
        %5423 = vst.msk [vmem:[#allocation3 + $0x194] sm:$0xf] %vm1303, %v5348
        %5424 = vst.msk [vmem:[#allocation3 + $0x1a8] sm:$0xf] %vm1303, %v5350
        %5425 = vst.msk [vmem:[#allocation3 + $0x1bc] sm:$0xf] %vm1303, %v5352
        %5426 = vst.msk [vmem:[#allocation3 + $0x1d0] sm:$0xf] %vm1303, %v5354
        %5427 = vst.msk [vmem:[#allocation3 + $0x1e4] sm:$0xf] %vm1303, %v5356
        %5428 = vst.msk [vmem:[#allocation3 + $0x1f8] sm:$0xf] %vm1303, %v5358
        %5429 = vst.msk [vmem:[#allocation3 + $0x20c] sm:$0xf] %vm1303, %v5360
        %5430 = vst.msk [vmem:[#allocation3 + $0x220] sm:$0xf] %vm1303, %v5362
        %5431 = vst.msk [vmem:[#allocation3 + $0x234] sm:$0xf] %vm1303, %v5364
        %5432 = vst.msk [vmem:[#allocation3 + $0x248] sm:$0xf] %vm1303, %v5366
        %5433 = vst.msk [vmem:[#allocation3 + $0x25c] sm:$0xf] %vm1303, %v5368
        %5434 = vst.msk [vmem:[#allocation3 + $0x270] sm:$0xf] %vm1303, %v5370
        %v5435 = vpack.c.bf16 %v4635, %v4635
        %v5436 = vpack.c.bf16 %v4636, %v4636
        %v5437 = vpack.c.bf16 %v4637, %v4637
        %v5438 = vpack.c.bf16 %v4638, %v4638
        %v5439 = vpack.c.bf16 %v4639, %v4639
        %v5440 = vpack.c.bf16 %v4640, %v4640
        %v5441 = vpack.c.bf16 %v4641, %v4641
        %v5442 = vpack.c.bf16 %v4642, %v4642
        %v5443 = vpack.c.bf16 %v4643, %v4643
        %v5444 = vpack.c.bf16 %v4644, %v4644
        %v5445 = vpack.c.bf16 %v4645, %v4645
        %v5446 = vpack.c.bf16 %v4646, %v4646
        %v5447 = vpack.c.bf16 %v4647, %v4647
        %v5448 = vpack.c.bf16 %v4648, %v4648
        %v5449 = vpack.c.bf16 %v4649, %v4649
        %v5450 = vpack.c.bf16 %v4650, %v4650
        %v5451 = vpack.c.bf16 %v4651, %v4651
        %v5452 = vpack.c.bf16 %v4652, %v4652
        %v5453 = vpack.c.bf16 %v4653, %v4653
        %v5454 = vpack.c.bf16 %v4654, %v4654
        %v5455 = vpack.c.bf16 %v4655, %v4655
        %v5456 = vpack.c.bf16 %v4656, %v4656
        %v5457 = vpack.c.bf16 %v4657, %v4657
        %v5458 = vpack.c.bf16 %v4658, %v4658
        %v5459 = vpack.c.bf16 %v4659, %v4659
        %v5460 = vpack.c.bf16 %v4660, %v4660
        %v5461 = vpack.c.bf16 %v4661, %v4661
        %v5462 = vpack.c.bf16 %v4662, %v4662
        %v5463 = vpack.c.bf16 %v4663, %v4663
        %v5464 = vpack.c.bf16 %v4664, %v4664
        %v5465 = vpack.c.bf16 %v4665, %v4665
        %v5466 = vpack.c.bf16 %v4666, %v4666
        %5467 = vst.msk [vmem:[#allocation3 + $0x8] sm:$0xf] %vm918, %v5435
        %5468 = vst.msk [vmem:[#allocation3 + $0x1c] sm:$0xf] %vm918, %v5436
        %5469 = vst.msk [vmem:[#allocation3 + $0x30] sm:$0xf] %vm918, %v5437
        %5470 = vst.msk [vmem:[#allocation3 + $0x44] sm:$0xf] %vm918, %v5438
        %5471 = vst.msk [vmem:[#allocation3 + $0x58] sm:$0xf] %vm918, %v5439
        %5472 = vst.msk [vmem:[#allocation3 + $0x6c] sm:$0xf] %vm918, %v5440
        %5473 = vst.msk [vmem:[#allocation3 + $0x80] sm:$0xf] %vm918, %v5441
        %5474 = vst.msk [vmem:[#allocation3 + $0x94] sm:$0xf] %vm918, %v5442
        %5475 = vst.msk [vmem:[#allocation3 + $0xa8] sm:$0xf] %vm918, %v5443
        %5476 = vst.msk [vmem:[#allocation3 + $0xbc] sm:$0xf] %vm918, %v5444
        %5477 = vst.msk [vmem:[#allocation3 + $0xd0] sm:$0xf] %vm918, %v5445
        %5478 = vst.msk [vmem:[#allocation3 + $0xe4] sm:$0xf] %vm918, %v5446
        %5479 = vst.msk [vmem:[#allocation3 + $0xf8] sm:$0xf] %vm918, %v5447
        %5480 = vst.msk [vmem:[#allocation3 + $0x10c] sm:$0xf] %vm918, %v5448
        %5481 = vst.msk [vmem:[#allocation3 + $0x120] sm:$0xf] %vm918, %v5449
        %5482 = vst.msk [vmem:[#allocation3 + $0x134] sm:$0xf] %vm918, %v5450
        %5483 = vst.msk [vmem:[#allocation3 + $0x148] sm:$0xf] %vm918, %v5451
        %5484 = vst.msk [vmem:[#allocation3 + $0x15c] sm:$0xf] %vm918, %v5452
        %5485 = vst.msk [vmem:[#allocation3 + $0x170] sm:$0xf] %vm918, %v5453
        %5486 = vst.msk [vmem:[#allocation3 + $0x184] sm:$0xf] %vm918, %v5454
        %5487 = vst.msk [vmem:[#allocation3 + $0x198] sm:$0xf] %vm918, %v5455
        %5488 = vst.msk [vmem:[#allocation3 + $0x1ac] sm:$0xf] %vm918, %v5456
        %5489 = vst.msk [vmem:[#allocation3 + $0x1c0] sm:$0xf] %vm918, %v5457
        %5490 = vst.msk [vmem:[#allocation3 + $0x1d4] sm:$0xf] %vm918, %v5458
        %5491 = vst.msk [vmem:[#allocation3 + $0x1e8] sm:$0xf] %vm918, %v5459
        %5492 = vst.msk [vmem:[#allocation3 + $0x1fc] sm:$0xf] %vm918, %v5460
        %5493 = vst.msk [vmem:[#allocation3 + $0x210] sm:$0xf] %vm918, %v5461
        %5494 = vst.msk [vmem:[#allocation3 + $0x224] sm:$0xf] %vm918, %v5462
        %5495 = vst.msk [vmem:[#allocation3 + $0x238] sm:$0xf] %vm918, %v5463
        %5496 = vst.msk [vmem:[#allocation3 + $0x24c] sm:$0xf] %vm918, %v5464
        %5497 = vst.msk [vmem:[#allocation3 + $0x260] sm:$0xf] %vm918, %v5465
        %5498 = vst.msk [vmem:[#allocation3 + $0x274] sm:$0xf] %vm918, %v5466
        %v5499 = vmul.f32 %v5113, %v2076
        %v5500 = vmul.f32 %v5112, %v2081
        %v5501 = vmul.f32 %v5111, %v2086
        %v5502 = vmul.f32 %v5110, %v2091
        %v5503 = vmul.f32 %v5109, %v2096
        %v5504 = vmul.f32 %v5108, %v2101
        %v5505 = vmul.f32 %v5107, %v2106
        %v5506 = vmul.f32 %v5106, %v2111
        %v5507 = vmul.f32 %v5105, %v2116
        %v5508 = vmul.f32 %v5104, %v2121
        %v5509 = vmul.f32 %v5103, %v2126
        %v5510 = vmul.f32 %v5102, %v2131
        %v5511 = vmul.f32 %v5101, %v2136
        %v5512 = vmul.f32 %v5100, %v2141
        %v5513 = vmul.f32 %v5099, %v2146
        %v5514 = vmul.f32 %v5098, %v2151
        %v5515 = vmul.f32 %v5097, %v2156
        %v5516 = vmul.f32 %v5096, %v2161
        %v5517 = vmul.f32 %v5095, %v2166
        %v5518 = vmul.f32 %v5094, %v2171
        %v5519 = vmul.f32 %v5093, %v2176
        %v5520 = vmul.f32 %v5092, %v2181
        %v5521 = vmul.f32 %v5091, %v2186
        %v5522 = vmul.f32 %v5090, %v2191
        %v5523 = vmul.f32 %v5089, %v2196
        %v5524 = vmul.f32 %v5088, %v2201
        %v5525 = vmul.f32 %v5087, %v2206
        %v5526 = vmul.f32 %v5086, %v2211
        %v5527 = vmul.f32 %v5085, %v2216
        %v5528 = vmul.f32 %v5084, %v2221
        %v5529 = vmul.f32 %v5083, %v2226
        %v5530 = vmul.f32 %v5114, %v2231
        %v5531 = vpack.c.bf16 %v5499, %v5499
        %v5532 = vpack.c.bf16 %v5500, %v5500
        %v5533 = vpack.c.bf16 %v5501, %v5501
        %v5534 = vpack.c.bf16 %v5502, %v5502
        %v5535 = vpack.c.bf16 %v5503, %v5503
        %v5536 = vpack.c.bf16 %v5504, %v5504
        %v5537 = vpack.c.bf16 %v5505, %v5505
        %v5538 = vpack.c.bf16 %v5506, %v5506
        %v5539 = vpack.c.bf16 %v5507, %v5507
        %v5540 = vpack.c.bf16 %v5508, %v5508
        %v5541 = vpack.c.bf16 %v5509, %v5509
        %v5542 = vpack.c.bf16 %v5510, %v5510
        %v5543 = vpack.c.bf16 %v5511, %v5511
        %v5544 = vpack.c.bf16 %v5512, %v5512
        %v5545 = vpack.c.bf16 %v5513, %v5513
        %v5546 = vpack.c.bf16 %v5514, %v5514
        %v5547 = vpack.c.bf16 %v5515, %v5515
        %v5548 = vpack.c.bf16 %v5516, %v5516
        %v5549 = vpack.c.bf16 %v5517, %v5517
        %v5550 = vpack.c.bf16 %v5518, %v5518
        %v5551 = vpack.c.bf16 %v5519, %v5519
        %v5552 = vpack.c.bf16 %v5520, %v5520
        %v5553 = vpack.c.bf16 %v5521, %v5521
        %v5554 = vpack.c.bf16 %v5522, %v5522
        %v5555 = vpack.c.bf16 %v5523, %v5523
        %v5556 = vpack.c.bf16 %v5524, %v5524
        %v5557 = vpack.c.bf16 %v5525, %v5525
        %v5558 = vpack.c.bf16 %v5526, %v5526
        %v5559 = vpack.c.bf16 %v5527, %v5527
        %v5560 = vpack.c.bf16 %v5528, %v5528
        %v5561 = vpack.c.bf16 %v5529, %v5529
        %v5562 = vpack.c.bf16 %v5530, %v5530
        %5595 = vrot.lane.b32.xlu0 %v5531, 64
        %v5596 = vpop.permute.xlu0 %5595
        %5597 = vrot.lane.b32.xlu0 %v5532, 64
        %v5598 = vpop.permute.xlu0 %5597
        %5599 = vrot.lane.b32.xlu0 %v5533, 64
        %v5600 = vpop.permute.xlu0 %5599
        %5601 = vrot.lane.b32.xlu0 %v5534, 64
        %v5602 = vpop.permute.xlu0 %5601
        %5603 = vrot.lane.b32.xlu0 %v5535, 64
        %v5604 = vpop.permute.xlu0 %5603
        %5605 = vrot.lane.b32.xlu0 %v5536, 64
        %v5606 = vpop.permute.xlu0 %5605
        %5607 = vrot.lane.b32.xlu0 %v5537, 64
        %v5608 = vpop.permute.xlu0 %5607
        %5609 = vrot.lane.b32.xlu0 %v5538, 64
        %v5610 = vpop.permute.xlu0 %5609
        %5611 = vrot.lane.b32.xlu0 %v5539, 64
        %v5612 = vpop.permute.xlu0 %5611
        %5613 = vrot.lane.b32.xlu0 %v5540, 64
        %v5614 = vpop.permute.xlu0 %5613
        %5615 = vrot.lane.b32.xlu0 %v5541, 64
        %v5616 = vpop.permute.xlu0 %5615
        %5617 = vrot.lane.b32.xlu0 %v5542, 64
        %v5618 = vpop.permute.xlu0 %5617
        %5619 = vrot.lane.b32.xlu0 %v5543, 64
        %v5620 = vpop.permute.xlu0 %5619
        %5621 = vrot.lane.b32.xlu0 %v5544, 64
        %v5622 = vpop.permute.xlu0 %5621
        %5623 = vrot.lane.b32.xlu0 %v5545, 64
        %v5624 = vpop.permute.xlu0 %5623
        %5625 = vrot.lane.b32.xlu0 %v5546, 64
        %v5626 = vpop.permute.xlu0 %5625
        %5627 = vrot.lane.b32.xlu0 %v5547, 64
        %v5628 = vpop.permute.xlu0 %5627
        %5629 = vrot.lane.b32.xlu0 %v5548, 64
        %v5630 = vpop.permute.xlu0 %5629
        %5631 = vrot.lane.b32.xlu0 %v5549, 64
        %v5632 = vpop.permute.xlu0 %5631
        %5633 = vrot.lane.b32.xlu0 %v5550, 64
        %v5634 = vpop.permute.xlu0 %5633
        %5635 = vrot.lane.b32.xlu0 %v5551, 64
        %v5636 = vpop.permute.xlu0 %5635
        %5637 = vrot.lane.b32.xlu0 %v5552, 64
        %v5638 = vpop.permute.xlu0 %5637
        %5639 = vrot.lane.b32.xlu0 %v5553, 64
        %v5640 = vpop.permute.xlu0 %5639
        %5641 = vrot.lane.b32.xlu0 %v5554, 64
        %v5642 = vpop.permute.xlu0 %5641
        %5643 = vrot.lane.b32.xlu0 %v5555, 64
        %v5644 = vpop.permute.xlu0 %5643
        %5645 = vrot.lane.b32.xlu0 %v5556, 64
        %v5646 = vpop.permute.xlu0 %5645
        %5647 = vrot.lane.b32.xlu0 %v5557, 64
        %v5648 = vpop.permute.xlu0 %5647
        %5649 = vrot.lane.b32.xlu0 %v5558, 64
        %v5650 = vpop.permute.xlu0 %5649
        %5651 = vrot.lane.b32.xlu0 %v5559, 64
        %v5652 = vpop.permute.xlu0 %5651
        %5653 = vrot.lane.b32.xlu0 %v5560, 64
        %v5654 = vpop.permute.xlu0 %5653
        %5655 = vrot.lane.b32.xlu0 %v5561, 64
        %v5656 = vpop.permute.xlu0 %5655
        %5657 = vrot.lane.b32.xlu0 %v5562, 64
        %v5658 = vpop.permute.xlu0 %5657
        %5691 = vst.msk [vmem:[#allocation3 + $0x8] sm:$0xf] %vm1303, %v5596
        %5692 = vst.msk [vmem:[#allocation3 + $0x1c] sm:$0xf] %vm1303, %v5598
        %5693 = vst.msk [vmem:[#allocation3 + $0x30] sm:$0xf] %vm1303, %v5600
        %5694 = vst.msk [vmem:[#allocation3 + $0x44] sm:$0xf] %vm1303, %v5602
        %5695 = vst.msk [vmem:[#allocation3 + $0x58] sm:$0xf] %vm1303, %v5604
        %5696 = vst.msk [vmem:[#allocation3 + $0x6c] sm:$0xf] %vm1303, %v5606
        %5697 = vst.msk [vmem:[#allocation3 + $0x80] sm:$0xf] %vm1303, %v5608
        %5698 = vst.msk [vmem:[#allocation3 + $0x94] sm:$0xf] %vm1303, %v5610
        %5699 = vst.msk [vmem:[#allocation3 + $0xa8] sm:$0xf] %vm1303, %v5612
        %5700 = vst.msk [vmem:[#allocation3 + $0xbc] sm:$0xf] %vm1303, %v5614
        %5701 = vst.msk [vmem:[#allocation3 + $0xd0] sm:$0xf] %vm1303, %v5616
        %5702 = vst.msk [vmem:[#allocation3 + $0xe4] sm:$0xf] %vm1303, %v5618
        %5703 = vst.msk [vmem:[#allocation3 + $0xf8] sm:$0xf] %vm1303, %v5620
        %5704 = vst.msk [vmem:[#allocation3 + $0x10c] sm:$0xf] %vm1303, %v5622
        %5705 = vst.msk [vmem:[#allocation3 + $0x120] sm:$0xf] %vm1303, %v5624
        %5706 = vst.msk [vmem:[#allocation3 + $0x134] sm:$0xf] %vm1303, %v5626
        %5707 = vst.msk [vmem:[#allocation3 + $0x148] sm:$0xf] %vm1303, %v5628
        %5708 = vst.msk [vmem:[#allocation3 + $0x15c] sm:$0xf] %vm1303, %v5630
        %5709 = vst.msk [vmem:[#allocation3 + $0x170] sm:$0xf] %vm1303, %v5632
        %5710 = vst.msk [vmem:[#allocation3 + $0x184] sm:$0xf] %vm1303, %v5634
        %5711 = vst.msk [vmem:[#allocation3 + $0x198] sm:$0xf] %vm1303, %v5636
        %5712 = vst.msk [vmem:[#allocation3 + $0x1ac] sm:$0xf] %vm1303, %v5638
        %5713 = vst.msk [vmem:[#allocation3 + $0x1c0] sm:$0xf] %vm1303, %v5640
        %5714 = vst.msk [vmem:[#allocation3 + $0x1d4] sm:$0xf] %vm1303, %v5642
        %5715 = vst.msk [vmem:[#allocation3 + $0x1e8] sm:$0xf] %vm1303, %v5644
        %5716 = vst.msk [vmem:[#allocation3 + $0x1fc] sm:$0xf] %vm1303, %v5646
        %5717 = vst.msk [vmem:[#allocation3 + $0x210] sm:$0xf] %vm1303, %v5648
        %5718 = vst.msk [vmem:[#allocation3 + $0x224] sm:$0xf] %vm1303, %v5650
        %5719 = vst.msk [vmem:[#allocation3 + $0x238] sm:$0xf] %vm1303, %v5652
        %5720 = vst.msk [vmem:[#allocation3 + $0x24c] sm:$0xf] %vm1303, %v5654
        %5721 = vst.msk [vmem:[#allocation3 + $0x260] sm:$0xf] %vm1303, %v5656
        %5722 = vst.msk [vmem:[#allocation3 + $0x274] sm:$0xf] %vm1303, %v5658
        %v5723 = vmul.f32 %v4728, %v2460
        %v5724 = vmul.f32 %v4727, %v2465
        %v5725 = vmul.f32 %v4726, %v2470
        %v5726 = vmul.f32 %v4725, %v2475
        %v5727 = vmul.f32 %v4724, %v2480
        %v5728 = vmul.f32 %v4723, %v2485
        %v5729 = vmul.f32 %v4722, %v2490
        %v5730 = vmul.f32 %v4721, %v2495
        %v5731 = vmul.f32 %v4720, %v2500
        %v5732 = vmul.f32 %v4719, %v2505
        %v5733 = vmul.f32 %v4718, %v2510
        %v5734 = vmul.f32 %v4717, %v2515
        %v5735 = vmul.f32 %v4716, %v2520
        %v5736 = vmul.f32 %v4715, %v2525
        %v5737 = vmul.f32 %v4714, %v2530
        %v5738 = vmul.f32 %v4713, %v2535
        %v5739 = vmul.f32 %v4712, %v2540
        %v5740 = vmul.f32 %v4711, %v2545
        %v5741 = vmul.f32 %v4710, %v2550
        %v5742 = vmul.f32 %v4709, %v2555
        %v5743 = vmul.f32 %v4708, %v2560
        %v5744 = vmul.f32 %v4707, %v2565
        %v5745 = vmul.f32 %v4706, %v2570
        %v5746 = vmul.f32 %v4705, %v2575
        %v5747 = vmul.f32 %v4704, %v2580
        %v5748 = vmul.f32 %v4703, %v2585
        %v5749 = vmul.f32 %v4702, %v2590
        %v5750 = vmul.f32 %v4701, %v2595
        %v5751 = vmul.f32 %v4700, %v2600
        %v5752 = vmul.f32 %v4699, %v2605
        %v5753 = vmul.f32 %v4730, %v2610
        %v5754 = vmul.f32 %v4729, %v2615
        %v5755 = vpack.c.bf16 %v5723, %v5723
        %v5756 = vpack.c.bf16 %v5724, %v5724
        %v5757 = vpack.c.bf16 %v5725, %v5725
        %v5758 = vpack.c.bf16 %v5726, %v5726
        %v5759 = vpack.c.bf16 %v5727, %v5727
        %v5760 = vpack.c.bf16 %v5728, %v5728
        %v5761 = vpack.c.bf16 %v5729, %v5729
        %v5762 = vpack.c.bf16 %v5730, %v5730
        %v5763 = vpack.c.bf16 %v5731, %v5731
        %v5764 = vpack.c.bf16 %v5732, %v5732
        %v5765 = vpack.c.bf16 %v5733, %v5733
        %v5766 = vpack.c.bf16 %v5734, %v5734
        %v5767 = vpack.c.bf16 %v5735, %v5735
        %v5768 = vpack.c.bf16 %v5736, %v5736
        %v5769 = vpack.c.bf16 %v5737, %v5737
        %v5770 = vpack.c.bf16 %v5738, %v5738
        %v5771 = vpack.c.bf16 %v5739, %v5739
        %v5772 = vpack.c.bf16 %v5740, %v5740
        %v5773 = vpack.c.bf16 %v5741, %v5741
        %v5774 = vpack.c.bf16 %v5742, %v5742
        %v5775 = vpack.c.bf16 %v5743, %v5743
        %v5776 = vpack.c.bf16 %v5744, %v5744
        %v5777 = vpack.c.bf16 %v5745, %v5745
        %v5778 = vpack.c.bf16 %v5746, %v5746
        %v5779 = vpack.c.bf16 %v5747, %v5747
        %v5780 = vpack.c.bf16 %v5748, %v5748
        %v5781 = vpack.c.bf16 %v5749, %v5749
        %v5782 = vpack.c.bf16 %v5750, %v5750
        %v5783 = vpack.c.bf16 %v5751, %v5751
        %v5784 = vpack.c.bf16 %v5752, %v5752
        %v5785 = vpack.c.bf16 %v5753, %v5753
        %v5786 = vpack.c.bf16 %v5754, %v5754
        %5787 = vst.msk [vmem:[#allocation3 + $0xc] sm:$0xf] %vm918, %v5755
        %5788 = vst.msk [vmem:[#allocation3 + $0x20] sm:$0xf] %vm918, %v5756
        %5789 = vst.msk [vmem:[#allocation3 + $0x34] sm:$0xf] %vm918, %v5757
        %5790 = vst.msk [vmem:[#allocation3 + $0x48] sm:$0xf] %vm918, %v5758
        %5791 = vst.msk [vmem:[#allocation3 + $0x5c] sm:$0xf] %vm918, %v5759
        %5792 = vst.msk [vmem:[#allocation3 + $0x70] sm:$0xf] %vm918, %v5760
        %5793 = vst.msk [vmem:[#allocation3 + $0x84] sm:$0xf] %vm918, %v5761
        %5794 = vst.msk [vmem:[#allocation3 + $0x98] sm:$0xf] %vm918, %v5762
        %5795 = vst.msk [vmem:[#allocation3 + $0xac] sm:$0xf] %vm918, %v5763
        %5796 = vst.msk [vmem:[#allocation3 + $0xc0] sm:$0xf] %vm918, %v5764
        %5797 = vst.msk [vmem:[#allocation3 + $0xd4] sm:$0xf] %vm918, %v5765
        %5798 = vst.msk [vmem:[#allocation3 + $0xe8] sm:$0xf] %vm918, %v5766
        %5799 = vst.msk [vmem:[#allocation3 + $0xfc] sm:$0xf] %vm918, %v5767
        %5800 = vst.msk [vmem:[#allocation3 + $0x110] sm:$0xf] %vm918, %v5768
        %5801 = vst.msk [vmem:[#allocation3 + $0x124] sm:$0xf] %vm918, %v5769
        %5802 = vst.msk [vmem:[#allocation3 + $0x138] sm:$0xf] %vm918, %v5770
        %5803 = vst.msk [vmem:[#allocation3 + $0x14c] sm:$0xf] %vm918, %v5771
        %5804 = vst.msk [vmem:[#allocation3 + $0x160] sm:$0xf] %vm918, %v5772
        %5805 = vst.msk [vmem:[#allocation3 + $0x174] sm:$0xf] %vm918, %v5773
        %5806 = vst.msk [vmem:[#allocation3 + $0x188] sm:$0xf] %vm918, %v5774
        %5807 = vst.msk [vmem:[#allocation3 + $0x19c] sm:$0xf] %vm918, %v5775
        %5808 = vst.msk [vmem:[#allocation3 + $0x1b0] sm:$0xf] %vm918, %v5776
        %5809 = vst.msk [vmem:[#allocation3 + $0x1c4] sm:$0xf] %vm918, %v5777
        %5810 = vst.msk [vmem:[#allocation3 + $0x1d8] sm:$0xf] %vm918, %v5778
        %5811 = vst.msk [vmem:[#allocation3 + $0x1ec] sm:$0xf] %vm918, %v5779
        %5812 = vst.msk [vmem:[#allocation3 + $0x200] sm:$0xf] %vm918, %v5780
        %5813 = vst.msk [vmem:[#allocation3 + $0x214] sm:$0xf] %vm918, %v5781
        %5814 = vst.msk [vmem:[#allocation3 + $0x228] sm:$0xf] %vm918, %v5782
        %5815 = vst.msk [vmem:[#allocation3 + $0x23c] sm:$0xf] %vm918, %v5783
        %5816 = vst.msk [vmem:[#allocation3 + $0x250] sm:$0xf] %vm918, %v5784
        %5817 = vst.msk [vmem:[#allocation3 + $0x264] sm:$0xf] %vm918, %v5785
        %5818 = vst.msk [vmem:[#allocation3 + $0x278] sm:$0xf] %vm918, %v5786
        %v5819 = vmul.f32 %v4637, %v2716
        %v5820 = vmul.f32 %v4638, %v2721
        %v5821 = vmul.f32 %v4639, %v2726
        %v5822 = vmul.f32 %v4640, %v2731
        %v5823 = vmul.f32 %v4641, %v2736
        %v5824 = vmul.f32 %v4642, %v2741
        %v5825 = vmul.f32 %v4643, %v2746
        %v5826 = vmul.f32 %v4644, %v2751
        %v5827 = vmul.f32 %v4645, %v2756
        %v5828 = vmul.f32 %v4646, %v2761
        %v5829 = vmul.f32 %v4647, %v2766
        %v5830 = vmul.f32 %v4648, %v2771
        %v5831 = vmul.f32 %v4649, %v2776
        %v5832 = vmul.f32 %v4650, %v2781
        %v5833 = vmul.f32 %v4651, %v2786
        %v5834 = vmul.f32 %v4652, %v2791
        %v5835 = vmul.f32 %v4653, %v2796
        %v5836 = vmul.f32 %v4654, %v2801
        %v5837 = vmul.f32 %v4655, %v2806
        %v5838 = vmul.f32 %v4656, %v2811
        %v5839 = vmul.f32 %v4657, %v2816
        %v5840 = vmul.f32 %v4658, %v2821
        %v5841 = vmul.f32 %v4659, %v2826
        %v5842 = vmul.f32 %v4660, %v2831
        %v5843 = vmul.f32 %v4661, %v2836
        %v5844 = vmul.f32 %v4662, %v2841
        %v5845 = vmul.f32 %v4663, %v2846
        %v5846 = vmul.f32 %v4664, %v2851
        %v5847 = vmul.f32 %v4665, %v2856
        %v5848 = vmul.f32 %v4666, %v2861
        %v5849 = vmul.f32 %v4635, %v2866
        %v5850 = vmul.f32 %v4636, %v2871
        %v5851 = vpack.c.bf16 %v5819, %v5819
        %v5852 = vpack.c.bf16 %v5820, %v5820
        %v5853 = vpack.c.bf16 %v5821, %v5821
        %v5854 = vpack.c.bf16 %v5822, %v5822
        %v5855 = vpack.c.bf16 %v5823, %v5823
        %v5856 = vpack.c.bf16 %v5824, %v5824
        %v5857 = vpack.c.bf16 %v5825, %v5825
        %v5858 = vpack.c.bf16 %v5826, %v5826
        %v5859 = vpack.c.bf16 %v5827, %v5827
        %v5860 = vpack.c.bf16 %v5828, %v5828
        %v5861 = vpack.c.bf16 %v5829, %v5829
        %v5862 = vpack.c.bf16 %v5830, %v5830
        %v5863 = vpack.c.bf16 %v5831, %v5831
        %v5864 = vpack.c.bf16 %v5832, %v5832
        %v5865 = vpack.c.bf16 %v5833, %v5833
        %v5866 = vpack.c.bf16 %v5834, %v5834
        %v5867 = vpack.c.bf16 %v5835, %v5835
        %v5868 = vpack.c.bf16 %v5836, %v5836
        %v5869 = vpack.c.bf16 %v5837, %v5837
        %v5870 = vpack.c.bf16 %v5838, %v5838
        %v5871 = vpack.c.bf16 %v5839, %v5839
        %v5872 = vpack.c.bf16 %v5840, %v5840
        %v5873 = vpack.c.bf16 %v5841, %v5841
        %v5874 = vpack.c.bf16 %v5842, %v5842
        %v5875 = vpack.c.bf16 %v5843, %v5843
        %v5876 = vpack.c.bf16 %v5844, %v5844
        %v5877 = vpack.c.bf16 %v5845, %v5845
        %v5878 = vpack.c.bf16 %v5846, %v5846
        %v5879 = vpack.c.bf16 %v5847, %v5847
        %v5880 = vpack.c.bf16 %v5848, %v5848
        %v5881 = vpack.c.bf16 %v5849, %v5849
        %v5882 = vpack.c.bf16 %v5850, %v5850
        %5915 = vrot.lane.b32.xlu0 %v5851, 64
        %v5916 = vpop.permute.xlu0 %5915
        %5917 = vrot.lane.b32.xlu0 %v5852, 64
        %v5918 = vpop.permute.xlu0 %5917
        %5919 = vrot.lane.b32.xlu0 %v5853, 64
        %v5920 = vpop.permute.xlu0 %5919
        %5921 = vrot.lane.b32.xlu0 %v5854, 64
        %v5922 = vpop.permute.xlu0 %5921
        %5923 = vrot.lane.b32.xlu0 %v5855, 64
        %v5924 = vpop.permute.xlu0 %5923
        %5925 = vrot.lane.b32.xlu0 %v5856, 64
        %v5926 = vpop.permute.xlu0 %5925
        %5927 = vrot.lane.b32.xlu0 %v5857, 64
        %v5928 = vpop.permute.xlu0 %5927
        %5929 = vrot.lane.b32.xlu0 %v5858, 64
        %v5930 = vpop.permute.xlu0 %5929
        %5931 = vrot.lane.b32.xlu0 %v5859, 64
        %v5932 = vpop.permute.xlu0 %5931
        %5933 = vrot.lane.b32.xlu0 %v5860, 64
        %v5934 = vpop.permute.xlu0 %5933
        %5935 = vrot.lane.b32.xlu0 %v5861, 64
        %v5936 = vpop.permute.xlu0 %5935
        %5937 = vrot.lane.b32.xlu0 %v5862, 64
        %v5938 = vpop.permute.xlu0 %5937
        %5939 = vrot.lane.b32.xlu0 %v5863, 64
        %v5940 = vpop.permute.xlu0 %5939
        %5941 = vrot.lane.b32.xlu0 %v5864, 64
        %v5942 = vpop.permute.xlu0 %5941
        %5943 = vrot.lane.b32.xlu0 %v5865, 64
        %v5944 = vpop.permute.xlu0 %5943
        %5945 = vrot.lane.b32.xlu0 %v5866, 64
        %v5946 = vpop.permute.xlu0 %5945
        %5947 = vrot.lane.b32.xlu0 %v5867, 64
        %v5948 = vpop.permute.xlu0 %5947
        %5949 = vrot.lane.b32.xlu0 %v5868, 64
        %v5950 = vpop.permute.xlu0 %5949
        %5951 = vrot.lane.b32.xlu0 %v5869, 64
        %v5952 = vpop.permute.xlu0 %5951
        %5953 = vrot.lane.b32.xlu0 %v5870, 64
        %v5954 = vpop.permute.xlu0 %5953
        %5955 = vrot.lane.b32.xlu0 %v5871, 64
        %v5956 = vpop.permute.xlu0 %5955
        %5957 = vrot.lane.b32.xlu0 %v5872, 64
        %v5958 = vpop.permute.xlu0 %5957
        %5959 = vrot.lane.b32.xlu0 %v5873, 64
        %v5960 = vpop.permute.xlu0 %5959
        %5961 = vrot.lane.b32.xlu0 %v5874, 64
        %v5962 = vpop.permute.xlu0 %5961
        %5963 = vrot.lane.b32.xlu0 %v5875, 64
        %v5964 = vpop.permute.xlu0 %5963
        %5965 = vrot.lane.b32.xlu0 %v5876, 64
        %v5966 = vpop.permute.xlu0 %5965
        %5967 = vrot.lane.b32.xlu0 %v5877, 64
        %v5968 = vpop.permute.xlu0 %5967
        %5969 = vrot.lane.b32.xlu0 %v5878, 64
        %v5970 = vpop.permute.xlu0 %5969
        %5971 = vrot.lane.b32.xlu0 %v5879, 64
        %v5972 = vpop.permute.xlu0 %5971
        %5973 = vrot.lane.b32.xlu0 %v5880, 64
        %v5974 = vpop.permute.xlu0 %5973
        %5975 = vrot.lane.b32.xlu0 %v5881, 64
        %v5976 = vpop.permute.xlu0 %5975
        %5977 = vrot.lane.b32.xlu0 %v5882, 64
        %v5978 = vpop.permute.xlu0 %5977
        %6011 = vst.msk [vmem:[#allocation3 + $0xc] sm:$0xf] %vm1303, %v5916
        %6012 = vst.msk [vmem:[#allocation3 + $0x20] sm:$0xf] %vm1303, %v5918
        %6013 = vst.msk [vmem:[#allocation3 + $0x34] sm:$0xf] %vm1303, %v5920
        %6014 = vst.msk [vmem:[#allocation3 + $0x48] sm:$0xf] %vm1303, %v5922
        %6015 = vst.msk [vmem:[#allocation3 + $0x5c] sm:$0xf] %vm1303, %v5924
        %6016 = vst.msk [vmem:[#allocation3 + $0x70] sm:$0xf] %vm1303, %v5926
        %6017 = vst.msk [vmem:[#allocation3 + $0x84] sm:$0xf] %vm1303, %v5928
        %6018 = vst.msk [vmem:[#allocation3 + $0x98] sm:$0xf] %vm1303, %v5930
        %6019 = vst.msk [vmem:[#allocation3 + $0xac] sm:$0xf] %vm1303, %v5932
        %6020 = vst.msk [vmem:[#allocation3 + $0xc0] sm:$0xf] %vm1303, %v5934
        %6021 = vst.msk [vmem:[#allocation3 + $0xd4] sm:$0xf] %vm1303, %v5936
        %6022 = vst.msk [vmem:[#allocation3 + $0xe8] sm:$0xf] %vm1303, %v5938
        %6023 = vst.msk [vmem:[#allocation3 + $0xfc] sm:$0xf] %vm1303, %v5940
        %6024 = vst.msk [vmem:[#allocation3 + $0x110] sm:$0xf] %vm1303, %v5942
        %6025 = vst.msk [vmem:[#allocation3 + $0x124] sm:$0xf] %vm1303, %v5944
        %6026 = vst.msk [vmem:[#allocation3 + $0x138] sm:$0xf] %vm1303, %v5946
        %6027 = vst.msk [vmem:[#allocation3 + $0x14c] sm:$0xf] %vm1303, %v5948
        %6028 = vst.msk [vmem:[#allocation3 + $0x160] sm:$0xf] %vm1303, %v5950
        %6029 = vst.msk [vmem:[#allocation3 + $0x174] sm:$0xf] %vm1303, %v5952
        %6030 = vst.msk [vmem:[#allocation3 + $0x188] sm:$0xf] %vm1303, %v5954
        %6031 = vst.msk [vmem:[#allocation3 + $0x19c] sm:$0xf] %vm1303, %v5956
        %6032 = vst.msk [vmem:[#allocation3 + $0x1b0] sm:$0xf] %vm1303, %v5958
        %6033 = vst.msk [vmem:[#allocation3 + $0x1c4] sm:$0xf] %vm1303, %v5960
        %6034 = vst.msk [vmem:[#allocation3 + $0x1d8] sm:$0xf] %vm1303, %v5962
        %6035 = vst.msk [vmem:[#allocation3 + $0x1ec] sm:$0xf] %vm1303, %v5964
        %6036 = vst.msk [vmem:[#allocation3 + $0x200] sm:$0xf] %vm1303, %v5966
        %6037 = vst.msk [vmem:[#allocation3 + $0x214] sm:$0xf] %vm1303, %v5968
        %6038 = vst.msk [vmem:[#allocation3 + $0x228] sm:$0xf] %vm1303, %v5970
        %6039 = vst.msk [vmem:[#allocation3 + $0x23c] sm:$0xf] %vm1303, %v5972
        %6040 = vst.msk [vmem:[#allocation3 + $0x250] sm:$0xf] %vm1303, %v5974
        %6041 = vst.msk [vmem:[#allocation3 + $0x264] sm:$0xf] %vm1303, %v5976
        %6042 = vst.msk [vmem:[#allocation3 + $0x278] sm:$0xf] %vm1303, %v5978
        %v6043 = vmul.f32 %v5111, %v3100
        %v6044 = vmul.f32 %v5110, %v3105
        %v6045 = vmul.f32 %v5109, %v3110
        %v6046 = vmul.f32 %v5108, %v3115
        %v6047 = vmul.f32 %v5107, %v3120
        %v6048 = vmul.f32 %v5106, %v3125
        %v6049 = vmul.f32 %v5105, %v3130
        %v6050 = vmul.f32 %v5104, %v3135
        %v6051 = vmul.f32 %v5103, %v3140
        %v6052 = vmul.f32 %v5102, %v3145
        %v6053 = vmul.f32 %v5101, %v3150
        %v6054 = vmul.f32 %v5100, %v3155
        %v6055 = vmul.f32 %v5099, %v3160
        %v6056 = vmul.f32 %v5098, %v3165
        %v6057 = vmul.f32 %v5097, %v3170
        %v6058 = vmul.f32 %v5096, %v3175
        %v6059 = vmul.f32 %v5095, %v3180
        %v6060 = vmul.f32 %v5094, %v3185
        %v6061 = vmul.f32 %v5093, %v3190
        %v6062 = vmul.f32 %v5092, %v3195
        %v6063 = vmul.f32 %v5091, %v3200
        %v6064 = vmul.f32 %v5090, %v3205
        %v6065 = vmul.f32 %v5089, %v3210
        %v6066 = vmul.f32 %v5088, %v3215
        %v6067 = vmul.f32 %v5087, %v3220
        %v6068 = vmul.f32 %v5086, %v3225
        %v6069 = vmul.f32 %v5085, %v3230
        %v6070 = vmul.f32 %v5084, %v3235
        %v6071 = vmul.f32 %v5083, %v3240
        %v6072 = vmul.f32 %v5114, %v3245
        %v6073 = vmul.f32 %v5113, %v3250
        %v6074 = vmul.f32 %v5112, %v3255
        %v6075 = vpack.c.bf16 %v6043, %v6043
        %v6076 = vpack.c.bf16 %v6044, %v6044
        %v6077 = vpack.c.bf16 %v6045, %v6045
        %v6078 = vpack.c.bf16 %v6046, %v6046
        %v6079 = vpack.c.bf16 %v6047, %v6047
        %v6080 = vpack.c.bf16 %v6048, %v6048
        %v6081 = vpack.c.bf16 %v6049, %v6049
        %v6082 = vpack.c.bf16 %v6050, %v6050
        %v6083 = vpack.c.bf16 %v6051, %v6051
        %v6084 = vpack.c.bf16 %v6052, %v6052
        %v6085 = vpack.c.bf16 %v6053, %v6053
        %v6086 = vpack.c.bf16 %v6054, %v6054
        %v6087 = vpack.c.bf16 %v6055, %v6055
        %v6088 = vpack.c.bf16 %v6056, %v6056
        %v6089 = vpack.c.bf16 %v6057, %v6057
        %v6090 = vpack.c.bf16 %v6058, %v6058
        %v6091 = vpack.c.bf16 %v6059, %v6059
        %v6092 = vpack.c.bf16 %v6060, %v6060
        %v6093 = vpack.c.bf16 %v6061, %v6061
        %v6094 = vpack.c.bf16 %v6062, %v6062
        %v6095 = vpack.c.bf16 %v6063, %v6063
        %v6096 = vpack.c.bf16 %v6064, %v6064
        %v6097 = vpack.c.bf16 %v6065, %v6065
        %v6098 = vpack.c.bf16 %v6066, %v6066
        %v6099 = vpack.c.bf16 %v6067, %v6067
        %v6100 = vpack.c.bf16 %v6068, %v6068
        %v6101 = vpack.c.bf16 %v6069, %v6069
        %v6102 = vpack.c.bf16 %v6070, %v6070
        %v6103 = vpack.c.bf16 %v6071, %v6071
        %v6104 = vpack.c.bf16 %v6072, %v6072
        %v6105 = vpack.c.bf16 %v6073, %v6073
        %v6106 = vpack.c.bf16 %v6074, %v6074
        %6107 = vst.msk [vmem:[#allocation3 + $0x10] sm:$0xf] %vm918, %v6075
        %6108 = vst.msk [vmem:[#allocation3 + $0x24] sm:$0xf] %vm918, %v6076
        %6109 = vst.msk [vmem:[#allocation3 + $0x38] sm:$0xf] %vm918, %v6077
        %6110 = vst.msk [vmem:[#allocation3 + $0x4c] sm:$0xf] %vm918, %v6078
        %6111 = vst.msk [vmem:[#allocation3 + $0x60] sm:$0xf] %vm918, %v6079
        %6112 = vst.msk [vmem:[#allocation3 + $0x74] sm:$0xf] %vm918, %v6080
        %6113 = vst.msk [vmem:[#allocation3 + $0x88] sm:$0xf] %vm918, %v6081
        %6114 = vst.msk [vmem:[#allocation3 + $0x9c] sm:$0xf] %vm918, %v6082
        %6115 = vst.msk [vmem:[#allocation3 + $0xb0] sm:$0xf] %vm918, %v6083
        %6116 = vst.msk [vmem:[#allocation3 + $0xc4] sm:$0xf] %vm918, %v6084
        %6117 = vst.msk [vmem:[#allocation3 + $0xd8] sm:$0xf] %vm918, %v6085
        %6118 = vst.msk [vmem:[#allocation3 + $0xec] sm:$0xf] %vm918, %v6086
        %6119 = vst.msk [vmem:[#allocation3 + $0x100] sm:$0xf] %vm918, %v6087
        %6120 = vst.msk [vmem:[#allocation3 + $0x114] sm:$0xf] %vm918, %v6088
        %6121 = vst.msk [vmem:[#allocation3 + $0x128] sm:$0xf] %vm918, %v6089
        %6122 = vst.msk [vmem:[#allocation3 + $0x13c] sm:$0xf] %vm918, %v6090
        %6123 = vst.msk [vmem:[#allocation3 + $0x150] sm:$0xf] %vm918, %v6091
        %6124 = vst.msk [vmem:[#allocation3 + $0x164] sm:$0xf] %vm918, %v6092
        %6125 = vst.msk [vmem:[#allocation3 + $0x178] sm:$0xf] %vm918, %v6093
        %6126 = vst.msk [vmem:[#allocation3 + $0x18c] sm:$0xf] %vm918, %v6094
        %6127 = vst.msk [vmem:[#allocation3 + $0x1a0] sm:$0xf] %vm918, %v6095
        %6128 = vst.msk [vmem:[#allocation3 + $0x1b4] sm:$0xf] %vm918, %v6096
        %6129 = vst.msk [vmem:[#allocation3 + $0x1c8] sm:$0xf] %vm918, %v6097
        %6130 = vst.msk [vmem:[#allocation3 + $0x1dc] sm:$0xf] %vm918, %v6098
        %6131 = vst.msk [vmem:[#allocation3 + $0x1f0] sm:$0xf] %vm918, %v6099
        %6132 = vst.msk [vmem:[#allocation3 + $0x204] sm:$0xf] %vm918, %v6100
        %6133 = vst.msk [vmem:[#allocation3 + $0x218] sm:$0xf] %vm918, %v6101
        %6134 = vst.msk [vmem:[#allocation3 + $0x22c] sm:$0xf] %vm918, %v6102
        %6135 = vst.msk [vmem:[#allocation3 + $0x240] sm:$0xf] %vm918, %v6103
        %6136 = vst.msk [vmem:[#allocation3 + $0x254] sm:$0xf] %vm918, %v6104
        %6137 = vst.msk [vmem:[#allocation3 + $0x268] sm:$0xf] %vm918, %v6105
        %6138 = vst.msk [vmem:[#allocation3 + $0x27c] sm:$0xf] %vm918, %v6106
        %v6139 = vld [vmem:[#allocation3] sm:$0xff]
        %v6140 = vld [vmem:[#allocation3 + $0x8] sm:$0xff]
        %v6141 = vld [vmem:[#allocation3 + $0x10] sm:$0xf]
        %v6142 = vld [vmem:[#allocation3 + $0x14] sm:$0xff]
        %v6143 = vld [vmem:[#allocation3 + $0x1c] sm:$0xff]
        %v6144 = vld [vmem:[#allocation3 + $0x24] sm:$0xf]
        %v6145 = vld [vmem:[#allocation3 + $0x28] sm:$0xff]
        %v6146 = vld [vmem:[#allocation3 + $0x30] sm:$0xff]
        %v6147 = vld [vmem:[#allocation3 + $0x38] sm:$0xf]
        %v6148 = vld [vmem:[#allocation3 + $0x3c] sm:$0xff]
        %v6149 = vld [vmem:[#allocation3 + $0x44] sm:$0xff]
        %v6150 = vld [vmem:[#allocation3 + $0x4c] sm:$0xf]
        %v6151 = vld [vmem:[#allocation3 + $0x50] sm:$0xff]
        %v6152 = vld [vmem:[#allocation3 + $0x58] sm:$0xff]
        %v6153 = vld [vmem:[#allocation3 + $0x60] sm:$0xf]
        %v6154 = vld [vmem:[#allocation3 + $0x64] sm:$0xff]
        %v6155 = vld [vmem:[#allocation3 + $0x6c] sm:$0xff]
        %v6156 = vld [vmem:[#allocation3 + $0x74] sm:$0xf]
        %v6157 = vld [vmem:[#allocation3 + $0x78] sm:$0xff]
        %v6158 = vld [vmem:[#allocation3 + $0x80] sm:$0xff]
        %v6159 = vld [vmem:[#allocation3 + $0x88] sm:$0xf]
        %v6160 = vld [vmem:[#allocation3 + $0x8c] sm:$0xff]
        %v6161 = vld [vmem:[#allocation3 + $0x94] sm:$0xff]
        %v6162 = vld [vmem:[#allocation3 + $0x9c] sm:$0xf]
        %v6163 = vld [vmem:[#allocation3 + $0xa0] sm:$0xff]
        %v6164 = vld [vmem:[#allocation3 + $0xa8] sm:$0xff]
        %v6165 = vld [vmem:[#allocation3 + $0xb0] sm:$0xf]
        %v6166 = vld [vmem:[#allocation3 + $0xb4] sm:$0xff]
        %v6167 = vld [vmem:[#allocation3 + $0xbc] sm:$0xff]
        %v6168 = vld [vmem:[#allocation3 + $0xc4] sm:$0xf]
        %v6169 = vld [vmem:[#allocation3 + $0xc8] sm:$0xff]
        %v6170 = vld [vmem:[#allocation3 + $0xd0] sm:$0xff]
        %v6171 = vld [vmem:[#allocation3 + $0xd8] sm:$0xf]
        %v6172 = vld [vmem:[#allocation3 + $0xdc] sm:$0xff]
        %v6173 = vld [vmem:[#allocation3 + $0xe4] sm:$0xff]
        %v6174 = vld [vmem:[#allocation3 + $0xec] sm:$0xf]
        %v6175 = vld [vmem:[#allocation3 + $0xf0] sm:$0xff]
        %v6176 = vld [vmem:[#allocation3 + $0xf8] sm:$0xff]
        %v6177 = vld [vmem:[#allocation3 + $0x100] sm:$0xf]
        %v6178 = vld [vmem:[#allocation3 + $0x104] sm:$0xff]
        %v6179 = vld [vmem:[#allocation3 + $0x10c] sm:$0xff]
        %v6180 = vld [vmem:[#allocation3 + $0x114] sm:$0xf]
        %v6181 = vld [vmem:[#allocation3 + $0x118] sm:$0xff]
        %v6182 = vld [vmem:[#allocation3 + $0x120] sm:$0xff]
        %v6183 = vld [vmem:[#allocation3 + $0x128] sm:$0xf]
        %v6184 = vld [vmem:[#allocation3 + $0x12c] sm:$0xff]
        %v6185 = vld [vmem:[#allocation3 + $0x134] sm:$0xff]
        %v6186 = vld [vmem:[#allocation3 + $0x13c] sm:$0xf]
        %v6187 = vld [vmem:[#allocation3 + $0x140] sm:$0xff]
        %v6188 = vld [vmem:[#allocation3 + $0x148] sm:$0xff]
        %v6189 = vld [vmem:[#allocation3 + $0x150] sm:$0xf]
        %v6190 = vld [vmem:[#allocation3 + $0x154] sm:$0xff]
        %v6191 = vld [vmem:[#allocation3 + $0x15c] sm:$0xff]
        %v6192 = vld [vmem:[#allocation3 + $0x164] sm:$0xf]
        %v6193 = vld [vmem:[#allocation3 + $0x168] sm:$0xff]
        %v6194 = vld [vmem:[#allocation3 + $0x170] sm:$0xff]
        %v6195 = vld [vmem:[#allocation3 + $0x178] sm:$0xf]
        %v6196 = vld [vmem:[#allocation3 + $0x17c] sm:$0xff]
        %v6197 = vld [vmem:[#allocation3 + $0x184] sm:$0xff]
        %v6198 = vld [vmem:[#allocation3 + $0x18c] sm:$0xf]
        %v6199 = vld [vmem:[#allocation3 + $0x190] sm:$0xff]
        %v6200 = vld [vmem:[#allocation3 + $0x198] sm:$0xff]
        %v6201 = vld [vmem:[#allocation3 + $0x1a0] sm:$0xf]
        %v6202 = vld [vmem:[#allocation3 + $0x1a4] sm:$0xff]
        %v6203 = vld [vmem:[#allocation3 + $0x1ac] sm:$0xff]
        %v6204 = vld [vmem:[#allocation3 + $0x1b4] sm:$0xf]
        %v6205 = vld [vmem:[#allocation3 + $0x1b8] sm:$0xff]
        %v6206 = vld [vmem:[#allocation3 + $0x1c0] sm:$0xff]
        %v6207 = vld [vmem:[#allocation3 + $0x1c8] sm:$0xf]
        %v6208 = vld [vmem:[#allocation3 + $0x1cc] sm:$0xff]
        %v6209 = vld [vmem:[#allocation3 + $0x1d4] sm:$0xff]
        %v6210 = vld [vmem:[#allocation3 + $0x1dc] sm:$0xf]
        %v6211 = vld [vmem:[#allocation3 + $0x1e0] sm:$0xff]
        %v6212 = vld [vmem:[#allocation3 + $0x1e8] sm:$0xff]
        %v6213 = vld [vmem:[#allocation3 + $0x1f0] sm:$0xf]
        %v6214 = vld [vmem:[#allocation3 + $0x1f4] sm:$0xff]
        %v6215 = vld [vmem:[#allocation3 + $0x1fc] sm:$0xff]
        %v6216 = vld [vmem:[#allocation3 + $0x204] sm:$0xf]
        %v6217 = vld [vmem:[#allocation3 + $0x208] sm:$0xff]
        %v6218 = vld [vmem:[#allocation3 + $0x210] sm:$0xff]
        %v6219 = vld [vmem:[#allocation3 + $0x218] sm:$0xf]
        %v6220 = vld [vmem:[#allocation3 + $0x21c] sm:$0xff]
        %v6221 = vld [vmem:[#allocation3 + $0x224] sm:$0xff]
        %v6222 = vld [vmem:[#allocation3 + $0x22c] sm:$0xf]
        %v6223 = vld [vmem:[#allocation3 + $0x230] sm:$0xff]
        %v6224 = vld [vmem:[#allocation3 + $0x238] sm:$0xff]
        %v6225 = vld [vmem:[#allocation3 + $0x240] sm:$0xf]
        %v6226 = vld [vmem:[#allocation3 + $0x244] sm:$0xff]
        %v6227 = vld [vmem:[#allocation3 + $0x24c] sm:$0xff]
        %v6228 = vld [vmem:[#allocation3 + $0x254] sm:$0xf]
        %v6229 = vld [vmem:[#allocation3 + $0x258] sm:$0xff]
        %v6230 = vld [vmem:[#allocation3 + $0x260] sm:$0xff]
        %v6231 = vld [vmem:[#allocation3 + $0x268] sm:$0xf]
        %v6232 = vld [vmem:[#allocation3 + $0x26c] sm:$0xff]
        %v6233 = vld [vmem:[#allocation3 + $0x274] sm:$0xff]
        %v6234 = vld [vmem:[#allocation3 + $0x27c] sm:$0xf]
        %v6235 = vld [vmem:[%s4] sm:$0xf]
        %v6236 = vld [vmem:[%s4 + $0x4] sm:$0xf]
        %v6237 = vld [vmem:[%s4 + $0x8] sm:$0xf]
        %v6238 = vld [vmem:[%s4 + $0xc] sm:$0xf]
        %v6239 = vld [vmem:[%s4 + $0x10] sm:$0xf]
        %v6240 = vld [vmem:[%s4 + $0x14] sm:$0xf]
        %v6241 = vld [vmem:[%s4 + $0x18] sm:$0xf]
        %v6242 = vld [vmem:[%s4 + $0x1c] sm:$0xf]
        %v6243 = vld [vmem:[%s4 + $0x20] sm:$0xf]
        %v6244 = vld [vmem:[%s4 + $0x24] sm:$0xf]
        %v6245 = vld [vmem:[%s4 + $0x28] sm:$0xf]
        %v6246 = vld [vmem:[%s4 + $0x2c] sm:$0xf]
        %v6247 = vld [vmem:[%s4 + $0x30] sm:$0xf]
        %v6248 = vld [vmem:[%s4 + $0x34] sm:$0xf]
        %v6249 = vld [vmem:[%s4 + $0x38] sm:$0xf]
        %v6250 = vld [vmem:[%s4 + $0x3c] sm:$0xf]
        %v6251 = vld [vmem:[%s4 + $0x40] sm:$0xf]
        %v6252 = vld [vmem:[%s4 + $0x44] sm:$0xf]
        %v6253 = vld [vmem:[%s4 + $0x48] sm:$0xf]
        %v6254 = vld [vmem:[%s4 + $0x4c] sm:$0xf]
        %v6255 = vld [vmem:[%s4 + $0x50] sm:$0xf]
        %v6256 = vld [vmem:[%s4 + $0x54] sm:$0xf]
        %v6257 = vld [vmem:[%s4 + $0x58] sm:$0xf]
        %v6258 = vld [vmem:[%s4 + $0x5c] sm:$0xf]
        %v6259 = vld [vmem:[%s4 + $0x60] sm:$0xf]
        %v6260 = vld [vmem:[%s4 + $0x64] sm:$0xf]
        %v6261 = vld [vmem:[%s4 + $0x68] sm:$0xf]
        %v6262 = vld [vmem:[%s4 + $0x6c] sm:$0xf]
        %v6263 = vld [vmem:[%s4 + $0x70] sm:$0xf]
        %v6264 = vld [vmem:[%s4 + $0x74] sm:$0xf]
        %v6265 = vld [vmem:[%s4 + $0x78] sm:$0xf]
        %v6266 = vld [vmem:[%s4 + $0x7c] sm:$0xf]
        %v6267 = vld [vmem:[%s4 + $0x80] sm:$0xf]
        %v6268 = vld [vmem:[%s4 + $0x84] sm:$0xf]
        %v6269 = vld [vmem:[%s4 + $0x88] sm:$0xf]
        %v6270 = vld [vmem:[%s4 + $0x8c] sm:$0xf]
        %v6271 = vld [vmem:[%s4 + $0x90] sm:$0xf]
        %v6272 = vld [vmem:[%s4 + $0x94] sm:$0xf]
        %v6273 = vld [vmem:[%s4 + $0x98] sm:$0xf]
        %v6274 = vld [vmem:[%s4 + $0x9c] sm:$0xf]
        %v6275 = vld [vmem:[%s4 + $0xa0] sm:$0xf]
        %v6276 = vld [vmem:[%s4 + $0xa4] sm:$0xf]
        %v6277 = vld [vmem:[%s4 + $0xa8] sm:$0xf]
        %v6278 = vld [vmem:[%s4 + $0xac] sm:$0xf]
        %v6279 = vld [vmem:[%s4 + $0xb0] sm:$0xf]
        %v6280 = vld [vmem:[%s4 + $0xb4] sm:$0xf]
        %v6281 = vld [vmem:[%s4 + $0xb8] sm:$0xf]
        %v6282 = vld [vmem:[%s4 + $0xbc] sm:$0xf]
        %v6283 = vld [vmem:[%s4 + $0xc0] sm:$0xf]
        %v6284 = vld [vmem:[%s4 + $0xc4] sm:$0xf]
        %v6285 = vld [vmem:[%s4 + $0xc8] sm:$0xf]
        %v6286 = vld [vmem:[%s4 + $0xcc] sm:$0xf]
        %v6287 = vld [vmem:[%s4 + $0xd0] sm:$0xf]
        %v6288 = vld [vmem:[%s4 + $0xd4] sm:$0xf]
        %v6289 = vld [vmem:[%s4 + $0xd8] sm:$0xf]
        %v6290 = vld [vmem:[%s4 + $0xdc] sm:$0xf]
        %v6291 = vld [vmem:[%s4 + $0xe0] sm:$0xf]
        %v6292 = vld [vmem:[%s4 + $0xe4] sm:$0xf]
        %v6293 = vld [vmem:[%s4 + $0xe8] sm:$0xf]
        %v6294 = vld [vmem:[%s4 + $0xec] sm:$0xf]
        %v6295 = vld [vmem:[%s4 + $0xf0] sm:$0xf]
        %v6296 = vld [vmem:[%s4 + $0xf4] sm:$0xf]
        %v6297 = vld [vmem:[%s4 + $0xf8] sm:$0xf]
        %v6298 = vld [vmem:[%s4 + $0xfc] sm:$0xf]
        %v6299 = vld [vmem:[%s4 + $0x100] sm:$0xf]
        %v6300 = vld [vmem:[%s4 + $0x104] sm:$0xf]
        %v6301 = vld [vmem:[%s4 + $0x108] sm:$0xf]
        %v6302 = vld [vmem:[%s4 + $0x10c] sm:$0xf]
        %v6303 = vld [vmem:[%s4 + $0x110] sm:$0xf]
        %v6304 = vld [vmem:[%s4 + $0x114] sm:$0xf]
        %v6305 = vld [vmem:[%s4 + $0x118] sm:$0xf]
        %v6306 = vld [vmem:[%s4 + $0x11c] sm:$0xf]
        %v6307 = vld [vmem:[#allocation9] sm:$0x1]
        %v6309 = vperm.slane %v6307, 0
        %v6407 = vunpack.c.l.b16 %v6139
        %v6408 = vunpack.c.h.b16 %v6139
        %v6409 = vunpack.c.l.b16 %v6140
        %v6410 = vunpack.c.h.b16 %v6140
        %v6411 = vunpack.c.l.b16 %v6141
        %v6412 = vunpack.c.l.b16 %v6142
        %v6413 = vunpack.c.h.b16 %v6142
        %v6414 = vunpack.c.l.b16 %v6143
        %v6415 = vunpack.c.h.b16 %v6143
        %v6416 = vunpack.c.l.b16 %v6144
        %v6417 = vunpack.c.l.b16 %v6145
        %v6418 = vunpack.c.h.b16 %v6145
        %v6419 = vunpack.c.l.b16 %v6146
        %v6420 = vunpack.c.h.b16 %v6146
        %v6421 = vunpack.c.l.b16 %v6147
        %v6422 = vunpack.c.l.b16 %v6148
        %v6423 = vunpack.c.h.b16 %v6148
        %v6424 = vunpack.c.l.b16 %v6149
        %v6425 = vunpack.c.h.b16 %v6149
        %v6426 = vunpack.c.l.b16 %v6150
        %v6427 = vunpack.c.l.b16 %v6151
        %v6428 = vunpack.c.h.b16 %v6151
        %v6429 = vunpack.c.l.b16 %v6152
        %v6430 = vunpack.c.h.b16 %v6152
        %v6431 = vunpack.c.l.b16 %v6153
        %v6432 = vunpack.c.l.b16 %v6154
        %v6433 = vunpack.c.h.b16 %v6154
        %v6434 = vunpack.c.l.b16 %v6155
        %v6435 = vunpack.c.h.b16 %v6155
        %v6436 = vunpack.c.l.b16 %v6156
        %v6437 = vunpack.c.l.b16 %v6157
        %v6438 = vunpack.c.h.b16 %v6157
        %v6439 = vunpack.c.l.b16 %v6158
        %v6440 = vunpack.c.h.b16 %v6158
        %v6441 = vunpack.c.l.b16 %v6159
        %v6442 = vunpack.c.l.b16 %v6160
        %v6443 = vunpack.c.h.b16 %v6160
        %v6444 = vunpack.c.l.b16 %v6161
        %v6445 = vunpack.c.h.b16 %v6161
        %v6446 = vunpack.c.l.b16 %v6162
        %v6447 = vunpack.c.l.b16 %v6163
        %v6448 = vunpack.c.h.b16 %v6163
        %v6449 = vunpack.c.l.b16 %v6164
        %v6450 = vunpack.c.h.b16 %v6164
        %v6451 = vunpack.c.l.b16 %v6165
        %v6452 = vunpack.c.l.b16 %v6166
        %v6453 = vunpack.c.h.b16 %v6166
        %v6454 = vunpack.c.l.b16 %v6167
        %v6455 = vunpack.c.h.b16 %v6167
        %v6456 = vunpack.c.l.b16 %v6168
        %v6457 = vunpack.c.l.b16 %v6169
        %v6458 = vunpack.c.h.b16 %v6169
        %v6459 = vunpack.c.l.b16 %v6170
        %v6460 = vunpack.c.h.b16 %v6170
        %v6461 = vunpack.c.l.b16 %v6171
        %v6462 = vunpack.c.l.b16 %v6172
        %v6463 = vunpack.c.h.b16 %v6172
        %v6464 = vunpack.c.l.b16 %v6173
        %v6465 = vunpack.c.h.b16 %v6173
        %v6466 = vunpack.c.l.b16 %v6174
        %v6467 = vunpack.c.l.b16 %v6175
        %v6468 = vunpack.c.h.b16 %v6175
        %v6469 = vunpack.c.l.b16 %v6176
        %v6470 = vunpack.c.h.b16 %v6176
        %v6471 = vunpack.c.l.b16 %v6177
        %v6472 = vunpack.c.l.b16 %v6178
        %v6473 = vunpack.c.h.b16 %v6178
        %v6474 = vunpack.c.l.b16 %v6179
        %v6475 = vunpack.c.h.b16 %v6179
        %v6476 = vunpack.c.l.b16 %v6180
        %v6477 = vunpack.c.l.b16 %v6181
        %v6478 = vunpack.c.h.b16 %v6181
        %v6479 = vunpack.c.l.b16 %v6182
        %v6480 = vunpack.c.h.b16 %v6182
        %v6481 = vunpack.c.l.b16 %v6183
        %v6482 = vunpack.c.l.b16 %v6184
        %v6483 = vunpack.c.h.b16 %v6184
        %v6484 = vunpack.c.l.b16 %v6185
        %v6485 = vunpack.c.h.b16 %v6185
        %v6486 = vunpack.c.l.b16 %v6186
        %v6487 = vunpack.c.l.b16 %v6187
        %v6488 = vunpack.c.h.b16 %v6187
        %v6489 = vunpack.c.l.b16 %v6188
        %v6490 = vunpack.c.h.b16 %v6188
        %v6491 = vunpack.c.l.b16 %v6189
        %v6492 = vunpack.c.l.b16 %v6190
        %v6493 = vunpack.c.h.b16 %v6190
        %v6494 = vunpack.c.l.b16 %v6191
        %v6495 = vunpack.c.h.b16 %v6191
        %v6496 = vunpack.c.l.b16 %v6192
        %v6497 = vunpack.c.l.b16 %v6193
        %v6498 = vunpack.c.h.b16 %v6193
        %v6499 = vunpack.c.l.b16 %v6194
        %v6500 = vunpack.c.h.b16 %v6194
        %v6501 = vunpack.c.l.b16 %v6195
        %v6502 = vunpack.c.l.b16 %v6196
        %v6503 = vunpack.c.h.b16 %v6196
        %v6504 = vunpack.c.l.b16 %v6197
        %v6505 = vunpack.c.h.b16 %v6197
        %v6506 = vunpack.c.l.b16 %v6198
        %v6507 = vunpack.c.l.b16 %v6199
        %v6508 = vunpack.c.h.b16 %v6199
        %v6509 = vunpack.c.l.b16 %v6200
        %v6510 = vunpack.c.h.b16 %v6200
        %v6511 = vunpack.c.l.b16 %v6201
        %v6512 = vunpack.c.l.b16 %v6202
        %v6513 = vunpack.c.h.b16 %v6202
        %v6514 = vunpack.c.l.b16 %v6203
        %v6515 = vunpack.c.h.b16 %v6203
        %v6516 = vunpack.c.l.b16 %v6204
        %v6517 = vunpack.c.l.b16 %v6205
        %v6518 = vunpack.c.h.b16 %v6205
        %v6519 = vunpack.c.l.b16 %v6206
        %v6520 = vunpack.c.h.b16 %v6206
        %v6521 = vunpack.c.l.b16 %v6207
        %v6522 = vunpack.c.l.b16 %v6208
        %v6523 = vunpack.c.h.b16 %v6208
        %v6524 = vunpack.c.l.b16 %v6209
        %v6525 = vunpack.c.h.b16 %v6209
        %v6526 = vunpack.c.l.b16 %v6210
        %v6527 = vunpack.c.l.b16 %v6211
        %v6528 = vunpack.c.h.b16 %v6211
        %v6529 = vunpack.c.l.b16 %v6212
        %v6530 = vunpack.c.h.b16 %v6212
        %v6531 = vunpack.c.l.b16 %v6213
        %v6532 = vunpack.c.l.b16 %v6214
        %v6533 = vunpack.c.h.b16 %v6214
        %v6534 = vunpack.c.l.b16 %v6215
        %v6535 = vunpack.c.h.b16 %v6215
        %v6536 = vunpack.c.l.b16 %v6216
        %v6537 = vunpack.c.l.b16 %v6217
        %v6538 = vunpack.c.h.b16 %v6217
        %v6539 = vunpack.c.l.b16 %v6218
        %v6540 = vunpack.c.h.b16 %v6218
        %v6541 = vunpack.c.l.b16 %v6219
        %v6542 = vunpack.c.l.b16 %v6220
        %v6543 = vunpack.c.h.b16 %v6220
        %v6544 = vunpack.c.l.b16 %v6221
        %v6545 = vunpack.c.h.b16 %v6221
        %v6546 = vunpack.c.l.b16 %v6222
        %v6547 = vunpack.c.l.b16 %v6223
        %v6548 = vunpack.c.h.b16 %v6223
        %v6549 = vunpack.c.l.b16 %v6224
        %v6550 = vunpack.c.h.b16 %v6224
        %v6551 = vunpack.c.l.b16 %v6225
        %v6552 = vunpack.c.l.b16 %v6226
        %v6553 = vunpack.c.h.b16 %v6226
        %v6554 = vunpack.c.l.b16 %v6227
        %v6555 = vunpack.c.h.b16 %v6227
        %v6556 = vunpack.c.l.b16 %v6228
        %v6557 = vunpack.c.l.b16 %v6229
        %v6558 = vunpack.c.h.b16 %v6229
        %v6559 = vunpack.c.l.b16 %v6230
        %v6560 = vunpack.c.h.b16 %v6230
        %v6561 = vunpack.c.l.b16 %v6231
        %v6562 = vunpack.c.l.b16 %v6232
        %v6563 = vunpack.c.h.b16 %v6232
        %v6564 = vunpack.c.l.b16 %v6233
        %v6565 = vunpack.c.h.b16 %v6233
        %v6566 = vunpack.c.l.b16 %v6234
        %v6567 = vpack.c.b16 %v6412, %v6407
        %v6568 = vpack.c.b16 %v6413, %v6408
        %v6569 = vpack.c.b16 %v6414, %v6409
        %v6570 = vpack.c.b16 %v6415, %v6410
        %v6571 = vpack.c.b16 %v6416, %v6411
        %v6572 = vpack.c.b16 %v6422, %v6417
        %v6573 = vpack.c.b16 %v6423, %v6418
        %v6574 = vpack.c.b16 %v6424, %v6419
        %v6575 = vpack.c.b16 %v6425, %v6420
        %v6576 = vpack.c.b16 %v6426, %v6421
        %v6577 = vpack.c.b16 %v6432, %v6427
        %v6578 = vpack.c.b16 %v6433, %v6428
        %v6579 = vpack.c.b16 %v6434, %v6429
        %v6580 = vpack.c.b16 %v6435, %v6430
        %v6581 = vpack.c.b16 %v6436, %v6431
        %v6582 = vpack.c.b16 %v6442, %v6437
        %v6583 = vpack.c.b16 %v6443, %v6438
        %v6584 = vpack.c.b16 %v6444, %v6439
        %v6585 = vpack.c.b16 %v6445, %v6440
        %v6586 = vpack.c.b16 %v6446, %v6441
        %v6587 = vpack.c.b16 %v6452, %v6447
        %v6588 = vpack.c.b16 %v6453, %v6448
        %v6589 = vpack.c.b16 %v6454, %v6449
        %v6590 = vpack.c.b16 %v6455, %v6450
        %v6591 = vpack.c.b16 %v6456, %v6451
        %v6592 = vpack.c.b16 %v6462, %v6457
        %v6593 = vpack.c.b16 %v6463, %v6458
        %v6594 = vpack.c.b16 %v6464, %v6459
        %v6595 = vpack.c.b16 %v6465, %v6460
        %v6596 = vpack.c.b16 %v6466, %v6461
        %v6597 = vpack.c.b16 %v6472, %v6467
        %v6598 = vpack.c.b16 %v6473, %v6468
        %v6599 = vpack.c.b16 %v6474, %v6469
        %v6600 = vpack.c.b16 %v6475, %v6470
        %v6601 = vpack.c.b16 %v6476, %v6471
        %v6602 = vpack.c.b16 %v6482, %v6477
        %v6603 = vpack.c.b16 %v6483, %v6478
        %v6604 = vpack.c.b16 %v6484, %v6479
        %v6605 = vpack.c.b16 %v6485, %v6480
        %v6606 = vpack.c.b16 %v6486, %v6481
        %v6607 = vpack.c.b16 %v6492, %v6487
        %v6608 = vpack.c.b16 %v6493, %v6488
        %v6609 = vpack.c.b16 %v6494, %v6489
        %v6610 = vpack.c.b16 %v6495, %v6490
        %v6611 = vpack.c.b16 %v6496, %v6491
        %v6612 = vpack.c.b16 %v6502, %v6497
        %v6613 = vpack.c.b16 %v6503, %v6498
        %v6614 = vpack.c.b16 %v6504, %v6499
        %v6615 = vpack.c.b16 %v6505, %v6500
        %v6616 = vpack.c.b16 %v6506, %v6501
        %v6617 = vpack.c.b16 %v6512, %v6507
        %v6618 = vpack.c.b16 %v6513, %v6508
        %v6619 = vpack.c.b16 %v6514, %v6509
        %v6620 = vpack.c.b16 %v6515, %v6510
        %v6621 = vpack.c.b16 %v6516, %v6511
        %v6622 = vpack.c.b16 %v6522, %v6517
        %v6623 = vpack.c.b16 %v6523, %v6518
        %v6624 = vpack.c.b16 %v6524, %v6519
        %v6625 = vpack.c.b16 %v6525, %v6520
        %v6626 = vpack.c.b16 %v6526, %v6521
        %v6627 = vpack.c.b16 %v6532, %v6527
        %v6628 = vpack.c.b16 %v6533, %v6528
        %v6629 = vpack.c.b16 %v6534, %v6529
        %v6630 = vpack.c.b16 %v6535, %v6530
        %v6631 = vpack.c.b16 %v6536, %v6531
        %v6632 = vpack.c.b16 %v6542, %v6537
        %v6633 = vpack.c.b16 %v6543, %v6538
        %v6634 = vpack.c.b16 %v6544, %v6539
        %v6635 = vpack.c.b16 %v6545, %v6540
        %v6636 = vpack.c.b16 %v6546, %v6541
        %v6637 = vpack.c.b16 %v6552, %v6547
        %v6638 = vpack.c.b16 %v6553, %v6548
        %v6639 = vpack.c.b16 %v6554, %v6549
        %v6640 = vpack.c.b16 %v6555, %v6550
        %v6641 = vpack.c.b16 %v6556, %v6551
        %v6642 = vpack.c.b16 %v6562, %v6557
        %v6643 = vpack.c.b16 %v6563, %v6558
        %v6644 = vpack.c.b16 %v6564, %v6559
        %v6645 = vpack.c.b16 %v6565, %v6560
        %v6646 = vpack.c.b16 %v6566, %v6561
        %v6783 = vunpack.c.l.b16 %v6235
        %v6784 = vunpack.c.l.b16 %v6236
        %v6785 = vunpack.c.l.b16 %v6237
        %v6786 = vunpack.c.l.b16 %v6238
        %v6787 = vunpack.c.l.b16 %v6239
        %v6788 = vunpack.c.l.b16 %v6240
        %v6789 = vunpack.c.l.b16 %v6241
        %v6790 = vunpack.c.l.b16 %v6242
        %v6791 = vunpack.c.l.b16 %v6243
        %v6792 = vunpack.c.l.b16 %v6244
        %v6793 = vunpack.c.l.b16 %v6245
        %v6794 = vunpack.c.l.b16 %v6246
        %v6795 = vunpack.c.l.b16 %v6247
        %v6796 = vunpack.c.l.b16 %v6248
        %v6797 = vunpack.c.l.b16 %v6249
        %v6798 = vunpack.c.l.b16 %v6250
        %v6799 = vunpack.c.l.b16 %v6251
        %v6800 = vunpack.c.l.b16 %v6252
        %v6801 = vunpack.c.l.b16 %v6253
        %v6802 = vunpack.c.l.b16 %v6254
        %v6803 = vunpack.c.l.b16 %v6255
        %v6804 = vunpack.c.l.b16 %v6256
        %v6805 = vunpack.c.l.b16 %v6257
        %v6806 = vunpack.c.l.b16 %v6258
        %v6807 = vunpack.c.l.b16 %v6259
        %v6808 = vunpack.c.l.b16 %v6260
        %v6809 = vunpack.c.l.b16 %v6261
        %v6810 = vunpack.c.l.b16 %v6262
        %v6811 = vunpack.c.l.b16 %v6263
        %v6812 = vunpack.c.l.b16 %v6264
        %v6813 = vunpack.c.l.b16 %v6265
        %v6814 = vunpack.c.l.b16 %v6266
        %v6815 = vunpack.c.l.b16 %v6267
        %v6816 = vunpack.c.l.b16 %v6268
        %v6817 = vunpack.c.l.b16 %v6269
        %v6818 = vunpack.c.l.b16 %v6270
        %v6819 = vunpack.c.l.b16 %v6271
        %v6820 = vunpack.c.l.b16 %v6272
        %v6821 = vunpack.c.l.b16 %v6273
        %v6822 = vunpack.c.l.b16 %v6274
        %v6823 = vunpack.c.l.b16 %v6275
        %v6824 = vunpack.c.l.b16 %v6276
        %v6825 = vunpack.c.l.b16 %v6277
        %v6826 = vunpack.c.l.b16 %v6278
        %v6827 = vunpack.c.l.b16 %v6279
        %v6828 = vunpack.c.l.b16 %v6280
        %v6829 = vunpack.c.l.b16 %v6281
        %v6830 = vunpack.c.l.b16 %v6282
        %v6831 = vunpack.c.l.b16 %v6283
        %v6832 = vunpack.c.l.b16 %v6284
        %v6833 = vunpack.c.l.b16 %v6285
        %v6834 = vunpack.c.l.b16 %v6286
        %v6835 = vunpack.c.l.b16 %v6287
        %v6836 = vunpack.c.l.b16 %v6288
        %v6837 = vunpack.c.l.b16 %v6289
        %v6838 = vunpack.c.l.b16 %v6290
        %v6839 = vunpack.c.l.b16 %v6291
        %v6840 = vunpack.c.l.b16 %v6292
        %v6841 = vunpack.c.l.b16 %v6293
        %v6842 = vunpack.c.l.b16 %v6294
        %v6843 = vunpack.c.l.b16 %v6295
        %v6844 = vunpack.c.l.b16 %v6296
        %v6845 = vunpack.c.l.b16 %v6297
        %v6846 = vunpack.c.l.b16 %v6298
        %v6847 = vunpack.c.l.b16 %v6299
        %v6848 = vunpack.c.l.b16 %v6300
        %v6849 = vunpack.c.l.b16 %v6301
        %v6850 = vunpack.c.l.b16 %v6302
        %v6851 = vunpack.c.l.b16 %v6303
        %v6852 = vunpack.c.l.b16 %v6304
        %v6853 = vunpack.c.l.b16 %v6305
        %v6854 = vunpack.c.l.b16 %v6306
        %v6855 = vpack.c.b16 %v6784, %v6783
        %v6856 = vpack.c.b16 %v6786, %v6785
        %v6857 = vpack.c.b16 %v6788, %v6787
        %v6858 = vpack.c.b16 %v6790, %v6789
        %v6859 = vpack.c.b16 %v6792, %v6791
        %v6860 = vpack.c.b16 %v6794, %v6793
        %v6861 = vpack.c.b16 %v6796, %v6795
        %v6862 = vpack.c.b16 %v6798, %v6797
        %v6863 = vpack.c.b16 %v6800, %v6799
        %v6864 = vpack.c.b16 %v6802, %v6801
        %v6865 = vpack.c.b16 %v6804, %v6803
        %v6866 = vpack.c.b16 %v6806, %v6805
        %v6867 = vpack.c.b16 %v6808, %v6807
        %v6868 = vpack.c.b16 %v6810, %v6809
        %v6869 = vpack.c.b16 %v6812, %v6811
        %v6870 = vpack.c.b16 %v6814, %v6813
        %v6871 = vpack.c.b16 %v6816, %v6815
        %v6872 = vpack.c.b16 %v6818, %v6817
        %v6873 = vpack.c.b16 %v6820, %v6819
        %v6874 = vpack.c.b16 %v6822, %v6821
        %v6875 = vpack.c.b16 %v6824, %v6823
        %v6876 = vpack.c.b16 %v6826, %v6825
        %v6877 = vpack.c.b16 %v6828, %v6827
        %v6878 = vpack.c.b16 %v6830, %v6829
        %v6879 = vpack.c.b16 %v6832, %v6831
        %v6880 = vpack.c.b16 %v6834, %v6833
        %v6881 = vpack.c.b16 %v6836, %v6835
        %v6882 = vpack.c.b16 %v6838, %v6837
        %v6883 = vpack.c.b16 %v6840, %v6839
        %v6884 = vpack.c.b16 %v6842, %v6841
        %v6885 = vpack.c.b16 %v6844, %v6843
        %v6886 = vpack.c.b16 %v6846, %v6845
        %v6887 = vpack.c.b16 %v6848, %v6847
        %v6888 = vpack.c.b16 %v6850, %v6849
        %v6889 = vpack.c.b16 %v6852, %v6851
        %v6890 = vpack.c.b16 %v6854, %v6853
        %v6928 = vsel %vm4141, %v6571, 0
        %v6931 = vsel %vm4141, %v6576, 0
        %v6934 = vsel %vm4141, %v6581, 0
        %v6937 = vsel %vm4141, %v6586, 0
        %v6940 = vsel %vm4141, %v6591, 0
        %v6943 = vsel %vm4141, %v6596, 0
        %v6946 = vsel %vm4141, %v6601, 0
        %v6949 = vsel %vm4141, %v6606, 0
        %v6952 = vsel %vm4141, %v6611, 0
        %v6955 = vsel %vm4141, %v6616, 0
        %v6958 = vsel %vm4141, %v6621, 0
        %v6961 = vsel %vm4141, %v6626, 0
        %v6964 = vsel %vm4141, %v6631, 0
        %v6967 = vsel %vm4141, %v6636, 0
        %v6970 = vsel %vm4141, %v6641, 0
        %v6973 = vsel %vm4141, %v6646, 0
        %6975 = vmatpush.bf16.msra.mxu0 %v6862
        %6976 = vmatpush.bf16.msra.mxu0 %v6861
        %6977 = vmatpush.bf16.msra.mxu0 %v6860
        %6978 = vmatpush.bf16.msra.mxu0 %v6859
        %6979 = vmatpush.bf16.msra.mxu0 %v6858
        %6980 = vmatpush.bf16.msra.mxu0 %v6857
        %6981 = vmatpush.bf16.msra.mxu0 %v6856
        %6982 = vmatpush.bf16.msra.mxu0 %v6855
        %6983 = vmatmul.bf16.gmra.mxu0 %v6567
        %v6984 = vpop.f32.mrf.mxu0
        %v6985 = vadd.f32 %v6309, %v6984
        %v6986 = vpop.f32.mrf.mxu0
        %v6987 = vadd.f32 %v6309, %v6986
        %6988 = vmatmul.bf16.gmra.mxu0 %v6572
        %v6989 = vpop.f32.mrf.mxu0
        %v6990 = vadd.f32 %v6309, %v6989
        %v6991 = vpop.f32.mrf.mxu0
        %v6992 = vadd.f32 %v6309, %v6991
        %6993 = vmatmul.bf16.gmra.mxu0 %v6577
        %v6994 = vpop.f32.mrf.mxu0
        %v6995 = vadd.f32 %v6309, %v6994
        %v6996 = vpop.f32.mrf.mxu0
        %v6997 = vadd.f32 %v6309, %v6996
        %6998 = vmatmul.bf16.gmra.mxu0 %v6582
        %v6999 = vpop.f32.mrf.mxu0
        %v7000 = vadd.f32 %v6309, %v6999
        %v7001 = vpop.f32.mrf.mxu0
        %v7002 = vadd.f32 %v6309, %v7001
        %7003 = vmatmul.bf16.gmra.mxu0 %v6587
        %v7004 = vpop.f32.mrf.mxu0
        %v7005 = vadd.f32 %v6309, %v7004
        %v7006 = vpop.f32.mrf.mxu0
        %v7007 = vadd.f32 %v6309, %v7006
        %7008 = vmatmul.bf16.gmra.mxu0 %v6592
        %v7009 = vpop.f32.mrf.mxu0
        %v7010 = vadd.f32 %v6309, %v7009
        %v7011 = vpop.f32.mrf.mxu0
        %v7012 = vadd.f32 %v6309, %v7011
        %7013 = vmatmul.bf16.gmra.mxu0 %v6597
        %v7014 = vpop.f32.mrf.mxu0
        %v7015 = vadd.f32 %v6309, %v7014
        %v7016 = vpop.f32.mrf.mxu0
        %v7017 = vadd.f32 %v6309, %v7016
        %7018 = vmatmul.bf16.gmra.mxu0 %v6602
        %v7019 = vpop.f32.mrf.mxu0
        %v7020 = vadd.f32 %v6309, %v7019
        %v7021 = vpop.f32.mrf.mxu0
        %v7022 = vadd.f32 %v6309, %v7021
        %7023 = vmatmul.bf16.gmra.mxu0 %v6607
        %v7024 = vpop.f32.mrf.mxu0
        %v7025 = vadd.f32 %v6309, %v7024
        %v7026 = vpop.f32.mrf.mxu0
        %v7027 = vadd.f32 %v6309, %v7026
        %7028 = vmatmul.bf16.gmra.mxu0 %v6612
        %v7029 = vpop.f32.mrf.mxu0
        %v7030 = vadd.f32 %v6309, %v7029
        %v7031 = vpop.f32.mrf.mxu0
        %v7032 = vadd.f32 %v6309, %v7031
        %7033 = vmatmul.bf16.gmra.mxu0 %v6617
        %v7034 = vpop.f32.mrf.mxu0
        %v7035 = vadd.f32 %v6309, %v7034
        %v7036 = vpop.f32.mrf.mxu0
        %v7037 = vadd.f32 %v6309, %v7036
        %7038 = vmatmul.bf16.gmra.mxu0 %v6622
        %v7039 = vpop.f32.mrf.mxu0
        %v7040 = vadd.f32 %v6309, %v7039
        %v7041 = vpop.f32.mrf.mxu0
        %v7042 = vadd.f32 %v6309, %v7041
        %7043 = vmatmul.bf16.gmra.mxu0 %v6627
        %v7044 = vpop.f32.mrf.mxu0
        %v7045 = vadd.f32 %v6309, %v7044
        %v7046 = vpop.f32.mrf.mxu0
        %v7047 = vadd.f32 %v6309, %v7046
        %7048 = vmatmul.bf16.gmra.mxu0 %v6632
        %v7049 = vpop.f32.mrf.mxu0
        %v7050 = vadd.f32 %v6309, %v7049
        %v7051 = vpop.f32.mrf.mxu0
        %v7052 = vadd.f32 %v6309, %v7051
        %7053 = vmatmul.bf16.gmra.mxu0 %v6637
        %v7054 = vpop.f32.mrf.mxu0
        %v7055 = vadd.f32 %v6309, %v7054
        %v7056 = vpop.f32.mrf.mxu0
        %v7057 = vadd.f32 %v6309, %v7056
        %7058 = vmatmul.bf16.gmra.mxu0 %v6642
        %v7059 = vpop.f32.mrf.mxu0
        %v7060 = vadd.f32 %v6309, %v7059
        %v7061 = vpop.f32.mrf.mxu0
        %v7062 = vadd.f32 %v6309, %v7061
        %7063 = vdwg.mxu0
        %7064 = vmatpush.bf16.msra.mxu0 %v6870
        %7065 = vmatpush.bf16.msra.mxu0 %v6869
        %7066 = vmatpush.bf16.msra.mxu0 %v6868
        %7067 = vmatpush.bf16.msra.mxu0 %v6867
        %7068 = vmatpush.bf16.msra.mxu0 %v6866
        %7069 = vmatpush.bf16.msra.mxu0 %v6865
        %7070 = vmatpush.bf16.msra.mxu0 %v6864
        %7071 = vmatpush.bf16.msra.mxu0 %v6863
        %7072 = vmatmul.bf16.gmra.mxu0 %v6568
        %v7073 = vpop.f32.mrf.mxu0
        %v7074 = vadd.f32 %v6985, %v7073
        %v7075 = vpop.f32.mrf.mxu0
        %v7076 = vadd.f32 %v6987, %v7075
        %7077 = vmatmul.bf16.gmra.mxu0 %v6573
        %v7078 = vpop.f32.mrf.mxu0
        %v7079 = vadd.f32 %v6990, %v7078
        %v7080 = vpop.f32.mrf.mxu0
        %v7081 = vadd.f32 %v6992, %v7080
        %7082 = vmatmul.bf16.gmra.mxu0 %v6578
        %v7083 = vpop.f32.mrf.mxu0
        %v7084 = vadd.f32 %v6995, %v7083
        %v7085 = vpop.f32.mrf.mxu0
        %v7086 = vadd.f32 %v6997, %v7085
        %7087 = vmatmul.bf16.gmra.mxu0 %v6583
        %v7088 = vpop.f32.mrf.mxu0
        %v7089 = vadd.f32 %v7000, %v7088
        %v7090 = vpop.f32.mrf.mxu0
        %v7091 = vadd.f32 %v7002, %v7090
        %7092 = vmatmul.bf16.gmra.mxu0 %v6588
        %v7093 = vpop.f32.mrf.mxu0
        %v7094 = vadd.f32 %v7005, %v7093
        %v7095 = vpop.f32.mrf.mxu0
        %v7096 = vadd.f32 %v7007, %v7095
        %7097 = vmatmul.bf16.gmra.mxu0 %v6593
        %v7098 = vpop.f32.mrf.mxu0
        %v7099 = vadd.f32 %v7010, %v7098
        %v7100 = vpop.f32.mrf.mxu0
        %v7101 = vadd.f32 %v7012, %v7100
        %7102 = vmatmul.bf16.gmra.mxu0 %v6598
        %v7103 = vpop.f32.mrf.mxu0
        %v7104 = vadd.f32 %v7015, %v7103
        %v7105 = vpop.f32.mrf.mxu0
        %v7106 = vadd.f32 %v7017, %v7105
        %7107 = vmatmul.bf16.gmra.mxu0 %v6603
        %v7108 = vpop.f32.mrf.mxu0
        %v7109 = vadd.f32 %v7020, %v7108
        %v7110 = vpop.f32.mrf.mxu0
        %v7111 = vadd.f32 %v7022, %v7110
        %7112 = vmatmul.bf16.gmra.mxu0 %v6608
        %v7113 = vpop.f32.mrf.mxu0
        %v7114 = vadd.f32 %v7025, %v7113
        %v7115 = vpop.f32.mrf.mxu0
        %v7116 = vadd.f32 %v7027, %v7115
        %7117 = vmatmul.bf16.gmra.mxu0 %v6613
        %v7118 = vpop.f32.mrf.mxu0
        %v7119 = vadd.f32 %v7030, %v7118
        %v7120 = vpop.f32.mrf.mxu0
        %v7121 = vadd.f32 %v7032, %v7120
        %7122 = vmatmul.bf16.gmra.mxu0 %v6618
        %v7123 = vpop.f32.mrf.mxu0
        %v7124 = vadd.f32 %v7035, %v7123
        %v7125 = vpop.f32.mrf.mxu0
        %v7126 = vadd.f32 %v7037, %v7125
        %7127 = vmatmul.bf16.gmra.mxu0 %v6623
        %v7128 = vpop.f32.mrf.mxu0
        %v7129 = vadd.f32 %v7040, %v7128
        %v7130 = vpop.f32.mrf.mxu0
        %v7131 = vadd.f32 %v7042, %v7130
        %7132 = vmatmul.bf16.gmra.mxu0 %v6628
        %v7133 = vpop.f32.mrf.mxu0
        %v7134 = vadd.f32 %v7045, %v7133
        %v7135 = vpop.f32.mrf.mxu0
        %v7136 = vadd.f32 %v7047, %v7135
        %7137 = vmatmul.bf16.gmra.mxu0 %v6633
        %v7138 = vpop.f32.mrf.mxu0
        %v7139 = vadd.f32 %v7050, %v7138
        %v7140 = vpop.f32.mrf.mxu0
        %v7141 = vadd.f32 %v7052, %v7140
        %7142 = vmatmul.bf16.gmra.mxu0 %v6638
        %v7143 = vpop.f32.mrf.mxu0
        %v7144 = vadd.f32 %v7055, %v7143
        %v7145 = vpop.f32.mrf.mxu0
        %v7146 = vadd.f32 %v7057, %v7145
        %7147 = vmatmul.bf16.gmra.mxu0 %v6643
        %v7148 = vpop.f32.mrf.mxu0
        %v7149 = vadd.f32 %v7060, %v7148
        %v7150 = vpop.f32.mrf.mxu0
        %v7151 = vadd.f32 %v7062, %v7150
        %7152 = vdwg.mxu0
        %7153 = vmatpush.bf16.msra.mxu0 %v6878
        %7154 = vmatpush.bf16.msra.mxu0 %v6877
        %7155 = vmatpush.bf16.msra.mxu0 %v6876
        %7156 = vmatpush.bf16.msra.mxu0 %v6875
        %7157 = vmatpush.bf16.msra.mxu0 %v6874
        %7158 = vmatpush.bf16.msra.mxu0 %v6873
        %7159 = vmatpush.bf16.msra.mxu0 %v6872
        %7160 = vmatpush.bf16.msra.mxu0 %v6871
        %7161 = vmatmul.bf16.gmra.mxu0 %v6569
        %v7162 = vpop.f32.mrf.mxu0
        %v7163 = vadd.f32 %v7074, %v7162
        %v7164 = vpop.f32.mrf.mxu0
        %v7165 = vadd.f32 %v7076, %v7164
        %7166 = vmatmul.bf16.gmra.mxu0 %v6574
        %v7167 = vpop.f32.mrf.mxu0
        %v7168 = vadd.f32 %v7079, %v7167
        %v7169 = vpop.f32.mrf.mxu0
        %v7170 = vadd.f32 %v7081, %v7169
        %7171 = vmatmul.bf16.gmra.mxu0 %v6579
        %v7172 = vpop.f32.mrf.mxu0
        %v7173 = vadd.f32 %v7084, %v7172
        %v7174 = vpop.f32.mrf.mxu0
        %v7175 = vadd.f32 %v7086, %v7174
        %7176 = vmatmul.bf16.gmra.mxu0 %v6584
        %v7177 = vpop.f32.mrf.mxu0
        %v7178 = vadd.f32 %v7089, %v7177
        %v7179 = vpop.f32.mrf.mxu0
        %v7180 = vadd.f32 %v7091, %v7179
        %7181 = vmatmul.bf16.gmra.mxu0 %v6589
        %v7182 = vpop.f32.mrf.mxu0
        %v7183 = vadd.f32 %v7094, %v7182
        %v7184 = vpop.f32.mrf.mxu0
        %v7185 = vadd.f32 %v7096, %v7184
        %7186 = vmatmul.bf16.gmra.mxu0 %v6594
        %v7187 = vpop.f32.mrf.mxu0
        %v7188 = vadd.f32 %v7099, %v7187
        %v7189 = vpop.f32.mrf.mxu0
        %v7190 = vadd.f32 %v7101, %v7189
        %7191 = vmatmul.bf16.gmra.mxu0 %v6599
        %v7192 = vpop.f32.mrf.mxu0
        %v7193 = vadd.f32 %v7104, %v7192
        %v7194 = vpop.f32.mrf.mxu0
        %v7195 = vadd.f32 %v7106, %v7194
        %7196 = vmatmul.bf16.gmra.mxu0 %v6604
        %v7197 = vpop.f32.mrf.mxu0
        %v7198 = vadd.f32 %v7109, %v7197
        %v7199 = vpop.f32.mrf.mxu0
        %v7200 = vadd.f32 %v7111, %v7199
        %7201 = vmatmul.bf16.gmra.mxu0 %v6609
        %v7202 = vpop.f32.mrf.mxu0
        %v7203 = vadd.f32 %v7114, %v7202
        %v7204 = vpop.f32.mrf.mxu0
        %v7205 = vadd.f32 %v7116, %v7204
        %7206 = vmatmul.bf16.gmra.mxu0 %v6614
        %v7207 = vpop.f32.mrf.mxu0
        %v7208 = vadd.f32 %v7119, %v7207
        %v7209 = vpop.f32.mrf.mxu0
        %v7210 = vadd.f32 %v7121, %v7209
        %7211 = vmatmul.bf16.gmra.mxu0 %v6619
        %v7212 = vpop.f32.mrf.mxu0
        %v7213 = vadd.f32 %v7124, %v7212
        %v7214 = vpop.f32.mrf.mxu0
        %v7215 = vadd.f32 %v7126, %v7214
        %7216 = vmatmul.bf16.gmra.mxu0 %v6624
        %v7217 = vpop.f32.mrf.mxu0
        %v7218 = vadd.f32 %v7129, %v7217
        %v7219 = vpop.f32.mrf.mxu0
        %v7220 = vadd.f32 %v7131, %v7219
        %7221 = vmatmul.bf16.gmra.mxu0 %v6629
        %v7222 = vpop.f32.mrf.mxu0
        %v7223 = vadd.f32 %v7134, %v7222
        %v7224 = vpop.f32.mrf.mxu0
        %v7225 = vadd.f32 %v7136, %v7224
        %7226 = vmatmul.bf16.gmra.mxu0 %v6634
        %v7227 = vpop.f32.mrf.mxu0
        %v7228 = vadd.f32 %v7139, %v7227
        %v7229 = vpop.f32.mrf.mxu0
        %v7230 = vadd.f32 %v7141, %v7229
        %7231 = vmatmul.bf16.gmra.mxu0 %v6639
        %v7232 = vpop.f32.mrf.mxu0
        %v7233 = vadd.f32 %v7144, %v7232
        %v7234 = vpop.f32.mrf.mxu0
        %v7235 = vadd.f32 %v7146, %v7234
        %7236 = vmatmul.bf16.gmra.mxu0 %v6644
        %v7237 = vpop.f32.mrf.mxu0
        %v7238 = vadd.f32 %v7149, %v7237
        %v7239 = vpop.f32.mrf.mxu0
        %v7240 = vadd.f32 %v7151, %v7239
        %7241 = vdwg.mxu0
        %7242 = vmatpush.bf16.msra.mxu0 %v6886
        %7243 = vmatpush.bf16.msra.mxu0 %v6885
        %7244 = vmatpush.bf16.msra.mxu0 %v6884
        %7245 = vmatpush.bf16.msra.mxu0 %v6883
        %7246 = vmatpush.bf16.msra.mxu0 %v6882
        %7247 = vmatpush.bf16.msra.mxu0 %v6881
        %7248 = vmatpush.bf16.msra.mxu0 %v6880
        %7249 = vmatpush.bf16.msra.mxu0 %v6879
        %7250 = vmatmul.bf16.gmra.mxu0 %v6570
        %v7251 = vpop.f32.mrf.mxu0
        %v7252 = vadd.f32 %v7163, %v7251
        %v7253 = vpop.f32.mrf.mxu0
        %v7254 = vadd.f32 %v7165, %v7253
        %7255 = vmatmul.bf16.gmra.mxu0 %v6575
        %v7256 = vpop.f32.mrf.mxu0
        %v7257 = vadd.f32 %v7168, %v7256
        %v7258 = vpop.f32.mrf.mxu0
        %v7259 = vadd.f32 %v7170, %v7258
        %7260 = vmatmul.bf16.gmra.mxu0 %v6580
        %v7261 = vpop.f32.mrf.mxu0
        %v7262 = vadd.f32 %v7173, %v7261
        %v7263 = vpop.f32.mrf.mxu0
        %v7264 = vadd.f32 %v7175, %v7263
        %7265 = vmatmul.bf16.gmra.mxu0 %v6585
        %v7266 = vpop.f32.mrf.mxu0
        %v7267 = vadd.f32 %v7178, %v7266
        %v7268 = vpop.f32.mrf.mxu0
        %v7269 = vadd.f32 %v7180, %v7268
        %7270 = vmatmul.bf16.gmra.mxu0 %v6590
        %v7271 = vpop.f32.mrf.mxu0
        %v7272 = vadd.f32 %v7183, %v7271
        %v7273 = vpop.f32.mrf.mxu0
        %v7274 = vadd.f32 %v7185, %v7273
        %7275 = vmatmul.bf16.gmra.mxu0 %v6595
        %v7276 = vpop.f32.mrf.mxu0
        %v7277 = vadd.f32 %v7188, %v7276
        %v7278 = vpop.f32.mrf.mxu0
        %v7279 = vadd.f32 %v7190, %v7278
        %7280 = vmatmul.bf16.gmra.mxu0 %v6600
        %v7281 = vpop.f32.mrf.mxu0
        %v7282 = vadd.f32 %v7193, %v7281
        %v7283 = vpop.f32.mrf.mxu0
        %v7284 = vadd.f32 %v7195, %v7283
        %7285 = vmatmul.bf16.gmra.mxu0 %v6605
        %v7286 = vpop.f32.mrf.mxu0
        %v7287 = vadd.f32 %v7198, %v7286
        %v7288 = vpop.f32.mrf.mxu0
        %v7289 = vadd.f32 %v7200, %v7288
        %7290 = vmatmul.bf16.gmra.mxu0 %v6610
        %v7291 = vpop.f32.mrf.mxu0
        %v7292 = vadd.f32 %v7203, %v7291
        %v7293 = vpop.f32.mrf.mxu0
        %v7294 = vadd.f32 %v7205, %v7293
        %7295 = vmatmul.bf16.gmra.mxu0 %v6615
        %v7296 = vpop.f32.mrf.mxu0
        %v7297 = vadd.f32 %v7208, %v7296
        %v7298 = vpop.f32.mrf.mxu0
        %v7299 = vadd.f32 %v7210, %v7298
        %7300 = vmatmul.bf16.gmra.mxu0 %v6620
        %v7301 = vpop.f32.mrf.mxu0
        %v7302 = vadd.f32 %v7213, %v7301
        %v7303 = vpop.f32.mrf.mxu0
        %v7304 = vadd.f32 %v7215, %v7303
        %7305 = vmatmul.bf16.gmra.mxu0 %v6625
        %v7306 = vpop.f32.mrf.mxu0
        %v7307 = vadd.f32 %v7218, %v7306
        %v7308 = vpop.f32.mrf.mxu0
        %v7309 = vadd.f32 %v7220, %v7308
        %7310 = vmatmul.bf16.gmra.mxu0 %v6630
        %v7311 = vpop.f32.mrf.mxu0
        %v7312 = vadd.f32 %v7223, %v7311
        %v7313 = vpop.f32.mrf.mxu0
        %v7314 = vadd.f32 %v7225, %v7313
        %7315 = vmatmul.bf16.gmra.mxu0 %v6635
        %v7316 = vpop.f32.mrf.mxu0
        %v7317 = vadd.f32 %v7228, %v7316
        %v7318 = vpop.f32.mrf.mxu0
        %v7319 = vadd.f32 %v7230, %v7318
        %7320 = vmatmul.bf16.gmra.mxu0 %v6640
        %v7321 = vpop.f32.mrf.mxu0
        %v7322 = vadd.f32 %v7233, %v7321
        %v7323 = vpop.f32.mrf.mxu0
        %v7324 = vadd.f32 %v7235, %v7323
        %7325 = vmatmul.bf16.gmra.mxu0 %v6645
        %v7326 = vpop.f32.mrf.mxu0
        %v7327 = vadd.f32 %v7238, %v7326
        %v7328 = vpop.f32.mrf.mxu0
        %v7329 = vadd.f32 %v7240, %v7328
        %7330 = vdwg.mxu0
        %7331 = vmatpush.bf16.msra.mxu0 0
        %7332 = vmatpush.bf16.msra.mxu0 0
        %7333 = vmatpush.bf16.msra.mxu0 0
        %7334 = vmatpush.bf16.msra.mxu0 0
        %7335 = vmatpush.bf16.msra.mxu0 %v6890
        %7336 = vmatpush.bf16.msra.mxu0 %v6889
        %7337 = vmatpush.bf16.msra.mxu0 %v6888
        %7338 = vmatpush.bf16.msra.mxu0 %v6887
        %7339 = vmatmul.bf16.gmra.mxu0 %v6928
        %v7340 = vpop.f32.mrf.mxu0
        %v7341 = vadd.f32 %v7252, %v7340
        %v7342 = vpop.f32.mrf.mxu0
        %v7343 = vadd.f32 %v7254, %v7342
        %7344 = vmatmul.bf16.gmra.mxu0 %v6931
        %v7345 = vpop.f32.mrf.mxu0
        %v7346 = vadd.f32 %v7257, %v7345
        %v7347 = vpop.f32.mrf.mxu0
        %v7348 = vadd.f32 %v7259, %v7347
        %7349 = vmatmul.bf16.gmra.mxu0 %v6934
        %v7350 = vpop.f32.mrf.mxu0
        %v7351 = vadd.f32 %v7262, %v7350
        %v7352 = vpop.f32.mrf.mxu0
        %v7353 = vadd.f32 %v7264, %v7352
        %7354 = vmatmul.bf16.gmra.mxu0 %v6937
        %v7355 = vpop.f32.mrf.mxu0
        %v7356 = vadd.f32 %v7267, %v7355
        %v7357 = vpop.f32.mrf.mxu0
        %v7358 = vadd.f32 %v7269, %v7357
        %7359 = vmatmul.bf16.gmra.mxu0 %v6940
        %v7360 = vpop.f32.mrf.mxu0
        %v7361 = vadd.f32 %v7272, %v7360
        %v7362 = vpop.f32.mrf.mxu0
        %v7363 = vadd.f32 %v7274, %v7362
        %7364 = vmatmul.bf16.gmra.mxu0 %v6943
        %v7365 = vpop.f32.mrf.mxu0
        %v7366 = vadd.f32 %v7277, %v7365
        %v7367 = vpop.f32.mrf.mxu0
        %v7368 = vadd.f32 %v7279, %v7367
        %7369 = vmatmul.bf16.gmra.mxu0 %v6946
        %v7370 = vpop.f32.mrf.mxu0
        %v7371 = vadd.f32 %v7282, %v7370
        %v7372 = vpop.f32.mrf.mxu0
        %v7373 = vadd.f32 %v7284, %v7372
        %7374 = vmatmul.bf16.gmra.mxu0 %v6949
        %v7375 = vpop.f32.mrf.mxu0
        %v7376 = vadd.f32 %v7287, %v7375
        %v7377 = vpop.f32.mrf.mxu0
        %v7378 = vadd.f32 %v7289, %v7377
        %7379 = vmatmul.bf16.gmra.mxu0 %v6952
        %v7380 = vpop.f32.mrf.mxu0
        %v7381 = vadd.f32 %v7292, %v7380
        %v7382 = vpop.f32.mrf.mxu0
        %v7383 = vadd.f32 %v7294, %v7382
        %7384 = vmatmul.bf16.gmra.mxu0 %v6955
        %v7385 = vpop.f32.mrf.mxu0
        %v7386 = vadd.f32 %v7297, %v7385
        %v7387 = vpop.f32.mrf.mxu0
        %v7388 = vadd.f32 %v7299, %v7387
        %7389 = vmatmul.bf16.gmra.mxu0 %v6958
        %v7390 = vpop.f32.mrf.mxu0
        %v7391 = vadd.f32 %v7302, %v7390
        %v7392 = vpop.f32.mrf.mxu0
        %v7393 = vadd.f32 %v7304, %v7392
        %7394 = vmatmul.bf16.gmra.mxu0 %v6961
        %v7395 = vpop.f32.mrf.mxu0
        %v7396 = vadd.f32 %v7307, %v7395
        %v7397 = vpop.f32.mrf.mxu0
        %v7398 = vadd.f32 %v7309, %v7397
        %7399 = vmatmul.bf16.gmra.mxu0 %v6964
        %v7400 = vpop.f32.mrf.mxu0
        %v7401 = vadd.f32 %v7312, %v7400
        %v7402 = vpop.f32.mrf.mxu0
        %v7403 = vadd.f32 %v7314, %v7402
        %7404 = vmatmul.bf16.gmra.mxu0 %v6967
        %v7405 = vpop.f32.mrf.mxu0
        %v7406 = vadd.f32 %v7317, %v7405
        %v7407 = vpop.f32.mrf.mxu0
        %v7408 = vadd.f32 %v7319, %v7407
        %7409 = vmatmul.bf16.gmra.mxu0 %v6970
        %v7410 = vpop.f32.mrf.mxu0
        %v7411 = vadd.f32 %v7322, %v7410
        %v7412 = vpop.f32.mrf.mxu0
        %v7413 = vadd.f32 %v7324, %v7412
        %7414 = vmatmul.bf16.gmra.mxu0 %v6973
        %v7415 = vpop.f32.mrf.mxu0
        %v7416 = vadd.f32 %v7327, %v7415
        %v7417 = vpop.f32.mrf.mxu0
        %v7418 = vadd.f32 %v7329, %v7417
        %7419 = vdwg.mxu0
        %v7420 = vld [vmem:[%s296] sm:$0xf]
        %v7421 = vld [vmem:[%s296 + $0x4] sm:$0xf]
        %v7422 = vld [vmem:[%s296 + $0x8] sm:$0xf]
        %v7423 = vld [vmem:[%s296 + $0xc] sm:$0xf]
        %v7424 = vld [vmem:[%s296 + $0x10] sm:$0xf]
        %v7425 = vld [vmem:[%s296 + $0x14] sm:$0xf]
        %v7426 = vld [vmem:[%s296 + $0x18] sm:$0xf]
        %v7427 = vld [vmem:[%s296 + $0x1c] sm:$0xf]
        %v7428 = vld [vmem:[%s296 + $0x20] sm:$0xf]
        %v7429 = vld [vmem:[%s296 + $0x24] sm:$0xf]
        %v7430 = vld [vmem:[%s296 + $0x28] sm:$0xf]
        %v7431 = vld [vmem:[%s296 + $0x2c] sm:$0xf]
        %v7432 = vld [vmem:[%s296 + $0x30] sm:$0xf]
        %v7433 = vld [vmem:[%s296 + $0x34] sm:$0xf]
        %v7434 = vld [vmem:[%s296 + $0x38] sm:$0xf]
        %v7435 = vld [vmem:[%s296 + $0x3c] sm:$0xf]
        %v7436 = vld [vmem:[%s296 + $0x40] sm:$0xf]
        %v7437 = vld [vmem:[%s296 + $0x44] sm:$0xf]
        %v7438 = vld [vmem:[%s296 + $0x48] sm:$0xf]
        %v7439 = vld [vmem:[%s296 + $0x4c] sm:$0xf]
        %v7440 = vld [vmem:[%s296 + $0x50] sm:$0xf]
        %v7441 = vld [vmem:[%s296 + $0x54] sm:$0xf]
        %v7442 = vld [vmem:[%s296 + $0x58] sm:$0xf]
        %v7443 = vld [vmem:[%s296 + $0x5c] sm:$0xf]
        %v7444 = vld [vmem:[%s296 + $0x60] sm:$0xf]
        %v7445 = vld [vmem:[%s296 + $0x64] sm:$0xf]
        %v7446 = vld [vmem:[%s296 + $0x68] sm:$0xf]
        %v7447 = vld [vmem:[%s296 + $0x6c] sm:$0xf]
        %v7448 = vld [vmem:[%s296 + $0x70] sm:$0xf]
        %v7449 = vld [vmem:[%s296 + $0x74] sm:$0xf]
        %v7450 = vld [vmem:[%s296 + $0x78] sm:$0xf]
        %v7451 = vld [vmem:[%s296 + $0x7c] sm:$0xf]
        %v7452 = vunpack.c.l.bf16 %v7420
        %v7453 = vunpack.c.l.bf16 %v7421
        %v7454 = vunpack.c.l.bf16 %v7422
        %v7455 = vunpack.c.l.bf16 %v7423
        %v7456 = vunpack.c.l.bf16 %v7424
        %v7457 = vunpack.c.l.bf16 %v7425
        %v7458 = vunpack.c.l.bf16 %v7426
        %v7459 = vunpack.c.l.bf16 %v7427
        %v7460 = vunpack.c.l.bf16 %v7428
        %v7461 = vunpack.c.l.bf16 %v7429
        %v7462 = vunpack.c.l.bf16 %v7430
        %v7463 = vunpack.c.l.bf16 %v7431
        %v7464 = vunpack.c.l.bf16 %v7432
        %v7465 = vunpack.c.l.bf16 %v7433
        %v7466 = vunpack.c.l.bf16 %v7434
        %v7467 = vunpack.c.l.bf16 %v7435
        %v7468 = vunpack.c.l.bf16 %v7436
        %v7469 = vunpack.c.l.bf16 %v7437
        %v7470 = vunpack.c.l.bf16 %v7438
        %v7471 = vunpack.c.l.bf16 %v7439
        %v7472 = vunpack.c.l.bf16 %v7440
        %v7473 = vunpack.c.l.bf16 %v7441
        %v7474 = vunpack.c.l.bf16 %v7442
        %v7475 = vunpack.c.l.bf16 %v7443
        %v7476 = vunpack.c.l.bf16 %v7444
        %v7477 = vunpack.c.l.bf16 %v7445
        %v7478 = vunpack.c.l.bf16 %v7446
        %v7479 = vunpack.c.l.bf16 %v7447
        %v7480 = vunpack.c.l.bf16 %v7448
        %v7481 = vunpack.c.l.bf16 %v7449
        %v7482 = vunpack.c.l.bf16 %v7450
        %v7483 = vunpack.c.l.bf16 %v7451
        %v7484 = vadd.f32 %v7341, %v7452
        %v7485 = vadd.f32 %v7343, %v7453
        %v7486 = vadd.f32 %v7346, %v7454
        %v7487 = vadd.f32 %v7348, %v7455
        %v7488 = vadd.f32 %v7351, %v7456
        %v7489 = vadd.f32 %v7353, %v7457
        %v7490 = vadd.f32 %v7356, %v7458
        %v7491 = vadd.f32 %v7358, %v7459
        %v7492 = vadd.f32 %v7361, %v7460
        %v7493 = vadd.f32 %v7363, %v7461
        %v7494 = vadd.f32 %v7366, %v7462
        %v7495 = vadd.f32 %v7368, %v7463
        %v7496 = vadd.f32 %v7371, %v7464
        %v7497 = vadd.f32 %v7373, %v7465
        %v7498 = vadd.f32 %v7376, %v7466
        %v7499 = vadd.f32 %v7378, %v7467
        %v7500 = vadd.f32 %v7381, %v7468
        %v7501 = vadd.f32 %v7383, %v7469
        %v7502 = vadd.f32 %v7386, %v7470
        %v7503 = vadd.f32 %v7388, %v7471
        %v7504 = vadd.f32 %v7391, %v7472
        %v7505 = vadd.f32 %v7393, %v7473
        %v7506 = vadd.f32 %v7396, %v7474
        %v7507 = vadd.f32 %v7398, %v7475
        %v7508 = vadd.f32 %v7401, %v7476
        %v7509 = vadd.f32 %v7403, %v7477
        %v7510 = vadd.f32 %v7406, %v7478
        %v7511 = vadd.f32 %v7408, %v7479
        %v7512 = vadd.f32 %v7411, %v7480
        %v7513 = vadd.f32 %v7413, %v7481
        %v7514 = vadd.f32 %v7416, %v7482
        %v7515 = vadd.f32 %v7418, %v7483
        %v7516 = vmax.f32 %v7484, 0.0
        %v7517 = vmax.f32 %v7485, 0.0
        %v7518 = vmax.f32 %v7486, 0.0
        %v7519 = vmax.f32 %v7487, 0.0
        %v7520 = vmax.f32 %v7488, 0.0
        %v7521 = vmax.f32 %v7489, 0.0
        %v7522 = vmax.f32 %v7490, 0.0
        %v7523 = vmax.f32 %v7491, 0.0
        %v7524 = vmax.f32 %v7492, 0.0
        %v7525 = vmax.f32 %v7493, 0.0
        %v7526 = vmax.f32 %v7494, 0.0
        %v7527 = vmax.f32 %v7495, 0.0
        %v7528 = vmax.f32 %v7496, 0.0
        %v7529 = vmax.f32 %v7497, 0.0
        %v7530 = vmax.f32 %v7498, 0.0
        %v7531 = vmax.f32 %v7499, 0.0
        %v7532 = vmax.f32 %v7500, 0.0
        %v7533 = vmax.f32 %v7501, 0.0
        %v7534 = vmax.f32 %v7502, 0.0
        %v7535 = vmax.f32 %v7503, 0.0
        %v7536 = vmax.f32 %v7504, 0.0
        %v7537 = vmax.f32 %v7505, 0.0
        %v7538 = vmax.f32 %v7506, 0.0
        %v7539 = vmax.f32 %v7507, 0.0
        %v7540 = vmax.f32 %v7508, 0.0
        %v7541 = vmax.f32 %v7509, 0.0
        %v7542 = vmax.f32 %v7510, 0.0
        %v7543 = vmax.f32 %v7511, 0.0
        %v7544 = vmax.f32 %v7512, 0.0
        %v7545 = vmax.f32 %v7513, 0.0
        %v7546 = vmax.f32 %v7514, 0.0
        %v7547 = vmax.f32 %v7515, 0.0
        %7548 = vst.msk [vmem:[%s291] sm:$0xff] %vm4141, %v7516
        %7549 = vst.msk [vmem:[%s291 + $0x8] sm:$0xff] %vm4141, %v7517
        %7550 = vst.msk [vmem:[%s291 + $0x10] sm:$0xff] %vm4141, %v7518
        %7551 = vst.msk [vmem:[%s291 + $0x18] sm:$0xff] %vm4141, %v7519
        %7552 = vst.msk [vmem:[%s291 + $0x20] sm:$0xff] %vm4141, %v7520
        %7553 = vst.msk [vmem:[%s291 + $0x28] sm:$0xff] %vm4141, %v7521
        %7554 = vst.msk [vmem:[%s291 + $0x30] sm:$0xff] %vm4141, %v7522
        %7555 = vst.msk [vmem:[%s291 + $0x38] sm:$0xff] %vm4141, %v7523
        %7556 = vst.msk [vmem:[%s291 + $0x40] sm:$0xff] %vm4141, %v7524
        %7557 = vst.msk [vmem:[%s291 + $0x48] sm:$0xff] %vm4141, %v7525
        %7558 = vst.msk [vmem:[%s291 + $0x50] sm:$0xff] %vm4141, %v7526
        %7559 = vst.msk [vmem:[%s291 + $0x58] sm:$0xff] %vm4141, %v7527
        %7560 = vst.msk [vmem:[%s291 + $0x60] sm:$0xff] %vm4141, %v7528
        %7561 = vst.msk [vmem:[%s291 + $0x68] sm:$0xff] %vm4141, %v7529
        %7562 = vst.msk [vmem:[%s291 + $0x70] sm:$0xff] %vm4141, %v7530
        %7563 = vst.msk [vmem:[%s291 + $0x78] sm:$0xff] %vm4141, %v7531
        %7564 = vst.msk [vmem:[%s291 + $0x80] sm:$0xff] %vm4141, %v7532
        %7565 = vst.msk [vmem:[%s291 + $0x88] sm:$0xff] %vm4141, %v7533
        %7566 = vst.msk [vmem:[%s291 + $0x90] sm:$0xff] %vm4141, %v7534
        %7567 = vst.msk [vmem:[%s291 + $0x98] sm:$0xff] %vm4141, %v7535
        %7568 = vst.msk [vmem:[%s291 + $0xa0] sm:$0xff] %vm4141, %v7536
        %7569 = vst.msk [vmem:[%s291 + $0xa8] sm:$0xff] %vm4141, %v7537
        %7570 = vst.msk [vmem:[%s291 + $0xb0] sm:$0xff] %vm4141, %v7538
        %7571 = vst.msk [vmem:[%s291 + $0xb8] sm:$0xff] %vm4141, %v7539
        %7572 = vst.msk [vmem:[%s291 + $0xc0] sm:$0xff] %vm4141, %v7540
        %7573 = vst.msk [vmem:[%s291 + $0xc8] sm:$0xff] %vm4141, %v7541
        %7574 = vst.msk [vmem:[%s291 + $0xd0] sm:$0xff] %vm4141, %v7542
        %7575 = vst.msk [vmem:[%s291 + $0xd8] sm:$0xff] %vm4141, %v7543
        %7576 = vst.msk [vmem:[%s291 + $0xe0] sm:$0xff] %vm4141, %v7544
        %7577 = vst.msk [vmem:[%s291 + $0xe8] sm:$0xff] %vm4141, %v7545
        %7578 = vst.msk [vmem:[%s291 + $0xf0] sm:$0xff] %vm4141, %v7546
        %7579 = vst.msk [vmem:[%s291 + $0xf8] sm:$0xff] %vm4141, %v7547
        %s7580 = sand.u32 %s161, 1
        %s7581 = scalar_lea.sflag [#allocation6], %s7580
        %s7582 = sand.u32 %s161, 1
        %s7583 = smul.addr %s7582, 256
        %s7584 = scalar_lea.vmem [#allocation10], %s7583
        // Predicated region
        $region57: #{basic_block_forward.1} parent=43 // pred_check
          %p7585 = pneg %p171
        $region58: #{basic_block_forward.1} parent=43 // pred_check_branch
          %7587 = sbr.rel (%p7585) target = $region60
        $region59: #{basic_block_forward.1} parent=43 // pred_region
          %s7588 = smul.u32 32, %s22
          %7590 = vsyncadd %s7581, 0
          %s7591 = smul.addr %s7588, 8
          %s7592 = scalar_lea.hbm %s6, %s7591
          %s7593 = sshll.u32 %s7584, 4
          %s7594 = int_to_ptr.vmem [resolvable:$true] %s7593
          %s7595 = sshll.u32 %s7592, 4
          %s7596 = int_to_ptr.hbm [resolvable:$true] %s7595
          %7601 = dma.vmem_to_hbm [thread:$0]  %s7594, 4096, %s7596, %s7581, 128, 128, 8
        $region60: #{basic_block_forward.1} parent=43 // pred_fallthru
          _
      $region44: #{basic_block_forward.1} parent=5 // pred_fallthru
        _
      %p7602 = scmp.le.s32.totalorder 2, %s17
      // Predicated region
      $region61: #{basic_block_forward.1} parent=5 // pred_check
        %p7603 = pneg %p7602
      $region62: #{basic_block_forward.1} parent=5 // pred_check_branch
        %7605 = sbr.rel (%p7603) target = $region64
      $region63: #{basic_block_forward.1} parent=5 // pred_region
        %s7606 = ssub.s32 %s17, 2
        // Predicated region
        $region65: #{basic_block_forward.1} parent=63 // pred_check
          %p7607 = pneg %p177
        $region66: #{basic_block_forward.1} parent=63 // pred_check_branch
          %7609 = sbr.rel (%p7607) target = $region68
        $region67: #{basic_block_forward.1} parent=63 // pred_region
          %s7610 = sand.u32 %s162, 1
          %s7611 = scalar_lea.sflag [#allocation6], %s7610
          %s7612 = sand.u32 %s162, 1
          %s7613 = smul.addr %s7612, 256
          %s7614 = scalar_lea.vmem [#allocation10], %s7613
          %7616 = dma.done %s7611, 4096
        $region68: #{basic_block_forward.1} parent=63 // pred_fallthru
          _
      $region64: #{basic_block_forward.1} parent=5 // pred_fallthru
        _
    $region6: #{basic_block_forward.1} parent=1 // loop_footer
      %s21 = sadd.s32 1, %s17
    $region7: #{basic_block_forward.1} parent=1 // loop_footer_branch
      %16 = sbr.rel target = $region3
    $region8: #{basic_block_forward.1} parent=1 // loop_exit
      _
    %7617 = vsyncpa [#allocation5], 1
    %s7618 = scalar_lea.sflag [#allocation5], 1
    %7619 = vsyncpa %s7618, 1
    %7620 = vsyncpa [#allocation8], 1
    %7621 = vsyncpa [#allocation6], 1
    %s7622 = scalar_lea.sflag [#allocation6], 1
    %7623 = vsyncpa %s7622, 1

</llo_original>
